<compile_context>
chip_gen: v7x
topology: tpu7x:2x2x1
jax: 0.10.0
libtpu: 0.0.40
codegen_flags: <defaults>
</compile_context>

<pallas_src>
import functools

import jax
import jax.numpy as jnp
from jax.experimental import pallas as pl
from jax.experimental.pallas import tpu as pltpu

# TODO(synk): verify liftreg convBlock/FullyConnectBlock LeakyReLU slope (0.2 assumed).
LEAKY_SLOPE = 0.2
ENC_FILTERS = [16, 32, 32, 32, 32, 32]
CONV_STRIDES = [1, 2, 2, 2, 2, 2]   # first conv stride=1, rest stride=2 (as in __init__)


# ---------------------------------------------------------------------------
# Pallas kernel 1: fused (M,K)@(K,N) + bias (+ LeakyReLU)
#   bf16 MXU operands, f32 accumulate + f32 epilogue, out dtype selectable
# ---------------------------------------------------------------------------
def _linear_kernel(x_ref, w_ref, b_ref, o_ref, *, act):
    acc = jnp.dot(x_ref[...], w_ref[...], preferred_element_type=jnp.float32)
    acc = acc + b_ref[...]
    if act == "leaky_relu":
        acc = jnp.where(acc >= 0, acc, LEAKY_SLOPE * acc)
    o_ref[...] = acc.astype(o_ref.dtype)


def pallas_linear(x, w, b, act=None, out_dtype=jnp.float32, tile_m=1024):
    """x:(M,K)  w:(K,N)  b:(N,)  ->  (M,N) in out_dtype; bf16 matmul on the MXU."""
    M, K = x.shape
    Kw, N = w.shape
    assert K == Kw
    x = x.astype(jnp.bfloat16)
    w = w.astype(jnp.bfloat16)
    b = b.astype(jnp.float32).reshape(1, N)

    Mp8 = ((M + 7) // 8) * 8
    if Mp8 <= tile_m:
        # Small M: still split into 2 grid steps when large enough so both
        # TensorCores (v7x) can take work on the "parallel" axis.
        tm = ((Mp8 // 2 + 7) // 8) * 8 if Mp8 >= 512 else Mp8
    else:
        tm = tile_m
    Mp = ((M + tm - 1) // tm) * tm
    xp = x if Mp == M else jnp.pad(x, ((0, Mp - M), (0, 0)))

    out = pl.pallas_call(
        functools.partial(_linear_kernel, act=act),
        out_shape=jax.ShapeDtypeStruct((Mp, N), out_dtype),
        grid=(Mp // tm,),
        in_specs=[
            pl.BlockSpec((tm, K), lambda i: (i, 0)),
            pl.BlockSpec((K, N), lambda i: (0, 0)),
            pl.BlockSpec((1, N), lambda i: (0, 0)),
        ],
        out_specs=pl.BlockSpec((tm, N), lambda i: (i, 0)),
        compiler_params=pltpu.CompilerParams(
            dimension_semantics=("parallel",)),
    )(xp, w, b)
    return out[:M]


# ---------------------------------------------------------------------------
# Pallas kernel 2: fused FC1 -> FC2 -> FC3 -> PCA linear (single pallas_call)
# ---------------------------------------------------------------------------
def _head_kernel(x_ref, w1_ref, b1_ref, w2_ref, b2_ref, w3_ref, b3_ref,
                 wp_ref, bp_ref, coef_ref, disp_ref):
    def leaky(a):
        return jnp.where(a >= 0, a, LEAKY_SLOPE * a)

    h = x_ref[...]                                                  # (Mp, flat) bf16
    h = leaky(jnp.dot(h, w1_ref[...], preferred_element_type=jnp.float32) + b1_ref[...])
    h = leaky(jnp.dot(h.astype(jnp.bfloat16), w2_ref[...],
                      preferred_element_type=jnp.float32) + b2_ref[...])
    c = jnp.dot(h.astype(jnp.bfloat16), w3_ref[...],
                preferred_element_type=jnp.float32) + b3_ref[...]   # latent coefs (no act)
    coef_ref[...] = c
    # Final PCA linear kept fully in f32 (K = latent_dim is tiny) to preserve
    # displacement-field numerics.
    disp_ref[...] = jnp.dot(c, wp_ref[...], preferred_element_type=jnp.float32) + bp_ref[...]


def fused_head(params, xflat):
    """Three FullyConnect layers + PCA linear fused into one kernel launch."""
    B, flat = xflat.shape
    (w1, b1), (w2, b2), (w3, b3) = params["fcs"]
    wp, bp = params["pca_vectors_T"], params["pca_mean"]
    latent = w3.shape[1]
    n_out = wp.shape[1]

    Mp = max(8, ((B + 7) // 8) * 8)
    xp = jnp.pad(xflat.astype(jnp.bfloat16), ((0, Mp - B), (0, 0)))

    def full(shape):
        return pl.BlockSpec(tuple(shape), lambda: (0,) * len(shape))

    coefs, disp = pl.pallas_call(
        _head_kernel,
        out_shape=(jax.ShapeDtypeStruct((Mp, latent), jnp.float32),
                   jax.ShapeDtypeStruct((Mp, n_out), jnp.float32)),
        in_specs=[
            full((Mp, flat)),
            full(w1.shape), full((1, w1.shape[1])),
            full(w2.shape), full((1, w2.shape[1])),
            full(w3.shape), full((1, w3.shape[1])),
            full(wp.shape), full((1, n_out)),
        ],
        out_specs=(full((Mp, latent)), full((Mp, n_out))),
    )(xp,
      w1.astype(jnp.bfloat16), b1.reshape(1, -1).astype(jnp.float32),
      w2.astype(jnp.bfloat16), b2.reshape(1, -1).astype(jnp.float32),
      w3.astype(jnp.bfloat16), b3.reshape(1, -1).astype(jnp.float32),
      wp.astype(jnp.float32), bp.reshape(1, -1).astype(jnp.float32))
    return coefs[:B], disp[:B]


# ---------------------------------------------------------------------------
# Conv3d (kernel 3, padding 1) as channels-last bf16 im2col + Pallas matmul
# (= convBlock: Conv3d + LeakyReLU)
# ---------------------------------------------------------------------------
def conv3d_block_cl(x, weight, bias, stride, act="leaky_relu"):
    # x: (B, D, W, H, C) channels-last; weight: (Cout, Cin, 3, 3, 3); bias: (Cout,)
    B, D, W, H, C = x.shape
    Cout = weight.shape[0]
    xp = jnp.pad(x.astype(jnp.bfloat16), ((0, 0), (1, 1), (1, 1), (1, 1), (0, 0)))
    oD = (D - 1) // stride + 1
    oW = (W - 1) // stride + 1
    oH = (H - 1) // stride + 1

    # TODO(synk): the 27 taps are still materialized (bf16, channels-last, no
    # transposes); a direct-conv Pallas kernel reading halo'd slabs would remove
    # the remaining 27x copy entirely.
    cols = []
    for kd in range(3):
        for kw in range(3):
            for kh in range(3):
                cols.append(xp[:, kd: kd + (oD - 1) * stride + 1: stride,
                                 kw: kw + (oW - 1) * stride + 1: stride,
                                 kh: kh + (oH - 1) * stride + 1: stride, :])
    # concat along channel axis -> columns ordered tap-major / channel-minor
    patches = jnp.concatenate(cols, axis=-1)           # (B, oD, oW, oH, 27*C)
    mat = patches.reshape(B * oD * oW * oH, 27 * C)
    # weight -> (kd,kw,kh,Cin,Cout) to match tap-major / channel-minor patch order
    wmat = jnp.transpose(weight, (2, 3, 4, 1, 0)).reshape(27 * C, Cout)
    out = pallas_linear(mat, wmat, bias, act=act, out_dtype=jnp.bfloat16)
    return out.reshape(B, oD, oW, oH, Cout)            # channels-last, no transpose


# ---------------------------------------------------------------------------
# Grid-sampling glue (F.grid_sample, align_corners=True, padding_mode='zeros')
# ---------------------------------------------------------------------------
def _grid_sample_2d_one(img, gx, gy):
    # img: (C, Hin, Win); gx/gy: (Ho, Wo) in [-1, 1]; x -> Win, y -> Hin
    C, Hin, Win = img.shape
    x = (gx + 1.0) * 0.5 * (Win - 1)
    y = (gy + 1.0) * 0.5 * (Hin - 1)
    x0 = jnp.floor(x)
    y0 = jnp.floor(y)

    def tap(ix, iy, wgt):
        valid = (ix >= 0) & (ix <= Win - 1) & (iy >= 0) & (iy <= Hin - 1)
        ixc = jnp.clip(ix, 0, Win - 1).astype(jnp.int32)
        iyc = jnp.clip(iy, 0, Hin - 1).astype(jnp.int32)
        return img[:, iyc, ixc] * (wgt * valid)[None]

    fx, fy = x - x0, y - y0
    return (tap(x0, y0, (1 - fx) * (1 - fy)) +
            tap(x0 + 1, y0, fx * (1 - fy)) +
            tap(x0, y0 + 1, (1 - fx) * fy) +
            tap(x0 + 1, y0 + 1, fx * fy))


def _grid_sample_3d_one(vol, gx, gy, gz):
    # vol: (C, Din, Hin, Win); gx -> Win, gy -> Hin, gz -> Din
    C, Din, Hin, Win = vol.shape
    x = (gx + 1.0) * 0.5 * (Win - 1)
    y = (gy + 1.0) * 0.5 * (Hin - 1)
    z = (gz + 1.0) * 0.5 * (Din - 1)
    x0, y0, z0 = jnp.floor(x), jnp.floor(y), jnp.floor(z)
    fx, fy, fz = x - x0, y - y0, z - z0

    def tap(ix, iy, iz, wgt):
        valid = ((ix >= 0) & (ix <= Win - 1) & (iy >= 0) & (iy <= Hin - 1)
                 & (iz >= 0) & (iz <= Din - 1))
        ixc = jnp.clip(ix, 0, Win - 1).astype(jnp.int32)
        iyc = jnp.clip(iy, 0, Hin - 1).astype(jnp.int32)
        izc = jnp.clip(iz, 0, Din - 1).astype(jnp.int32)
        return vol[:, izc, iyc, ixc] * (wgt * valid)[None]

    out = jnp.zeros(vol.shape[:1] + gx.shape, jnp.float32)
    for dx in (0, 1):
        for dy in (0, 1):
            for dz in (0, 1):
                wx = fx if dx else (1.0 - fx)
                wy = fy if dy else (1.0 - fy)
                wz = fz if dz else (1.0 - fz)
                out = out + tap(x0 + dx, y0 + dy, z0 + dz, wx * wy * wz)
    return out


def bilinear_warp(moving, phi):
    """mermaid/liftreg Bilinear(zero_boundary=True, using_scale=True)."""
    src = (moving + 1.0) * 0.5
    gx = phi[:, 2]   # last spatial axis (H) coordinate
    gy = phi[:, 1]   # W coordinate
    gz = phi[:, 0]   # D coordinate
    out = jax.vmap(_grid_sample_3d_one)(src, gx, gy, gz)
    return out * 2.0 - 1.0


def gen_identity_map(img_sz):
    grids = jnp.meshgrid(*[jnp.linspace(-1.0, 1.0, s) for s in img_sz], indexing="ij")
    return jnp.stack(grids, axis=0).astype(jnp.float32)   # (3, D, W, H) in [-1, 1]


# TODO(synk): backproj_grids_with_poses implements real cone-beam back-projection
# geometry from camera poses (external to this module); replaced by a deterministic
# synthetic grid derived from the poses so shapes/semantics of the pipeline match.
def synthetic_backproj_grids(poses, vol_shape):
    w, d, h = vol_shape
    proj_num = poses.shape[1]
    base = jnp.stack(jnp.meshgrid(jnp.linspace(-1.0, 1.0, w),
                                  jnp.linspace(-1.0, 1.0, d),
                                  jnp.linspace(-1.0, 1.0, h), indexing="ij"), -1)
    grids = []
    for p in range(proj_num):
        ang = poses[0, p, 0]
        gx = base[..., 2] * jnp.cos(ang) + base[..., 0] * jnp.sin(ang)
        gy = base[..., 1]
        grids.append(jnp.stack([gx, gy], axis=-1))
    return jnp.stack(grids, axis=0)[None]   # (1, proj_num, w, d, h, 2)


# ---------------------------------------------------------------------------
# Parameters (deterministic synthetic init; shapes follow module __init__)
# ---------------------------------------------------------------------------
def init_params(key, proj_num, latent_dim, img_sz):
    D, W, H = img_sz
    keys = jax.random.split(key, 32)
    ki = 0
    params = {"convs": [], "fcs": []}

    cin = proj_num + 1                       # opt['drr_feature_num'] + 1
    for cout in ENC_FILTERS:
        fan_in = cin * 27
        wk = jax.random.normal(keys[ki], (cout, cin, 3, 3, 3), jnp.float32) / jnp.sqrt(fan_in)
        bk = jax.random.normal(keys[ki + 1], (cout,), jnp.float32) * 0.01
        ki += 2
        params["convs"].append((wk, bk))
        cin = cout

    sD, sW, sH = D, W, H
    for _ in range(len(ENC_FILTERS) - 1):    # five stride-2 convs
        sD = (sD - 1) // 2 + 1
        sW = (sW - 1) // 2 + 1
        sH = (sH - 1) // 2 + 1
    flat = ENC_FILTERS[-1] * sD * sW * sH    # scaled-down analogue of 32*5*5*5

    dims = [flat, 800, 256, latent_dim]
    for i in range(3):
        wk = jax.random.normal(keys[ki], (dims[i], dims[i + 1]), jnp.float32) / jnp.sqrt(dims[i])
        bk = jax.random.normal(keys[ki + 1], (dims[i + 1],), jnp.float32) * 0.01
        ki += 2
        params["fcs"].append((wk, bk))

    n_out = 3 * D * W * H
    params["pca_vectors_T"] = (jax.random.normal(keys[ki], (latent_dim, n_out), jnp.float32)
                               / jnp.sqrt(latent_dim))
    params["pca_mean"] = jax.random.normal(keys[ki + 1], (n_out,), jnp.float32) * 0.01
    params["id_transform"] = gen_identity_map(img_sz)
    return params


# ---------------------------------------------------------------------------
# Forward pass (mirrors model.forward / model._estimate_flow)
# ---------------------------------------------------------------------------
def estimate_flow(params, moving, target_proj, bp_grids):
    B, _, D, W, H = moving.shape
    proj_num, proj_w, proj_h = target_proj.shape[1:]
    w, d, h = D, W, H

    grids = jnp.broadcast_to(bp_grids, (B,) + bp_grids.shape[1:])
    grids = grids.reshape(B * proj_num, w * d, h, 2)
    imgs = target_proj.reshape(B * proj_num, 1, proj_w, proj_h)
    tv = jax.vmap(_grid_sample_2d_one)(imgs, grids[..., 0], grids[..., 1])
    target_volume = tv.reshape(B, proj_num, w, d, h)

    # one NCDHW -> channels-last transpose at the encoder boundary (then none per layer)
    x = jnp.concatenate([moving, target_volume], axis=1)            # (B, 1+proj, D, W, H)
    x = jnp.transpose(x, (0, 2, 3, 4, 1)).astype(jnp.bfloat16)      # (B, D, W, H, C)
    for (wk, bk), stride in zip(params["convs"], CONV_STRIDES):
        x = conv3d_block_cl(x, wk, bk, stride, act="leaky_relu")

    # back to channel-major before Flatten to match nn.Flatten ordering (tiny tensor)
    x = jnp.transpose(x, (0, 4, 1, 2, 3)).reshape(B, -1)
    coefs, disp = fused_head(params, x)                             # FC1->FC2->FC3->PCA fused
    disp_field = disp.reshape(B, 3, D, W, H)
    return coefs, disp_field


def forward(params, inp, bp_grids):
    moving = inp["source"]
    target = inp["target"]
    target_proj = inp["target_proj"]
    if "source_label" in inp:
        moving_cp = (moving + 1) * inp["source_label"] - 1
        target_cp = (target + 1) * inp["target_label"] - 1
    else:
        moving_cp = moving
        target_cp = target

    coefs, disp_field = estimate_flow(params, moving, target_proj, bp_grids)
    deform_field = disp_field + params["id_transform"][None]
    warped_source = bilinear_warp(moving_cp, deform_field)
    return {
        "warped": warped_source,
        "phi": deform_field,
        "params": disp_field,
        "target": target_cp,
        "pca_coefs": coefs,
        "target_proj": target_proj,
        "warped_proj": target_proj,
    }


# ---------------------------------------------------------------------------
if __name__ == "__main__":
    B, D, W, H = 2, 16, 16, 16
    proj_num, proj_w, proj_h = 2, 16, 16
    latent_dim = 8
    img_sz = (D, W, H)

    key = jax.random.PRNGKey(0)
    k1, k2, k3, k4, kp = jax.random.split(key, 5)
    params = init_params(kp, proj_num, latent_dim, img_sz)

    inp = {
        "source": jax.random.uniform(k1, (B, 1, D, W, H), jnp.float32, -1.0, 1.0),
        "target": jax.random.uniform(k2, (B, 1, D, W, H), jnp.float32, -1.0, 1.0),
        "target_proj": jax.random.uniform(k3, (B, proj_num, proj_w, proj_h), jnp.float32, 0.0, 1.0),
        "target_poses": jax.random.uniform(k4, (B, proj_num, 3), jnp.float32, -1.0, 1.0),
    }

    # cached buffer, built once from poses[0:1] (as in the PyTorch module)
    bp_grids = synthetic_backproj_grids(inp["target_poses"][0:1], (D, W, H))

    out = jax.jit(forward)(params, inp, bp_grids)
    out = jax.block_until_ready(out)

    assert out["warped"].shape == (B, 1, D, W, H)
    assert out["phi"].shape == (B, 3, D, W, H)
    assert out["params"].shape == (B, 3, D, W, H)
    assert out["pca_coefs"].shape == (B, latent_dim)
    assert bool(jnp.all(jnp.isfinite(out["warped"])))
    assert bool(jnp.all(jnp.isfinite(out["params"])))
    print("KERNEL_OK")
</pallas_src>

<mosaic_0001>
module attributes {stable_mosaic.version = 11 : i64} {
  func.func private @main(%arg0: i32) attributes {dimension_semantics = [#tpu.dimension_semantics<core_parallel>], iteration_bounds = array<i64: 2>, tpu.core_type = #tpu.core_type<sc_scalar_subcore>, window_params = []} {
    return
  }
}

module attributes {stable_mosaic.version = 11 : i64} {
  func.func private @main(%arg0: i32) attributes {dimension_semantics = [#tpu.dimension_semantics<core_parallel>], iteration_bounds = array<i64: 2>, tpu.core_type = #tpu.core_type<sc_scalar_subcore>, window_params = []} {
    return
  }
}

module attributes {stable_mosaic.version = 11 : i64} {
  func.func @_linear_kernel(%arg0: i32, %arg1: memref<1024x81xbf16, #tpu.memory_space<vmem>>, %arg2: memref<81x16xbf16, #tpu.memory_space<vmem>>, %arg3: memref<1x16xf32, #tpu.memory_space<vmem>>, %arg4: memref<1024x16xbf16, #tpu.memory_space<vmem>>) attributes {dimension_semantics = [#tpu.dimension_semantics<parallel>], iteration_bounds = array<i64: 8>, scalar_prefetch = 0 : i64, scratch_operands = 0 : i64, tpu.core_type = #tpu.core_type<tc>, window_params = [{transform_indices = @transform_0, window_bounds = array<i64: 1024, 81>}, {pipeline_mode = #tpu.pipeline_mode<synchronous>, transform_indices = @transform_1, window_bounds = array<i64: 81, 16>}, {pipeline_mode = #tpu.pipeline_mode<synchronous>, transform_indices = @transform_2, window_bounds = array<i64: 1, 16>}, {transform_indices = @transform_3, window_bounds = array<i64: 1024, 16>}]} {
    %c0 = arith.constant 0 : index
    %c0_0 = arith.constant 0 : index
    %0 = vector.load %arg1[%c0, %c0_0] : memref<1024x81xbf16, #tpu.memory_space<vmem>>, vector<1024x81xbf16>
    %c0_1 = arith.constant 0 : index
    %c0_2 = arith.constant 0 : index
    %1 = vector.load %arg2[%c0_1, %c0_2] : memref<81x16xbf16, #tpu.memory_space<vmem>>, vector<81x16xbf16>
    %cst = arith.constant dense<0.000000e+00> : vector<1024x16xf32>
    %2 = tpu.matmul %0, %1, %cst {dimension_numbers = #tpu.dot_dimension_numbers<[1], [0], [0], [1], [0, 0, 1, 1], [], []>} : vector<1024x81xbf16>, vector<81x16xbf16>, vector<1024x16xf32> -> vector<1024x16xf32>
    %c0_3 = arith.constant 0 : index
    %c0_4 = arith.constant 0 : index
    %3 = vector.load %arg3[%c0_3, %c0_4] : memref<1x16xf32, #tpu.memory_space<vmem>>, vector<1x16xf32>
    %4 = vector.broadcast %3 : vector<1x16xf32> to vector<1024x16xf32>
    %5 = arith.addf %2, %4 : vector<1024x16xf32>
    %cst_5 = arith.constant 0.000000e+00 : f32
    %6 = vector.broadcast %cst_5 : f32 to vector<1024x16xf32>
    %7 = arith.cmpf oge, %5, %6 : vector<1024x16xf32>
    %cst_6 = arith.constant 2.000000e-01 : f32
    %8 = vector.broadcast %cst_6 : f32 to vector<1024x16xf32>
    %9 = arith.mulf %8, %5 : vector<1024x16xf32>
    %10 = arith.select %7, %5, %9 : vector<1024x16xi1>, vector<1024x16xf32>
    %11 = arith.truncf %10 : vector<1024x16xf32> to vector<1024x16xbf16>
    %c0_7 = arith.constant 0 : index
    %c0_8 = arith.constant 0 : index
    %12 = vector.load %arg4[%c0_7, %c0_8] : memref<1024x16xbf16, #tpu.memory_space<vmem>>, vector<1024x16xbf16>
    tpu.vector_store %arg4[%c0_7, %c0_8], %11 {strides = array<i32>} : memref<1024x16xbf16, #tpu.memory_space<vmem>>, vector<1024x16xbf16>,
    return
  }
  func.func @transform_0(%arg0: i32) -> (i32, i32) {
    %c0_i32 = arith.constant 0 : i32
    %c0_i32_0 = arith.constant 0 : i32
    return %arg0, %c0_i32 : i32, i32
  }
  func.func @transform_1(%arg0: i32) -> (i32, i32) {
    %c0_i32 = arith.constant 0 : i32
    %c0_i32_0 = arith.constant 0 : i32
    %c0_i32_1 = arith.constant 0 : i32
    return %c0_i32, %c0_i32_0 : i32, i32
  }
  func.func @transform_2(%arg0: i32) -> (i32, i32) {
    %c0_i32 = arith.constant 0 : i32
    %c0_i32_0 = arith.constant 0 : i32
    %c0_i32_1 = arith.constant 0 : i32
    return %c0_i32, %c0_i32_0 : i32, i32
  }
  func.func @transform_3(%arg0: i32) -> (i32, i32) {
    %c0_i32 = arith.constant 0 : i32
    %c0_i32_0 = arith.constant 0 : i32
    return %arg0, %c0_i32 : i32, i32
  }
}

module attributes {stable_mosaic.version = 11 : i64} {
  func.func @_linear_kernel(%arg0: i32, %arg1: memref<512x432xbf16, #tpu.memory_space<vmem>>, %arg2: memref<432x32xbf16, #tpu.memory_space<vmem>>, %arg3: memref<1x32xf32, #tpu.memory_space<vmem>>, %arg4: memref<512x32xbf16, #tpu.memory_space<vmem>>) attributes {dimension_semantics = [#tpu.dimension_semantics<parallel>], iteration_bounds = array<i64: 2>, scalar_prefetch = 0 : i64, scratch_operands = 0 : i64, tpu.core_type = #tpu.core_type<tc>, window_params = [{transform_indices = @transform_0, window_bounds = array<i64: 512, 432>}, {pipeline_mode = #tpu.pipeline_mode<synchronous>, transform_indices = @transform_1, window_bounds = array<i64: 432, 32>}, {pipeline_mode = #tpu.pipeline_mode<synchronous>, transform_indices = @transform_2, window_bounds = array<i64: 1, 32>}, {transform_indices = @transform_3, window_bounds = array<i64: 512, 32>}]} {
    %c0 = arith.constant 0 : index
    %c0_0 = arith.constant 0 : index
    %0 = vector.load %arg1[%c0, %c0_0] : memref<512x432xbf16, #tpu.memory_space<vmem>>, vector<512x432xbf16>
    %c0_1 = arith.constant 0 : index
    %c0_2 = arith.constant 0 : index
    %1 = vector.load %arg2[%c0_1, %c0_2] : memref<432x32xbf16, #tpu.memory_space<vmem>>, vector<432x32xbf16>
    %cst = arith.constant dense<0.000000e+00> : vector<512x32xf32>
    %2 = tpu.matmul %0, %1, %cst {dimension_numbers = #tpu.dot_dimension_numbers<[1], [0], [0], [1], [0, 0, 1, 1], [], []>} : vector<512x432xbf16>, vector<432x32xbf16>, vector<512x32xf32> -> vector<512x32xf32>
    %c0_3 = arith.constant 0 : index
    %c0_4 = arith.constant 0 : index
    %3 = vector.load %arg3[%c0_3, %c0_4] : memref<1x32xf32, #tpu.memory_space<vmem>>, vector<1x32xf32>
    %4 = vector.broadcast %3 : vector<1x32xf32> to vector<512x32xf32>
    %5 = arith.addf %2, %4 : vector<512x32xf32>
    %cst_5 = arith.constant 0.000000e+00 : f32
    %6 = vector.broadcast %cst_5 : f32 to vector<512x32xf32>
    %7 = arith.cmpf oge, %5, %6 : vector<512x32xf32>
    %cst_6 = arith.constant 2.000000e-01 : f32
    %8 = vector.broadcast %cst_6 : f32 to vector<512x32xf32>
    %9 = arith.mulf %8, %5 : vector<512x32xf32>
    %10 = arith.select %7, %5, %9 : vector<512x32xi1>, vector<512x32xf32>
    %11 = arith.truncf %10 : vector<512x32xf32> to vector<512x32xbf16>
    %c0_7 = arith.constant 0 : index
    %c0_8 = arith.constant 0 : index
    %12 = vector.load %arg4[%c0_7, %c0_8] : memref<512x32xbf16, #tpu.memory_space<vmem>>, vector<512x32xbf16>
    tpu.vector_store %arg4[%c0_7, %c0_8], %11 {strides = array<i32>} : memref<512x32xbf16, #tpu.memory_space<vmem>>, vector<512x32xbf16>,
    return
  }
  func.func @transform_0(%arg0: i32) -> (i32, i32) {
    %c0_i32 = arith.constant 0 : i32
    %c0_i32_0 = arith.constant 0 : i32
    return %arg0, %c0_i32 : i32, i32
  }
  func.func @transform_1(%arg0: i32) -> (i32, i32) {
    %c0_i32 = arith.constant 0 : i32
    %c0_i32_0 = arith.constant 0 : i32
    %c0_i32_1 = arith.constant 0 : i32
    return %c0_i32, %c0_i32_0 : i32, i32
  }
  func.func @transform_2(%arg0: i32) -> (i32, i32) {
    %c0_i32 = arith.constant 0 : i32
    %c0_i32_0 = arith.constant 0 : i32
    %c0_i32_1 = arith.constant 0 : i32
    return %c0_i32, %c0_i32_0 : i32, i32
  }
  func.func @transform_3(%arg0: i32) -> (i32, i32) {
    %c0_i32 = arith.constant 0 : i32
    %c0_i32_0 = arith.constant 0 : i32
    return %arg0, %c0_i32 : i32, i32
  }
}

module attributes {stable_mosaic.version = 11 : i64} {
  func.func @_linear_kernel(%arg0: i32, %arg1: memref<128x864xbf16, #tpu.memory_space<vmem>>, %arg2: memref<864x32xbf16, #tpu.memory_space<vmem>>, %arg3: memref<1x32xf32, #tpu.memory_space<vmem>>, %arg4: memref<128x32xbf16, #tpu.memory_space<vmem>>) attributes {dimension_semantics = [#tpu.dimension_semantics<parallel>], iteration_bounds = array<i64: 1>, scalar_prefetch = 0 : i64, scratch_operands = 0 : i64, tpu.core_type = #tpu.core_type<tc>, window_params = [{transform_indices = @transform_0, window_bounds = array<i64: 128, 864>}, {pipeline_mode = #tpu.pipeline_mode<synchronous>, transform_indices = @transform_1, window_bounds = array<i64: 864, 32>}, {pipeline_mode = #tpu.pipeline_mode<synchronous>, transform_indices = @transform_2, window_bounds = array<i64: 1, 32>}, {transform_indices = @transform_3, window_bounds = array<i64: 128, 32>}]} {
    %c0 = arith.constant 0 : index
    %c0_0 = arith.constant 0 : index
    %0 = vector.load %arg1[%c0, %c0_0] : memref<128x864xbf16, #tpu.memory_space<vmem>>, vector<128x864xbf16>
    %c0_1 = arith.constant 0 : index
    %c0_2 = arith.constant 0 : index
    %1 = vector.load %arg2[%c0_1, %c0_2] : memref<864x32xbf16, #tpu.memory_space<vmem>>, vector<864x32xbf16>
    %cst = arith.constant dense<0.000000e+00> : vector<128x32xf32>
    %2 = tpu.matmul %0, %1, %cst {dimension_numbers = #tpu.dot_dimension_numbers<[1], [0], [0], [1], [0, 0, 1, 1], [], []>} : vector<128x864xbf16>, vector<864x32xbf16>, vector<128x32xf32> -> vector<128x32xf32>
    %c0_3 = arith.constant 0 : index
    %c0_4 = arith.constant 0 : index
    %3 = vector.load %arg3[%c0_3, %c0_4] : memref<1x32xf32, #tpu.memory_space<vmem>>, vector<1x32xf32>
    %4 = vector.broadcast %3 : vector<1x32xf32> to vector<128x32xf32>
    %5 = arith.addf %2, %4 : vector<128x32xf32>
    %cst_5 = arith.constant 0.000000e+00 : f32
    %6 = vector.broadcast %cst_5 : f32 to vector<128x32xf32>
    %7 = arith.cmpf oge, %5, %6 : vector<128x32xf32>
    %cst_6 = arith.constant 2.000000e-01 : f32
    %8 = vector.broadcast %cst_6 : f32 to vector<128x32xf32>
    %9 = arith.mulf %8, %5 : vector<128x32xf32>
    %10 = arith.select %7, %5, %9 : vector<128x32xi1>, vector<128x32xf32>
    %11 = arith.truncf %10 : vector<128x32xf32> to vector<128x32xbf16>
    %c0_7 = arith.constant 0 : index
    %c0_8 = arith.constant 0 : index
    %12 = vector.load %arg4[%c0_7, %c0_8] : memref<128x32xbf16, #tpu.memory_space<vmem>>, vector<128x32xbf16>
    tpu.vector_store %arg4[%c0_7, %c0_8], %11 {strides = array<i32>} : memref<128x32xbf16, #tpu.memory_space<vmem>>, vector<128x32xbf16>,
    return
  }
  func.func @transform_0(%arg0: i32) -> (i32, i32) {
    %c0_i32 = arith.constant 0 : i32
    %c0_i32_0 = arith.constant 0 : i32
    return %arg0, %c0_i32 : i32, i32
  }
  func.func @transform_1(%arg0: i32) -> (i32, i32) {
    %c0_i32 = arith.constant 0 : i32
    %c0_i32_0 = arith.constant 0 : i32
    %c0_i32_1 = arith.constant 0 : i32
    return %c0_i32, %c0_i32_0 : i32, i32
  }
  func.func @transform_2(%arg0: i32) -> (i32, i32) {
    %c0_i32 = arith.constant 0 : i32
    %c0_i32_0 = arith.constant 0 : i32
    %c0_i32_1 = arith.constant 0 : i32
    return %c0_i32, %c0_i32_0 : i32, i32
  }
  func.func @transform_3(%arg0: i32) -> (i32, i32) {
    %c0_i32 = arith.constant 0 : i32
    %c0_i32_0 = arith.constant 0 : i32
    return %arg0, %c0_i32 : i32, i32
  }
}

module attributes {stable_mosaic.version = 11 : i64} {
  func.func @_linear_kernel(%arg0: i32, %arg1: memref<16x864xbf16, #tpu.memory_space<vmem>>, %arg2: memref<864x32xbf16, #tpu.memory_space<vmem>>, %arg3: memref<1x32xf32, #tpu.memory_space<vmem>>, %arg4: memref<16x32xbf16, #tpu.memory_space<vmem>>) attributes {dimension_semantics = [#tpu.dimension_semantics<parallel>], iteration_bounds = array<i64: 1>, scalar_prefetch = 0 : i64, scratch_operands = 0 : i64, tpu.core_type = #tpu.core_type<tc>, window_params = [{transform_indices = @transform_0, window_bounds = array<i64: 16, 864>}, {pipeline_mode = #tpu.pipeline_mode<synchronous>, transform_indices = @transform_1, window_bounds = array<i64: 864, 32>}, {pipeline_mode = #tpu.pipeline_mode<synchronous>, transform_indices = @transform_2, window_bounds = array<i64: 1, 32>}, {transform_indices = @transform_3, window_bounds = array<i64: 16, 32>}]} {
    %c0 = arith.constant 0 : index
    %c0_0 = arith.constant 0 : index
    %0 = vector.load %arg1[%c0, %c0_0] : memref<16x864xbf16, #tpu.memory_space<vmem>>, vector<16x864xbf16>
    %c0_1 = arith.constant 0 : index
    %c0_2 = arith.constant 0 : index
    %1 = vector.load %arg2[%c0_1, %c0_2] : memref<864x32xbf16, #tpu.memory_space<vmem>>, vector<864x32xbf16>
    %cst = arith.constant dense<0.000000e+00> : vector<16x32xf32>
    %2 = tpu.matmul %0, %1, %cst {dimension_numbers = #tpu.dot_dimension_numbers<[1], [0], [0], [1], [0, 0, 1, 1], [], []>} : vector<16x864xbf16>, vector<864x32xbf16>, vector<16x32xf32> -> vector<16x32xf32>
    %c0_3 = arith.constant 0 : index
    %c0_4 = arith.constant 0 : index
    %3 = vector.load %arg3[%c0_3, %c0_4] : memref<1x32xf32, #tpu.memory_space<vmem>>, vector<1x32xf32>
    %4 = vector.broadcast %3 : vector<1x32xf32> to vector<16x32xf32>
    %5 = arith.addf %2, %4 : vector<16x32xf32>
    %cst_5 = arith.constant 0.000000e+00 : f32
    %6 = vector.broadcast %cst_5 : f32 to vector<16x32xf32>
    %7 = arith.cmpf oge, %5, %6 : vector<16x32xf32>
    %cst_6 = arith.constant 2.000000e-01 : f32
    %8 = vector.broadcast %cst_6 : f32 to vector<16x32xf32>
    %9 = arith.mulf %8, %5 : vector<16x32xf32>
    %10 = arith.select %7, %5, %9 : vector<16x32xi1>, vector<16x32xf32>
    %11 = arith.truncf %10 : vector<16x32xf32> to vector<16x32xbf16>
    %c0_7 = arith.constant 0 : index
    %c0_8 = arith.constant 0 : index
    %12 = vector.load %arg4[%c0_7, %c0_8] : memref<16x32xbf16, #tpu.memory_space<vmem>>, vector<16x32xbf16>
    tpu.vector_store %arg4[%c0_7, %c0_8], %11 {strides = array<i32>} : memref<16x32xbf16, #tpu.memory_space<vmem>>, vector<16x32xbf16>,
    return
  }
  func.func @transform_0(%arg0: i32) -> (i32, i32) {
    %c0_i32 = arith.constant 0 : i32
    %c0_i32_0 = arith.constant 0 : i32
    return %arg0, %c0_i32 : i32, i32
  }
  func.func @transform_1(%arg0: i32) -> (i32, i32) {
    %c0_i32 = arith.constant 0 : i32
    %c0_i32_0 = arith.constant 0 : i32
    %c0_i32_1 = arith.constant 0 : i32
    return %c0_i32, %c0_i32_0 : i32, i32
  }
  func.func @transform_2(%arg0: i32) -> (i32, i32) {
    %c0_i32 = arith.constant 0 : i32
    %c0_i32_0 = arith.constant 0 : i32
    %c0_i32_1 = arith.constant 0 : i32
    return %c0_i32, %c0_i32_0 : i32, i32
  }
  func.func @transform_3(%arg0: i32) -> (i32, i32) {
    %c0_i32 = arith.constant 0 : i32
    %c0_i32_0 = arith.constant 0 : i32
    return %arg0, %c0_i32 : i32, i32
  }
}

module attributes {stable_mosaic.version = 11 : i64} {
  func.func @_linear_kernel(%arg0: i32, %arg1: memref<8x864xbf16, #tpu.memory_space<vmem>>, %arg2: memref<864x32xbf16, #tpu.memory_space<vmem>>, %arg3: memref<1x32xf32, #tpu.memory_space<vmem>>, %arg4: memref<8x32xbf16, #tpu.memory_space<vmem>>) attributes {dimension_semantics = [#tpu.dimension_semantics<parallel>], iteration_bounds = array<i64: 1>, scalar_prefetch = 0 : i64, scratch_operands = 0 : i64, tpu.core_type = #tpu.core_type<tc>, window_params = [{transform_indices = @transform_0, window_bounds = array<i64: 8, 864>}, {pipeline_mode = #tpu.pipeline_mode<synchronous>, transform_indices = @transform_1, window_bounds = array<i64: 864, 32>}, {pipeline_mode = #tpu.pipeline_mode<synchronous>, transform_indices = @transform_2, window_bounds = array<i64: 1, 32>}, {transform_indices = @transform_3, window_bounds = array<i64: 8, 32>}]} {
    %c0 = arith.constant 0 : index
    %c0_0 = arith.constant 0 : index
    %0 = vector.load %arg1[%c0, %c0_0] : memref<8x864xbf16, #tpu.memory_space<vmem>>, vector<8x864xbf16>
    %c0_1 = arith.constant 0 : index
    %c0_2 = arith.constant 0 : index
    %1 = vector.load %arg2[%c0_1, %c0_2] : memref<864x32xbf16, #tpu.memory_space<vmem>>, vector<864x32xbf16>
    %cst = arith.constant dense<0.000000e+00> : vector<8x32xf32>
    %2 = tpu.matmul %0, %1, %cst {dimension_numbers = #tpu.dot_dimension_numbers<[1], [0], [0], [1], [0, 0, 1, 1], [], []>} : vector<8x864xbf16>, vector<864x32xbf16>, vector<8x32xf32> -> vector<8x32xf32>
    %c0_3 = arith.constant 0 : index
    %c0_4 = arith.constant 0 : index
    %3 = vector.load %arg3[%c0_3, %c0_4] : memref<1x32xf32, #tpu.memory_space<vmem>>, vector<1x32xf32>
    %4 = vector.broadcast %3 : vector<1x32xf32> to vector<8x32xf32>
    %5 = arith.addf %2, %4 : vector<8x32xf32>
    %cst_5 = arith.constant 0.000000e+00 : f32
    %6 = vector.broadcast %cst_5 : f32 to vector<8x32xf32>
    %7 = arith.cmpf oge, %5, %6 : vector<8x32xf32>
    %cst_6 = arith.constant 2.000000e-01 : f32
    %8 = vector.broadcast %cst_6 : f32 to vector<8x32xf32>
    %9 = arith.mulf %8, %5 : vector<8x32xf32>
    %10 = arith.select %7, %5, %9 : vector<8x32xi1>, vector<8x32xf32>
    %11 = arith.truncf %10 : vector<8x32xf32> to vector<8x32xbf16>
    %c0_7 = arith.constant 0 : index
    %c0_8 = arith.constant 0 : index
    %12 = vector.load %arg4[%c0_7, %c0_8] : memref<8x32xbf16, #tpu.memory_space<vmem>>, vector<8x32xbf16>
    tpu.vector_store %arg4[%c0_7, %c0_8], %11 {strides = array<i32>} : memref<8x32xbf16, #tpu.memory_space<vmem>>, vector<8x32xbf16>,
    return
  }
  func.func @transform_0(%arg0: i32) -> (i32, i32) {
    %c0_i32 = arith.constant 0 : i32
    %c0_i32_0 = arith.constant 0 : i32
    return %arg0, %c0_i32 : i32, i32
  }
  func.func @transform_1(%arg0: i32) -> (i32, i32) {
    %c0_i32 = arith.constant 0 : i32
    %c0_i32_0 = arith.constant 0 : i32
    %c0_i32_1 = arith.constant 0 : i32
    return %c0_i32, %c0_i32_0 : i32, i32
  }
  func.func @transform_2(%arg0: i32) -> (i32, i32) {
    %c0_i32 = arith.constant 0 : i32
    %c0_i32_0 = arith.constant 0 : i32
    %c0_i32_1 = arith.constant 0 : i32
    return %c0_i32, %c0_i32_0 : i32, i32
  }
  func.func @transform_3(%arg0: i32) -> (i32, i32) {
    %c0_i32 = arith.constant 0 : i32
    %c0_i32_0 = arith.constant 0 : i32
    return %arg0, %c0_i32 : i32, i32
  }
}

module attributes {stable_mosaic.version = 11 : i64} {
  func.func @_head_kernel(%arg0: memref<8x32xbf16, #tpu.memory_space<vmem>>, %arg1: memref<32x800xbf16, #tpu.memory_space<vmem>>, %arg2: memref<1x800xf32, #tpu.memory_space<vmem>>, %arg3: memref<800x256xbf16, #tpu.memory_space<vmem>>, %arg4: memref<1x256xf32, #tpu.memory_space<vmem>>, %arg5: memref<256x8xbf16, #tpu.memory_space<vmem>>, %arg6: memref<1x8xf32, #tpu.memory_space<vmem>>, %arg7: memref<8x12288xf32, #tpu.memory_space<vmem>>, %arg8: memref<1x12288xf32, #tpu.memory_space<vmem>>, %arg9: memref<8x8xf32, #tpu.memory_space<vmem>>, %arg10: memref<8x12288xf32, #tpu.memory_space<vmem>>) attributes {dimension_semantics = [], scalar_prefetch = 0 : i64, scratch_operands = 0 : i64, tpu.core_type = #tpu.core_type<tc>} {
    %c0 = arith.constant 0 : index
    %c0_0 = arith.constant 0 : index
    %0 = vector.load %arg0[%c0, %c0_0] : memref<8x32xbf16, #tpu.memory_space<vmem>>, vector<8x32xbf16>
    %c0_1 = arith.constant 0 : index
    %c0_2 = arith.constant 0 : index
    %1 = vector.load %arg1[%c0_1, %c0_2] : memref<32x800xbf16, #tpu.memory_space<vmem>>, vector<32x800xbf16>
    %cst = arith.constant dense<0.000000e+00> : vector<8x800xf32>
    %2 = tpu.matmul %0, %1, %cst {dimension_numbers = #tpu.dot_dimension_numbers<[1], [0], [0], [1], [0, 0, 1, 1], [], []>} : vector<8x32xbf16>, vector<32x800xbf16>, vector<8x800xf32> -> vector<8x800xf32>
    %c0_3 = arith.constant 0 : index
    %c0_4 = arith.constant 0 : index
    %3 = vector.load %arg2[%c0_3, %c0_4] : memref<1x800xf32, #tpu.memory_space<vmem>>, vector<1x800xf32>
    %4 = vector.broadcast %3 : vector<1x800xf32> to vector<8x800xf32>
    %5 = arith.addf %2, %4 : vector<8x800xf32>
    %cst_5 = arith.constant 0.000000e+00 : f32
    %6 = vector.broadcast %cst_5 : f32 to vector<8x800xf32>
    %7 = arith.cmpf oge, %5, %6 : vector<8x800xf32>
    %cst_6 = arith.constant 2.000000e-01 : f32
    %8 = vector.broadcast %cst_6 : f32 to vector<8x800xf32>
    %9 = arith.mulf %8, %5 : vector<8x800xf32>
    %10 = arith.select %7, %5, %9 : vector<8x800xi1>, vector<8x800xf32>
    %11 = arith.truncf %10 : vector<8x800xf32> to vector<8x800xbf16>
    %c0_7 = arith.constant 0 : index
    %c0_8 = arith.constant 0 : index
    %12 = vector.load %arg3[%c0_7, %c0_8] : memref<800x256xbf16, #tpu.memory_space<vmem>>, vector<800x256xbf16>
    %cst_9 = arith.constant dense<0.000000e+00> : vector<8x256xf32>
    %13 = tpu.matmul %11, %12, %cst_9 {dimension_numbers = #tpu.dot_dimension_numbers<[1], [0], [0], [1], [0, 0, 1, 1], [], []>} : vector<8x800xbf16>, vector<800x256xbf16>, vector<8x256xf32> -> vector<8x256xf32>
    %c0_10 = arith.constant 0 : index
    %c0_11 = arith.constant 0 : index
    %14 = vector.load %arg4[%c0_10, %c0_11] : memref<1x256xf32, #tpu.memory_space<vmem>>, vector<1x256xf32>
    %15 = vector.broadcast %14 : vector<1x256xf32> to vector<8x256xf32>
    %16 = arith.addf %13, %15 : vector<8x256xf32>
    %cst_12 = arith.constant 0.000000e+00 : f32
    %17 = vector.broadcast %cst_12 : f32 to vector<8x256xf32>
    %18 = arith.cmpf oge, %16, %17 : vector<8x256xf32>
    %cst_13 = arith.constant 2.000000e-01 : f32
    %19 = vector.broadcast %cst_13 : f32 to vector<8x256xf32>
    %20 = arith.mulf %19, %16 : vector<8x256xf32>
    %21 = arith.select %18, %16, %20 : vector<8x256xi1>, vector<8x256xf32>
    %22 = arith.truncf %21 : vector<8x256xf32> to vector<8x256xbf16>
    %c0_14 = arith.constant 0 : index
    %c0_15 = arith.constant 0 : index
    %23 = vector.load %arg5[%c0_14, %c0_15] : memref<256x8xbf16, #tpu.memory_space<vmem>>, vector<256x8xbf16>
    %cst_16 = arith.constant dense<0.000000e+00> : vector<8x8xf32>
    %24 = tpu.matmul %22, %23, %cst_16 {dimension_numbers = #tpu.dot_dimension_numbers<[1], [0], [0], [1], [0, 0, 1, 1], [], []>} : vector<8x256xbf16>, vector<256x8xbf16>, vector<8x8xf32> -> vector<8x8xf32>
    %c0_17 = arith.constant 0 : index
    %c0_18 = arith.constant 0 : index
    %25 = vector.load %arg6[%c0_17, %c0_18] : memref<1x8xf32, #tpu.memory_space<vmem>>, vector<1x8xf32>
    %26 = vector.broadcast %25 : vector<1x8xf32> to vector<8x8xf32>
    %27 = arith.addf %24, %26 : vector<8x8xf32>
    %c0_19 = arith.constant 0 : index
    %c0_20 = arith.constant 0 : index
    %28 = vector.load %arg9[%c0_19, %c0_20] : memref<8x8xf32, #tpu.memory_space<vmem>>, vector<8x8xf32>
    tpu.vector_store %arg9[%c0_19, %c0_20], %27 {strides = array<i32>} : memref<8x8xf32, #tpu.memory_space<vmem>>, vector<8x8xf32>,
    %c0_21 = arith.constant 0 : index
    %c0_22 = arith.constant 0 : index
    %29 = vector.load %arg7[%c0_21, %c0_22] : memref<8x12288xf32, #tpu.memory_space<vmem>>, vector<8x12288xf32>
    %cst_23 = arith.constant dense<0.000000e+00> : vector<8x12288xf32>
    %30 = tpu.matmul %27, %29, %cst_23 {dimension_numbers = #tpu.dot_dimension_numbers<[1], [0], [0], [1], [0, 0, 1, 1], [], []>} : vector<8x8xf32>, vector<8x12288xf32>, vector<8x12288xf32> -> vector<8x12288xf32>
    %c0_24 = arith.constant 0 : index
    %c0_25 = arith.constant 0 : index
    %31 = vector.load %arg8[%c0_24, %c0_25] : memref<1x12288xf32, #tpu.memory_space<vmem>>, vector<1x12288xf32>
    %32 = vector.broadcast %31 : vector<1x12288xf32> to vector<8x12288xf32>
    %33 = arith.addf %30, %32 : vector<8x12288xf32>
    %c0_26 = arith.constant 0 : index
    %c0_27 = arith.constant 0 : index
    %34 = vector.load %arg10[%c0_26, %c0_27] : memref<8x12288xf32, #tpu.memory_space<vmem>>, vector<8x12288xf32>
    tpu.vector_store %arg10[%c0_26, %c0_27], %33 {strides = array<i32>} : memref<8x12288xf32, #tpu.memory_space<vmem>>, vector<8x12288xf32>,
    return
  }
}

</mosaic_0001>

<llo_original>
// kernel: forward.7
$region0: #{forward.7}
  #allocation0 [shape = 'u32[]', space=smem, size = 0x4, offset = 0x4, fixed_abs, tag = 'smem constant byte address 0x4 - core index']
  #allocation1 [shape = 'u32[144,128]{1,0:T(1,128)}', space=vmem, size = 0x12000, scoped, tag = 'internal scratch']
  %s0 = inlined_call_operand.vmem [shape: bf16[8192,81], index: 0, kind: input, shape index: {}]
  %s1 = inlined_call_operand.hbm [shape: bf16[81,16], index: 1, kind: input, shape index: {}]
  %s2 = inlined_call_operand.hbm [shape: f32[1,16], index: 2, kind: input, shape index: {}]
  %s3 = inlined_call_operand.vmem [shape: bf16[8192,16], index: 3, kind: output, shape index: {}]
  %s4 = sld [smem:[#allocation0]]
  $region53: #{forward.7} parent=0
    _
  %s6 = ssub.s32 1, %s4
  %s7 = scalar_select 0, %s6, %s4
  $region1: #{forward.7} parent=0
    #allocation2 [shape = 'u8[22528]{0}', space=vmem, size = 0x5800, scoped, tag = 'input window, operand 1, single buffered']
    #allocation3 [shape = 's32[2]{0}', space=sflag, size = 0x8, scoped, tag = 'scoped memory for forward.7']
    #allocation4 [shape = 'u8[512]{0}', space=vmem, size = 0x400, scoped, tag = 'input window, operand 2, single buffered']
    #allocation5 [shape = 's32[1]{0}', space=sflag, size = 0x4, scoped, tag = 'scoped memory for forward.7']
    %8 = vsyncpa [#allocation3], 0
    %9 = vsyncpa [#allocation5], 0
    loop: start=0, step=1, limit=10
    $region2: #{forward.7} parent=1 // loop_pre_header
      _
    $region3: #{forward.7} parent=1 // loop_header
      %s11 = sphi 0, %s15
      %p12 = scmp.ge.s32.totalorder %s11, 10
      %s21 = sphi 0, %s23
      %s24 = sphi 0, %s21
      %s25 = sphi 0, %s24
      %s41 = sphi 0, %s25
      %s45 = sphi 0, %s45
      %s47 = sphi 0, %s45
      %s48 = sphi 0, %s47
      %s62 = sphi 0, %s48
      %s66 = sphi 0, %s66
      %s68 = sphi 0, %s66
      %s69 = sphi 0, %s68
      %s83 = sphi 0, %s69
      %s89 = sphi 0, %s91
      %s92 = sphi 0, %s89
      %s93 = sphi 0, %s92
      %s109 = sphi 0, %s93
    $region4: #{forward.7} parent=1 // loop_header_branch
      %14 = sbr.rel (%p12) target = $region8
    $region5: #{forward.7} parent=1 // loop_body
      %s16 = ssub.s32 %s11, 1
      %s17 = ssub.s32 %s11, 2
      %s18 = sadd.s32 %s11, 1
      %s19 = ssub.s32 %s11, %s18
      %p20 = scmp.eq.s32.totalorder %s19, 0
      %s22 = sadd.s32 %s21, 1
      %s23 = scalar_select %p20, %s21, %s22
      %p26 = pneg %p20
      %p27 = scmp.eq.s32.totalorder %s11, 7
      %p28 = por %p26, %p27
      %p29 = scmp.ne.s32.totalorder %s21, %s24
      %p30 = scmp.eq.s32.totalorder %s11, 0
      %p31 = por %p29, %p30
      %p32 = scmp.ne.s32.totalorder %s21, %s24
      %p33 = scmp.eq.s32.totalorder %s16, 7
      %p34 = por %p32, %p33
      %p35 = scmp.ne.s32.totalorder %s24, %s25
      %p36 = scmp.eq.s32.totalorder %s16, 0
      %p37 = por %p35, %p36
      %p38 = scmp.ne.s32.totalorder %s24, %s25
      %p39 = scmp.eq.s32.totalorder %s17, 7
      %p40 = por %p38, %p39
      %p42 = scmp.ne.s32.totalorder %s25, %s41
      %p43 = scmp.eq.s32.totalorder %s17, 0
      %p44 = por %p42, %p43
      %s46 = sadd.s32 %s45, 1
      %p49 = scmp.eq.s32.totalorder %s11, 7
      %p50 = scmp.ne.s32.totalorder %s45, %s47
      %p51 = scmp.eq.s32.totalorder %s11, 0
      %p52 = por %p50, %p51
      %p53 = scmp.ne.s32.totalorder %s45, %s47
      %p54 = scmp.eq.s32.totalorder %s16, 7
      %p55 = por %p53, %p54
      %p56 = scmp.ne.s32.totalorder %s47, %s48
      %p57 = scmp.eq.s32.totalorder %s16, 0
      %p58 = por %p56, %p57
      %p59 = scmp.ne.s32.totalorder %s47, %s48
      %p60 = scmp.eq.s32.totalorder %s17, 7
      %p61 = por %p59, %p60
      %p63 = scmp.ne.s32.totalorder %s48, %s62
      %p64 = scmp.eq.s32.totalorder %s17, 0
      %p65 = por %p63, %p64
      %s67 = sadd.s32 %s66, 1
      %p70 = scmp.eq.s32.totalorder %s11, 7
      %p71 = scmp.ne.s32.totalorder %s66, %s68
      %p72 = scmp.eq.s32.totalorder %s11, 0
      %p73 = por %p71, %p72
      %p74 = scmp.ne.s32.totalorder %s66, %s68
      %p75 = scmp.eq.s32.totalorder %s16, 7
      %p76 = por %p74, %p75
      %p77 = scmp.ne.s32.totalorder %s68, %s69
      %p78 = scmp.eq.s32.totalorder %s16, 0
      %p79 = por %p77, %p78
      %p80 = scmp.ne.s32.totalorder %s68, %s69
      %p81 = scmp.eq.s32.totalorder %s17, 7
      %p82 = por %p80, %p81
      %p84 = scmp.ne.s32.totalorder %s69, %s83
      %p85 = scmp.eq.s32.totalorder %s17, 0
      %p86 = por %p84, %p85
      %s87 = ssub.s32 %s11, %s18
      %p88 = scmp.eq.s32.totalorder %s87, 0
      %s90 = sadd.s32 %s89, 1
      %s91 = scalar_select %p88, %s89, %s90
      %p94 = pneg %p88
      %p95 = scmp.eq.s32.totalorder %s11, 7
      %p96 = por %p94, %p95
      %p97 = scmp.ne.s32.totalorder %s89, %s92
      %p98 = scmp.eq.s32.totalorder %s11, 0
      %p99 = por %p97, %p98
      %p100 = scmp.ne.s32.totalorder %s89, %s92
      %p101 = scmp.eq.s32.totalorder %s16, 7
      %p102 = por %p100, %p101
      %p103 = scmp.ne.s32.totalorder %s92, %s93
      %p104 = scmp.eq.s32.totalorder %s16, 0
      %p105 = por %p103, %p104
      %p106 = scmp.ne.s32.totalorder %s92, %s93
      %p107 = scmp.eq.s32.totalorder %s17, 7
      %p108 = por %p106, %p107
      %p110 = scmp.ne.s32.totalorder %s93, %s109
      %p111 = scmp.eq.s32.totalorder %s17, 0
      %p112 = por %p110, %p111
      %p113 = scmp.le.s32.totalorder 1, %s11
      %p114 = scmp.lt.s32.totalorder %s11, 9
      %p115 = pnand %p113, %p114
      %p116 = pneg %p115
      // Predicated region
      $region9: #{forward.7} parent=5 // pred_check
        _
      $region10: #{forward.7} parent=5 // pred_check_branch
        %118 = sbr.rel (%p115) target = $region12
      $region11: #{forward.7} parent=5 // pred_region
        %s119 = ssub.s32 %s11, 1
        // Predicated region
        $region13: #{forward.7} parent=11 // pred_check
          %p120 = pneg %p58
        $region14: #{forward.7} parent=11 // pred_check_branch
          %122 = sbr.rel (%p120) target = $region16
        $region15: #{forward.7} parent=11 // pred_region
          %s124 = ssub.s32 704, 704
          %125 = vsyncadd [#allocation3], %s124
          %s126 = sshll.u32 [#allocation2], 4
          %s127 = int_to_ptr.vmem [resolvable:$true] %s126
          %132 = dma.hbm_to_vmem [thread:$0]  %s1, 704, %s127, [#allocation3], 64, 64, 4
        $region16: #{forward.7} parent=11 // pred_fallthru
          _
        // Predicated region
        $region17: #{forward.7} parent=11 // pred_check
          %p133 = pneg %p79
        $region18: #{forward.7} parent=11 // pred_check_branch
          %135 = sbr.rel (%p133) target = $region20
        $region19: #{forward.7} parent=11 // pred_region
          %s137 = ssub.s32 16, 16
          %138 = vsyncadd [#allocation5], %s137
          %s140 = sshll.u32 [#allocation4], 4
          %s141 = int_to_ptr.vmem [resolvable:$true] %s140
          %143 = dma.hbm_to_vmem [thread:$0]  %s2, 16, %s141, [#allocation5]
        $region20: #{forward.7} parent=11 // pred_fallthru
          _
      $region12: #{forward.7} parent=5 // pred_fallthru
        _
      %p144 = scmp.lt.s32.totalorder %s11, 8
      // Predicated region
      $region21: #{forward.7} parent=5 // pred_check
        %p145 = pneg %p144
      $region22: #{forward.7} parent=5 // pred_check_branch
        %147 = sbr.rel (%p145) target = $region24
      $region23: #{forward.7} parent=5 // pred_region
        // Predicated region
        $region25: #{forward.7} parent=23 // pred_check
          %p148 = pneg %p31
        $region26: #{forward.7} parent=23 // pred_check_branch
          %150 = sbr.rel (%p148) target = $region28
        $region27: #{forward.7} parent=23 // pred_region
          %s151 = smul.u32 128, %s11
          %p152 = scmp.lt.s32.totalorder %s151, 1023
          %s153 = scalar_select %p152, %s151, 1023
          %s154 = smul.addr %s153, 4
          %s155 = scalar_lea.vmem %s0, %s154
          %s156 = smul.u32 128, %s11
        $region28: #{forward.7} parent=23 // pred_fallthru
          _
      $region24: #{forward.7} parent=5 // pred_fallthru
        _
      %p157 = scmp.le.s32.totalorder 1, %s11
      %p158 = scmp.lt.s32.totalorder %s11, 9
      %p159 = pnand %p157, %p158
      %p160 = pneg %p159
      // Predicated region
      $region29: #{forward.7} parent=5 // pred_check
        _
      $region30: #{forward.7} parent=5 // pred_check_branch
        %162 = sbr.rel (%p159) target = $region32
      $region31: #{forward.7} parent=5 // pred_region
        %s163 = ssub.s32 %s11, 1
        // Predicated region
        $region33: #{forward.7} parent=31 // pred_check
          %p164 = pneg %p58
        $region34: #{forward.7} parent=31 // pred_check_branch
          %166 = sbr.rel (%p164) target = $region36
        $region35: #{forward.7} parent=31 // pred_region
          %167 = dma.done [#allocation3], 704
        $region36: #{forward.7} parent=31 // pred_fallthru
          _
        // Predicated region
        $region37: #{forward.7} parent=31 // pred_check
          %p168 = pneg %p79
        $region38: #{forward.7} parent=31 // pred_check_branch
          %170 = sbr.rel (%p168) target = $region40
        $region39: #{forward.7} parent=31 // pred_region
          %171 = dma.done [#allocation5], 16
        $region40: #{forward.7} parent=31 // pred_fallthru
          _
        %s172 = smul.u32 128, %s16
        %p173 = scmp.lt.s32.totalorder %s172, 1023
        %s174 = scalar_select %p173, %s172, 1023
        %s175 = smul.addr %s174, 4
        %s176 = scalar_lea.vmem %s0, %s175
        %p177 = pneg %p37
        %p178 = pneg %p34
        %p179 = pneg %p58
        %p180 = pneg %p55
        %p181 = pneg %p79
        %p182 = pneg %p76
        %p183 = pneg %p105
        %p184 = pneg %p102
        %s185 = smul.u32 128, %s16
        %p186 = scmp.lt.s32.totalorder %s185, 1023
        %s187 = scalar_select %p186, %s185, 1023
        %s188 = smul.addr %s187, 4
        %s189 = scalar_lea.vmem %s3, %s188
        %s190 = smul.u32 128, %s16
        %p191 = scmp.lt.s32.totalorder %s190, 1023
        %s192 = scalar_select %p191, %s190, 1023
        %s193 = smul.addr %s192, 4
        %s194 = scalar_lea.vmem %s0, %s193
        %s195 = smul.u32 128, %s16
        %s196 = smul.u32 128, %s16
        %p197 = scmp.lt.s32.totalorder %s196, 1023
        %s198 = scalar_select %p197, %s196, 1023
        %s199 = smul.addr %s198, 4
        %s200 = scalar_lea.vmem %s3, %s199
        %s201 = smul.u32 128, %s16
        %v203 = vld [vmem:[%s194] sm:$0xf]
        %v204 = vld [vmem:[%s194 + $0x4] sm:$0xf]
        %v205 = vld [vmem:[%s194 + $0x8] sm:$0xf]
        %v206 = vld [vmem:[%s194 + $0xc] sm:$0xf]
        %v207 = vld [vmem:[%s194 + $0x10] sm:$0xf]
        %v208 = vld [vmem:[%s194 + $0x14] sm:$0xf]
        %v209 = vld [vmem:[%s194 + $0x18] sm:$0xf]
        %v210 = vld [vmem:[%s194 + $0x1c] sm:$0xf]
        %v211 = vld [vmem:[%s194 + $0x20] sm:$0xf]
        %v212 = vld [vmem:[%s194 + $0x24] sm:$0xf]
        %v213 = vld [vmem:[%s194 + $0x28] sm:$0xf]
        %v214 = vld [vmem:[%s194 + $0x2c] sm:$0xf]
        %v215 = vld [vmem:[%s194 + $0x30] sm:$0xf]
        %v216 = vld [vmem:[%s194 + $0x34] sm:$0xf]
        %v217 = vld [vmem:[%s194 + $0x38] sm:$0xf]
        %v218 = vld [vmem:[%s194 + $0x3c] sm:$0xf]
        %v219 = vld [vmem:[%s194 + $0x40] sm:$0xf]
        %v220 = vld [vmem:[%s194 + $0x44] sm:$0xf]
        %v221 = vld [vmem:[%s194 + $0x48] sm:$0xf]
        %v222 = vld [vmem:[%s194 + $0x4c] sm:$0xf]
        %v223 = vld [vmem:[%s194 + $0x50] sm:$0xf]
        %v224 = vld [vmem:[%s194 + $0x54] sm:$0xf]
        %v225 = vld [vmem:[%s194 + $0x58] sm:$0xf]
        %v226 = vld [vmem:[%s194 + $0x5c] sm:$0xf]
        %v227 = vld [vmem:[%s194 + $0x60] sm:$0xf]
        %v228 = vld [vmem:[%s194 + $0x64] sm:$0xf]
        %v229 = vld [vmem:[%s194 + $0x68] sm:$0xf]
        %v230 = vld [vmem:[%s194 + $0x6c] sm:$0xf]
        %v231 = vld [vmem:[%s194 + $0x70] sm:$0xf]
        %v232 = vld [vmem:[%s194 + $0x74] sm:$0xf]
        %v233 = vld [vmem:[%s194 + $0x78] sm:$0xf]
        %v234 = vld [vmem:[%s194 + $0x7c] sm:$0xf]
        %v235 = vld [vmem:[%s194 + $0x80] sm:$0xf]
        %v236 = vld [vmem:[%s194 + $0x84] sm:$0xf]
        %v237 = vld [vmem:[%s194 + $0x88] sm:$0xf]
        %v238 = vld [vmem:[%s194 + $0x8c] sm:$0xf]
        %v239 = vld [vmem:[%s194 + $0x90] sm:$0xf]
        %v240 = vld [vmem:[%s194 + $0x94] sm:$0xf]
        %v241 = vld [vmem:[%s194 + $0x98] sm:$0xf]
        %v242 = vld [vmem:[%s194 + $0x9c] sm:$0xf]
        %v243 = vld [vmem:[%s194 + $0xa0] sm:$0xf]
        %v244 = vld [vmem:[%s194 + $0xa4] sm:$0xf]
        %v245 = vld [vmem:[%s194 + $0xa8] sm:$0xf]
        %v246 = vld [vmem:[%s194 + $0xac] sm:$0xf]
        %v247 = vld [vmem:[%s194 + $0xb0] sm:$0xf]
        %v248 = vld [vmem:[%s194 + $0xb4] sm:$0xf]
        %v249 = vld [vmem:[%s194 + $0xb8] sm:$0xf]
        %v250 = vld [vmem:[%s194 + $0xbc] sm:$0xf]
        %v251 = vld [vmem:[%s194 + $0xc0] sm:$0xf]
        %v252 = vld [vmem:[%s194 + $0xc4] sm:$0xf]
        %v253 = vld [vmem:[%s194 + $0xc8] sm:$0xf]
        %v254 = vld [vmem:[%s194 + $0xcc] sm:$0xf]
        %v255 = vld [vmem:[%s194 + $0xd0] sm:$0xf]
        %v256 = vld [vmem:[%s194 + $0xd4] sm:$0xf]
        %v257 = vld [vmem:[%s194 + $0xd8] sm:$0xf]
        %v258 = vld [vmem:[%s194 + $0xdc] sm:$0xf]
        %v259 = vld [vmem:[%s194 + $0xe0] sm:$0xf]
        %v260 = vld [vmem:[%s194 + $0xe4] sm:$0xf]
        %v261 = vld [vmem:[%s194 + $0xe8] sm:$0xf]
        %v262 = vld [vmem:[%s194 + $0xec] sm:$0xf]
        %v263 = vld [vmem:[%s194 + $0xf0] sm:$0xf]
        %v264 = vld [vmem:[%s194 + $0xf4] sm:$0xf]
        %v265 = vld [vmem:[%s194 + $0xf8] sm:$0xf]
        %v266 = vld [vmem:[%s194 + $0xfc] sm:$0xf]
        %v267 = vld [vmem:[%s194 + $0x100] sm:$0xf]
        %v268 = vld [vmem:[%s194 + $0x104] sm:$0xf]
        %v269 = vld [vmem:[%s194 + $0x108] sm:$0xf]
        %v270 = vld [vmem:[%s194 + $0x10c] sm:$0xf]
        %v271 = vld [vmem:[%s194 + $0x110] sm:$0xf]
        %v272 = vld [vmem:[%s194 + $0x114] sm:$0xf]
        %v273 = vld [vmem:[%s194 + $0x118] sm:$0xf]
        %v274 = vld [vmem:[%s194 + $0x11c] sm:$0xf]
        %v275 = vld [vmem:[%s194 + $0x120] sm:$0xf]
        %v276 = vld [vmem:[%s194 + $0x124] sm:$0xf]
        %v277 = vld [vmem:[%s194 + $0x128] sm:$0xf]
        %v278 = vld [vmem:[%s194 + $0x12c] sm:$0xf]
        %v279 = vld [vmem:[%s194 + $0x130] sm:$0xf]
        %v280 = vld [vmem:[%s194 + $0x134] sm:$0xf]
        %v281 = vld [vmem:[%s194 + $0x138] sm:$0xf]
        %v282 = vld [vmem:[%s194 + $0x13c] sm:$0xf]
        %v283 = vld [vmem:[%s194 + $0x140] sm:$0xf]
        %v284 = vld [vmem:[%s194 + $0x144] sm:$0xf]
        %v285 = vld [vmem:[%s194 + $0x148] sm:$0xf]
        %v286 = vld [vmem:[%s194 + $0x14c] sm:$0xf]
        %v287 = vld [vmem:[%s194 + $0x150] sm:$0xf]
        %v288 = vld [vmem:[%s194 + $0x154] sm:$0xf]
        %v289 = vld [vmem:[%s194 + $0x158] sm:$0xf]
        %v290 = vld [vmem:[%s194 + $0x15c] sm:$0xf]
        %v291 = vld [vmem:[%s194 + $0x160] sm:$0xf]
        %v292 = vld [vmem:[%s194 + $0x164] sm:$0xf]
        %v293 = vld [vmem:[%s194 + $0x168] sm:$0xf]
        %v294 = vld [vmem:[%s194 + $0x16c] sm:$0xf]
        %v295 = vld [vmem:[%s194 + $0x170] sm:$0xf]
        %v296 = vld [vmem:[%s194 + $0x174] sm:$0xf]
        %v297 = vld [vmem:[%s194 + $0x178] sm:$0xf]
        %v298 = vld [vmem:[%s194 + $0x17c] sm:$0xf]
        %v299 = vld [vmem:[%s194 + $0x180] sm:$0xf]
        %v300 = vld [vmem:[%s194 + $0x184] sm:$0xf]
        %v301 = vld [vmem:[%s194 + $0x188] sm:$0xf]
        %v302 = vld [vmem:[%s194 + $0x18c] sm:$0xf]
        %v303 = vld [vmem:[%s194 + $0x190] sm:$0xf]
        %v304 = vld [vmem:[%s194 + $0x194] sm:$0xf]
        %v305 = vld [vmem:[%s194 + $0x198] sm:$0xf]
        %v306 = vld [vmem:[%s194 + $0x19c] sm:$0xf]
        %v307 = vld [vmem:[%s194 + $0x1a0] sm:$0xf]
        %v308 = vld [vmem:[%s194 + $0x1a4] sm:$0xf]
        %v309 = vld [vmem:[%s194 + $0x1a8] sm:$0xf]
        %v310 = vld [vmem:[%s194 + $0x1ac] sm:$0xf]
        %v311 = vld [vmem:[%s194 + $0x1b0] sm:$0xf]
        %v312 = vld [vmem:[%s194 + $0x1b4] sm:$0xf]
        %v313 = vld [vmem:[%s194 + $0x1b8] sm:$0xf]
        %v314 = vld [vmem:[%s194 + $0x1bc] sm:$0xf]
        %v315 = vld [vmem:[%s194 + $0x1c0] sm:$0xf]
        %v316 = vld [vmem:[%s194 + $0x1c4] sm:$0xf]
        %v317 = vld [vmem:[%s194 + $0x1c8] sm:$0xf]
        %v318 = vld [vmem:[%s194 + $0x1cc] sm:$0xf]
        %v319 = vld [vmem:[%s194 + $0x1d0] sm:$0xf]
        %v320 = vld [vmem:[%s194 + $0x1d4] sm:$0xf]
        %v321 = vld [vmem:[%s194 + $0x1d8] sm:$0xf]
        %v322 = vld [vmem:[%s194 + $0x1dc] sm:$0xf]
        %v323 = vld [vmem:[%s194 + $0x1e0] sm:$0xf]
        %v324 = vld [vmem:[%s194 + $0x1e4] sm:$0xf]
        %v325 = vld [vmem:[%s194 + $0x1e8] sm:$0xf]
        %v326 = vld [vmem:[%s194 + $0x1ec] sm:$0xf]
        %v327 = vld [vmem:[%s194 + $0x1f0] sm:$0xf]
        %v328 = vld [vmem:[%s194 + $0x1f4] sm:$0xf]
        %v329 = vld [vmem:[%s194 + $0x1f8] sm:$0xf]
        %v330 = vld [vmem:[%s194 + $0x1fc] sm:$0xf]
        %v331 = vld [vmem:[#allocation2] sm:$0xf]
        %v332 = vld [vmem:[#allocation2 + $0x4] sm:$0xf]
        %v333 = vld [vmem:[#allocation2 + $0x8] sm:$0xf]
        %v334 = vld [vmem:[#allocation2 + $0xc] sm:$0xf]
        %v335 = vld [vmem:[#allocation2 + $0x10] sm:$0xf]
        %v336 = vld [vmem:[#allocation2 + $0x14] sm:$0xf]
        %v337 = vld [vmem:[#allocation2 + $0x18] sm:$0xf]
        %v338 = vld [vmem:[#allocation2 + $0x1c] sm:$0xf]
        %v339 = vld [vmem:[#allocation2 + $0x20] sm:$0xf]
        %v340 = vld [vmem:[#allocation2 + $0x24] sm:$0xf]
        %v341 = vld [vmem:[#allocation2 + $0x28] sm:$0x1]
        %v342 = vld [vmem:[#allocation4] sm:$0x1]
        %v344 = vlaneseq
        %v345 = vshrl.u32 %v344, 7
        %v346 = vsub.s32 0, %v345
        %v347 = vrot.slane %v342, %v346
        %v477 = vunpack.c.l.b16 %v203
        %v478 = vunpack.c.l.b16 %v204
        %v479 = vunpack.c.l.b16 %v205
        %v480 = vunpack.c.l.b16 %v206
        %v481 = vunpack.c.l.b16 %v207
        %v482 = vunpack.c.l.b16 %v208
        %v483 = vunpack.c.l.b16 %v209
        %v484 = vunpack.c.l.b16 %v210
        %v485 = vunpack.c.l.b16 %v211
        %v486 = vunpack.c.l.b16 %v212
        %v487 = vunpack.c.l.b16 %v213
        %v488 = vunpack.c.l.b16 %v214
        %v489 = vunpack.c.l.b16 %v215
        %v490 = vunpack.c.l.b16 %v216
        %v491 = vunpack.c.l.b16 %v217
        %v492 = vunpack.c.l.b16 %v218
        %v493 = vunpack.c.l.b16 %v219
        %v494 = vunpack.c.l.b16 %v220
        %v495 = vunpack.c.l.b16 %v221
        %v496 = vunpack.c.l.b16 %v222
        %v497 = vunpack.c.l.b16 %v223
        %v498 = vunpack.c.l.b16 %v224
        %v499 = vunpack.c.l.b16 %v225
        %v500 = vunpack.c.l.b16 %v226
        %v501 = vunpack.c.l.b16 %v227
        %v502 = vunpack.c.l.b16 %v228
        %v503 = vunpack.c.l.b16 %v229
        %v504 = vunpack.c.l.b16 %v230
        %v505 = vunpack.c.l.b16 %v231
        %v506 = vunpack.c.l.b16 %v232
        %v507 = vunpack.c.l.b16 %v233
        %v508 = vunpack.c.l.b16 %v234
        %v509 = vunpack.c.l.b16 %v235
        %v510 = vunpack.c.l.b16 %v236
        %v511 = vunpack.c.l.b16 %v237
        %v512 = vunpack.c.l.b16 %v238
        %v513 = vunpack.c.l.b16 %v239
        %v514 = vunpack.c.l.b16 %v240
        %v515 = vunpack.c.l.b16 %v241
        %v516 = vunpack.c.l.b16 %v242
        %v517 = vunpack.c.l.b16 %v243
        %v518 = vunpack.c.l.b16 %v244
        %v519 = vunpack.c.l.b16 %v245
        %v520 = vunpack.c.l.b16 %v246
        %v521 = vunpack.c.l.b16 %v247
        %v522 = vunpack.c.l.b16 %v248
        %v523 = vunpack.c.l.b16 %v249
        %v524 = vunpack.c.l.b16 %v250
        %v525 = vunpack.c.l.b16 %v251
        %v526 = vunpack.c.l.b16 %v252
        %v527 = vunpack.c.l.b16 %v253
        %v528 = vunpack.c.l.b16 %v254
        %v529 = vunpack.c.l.b16 %v255
        %v530 = vunpack.c.l.b16 %v256
        %v531 = vunpack.c.l.b16 %v257
        %v532 = vunpack.c.l.b16 %v258
        %v533 = vunpack.c.l.b16 %v259
        %v534 = vunpack.c.l.b16 %v260
        %v535 = vunpack.c.l.b16 %v261
        %v536 = vunpack.c.l.b16 %v262
        %v537 = vunpack.c.l.b16 %v263
        %v538 = vunpack.c.l.b16 %v264
        %v539 = vunpack.c.l.b16 %v265
        %v540 = vunpack.c.l.b16 %v266
        %v541 = vunpack.c.l.b16 %v267
        %v542 = vunpack.c.l.b16 %v268
        %v543 = vunpack.c.l.b16 %v269
        %v544 = vunpack.c.l.b16 %v270
        %v545 = vunpack.c.l.b16 %v271
        %v546 = vunpack.c.l.b16 %v272
        %v547 = vunpack.c.l.b16 %v273
        %v548 = vunpack.c.l.b16 %v274
        %v549 = vunpack.c.l.b16 %v275
        %v550 = vunpack.c.l.b16 %v276
        %v551 = vunpack.c.l.b16 %v277
        %v552 = vunpack.c.l.b16 %v278
        %v553 = vunpack.c.l.b16 %v279
        %v554 = vunpack.c.l.b16 %v280
        %v555 = vunpack.c.l.b16 %v281
        %v556 = vunpack.c.l.b16 %v282
        %v557 = vunpack.c.l.b16 %v283
        %v558 = vunpack.c.l.b16 %v284
        %v559 = vunpack.c.l.b16 %v285
        %v560 = vunpack.c.l.b16 %v286
        %v561 = vunpack.c.l.b16 %v287
        %v562 = vunpack.c.l.b16 %v288
        %v563 = vunpack.c.l.b16 %v289
        %v564 = vunpack.c.l.b16 %v290
        %v565 = vunpack.c.l.b16 %v291
        %v566 = vunpack.c.l.b16 %v292
        %v567 = vunpack.c.l.b16 %v293
        %v568 = vunpack.c.l.b16 %v294
        %v569 = vunpack.c.l.b16 %v295
        %v570 = vunpack.c.l.b16 %v296
        %v571 = vunpack.c.l.b16 %v297
        %v572 = vunpack.c.l.b16 %v298
        %v573 = vunpack.c.l.b16 %v299
        %v574 = vunpack.c.l.b16 %v300
        %v575 = vunpack.c.l.b16 %v301
        %v576 = vunpack.c.l.b16 %v302
        %v577 = vunpack.c.l.b16 %v303
        %v578 = vunpack.c.l.b16 %v304
        %v579 = vunpack.c.l.b16 %v305
        %v580 = vunpack.c.l.b16 %v306
        %v581 = vunpack.c.l.b16 %v307
        %v582 = vunpack.c.l.b16 %v308
        %v583 = vunpack.c.l.b16 %v309
        %v584 = vunpack.c.l.b16 %v310
        %v585 = vunpack.c.l.b16 %v311
        %v586 = vunpack.c.l.b16 %v312
        %v587 = vunpack.c.l.b16 %v313
        %v588 = vunpack.c.l.b16 %v314
        %v589 = vunpack.c.l.b16 %v315
        %v590 = vunpack.c.l.b16 %v316
        %v591 = vunpack.c.l.b16 %v317
        %v592 = vunpack.c.l.b16 %v318
        %v593 = vunpack.c.l.b16 %v319
        %v594 = vunpack.c.l.b16 %v320
        %v595 = vunpack.c.l.b16 %v321
        %v596 = vunpack.c.l.b16 %v322
        %v597 = vunpack.c.l.b16 %v323
        %v598 = vunpack.c.l.b16 %v324
        %v599 = vunpack.c.l.b16 %v325
        %v600 = vunpack.c.l.b16 %v326
        %v601 = vunpack.c.l.b16 %v327
        %v602 = vunpack.c.l.b16 %v328
        %v603 = vunpack.c.l.b16 %v329
        %v604 = vunpack.c.l.b16 %v330
        %v605 = vpack.c.b16 %v478, %v477
        %v606 = vpack.c.b16 %v480, %v479
        %v607 = vpack.c.b16 %v482, %v481
        %v608 = vpack.c.b16 %v484, %v483
        %v609 = vpack.c.b16 %v486, %v485
        %v610 = vpack.c.b16 %v488, %v487
        %v611 = vpack.c.b16 %v490, %v489
        %v612 = vpack.c.b16 %v492, %v491
        %v613 = vpack.c.b16 %v494, %v493
        %v614 = vpack.c.b16 %v496, %v495
        %v615 = vpack.c.b16 %v498, %v497
        %v616 = vpack.c.b16 %v500, %v499
        %v617 = vpack.c.b16 %v502, %v501
        %v618 = vpack.c.b16 %v504, %v503
        %v619 = vpack.c.b16 %v506, %v505
        %v620 = vpack.c.b16 %v508, %v507
        %v621 = vpack.c.b16 %v510, %v509
        %v622 = vpack.c.b16 %v512, %v511
        %v623 = vpack.c.b16 %v514, %v513
        %v624 = vpack.c.b16 %v516, %v515
        %v625 = vpack.c.b16 %v518, %v517
        %v626 = vpack.c.b16 %v520, %v519
        %v627 = vpack.c.b16 %v522, %v521
        %v628 = vpack.c.b16 %v524, %v523
        %v629 = vpack.c.b16 %v526, %v525
        %v630 = vpack.c.b16 %v528, %v527
        %v631 = vpack.c.b16 %v530, %v529
        %v632 = vpack.c.b16 %v532, %v531
        %v633 = vpack.c.b16 %v534, %v533
        %v634 = vpack.c.b16 %v536, %v535
        %v635 = vpack.c.b16 %v538, %v537
        %v636 = vpack.c.b16 %v540, %v539
        %v637 = vpack.c.b16 %v542, %v541
        %v638 = vpack.c.b16 %v544, %v543
        %v639 = vpack.c.b16 %v546, %v545
        %v640 = vpack.c.b16 %v548, %v547
        %v641 = vpack.c.b16 %v550, %v549
        %v642 = vpack.c.b16 %v552, %v551
        %v643 = vpack.c.b16 %v554, %v553
        %v644 = vpack.c.b16 %v556, %v555
        %v645 = vpack.c.b16 %v558, %v557
        %v646 = vpack.c.b16 %v560, %v559
        %v647 = vpack.c.b16 %v562, %v561
        %v648 = vpack.c.b16 %v564, %v563
        %v649 = vpack.c.b16 %v566, %v565
        %v650 = vpack.c.b16 %v568, %v567
        %v651 = vpack.c.b16 %v570, %v569
        %v652 = vpack.c.b16 %v572, %v571
        %v653 = vpack.c.b16 %v574, %v573
        %v654 = vpack.c.b16 %v576, %v575
        %v655 = vpack.c.b16 %v578, %v577
        %v656 = vpack.c.b16 %v580, %v579
        %v657 = vpack.c.b16 %v582, %v581
        %v658 = vpack.c.b16 %v584, %v583
        %v659 = vpack.c.b16 %v586, %v585
        %v660 = vpack.c.b16 %v588, %v587
        %v661 = vpack.c.b16 %v590, %v589
        %v662 = vpack.c.b16 %v592, %v591
        %v663 = vpack.c.b16 %v594, %v593
        %v664 = vpack.c.b16 %v596, %v595
        %v665 = vpack.c.b16 %v598, %v597
        %v666 = vpack.c.b16 %v600, %v599
        %v667 = vpack.c.b16 %v602, %v601
        %v668 = vpack.c.b16 %v604, %v603
        %v680 = vunpack.c.l.b16 %v331
        %v681 = vunpack.c.l.b16 %v332
        %v682 = vunpack.c.l.b16 %v333
        %v683 = vunpack.c.l.b16 %v334
        %v684 = vunpack.c.l.b16 %v335
        %v685 = vunpack.c.l.b16 %v336
        %v686 = vunpack.c.l.b16 %v337
        %v687 = vunpack.c.l.b16 %v338
        %v688 = vunpack.c.l.b16 %v339
        %v689 = vunpack.c.l.b16 %v340
        %v690 = vunpack.c.l.b16 %v341
        %v691 = vpack.c.b16 %v681, %v680
        %v692 = vpack.c.b16 %v683, %v682
        %v693 = vpack.c.b16 %v685, %v684
        %v694 = vpack.c.b16 %v687, %v686
        %v695 = vpack.c.b16 %v689, %v688
        %v696 = vpack.c.b16 %v690, %v690
        %vm702 = vcmask 662528
        %v704 = vsel %vm702, %v605, 0
        %v707 = vsel %vm702, %v606, 0
        %v710 = vsel %vm702, %v607, 0
        %v713 = vsel %vm702, %v608, 0
        %v716 = vsel %vm702, %v609, 0
        %v719 = vsel %vm702, %v610, 0
        %v722 = vsel %vm702, %v611, 0
        %v725 = vsel %vm702, %v612, 0
        %v728 = vsel %vm702, %v613, 0
        %v731 = vsel %vm702, %v614, 0
        %v734 = vsel %vm702, %v615, 0
        %v737 = vsel %vm702, %v616, 0
        %v740 = vsel %vm702, %v617, 0
        %v743 = vsel %vm702, %v618, 0
        %v746 = vsel %vm702, %v619, 0
        %v749 = vsel %vm702, %v620, 0
        %v752 = vsel %vm702, %v621, 0
        %v755 = vsel %vm702, %v622, 0
        %v758 = vsel %vm702, %v623, 0
        %v761 = vsel %vm702, %v624, 0
        %v764 = vsel %vm702, %v625, 0
        %v767 = vsel %vm702, %v626, 0
        %v770 = vsel %vm702, %v627, 0
        %v773 = vsel %vm702, %v628, 0
        %v776 = vsel %vm702, %v629, 0
        %v779 = vsel %vm702, %v630, 0
        %v782 = vsel %vm702, %v631, 0
        %v785 = vsel %vm702, %v632, 0
        %v788 = vsel %vm702, %v633, 0
        %v791 = vsel %vm702, %v634, 0
        %v794 = vsel %vm702, %v635, 0
        %v797 = vsel %vm702, %v636, 0
        %v800 = vsel %vm702, %v637, 0
        %v803 = vsel %vm702, %v638, 0
        %v806 = vsel %vm702, %v639, 0
        %v809 = vsel %vm702, %v640, 0
        %v812 = vsel %vm702, %v641, 0
        %v815 = vsel %vm702, %v642, 0
        %v818 = vsel %vm702, %v643, 0
        %v821 = vsel %vm702, %v644, 0
        %v824 = vsel %vm702, %v645, 0
        %v827 = vsel %vm702, %v646, 0
        %v830 = vsel %vm702, %v647, 0
        %v833 = vsel %vm702, %v648, 0
        %v836 = vsel %vm702, %v649, 0
        %v839 = vsel %vm702, %v650, 0
        %v842 = vsel %vm702, %v651, 0
        %v845 = vsel %vm702, %v652, 0
        %v848 = vsel %vm702, %v653, 0
        %v851 = vsel %vm702, %v654, 0
        %v854 = vsel %vm702, %v655, 0
        %v857 = vsel %vm702, %v656, 0
        %v860 = vsel %vm702, %v657, 0
        %v863 = vsel %vm702, %v658, 0
        %v866 = vsel %vm702, %v659, 0
        %v869 = vsel %vm702, %v660, 0
        %v872 = vsel %vm702, %v661, 0
        %v875 = vsel %vm702, %v662, 0
        %v878 = vsel %vm702, %v663, 0
        %v881 = vsel %vm702, %v664, 0
        %v884 = vsel %vm702, %v665, 0
        %v887 = vsel %vm702, %v666, 0
        %v890 = vsel %vm702, %v667, 0
        %v893 = vsel %vm702, %v668, 0
        %vm895 = vcmask 1040384
        %v896 = vsel 0, 4294967295, 65535
        %v897 = vsel %vm895, %v896, 0
        %v899 = vand.u32 %v696, %v897
        %901 = vmatprep.subr.bf16.mxu0 0
        %902 = vmatpush1.bf16.msra.mxu0 %v691
        %903 = vmatprep.subr.bf16.mxu0 0
        %904 = vmatpush1.bf16.msra.mxu0 %v692
        %905 = vmatprep.subr.bf16.mxu0 0
        %906 = vmatpush1.bf16.msra.mxu0 %v693
        %907 = vmatprep.subr.bf16.mxu0 0
        %908 = vmatpush1.bf16.msra.mxu0 %v694
        %909 = vmatprep.subr.bf16.mxu0 0
        %910 = vmatpush1.bf16.msra.mxu0 %v695
        %911 = vmatprep.subr.bf16.mxu0 0
        %912 = vmatpush1.bf16.msra.mxu0 %v899
        %913 = vmatprep.subr.bf16.mxu0 0
        %914 = vmatpush1.bf16.msra.mxu0 0
        %915 = vmatprep.subr.bf16.mxu0 0
        %916 = vmatpush1.bf16.msra.mxu0 0
        %917 = vmatprep.subr.bf16.mxu0 0
        %918 = vmatpush1.bf16.msra.mxu0 0
        %919 = vmatprep.subr.bf16.mxu0 0
        %920 = vmatpush1.bf16.msra.mxu0 0
        %921 = vmatprep.subr.bf16.mxu0 0
        %922 = vmatpush1.bf16.msra.mxu0 0
        %923 = vmatprep.subr.bf16.mxu0 0
        %924 = vmatpush1.bf16.msra.mxu0 0
        %925 = vmatprep.subr.bf16.mxu0 0
        %926 = vmatpush1.bf16.msra.mxu0 0
        %927 = vmatprep.subr.bf16.mxu0 0
        %928 = vmatpush1.bf16.msra.mxu0 0
        %929 = vmatprep.subr.bf16.mxu0 0
        %930 = vmatpush1.bf16.msra.mxu0 0
        %931 = vmatprep.subr.bf16.mxu0 0
        %932 = vmatpush1.bf16.msra.mxu0 0
        %933 = vmatprep.mubr.bf16.mxu0 0
        %934 = vmatmul.mubr.bf16.gmra.mrb[0].mxu0 %v704
        %v935 = vpop.f32.mrb[0].mxu0
        %v936 = vadd.f32 %v347, %v935
        %v937 = vpop.f32.mrb[0].mxu0
        %v938 = vpop.f32.mrb[0].mxu0
        %v939 = vadd.f32 %v347, %v938
        %v940 = vpop.f32.mrb[0].mxu0
        %941 = vmatprep.mubr.bf16.mxu0 0
        %942 = vmatmul.mubr.bf16.gmra.mrb[0].mxu0 %v707
        %v943 = vpop.f32.mrb[0].mxu0
        %v944 = vadd.f32 %v347, %v943
        %v945 = vpop.f32.mrb[0].mxu0
        %v946 = vpop.f32.mrb[0].mxu0
        %v947 = vadd.f32 %v347, %v946
        %v948 = vpop.f32.mrb[0].mxu0
        %949 = vmatprep.mubr.bf16.mxu0 0
        %950 = vmatmul.mubr.bf16.gmra.mrb[0].mxu0 %v710
        %v951 = vpop.f32.mrb[0].mxu0
        %v952 = vadd.f32 %v347, %v951
        %v953 = vpop.f32.mrb[0].mxu0
        %v954 = vpop.f32.mrb[0].mxu0
        %v955 = vadd.f32 %v347, %v954
        %v956 = vpop.f32.mrb[0].mxu0
        %957 = vmatprep.mubr.bf16.mxu0 0
        %958 = vmatmul.mubr.bf16.gmra.mrb[0].mxu0 %v713
        %v959 = vpop.f32.mrb[0].mxu0
        %v960 = vadd.f32 %v347, %v959
        %v961 = vpop.f32.mrb[0].mxu0
        %v962 = vpop.f32.mrb[0].mxu0
        %v963 = vadd.f32 %v347, %v962
        %v964 = vpop.f32.mrb[0].mxu0
        %965 = vmatprep.mubr.bf16.mxu0 0
        %966 = vmatmul.mubr.bf16.gmra.mrb[0].mxu0 %v716
        %v967 = vpop.f32.mrb[0].mxu0
        %v968 = vadd.f32 %v347, %v967
        %v969 = vpop.f32.mrb[0].mxu0
        %v970 = vpop.f32.mrb[0].mxu0
        %v971 = vadd.f32 %v347, %v970
        %v972 = vpop.f32.mrb[0].mxu0
        %973 = vmatprep.mubr.bf16.mxu0 0
        %974 = vmatmul.mubr.bf16.gmra.mrb[0].mxu0 %v719
        %v975 = vpop.f32.mrb[0].mxu0
        %v976 = vadd.f32 %v347, %v975
        %v977 = vpop.f32.mrb[0].mxu0
        %v978 = vpop.f32.mrb[0].mxu0
        %v979 = vadd.f32 %v347, %v978
        %v980 = vpop.f32.mrb[0].mxu0
        %981 = vmatprep.mubr.bf16.mxu0 0
        %982 = vmatmul.mubr.bf16.gmra.mrb[0].mxu0 %v722
        %v983 = vpop.f32.mrb[0].mxu0
        %v984 = vadd.f32 %v347, %v983
        %v985 = vpop.f32.mrb[0].mxu0
        %v986 = vpop.f32.mrb[0].mxu0
        %v987 = vadd.f32 %v347, %v986
        %v988 = vpop.f32.mrb[0].mxu0
        %989 = vmatprep.mubr.bf16.mxu0 0
        %990 = vmatmul.mubr.bf16.gmra.mrb[0].mxu0 %v725
        %v991 = vpop.f32.mrb[0].mxu0
        %v992 = vadd.f32 %v347, %v991
        %v993 = vpop.f32.mrb[0].mxu0
        %v994 = vpop.f32.mrb[0].mxu0
        %v995 = vadd.f32 %v347, %v994
        %v996 = vpop.f32.mrb[0].mxu0
        %997 = vmatprep.mubr.bf16.mxu0 0
        %998 = vmatmul.mubr.bf16.gmra.mrb[0].mxu0 %v728
        %v999 = vpop.f32.mrb[0].mxu0
        %v1000 = vadd.f32 %v347, %v999
        %v1001 = vpop.f32.mrb[0].mxu0
        %v1002 = vpop.f32.mrb[0].mxu0
        %v1003 = vadd.f32 %v347, %v1002
        %v1004 = vpop.f32.mrb[0].mxu0
        %1005 = vmatprep.mubr.bf16.mxu0 0
        %1006 = vmatmul.mubr.bf16.gmra.mrb[0].mxu0 %v731
        %v1007 = vpop.f32.mrb[0].mxu0
        %v1008 = vadd.f32 %v347, %v1007
        %v1009 = vpop.f32.mrb[0].mxu0
        %v1010 = vpop.f32.mrb[0].mxu0
        %v1011 = vadd.f32 %v347, %v1010
        %v1012 = vpop.f32.mrb[0].mxu0
        %1013 = vmatprep.mubr.bf16.mxu0 0
        %1014 = vmatmul.mubr.bf16.gmra.mrb[0].mxu0 %v734
        %v1015 = vpop.f32.mrb[0].mxu0
        %v1016 = vadd.f32 %v347, %v1015
        %v1017 = vpop.f32.mrb[0].mxu0
        %v1018 = vpop.f32.mrb[0].mxu0
        %v1019 = vadd.f32 %v347, %v1018
        %v1020 = vpop.f32.mrb[0].mxu0
        %1021 = vmatprep.mubr.bf16.mxu0 0
        %1022 = vmatmul.mubr.bf16.gmra.mrb[0].mxu0 %v737
        %v1023 = vpop.f32.mrb[0].mxu0
        %v1024 = vadd.f32 %v347, %v1023
        %v1025 = vpop.f32.mrb[0].mxu0
        %v1026 = vpop.f32.mrb[0].mxu0
        %v1027 = vadd.f32 %v347, %v1026
        %v1028 = vpop.f32.mrb[0].mxu0
        %1029 = vmatprep.mubr.bf16.mxu0 0
        %1030 = vmatmul.mubr.bf16.gmra.mrb[0].mxu0 %v740
        %v1031 = vpop.f32.mrb[0].mxu0
        %v1032 = vadd.f32 %v347, %v1031
        %v1033 = vpop.f32.mrb[0].mxu0
        %v1034 = vpop.f32.mrb[0].mxu0
        %v1035 = vadd.f32 %v347, %v1034
        %v1036 = vpop.f32.mrb[0].mxu0
        %1037 = vmatprep.mubr.bf16.mxu0 0
        %1038 = vmatmul.mubr.bf16.gmra.mrb[0].mxu0 %v743
        %v1039 = vpop.f32.mrb[0].mxu0
        %v1040 = vadd.f32 %v347, %v1039
        %v1041 = vpop.f32.mrb[0].mxu0
        %v1042 = vpop.f32.mrb[0].mxu0
        %v1043 = vadd.f32 %v347, %v1042
        %v1044 = vpop.f32.mrb[0].mxu0
        %1045 = vmatprep.mubr.bf16.mxu0 0
        %1046 = vmatmul.mubr.bf16.gmra.mrb[0].mxu0 %v746
        %v1047 = vpop.f32.mrb[0].mxu0
        %v1048 = vadd.f32 %v347, %v1047
        %v1049 = vpop.f32.mrb[0].mxu0
        %v1050 = vpop.f32.mrb[0].mxu0
        %v1051 = vadd.f32 %v347, %v1050
        %v1052 = vpop.f32.mrb[0].mxu0
        %1053 = vmatprep.mubr.bf16.mxu0 0
        %1054 = vmatmul.mubr.bf16.gmra.mrb[0].mxu0 %v749
        %v1055 = vpop.f32.mrb[0].mxu0
        %v1056 = vadd.f32 %v347, %v1055
        %v1057 = vpop.f32.mrb[0].mxu0
        %v1058 = vpop.f32.mrb[0].mxu0
        %v1059 = vadd.f32 %v347, %v1058
        %v1060 = vpop.f32.mrb[0].mxu0
        %1061 = vmatprep.mubr.bf16.mxu0 0
        %1062 = vmatmul.mubr.bf16.gmra.mrb[0].mxu0 %v752
        %v1063 = vpop.f32.mrb[0].mxu0
        %v1064 = vadd.f32 %v347, %v1063
        %v1065 = vpop.f32.mrb[0].mxu0
        %v1066 = vpop.f32.mrb[0].mxu0
        %v1067 = vadd.f32 %v347, %v1066
        %v1068 = vpop.f32.mrb[0].mxu0
        %1069 = vmatprep.mubr.bf16.mxu0 0
        %1070 = vmatmul.mubr.bf16.gmra.mrb[0].mxu0 %v755
        %v1071 = vpop.f32.mrb[0].mxu0
        %v1072 = vadd.f32 %v347, %v1071
        %v1073 = vpop.f32.mrb[0].mxu0
        %v1074 = vpop.f32.mrb[0].mxu0
        %v1075 = vadd.f32 %v347, %v1074
        %v1076 = vpop.f32.mrb[0].mxu0
        %1077 = vmatprep.mubr.bf16.mxu0 0
        %1078 = vmatmul.mubr.bf16.gmra.mrb[0].mxu0 %v758
        %v1079 = vpop.f32.mrb[0].mxu0
        %v1080 = vadd.f32 %v347, %v1079
        %v1081 = vpop.f32.mrb[0].mxu0
        %v1082 = vpop.f32.mrb[0].mxu0
        %v1083 = vadd.f32 %v347, %v1082
        %v1084 = vpop.f32.mrb[0].mxu0
        %1085 = vmatprep.mubr.bf16.mxu0 0
        %1086 = vmatmul.mubr.bf16.gmra.mrb[0].mxu0 %v761
        %v1087 = vpop.f32.mrb[0].mxu0
        %v1088 = vadd.f32 %v347, %v1087
        %v1089 = vpop.f32.mrb[0].mxu0
        %v1090 = vpop.f32.mrb[0].mxu0
        %v1091 = vadd.f32 %v347, %v1090
        %v1092 = vpop.f32.mrb[0].mxu0
        %1093 = vmatprep.mubr.bf16.mxu0 0
        %1094 = vmatmul.mubr.bf16.gmra.mrb[0].mxu0 %v764
        %v1095 = vpop.f32.mrb[0].mxu0
        %v1096 = vadd.f32 %v347, %v1095
        %v1097 = vpop.f32.mrb[0].mxu0
        %v1098 = vpop.f32.mrb[0].mxu0
        %v1099 = vadd.f32 %v347, %v1098
        %v1100 = vpop.f32.mrb[0].mxu0
        %1101 = vmatprep.mubr.bf16.mxu0 0
        %1102 = vmatmul.mubr.bf16.gmra.mrb[0].mxu0 %v767
        %v1103 = vpop.f32.mrb[0].mxu0
        %v1104 = vadd.f32 %v347, %v1103
        %v1105 = vpop.f32.mrb[0].mxu0
        %v1106 = vpop.f32.mrb[0].mxu0
        %v1107 = vadd.f32 %v347, %v1106
        %v1108 = vpop.f32.mrb[0].mxu0
        %1109 = vmatprep.mubr.bf16.mxu0 0
        %1110 = vmatmul.mubr.bf16.gmra.mrb[0].mxu0 %v770
        %v1111 = vpop.f32.mrb[0].mxu0
        %v1112 = vadd.f32 %v347, %v1111
        %v1113 = vpop.f32.mrb[0].mxu0
        %v1114 = vpop.f32.mrb[0].mxu0
        %v1115 = vadd.f32 %v347, %v1114
        %v1116 = vpop.f32.mrb[0].mxu0
        %1117 = vmatprep.mubr.bf16.mxu0 0
        %1118 = vmatmul.mubr.bf16.gmra.mrb[0].mxu0 %v773
        %v1119 = vpop.f32.mrb[0].mxu0
        %v1120 = vadd.f32 %v347, %v1119
        %v1121 = vpop.f32.mrb[0].mxu0
        %v1122 = vpop.f32.mrb[0].mxu0
        %v1123 = vadd.f32 %v347, %v1122
        %v1124 = vpop.f32.mrb[0].mxu0
        %1125 = vmatprep.mubr.bf16.mxu0 0
        %1126 = vmatmul.mubr.bf16.gmra.mrb[0].mxu0 %v776
        %v1127 = vpop.f32.mrb[0].mxu0
        %v1128 = vadd.f32 %v347, %v1127
        %v1129 = vpop.f32.mrb[0].mxu0
        %v1130 = vpop.f32.mrb[0].mxu0
        %v1131 = vadd.f32 %v347, %v1130
        %v1132 = vpop.f32.mrb[0].mxu0
        %1133 = vmatprep.mubr.bf16.mxu0 0
        %1134 = vmatmul.mubr.bf16.gmra.mrb[0].mxu0 %v779
        %v1135 = vpop.f32.mrb[0].mxu0
        %v1136 = vadd.f32 %v347, %v1135
        %v1137 = vpop.f32.mrb[0].mxu0
        %v1138 = vpop.f32.mrb[0].mxu0
        %v1139 = vadd.f32 %v347, %v1138
        %v1140 = vpop.f32.mrb[0].mxu0
        %1141 = vmatprep.mubr.bf16.mxu0 0
        %1142 = vmatmul.mubr.bf16.gmra.mrb[0].mxu0 %v782
        %v1143 = vpop.f32.mrb[0].mxu0
        %v1144 = vadd.f32 %v347, %v1143
        %v1145 = vpop.f32.mrb[0].mxu0
        %v1146 = vpop.f32.mrb[0].mxu0
        %v1147 = vadd.f32 %v347, %v1146
        %v1148 = vpop.f32.mrb[0].mxu0
        %1149 = vmatprep.mubr.bf16.mxu0 0
        %1150 = vmatmul.mubr.bf16.gmra.mrb[0].mxu0 %v785
        %v1151 = vpop.f32.mrb[0].mxu0
        %v1152 = vadd.f32 %v347, %v1151
        %v1153 = vpop.f32.mrb[0].mxu0
        %v1154 = vpop.f32.mrb[0].mxu0
        %v1155 = vadd.f32 %v347, %v1154
        %v1156 = vpop.f32.mrb[0].mxu0
        %1157 = vmatprep.mubr.bf16.mxu0 0
        %1158 = vmatmul.mubr.bf16.gmra.mrb[0].mxu0 %v788
        %v1159 = vpop.f32.mrb[0].mxu0
        %v1160 = vadd.f32 %v347, %v1159
        %v1161 = vpop.f32.mrb[0].mxu0
        %v1162 = vpop.f32.mrb[0].mxu0
        %v1163 = vadd.f32 %v347, %v1162
        %v1164 = vpop.f32.mrb[0].mxu0
        %1165 = vmatprep.mubr.bf16.mxu0 0
        %1166 = vmatmul.mubr.bf16.gmra.mrb[0].mxu0 %v791
        %v1167 = vpop.f32.mrb[0].mxu0
        %v1168 = vadd.f32 %v347, %v1167
        %v1169 = vpop.f32.mrb[0].mxu0
        %v1170 = vpop.f32.mrb[0].mxu0
        %v1171 = vadd.f32 %v347, %v1170
        %v1172 = vpop.f32.mrb[0].mxu0
        %1173 = vmatprep.mubr.bf16.mxu0 0
        %1174 = vmatmul.mubr.bf16.gmra.mrb[0].mxu0 %v794
        %v1175 = vpop.f32.mrb[0].mxu0
        %v1176 = vadd.f32 %v347, %v1175
        %v1177 = vpop.f32.mrb[0].mxu0
        %v1178 = vpop.f32.mrb[0].mxu0
        %v1179 = vadd.f32 %v347, %v1178
        %v1180 = vpop.f32.mrb[0].mxu0
        %1181 = vmatprep.mubr.bf16.mxu0 0
        %1182 = vmatmul.mubr.bf16.gmra.mrb[0].mxu0 %v797
        %v1183 = vpop.f32.mrb[0].mxu0
        %v1184 = vadd.f32 %v347, %v1183
        %v1185 = vpop.f32.mrb[0].mxu0
        %v1186 = vpop.f32.mrb[0].mxu0
        %v1187 = vadd.f32 %v347, %v1186
        %v1188 = vpop.f32.mrb[0].mxu0
        %1189 = vmatprep.mubr.bf16.mxu0 0
        %1190 = vmatmul.mubr.bf16.gmra.mrb[0].mxu0 %v800
        %v1191 = vpop.f32.mrb[0].mxu0
        %v1192 = vadd.f32 %v347, %v1191
        %v1193 = vpop.f32.mrb[0].mxu0
        %v1194 = vpop.f32.mrb[0].mxu0
        %v1195 = vadd.f32 %v347, %v1194
        %v1196 = vpop.f32.mrb[0].mxu0
        %1197 = vmatprep.mubr.bf16.mxu0 0
        %1198 = vmatmul.mubr.bf16.gmra.mrb[0].mxu0 %v803
        %v1199 = vpop.f32.mrb[0].mxu0
        %v1200 = vadd.f32 %v347, %v1199
        %v1201 = vpop.f32.mrb[0].mxu0
        %v1202 = vpop.f32.mrb[0].mxu0
        %v1203 = vadd.f32 %v347, %v1202
        %v1204 = vpop.f32.mrb[0].mxu0
        %1205 = vmatprep.mubr.bf16.mxu0 0
        %1206 = vmatmul.mubr.bf16.gmra.mrb[0].mxu0 %v806
        %v1207 = vpop.f32.mrb[0].mxu0
        %v1208 = vadd.f32 %v347, %v1207
        %v1209 = vpop.f32.mrb[0].mxu0
        %v1210 = vpop.f32.mrb[0].mxu0
        %v1211 = vadd.f32 %v347, %v1210
        %v1212 = vpop.f32.mrb[0].mxu0
        %1213 = vmatprep.mubr.bf16.mxu0 0
        %1214 = vmatmul.mubr.bf16.gmra.mrb[0].mxu0 %v809
        %v1215 = vpop.f32.mrb[0].mxu0
        %v1216 = vadd.f32 %v347, %v1215
        %v1217 = vpop.f32.mrb[0].mxu0
        %v1218 = vpop.f32.mrb[0].mxu0
        %v1219 = vadd.f32 %v347, %v1218
        %v1220 = vpop.f32.mrb[0].mxu0
        %1221 = vmatprep.mubr.bf16.mxu0 0
        %1222 = vmatmul.mubr.bf16.gmra.mrb[0].mxu0 %v812
        %v1223 = vpop.f32.mrb[0].mxu0
        %v1224 = vadd.f32 %v347, %v1223
        %v1225 = vpop.f32.mrb[0].mxu0
        %v1226 = vpop.f32.mrb[0].mxu0
        %v1227 = vadd.f32 %v347, %v1226
        %v1228 = vpop.f32.mrb[0].mxu0
        %1229 = vmatprep.mubr.bf16.mxu0 0
        %1230 = vmatmul.mubr.bf16.gmra.mrb[0].mxu0 %v815
        %v1231 = vpop.f32.mrb[0].mxu0
        %v1232 = vadd.f32 %v347, %v1231
        %v1233 = vpop.f32.mrb[0].mxu0
        %v1234 = vpop.f32.mrb[0].mxu0
        %v1235 = vadd.f32 %v347, %v1234
        %v1236 = vpop.f32.mrb[0].mxu0
        %1237 = vmatprep.mubr.bf16.mxu0 0
        %1238 = vmatmul.mubr.bf16.gmra.mrb[0].mxu0 %v818
        %v1239 = vpop.f32.mrb[0].mxu0
        %v1240 = vadd.f32 %v347, %v1239
        %v1241 = vpop.f32.mrb[0].mxu0
        %v1242 = vpop.f32.mrb[0].mxu0
        %v1243 = vadd.f32 %v347, %v1242
        %v1244 = vpop.f32.mrb[0].mxu0
        %1245 = vmatprep.mubr.bf16.mxu0 0
        %1246 = vmatmul.mubr.bf16.gmra.mrb[0].mxu0 %v821
        %v1247 = vpop.f32.mrb[0].mxu0
        %v1248 = vadd.f32 %v347, %v1247
        %v1249 = vpop.f32.mrb[0].mxu0
        %v1250 = vpop.f32.mrb[0].mxu0
        %v1251 = vadd.f32 %v347, %v1250
        %v1252 = vpop.f32.mrb[0].mxu0
        %1253 = vmatprep.mubr.bf16.mxu0 0
        %1254 = vmatmul.mubr.bf16.gmra.mrb[0].mxu0 %v824
        %v1255 = vpop.f32.mrb[0].mxu0
        %v1256 = vadd.f32 %v347, %v1255
        %v1257 = vpop.f32.mrb[0].mxu0
        %v1258 = vpop.f32.mrb[0].mxu0
        %v1259 = vadd.f32 %v347, %v1258
        %v1260 = vpop.f32.mrb[0].mxu0
        %1261 = vmatprep.mubr.bf16.mxu0 0
        %1262 = vmatmul.mubr.bf16.gmra.mrb[0].mxu0 %v827
        %v1263 = vpop.f32.mrb[0].mxu0
        %v1264 = vadd.f32 %v347, %v1263
        %v1265 = vpop.f32.mrb[0].mxu0
        %v1266 = vpop.f32.mrb[0].mxu0
        %v1267 = vadd.f32 %v347, %v1266
        %v1268 = vpop.f32.mrb[0].mxu0
        %1269 = vmatprep.mubr.bf16.mxu0 0
        %1270 = vmatmul.mubr.bf16.gmra.mrb[0].mxu0 %v830
        %v1271 = vpop.f32.mrb[0].mxu0
        %v1272 = vadd.f32 %v347, %v1271
        %v1273 = vpop.f32.mrb[0].mxu0
        %v1274 = vpop.f32.mrb[0].mxu0
        %v1275 = vadd.f32 %v347, %v1274
        %v1276 = vpop.f32.mrb[0].mxu0
        %1277 = vmatprep.mubr.bf16.mxu0 0
        %1278 = vmatmul.mubr.bf16.gmra.mrb[0].mxu0 %v833
        %v1279 = vpop.f32.mrb[0].mxu0
        %v1280 = vadd.f32 %v347, %v1279
        %v1281 = vpop.f32.mrb[0].mxu0
        %v1282 = vpop.f32.mrb[0].mxu0
        %v1283 = vadd.f32 %v347, %v1282
        %v1284 = vpop.f32.mrb[0].mxu0
        %1285 = vmatprep.mubr.bf16.mxu0 0
        %1286 = vmatmul.mubr.bf16.gmra.mrb[0].mxu0 %v836
        %v1287 = vpop.f32.mrb[0].mxu0
        %v1288 = vadd.f32 %v347, %v1287
        %v1289 = vpop.f32.mrb[0].mxu0
        %v1290 = vpop.f32.mrb[0].mxu0
        %v1291 = vadd.f32 %v347, %v1290
        %v1292 = vpop.f32.mrb[0].mxu0
        %1293 = vmatprep.mubr.bf16.mxu0 0
        %1294 = vmatmul.mubr.bf16.gmra.mrb[0].mxu0 %v839
        %v1295 = vpop.f32.mrb[0].mxu0
        %v1296 = vadd.f32 %v347, %v1295
        %v1297 = vpop.f32.mrb[0].mxu0
        %v1298 = vpop.f32.mrb[0].mxu0
        %v1299 = vadd.f32 %v347, %v1298
        %v1300 = vpop.f32.mrb[0].mxu0
        %1301 = vmatprep.mubr.bf16.mxu0 0
        %1302 = vmatmul.mubr.bf16.gmra.mrb[0].mxu0 %v842
        %v1303 = vpop.f32.mrb[0].mxu0
        %v1304 = vadd.f32 %v347, %v1303
        %v1305 = vpop.f32.mrb[0].mxu0
        %v1306 = vpop.f32.mrb[0].mxu0
        %v1307 = vadd.f32 %v347, %v1306
        %v1308 = vpop.f32.mrb[0].mxu0
        %1309 = vmatprep.mubr.bf16.mxu0 0
        %1310 = vmatmul.mubr.bf16.gmra.mrb[0].mxu0 %v845
        %v1311 = vpop.f32.mrb[0].mxu0
        %v1312 = vadd.f32 %v347, %v1311
        %v1313 = vpop.f32.mrb[0].mxu0
        %v1314 = vpop.f32.mrb[0].mxu0
        %v1315 = vadd.f32 %v347, %v1314
        %v1316 = vpop.f32.mrb[0].mxu0
        %1317 = vmatprep.mubr.bf16.mxu0 0
        %1318 = vmatmul.mubr.bf16.gmra.mrb[0].mxu0 %v848
        %v1319 = vpop.f32.mrb[0].mxu0
        %v1320 = vadd.f32 %v347, %v1319
        %v1321 = vpop.f32.mrb[0].mxu0
        %v1322 = vpop.f32.mrb[0].mxu0
        %v1323 = vadd.f32 %v347, %v1322
        %v1324 = vpop.f32.mrb[0].mxu0
        %1325 = vmatprep.mubr.bf16.mxu0 0
        %1326 = vmatmul.mubr.bf16.gmra.mrb[0].mxu0 %v851
        %v1327 = vpop.f32.mrb[0].mxu0
        %v1328 = vadd.f32 %v347, %v1327
        %v1329 = vpop.f32.mrb[0].mxu0
        %v1330 = vpop.f32.mrb[0].mxu0
        %v1331 = vadd.f32 %v347, %v1330
        %v1332 = vpop.f32.mrb[0].mxu0
        %1333 = vmatprep.mubr.bf16.mxu0 0
        %1334 = vmatmul.mubr.bf16.gmra.mrb[0].mxu0 %v854
        %v1335 = vpop.f32.mrb[0].mxu0
        %v1336 = vadd.f32 %v347, %v1335
        %v1337 = vpop.f32.mrb[0].mxu0
        %v1338 = vpop.f32.mrb[0].mxu0
        %v1339 = vadd.f32 %v347, %v1338
        %v1340 = vpop.f32.mrb[0].mxu0
        %1341 = vmatprep.mubr.bf16.mxu0 0
        %1342 = vmatmul.mubr.bf16.gmra.mrb[0].mxu0 %v857
        %v1343 = vpop.f32.mrb[0].mxu0
        %v1344 = vadd.f32 %v347, %v1343
        %v1345 = vpop.f32.mrb[0].mxu0
        %v1346 = vpop.f32.mrb[0].mxu0
        %v1347 = vadd.f32 %v347, %v1346
        %v1348 = vpop.f32.mrb[0].mxu0
        %1349 = vmatprep.mubr.bf16.mxu0 0
        %1350 = vmatmul.mubr.bf16.gmra.mrb[0].mxu0 %v860
        %v1351 = vpop.f32.mrb[0].mxu0
        %v1352 = vadd.f32 %v347, %v1351
        %v1353 = vpop.f32.mrb[0].mxu0
        %v1354 = vpop.f32.mrb[0].mxu0
        %v1355 = vadd.f32 %v347, %v1354
        %v1356 = vpop.f32.mrb[0].mxu0
        %1357 = vmatprep.mubr.bf16.mxu0 0
        %1358 = vmatmul.mubr.bf16.gmra.mrb[0].mxu0 %v863
        %v1359 = vpop.f32.mrb[0].mxu0
        %v1360 = vadd.f32 %v347, %v1359
        %v1361 = vpop.f32.mrb[0].mxu0
        %v1362 = vpop.f32.mrb[0].mxu0
        %v1363 = vadd.f32 %v347, %v1362
        %v1364 = vpop.f32.mrb[0].mxu0
        %1365 = vmatprep.mubr.bf16.mxu0 0
        %1366 = vmatmul.mubr.bf16.gmra.mrb[0].mxu0 %v866
        %v1367 = vpop.f32.mrb[0].mxu0
        %v1368 = vadd.f32 %v347, %v1367
        %v1369 = vpop.f32.mrb[0].mxu0
        %v1370 = vpop.f32.mrb[0].mxu0
        %v1371 = vadd.f32 %v347, %v1370
        %v1372 = vpop.f32.mrb[0].mxu0
        %1373 = vmatprep.mubr.bf16.mxu0 0
        %1374 = vmatmul.mubr.bf16.gmra.mrb[0].mxu0 %v869
        %v1375 = vpop.f32.mrb[0].mxu0
        %v1376 = vadd.f32 %v347, %v1375
        %v1377 = vpop.f32.mrb[0].mxu0
        %v1378 = vpop.f32.mrb[0].mxu0
        %v1379 = vadd.f32 %v347, %v1378
        %v1380 = vpop.f32.mrb[0].mxu0
        %1381 = vmatprep.mubr.bf16.mxu0 0
        %1382 = vmatmul.mubr.bf16.gmra.mrb[0].mxu0 %v872
        %v1383 = vpop.f32.mrb[0].mxu0
        %v1384 = vadd.f32 %v347, %v1383
        %v1385 = vpop.f32.mrb[0].mxu0
        %v1386 = vpop.f32.mrb[0].mxu0
        %v1387 = vadd.f32 %v347, %v1386
        %v1388 = vpop.f32.mrb[0].mxu0
        %1389 = vmatprep.mubr.bf16.mxu0 0
        %1390 = vmatmul.mubr.bf16.gmra.mrb[0].mxu0 %v875
        %v1391 = vpop.f32.mrb[0].mxu0
        %v1392 = vadd.f32 %v347, %v1391
        %v1393 = vpop.f32.mrb[0].mxu0
        %v1394 = vpop.f32.mrb[0].mxu0
        %v1395 = vadd.f32 %v347, %v1394
        %v1396 = vpop.f32.mrb[0].mxu0
        %1397 = vmatprep.mubr.bf16.mxu0 0
        %1398 = vmatmul.mubr.bf16.gmra.mrb[0].mxu0 %v878
        %v1399 = vpop.f32.mrb[0].mxu0
        %v1400 = vadd.f32 %v347, %v1399
        %v1401 = vpop.f32.mrb[0].mxu0
        %v1402 = vpop.f32.mrb[0].mxu0
        %v1403 = vadd.f32 %v347, %v1402
        %v1404 = vpop.f32.mrb[0].mxu0
        %1405 = vmatprep.mubr.bf16.mxu0 0
        %1406 = vmatmul.mubr.bf16.gmra.mrb[0].mxu0 %v881
        %v1407 = vpop.f32.mrb[0].mxu0
        %v1408 = vadd.f32 %v347, %v1407
        %v1409 = vpop.f32.mrb[0].mxu0
        %v1410 = vpop.f32.mrb[0].mxu0
        %v1411 = vadd.f32 %v347, %v1410
        %v1412 = vpop.f32.mrb[0].mxu0
        %1413 = vmatprep.mubr.bf16.mxu0 0
        %1414 = vmatmul.mubr.bf16.gmra.mrb[0].mxu0 %v884
        %v1415 = vpop.f32.mrb[0].mxu0
        %v1416 = vadd.f32 %v347, %v1415
        %v1417 = vpop.f32.mrb[0].mxu0
        %v1418 = vpop.f32.mrb[0].mxu0
        %v1419 = vadd.f32 %v347, %v1418
        %v1420 = vpop.f32.mrb[0].mxu0
        %1421 = vmatprep.mubr.bf16.mxu0 0
        %1422 = vmatmul.mubr.bf16.gmra.mrb[0].mxu0 %v887
        %v1423 = vpop.f32.mrb[0].mxu0
        %v1424 = vadd.f32 %v347, %v1423
        %v1425 = vpop.f32.mrb[0].mxu0
        %v1426 = vpop.f32.mrb[0].mxu0
        %v1427 = vadd.f32 %v347, %v1426
        %v1428 = vpop.f32.mrb[0].mxu0
        %1429 = vmatprep.mubr.bf16.mxu0 0
        %1430 = vmatmul.mubr.bf16.gmra.mrb[0].mxu0 %v890
        %v1431 = vpop.f32.mrb[0].mxu0
        %v1432 = vadd.f32 %v347, %v1431
        %v1433 = vpop.f32.mrb[0].mxu0
        %v1434 = vpop.f32.mrb[0].mxu0
        %v1435 = vadd.f32 %v347, %v1434
        %v1436 = vpop.f32.mrb[0].mxu0
        %1437 = vmatprep.mubr.bf16.mxu0 0
        %1438 = vmatmul.mubr.bf16.gmra.mrb[0].mxu0 %v893
        %v1439 = vpop.f32.mrb[0].mxu0
        %v1440 = vadd.f32 %v347, %v1439
        %v1441 = vpop.f32.mrb[0].mxu0
        %v1442 = vpop.f32.mrb[0].mxu0
        %v1443 = vadd.f32 %v347, %v1442
        %v1444 = vpop.f32.mrb[0].mxu0
        %1445 = vdwg.mxu0
        %vm1446 = vcmp.ge.f32.partialorder %v936, 0.0
        %vm1447 = vcmp.ge.f32.partialorder %v939, 0.0
        %vm1448 = vcmp.ge.f32.partialorder %v944, 0.0
        %vm1449 = vcmp.ge.f32.partialorder %v947, 0.0
        %vm1450 = vcmp.ge.f32.partialorder %v952, 0.0
        %vm1451 = vcmp.ge.f32.partialorder %v955, 0.0
        %vm1452 = vcmp.ge.f32.partialorder %v960, 0.0
        %vm1453 = vcmp.ge.f32.partialorder %v963, 0.0
        %vm1454 = vcmp.ge.f32.partialorder %v968, 0.0
        %vm1455 = vcmp.ge.f32.partialorder %v971, 0.0
        %vm1456 = vcmp.ge.f32.partialorder %v976, 0.0
        %vm1457 = vcmp.ge.f32.partialorder %v979, 0.0
        %vm1458 = vcmp.ge.f32.partialorder %v984, 0.0
        %vm1459 = vcmp.ge.f32.partialorder %v987, 0.0
        %vm1460 = vcmp.ge.f32.partialorder %v992, 0.0
        %vm1461 = vcmp.ge.f32.partialorder %v995, 0.0
        %vm1462 = vcmp.ge.f32.partialorder %v1000, 0.0
        %vm1463 = vcmp.ge.f32.partialorder %v1003, 0.0
        %vm1464 = vcmp.ge.f32.partialorder %v1008, 0.0
        %vm1465 = vcmp.ge.f32.partialorder %v1011, 0.0
        %vm1466 = vcmp.ge.f32.partialorder %v1016, 0.0
        %vm1467 = vcmp.ge.f32.partialorder %v1019, 0.0
        %vm1468 = vcmp.ge.f32.partialorder %v1024, 0.0
        %vm1469 = vcmp.ge.f32.partialorder %v1027, 0.0
        %vm1470 = vcmp.ge.f32.partialorder %v1032, 0.0
        %vm1471 = vcmp.ge.f32.partialorder %v1035, 0.0
        %vm1472 = vcmp.ge.f32.partialorder %v1040, 0.0
        %vm1473 = vcmp.ge.f32.partialorder %v1043, 0.0
        %vm1474 = vcmp.ge.f32.partialorder %v1048, 0.0
        %vm1475 = vcmp.ge.f32.partialorder %v1051, 0.0
        %vm1476 = vcmp.ge.f32.partialorder %v1056, 0.0
        %vm1477 = vcmp.ge.f32.partialorder %v1059, 0.0
        %vm1478 = vcmp.ge.f32.partialorder %v1064, 0.0
        %vm1479 = vcmp.ge.f32.partialorder %v1067, 0.0
        %vm1480 = vcmp.ge.f32.partialorder %v1072, 0.0
        %vm1481 = vcmp.ge.f32.partialorder %v1075, 0.0
        %vm1482 = vcmp.ge.f32.partialorder %v1080, 0.0
        %vm1483 = vcmp.ge.f32.partialorder %v1083, 0.0
        %vm1484 = vcmp.ge.f32.partialorder %v1088, 0.0
        %vm1485 = vcmp.ge.f32.partialorder %v1091, 0.0
        %vm1486 = vcmp.ge.f32.partialorder %v1096, 0.0
        %vm1487 = vcmp.ge.f32.partialorder %v1099, 0.0
        %vm1488 = vcmp.ge.f32.partialorder %v1104, 0.0
        %vm1489 = vcmp.ge.f32.partialorder %v1107, 0.0
        %vm1490 = vcmp.ge.f32.partialorder %v1112, 0.0
        %vm1491 = vcmp.ge.f32.partialorder %v1115, 0.0
        %vm1492 = vcmp.ge.f32.partialorder %v1120, 0.0
        %vm1493 = vcmp.ge.f32.partialorder %v1123, 0.0
        %vm1494 = vcmp.ge.f32.partialorder %v1128, 0.0
        %vm1495 = vcmp.ge.f32.partialorder %v1131, 0.0
        %vm1496 = vcmp.ge.f32.partialorder %v1136, 0.0
        %vm1497 = vcmp.ge.f32.partialorder %v1139, 0.0
        %vm1498 = vcmp.ge.f32.partialorder %v1144, 0.0
        %vm1499 = vcmp.ge.f32.partialorder %v1147, 0.0
        %vm1500 = vcmp.ge.f32.partialorder %v1152, 0.0
        %vm1501 = vcmp.ge.f32.partialorder %v1155, 0.0
        %vm1502 = vcmp.ge.f32.partialorder %v1160, 0.0
        %vm1503 = vcmp.ge.f32.partialorder %v1163, 0.0
        %vm1504 = vcmp.ge.f32.partialorder %v1168, 0.0
        %vm1505 = vcmp.ge.f32.partialorder %v1171, 0.0
        %vm1506 = vcmp.ge.f32.partialorder %v1176, 0.0
        %vm1507 = vcmp.ge.f32.partialorder %v1179, 0.0
        %vm1508 = vcmp.ge.f32.partialorder %v1184, 0.0
        %vm1509 = vcmp.ge.f32.partialorder %v1187, 0.0
        %vm1510 = vcmp.ge.f32.partialorder %v1192, 0.0
        %vm1511 = vcmp.ge.f32.partialorder %v1195, 0.0
        %vm1512 = vcmp.ge.f32.partialorder %v1200, 0.0
        %vm1513 = vcmp.ge.f32.partialorder %v1203, 0.0
        %vm1514 = vcmp.ge.f32.partialorder %v1208, 0.0
        %vm1515 = vcmp.ge.f32.partialorder %v1211, 0.0
        %vm1516 = vcmp.ge.f32.partialorder %v1216, 0.0
        %vm1517 = vcmp.ge.f32.partialorder %v1219, 0.0
        %vm1518 = vcmp.ge.f32.partialorder %v1224, 0.0
        %vm1519 = vcmp.ge.f32.partialorder %v1227, 0.0
        %vm1520 = vcmp.ge.f32.partialorder %v1232, 0.0
        %vm1521 = vcmp.ge.f32.partialorder %v1235, 0.0
        %vm1522 = vcmp.ge.f32.partialorder %v1240, 0.0
        %vm1523 = vcmp.ge.f32.partialorder %v1243, 0.0
        %vm1524 = vcmp.ge.f32.partialorder %v1248, 0.0
        %vm1525 = vcmp.ge.f32.partialorder %v1251, 0.0
        %vm1526 = vcmp.ge.f32.partialorder %v1256, 0.0
        %vm1527 = vcmp.ge.f32.partialorder %v1259, 0.0
        %vm1528 = vcmp.ge.f32.partialorder %v1264, 0.0
        %vm1529 = vcmp.ge.f32.partialorder %v1267, 0.0
        %vm1530 = vcmp.ge.f32.partialorder %v1272, 0.0
        %vm1531 = vcmp.ge.f32.partialorder %v1275, 0.0
        %vm1532 = vcmp.ge.f32.partialorder %v1280, 0.0
        %vm1533 = vcmp.ge.f32.partialorder %v1283, 0.0
        %vm1534 = vcmp.ge.f32.partialorder %v1288, 0.0
        %vm1535 = vcmp.ge.f32.partialorder %v1291, 0.0
        %vm1536 = vcmp.ge.f32.partialorder %v1296, 0.0
        %vm1537 = vcmp.ge.f32.partialorder %v1299, 0.0
        %vm1538 = vcmp.ge.f32.partialorder %v1304, 0.0
        %vm1539 = vcmp.ge.f32.partialorder %v1307, 0.0
        %vm1540 = vcmp.ge.f32.partialorder %v1312, 0.0
        %vm1541 = vcmp.ge.f32.partialorder %v1315, 0.0
        %vm1542 = vcmp.ge.f32.partialorder %v1320, 0.0
        %vm1543 = vcmp.ge.f32.partialorder %v1323, 0.0
        %vm1544 = vcmp.ge.f32.partialorder %v1328, 0.0
        %vm1545 = vcmp.ge.f32.partialorder %v1331, 0.0
        %vm1546 = vcmp.ge.f32.partialorder %v1336, 0.0
        %vm1547 = vcmp.ge.f32.partialorder %v1339, 0.0
        %vm1548 = vcmp.ge.f32.partialorder %v1344, 0.0
        %vm1549 = vcmp.ge.f32.partialorder %v1347, 0.0
        %vm1550 = vcmp.ge.f32.partialorder %v1352, 0.0
        %vm1551 = vcmp.ge.f32.partialorder %v1355, 0.0
        %vm1552 = vcmp.ge.f32.partialorder %v1360, 0.0
        %vm1553 = vcmp.ge.f32.partialorder %v1363, 0.0
        %vm1554 = vcmp.ge.f32.partialorder %v1368, 0.0
        %vm1555 = vcmp.ge.f32.partialorder %v1371, 0.0
        %vm1556 = vcmp.ge.f32.partialorder %v1376, 0.0
        %vm1557 = vcmp.ge.f32.partialorder %v1379, 0.0
        %vm1558 = vcmp.ge.f32.partialorder %v1384, 0.0
        %vm1559 = vcmp.ge.f32.partialorder %v1387, 0.0
        %vm1560 = vcmp.ge.f32.partialorder %v1392, 0.0
        %vm1561 = vcmp.ge.f32.partialorder %v1395, 0.0
        %vm1562 = vcmp.ge.f32.partialorder %v1400, 0.0
        %vm1563 = vcmp.ge.f32.partialorder %v1403, 0.0
        %vm1564 = vcmp.ge.f32.partialorder %v1408, 0.0
        %vm1565 = vcmp.ge.f32.partialorder %v1411, 0.0
        %vm1566 = vcmp.ge.f32.partialorder %v1416, 0.0
        %vm1567 = vcmp.ge.f32.partialorder %v1419, 0.0
        %vm1568 = vcmp.ge.f32.partialorder %v1424, 0.0
        %vm1569 = vcmp.ge.f32.partialorder %v1427, 0.0
        %vm1570 = vcmp.ge.f32.partialorder %v1432, 0.0
        %vm1571 = vcmp.ge.f32.partialorder %v1435, 0.0
        %vm1572 = vcmp.ge.f32.partialorder %v1440, 0.0
        %vm1573 = vcmp.ge.f32.partialorder %v1443, 0.0
        %v1574 = vmul.f32 %v936, 0.2
        %v1575 = vmul.f32 %v939, 0.2
        %v1576 = vmul.f32 %v944, 0.2
        %v1577 = vmul.f32 %v947, 0.2
        %v1578 = vmul.f32 %v952, 0.2
        %v1579 = vmul.f32 %v955, 0.2
        %v1580 = vmul.f32 %v960, 0.2
        %v1581 = vmul.f32 %v963, 0.2
        %v1582 = vmul.f32 %v968, 0.2
        %v1583 = vmul.f32 %v971, 0.2
        %v1584 = vmul.f32 %v976, 0.2
        %v1585 = vmul.f32 %v979, 0.2
        %v1586 = vmul.f32 %v984, 0.2
        %v1587 = vmul.f32 %v987, 0.2
        %v1588 = vmul.f32 %v992, 0.2
        %v1589 = vmul.f32 %v995, 0.2
        %v1590 = vmul.f32 %v1000, 0.2
        %v1591 = vmul.f32 %v1003, 0.2
        %v1592 = vmul.f32 %v1008, 0.2
        %v1593 = vmul.f32 %v1011, 0.2
        %v1594 = vmul.f32 %v1016, 0.2
        %v1595 = vmul.f32 %v1019, 0.2
        %v1596 = vmul.f32 %v1024, 0.2
        %v1597 = vmul.f32 %v1027, 0.2
        %v1598 = vmul.f32 %v1032, 0.2
        %v1599 = vmul.f32 %v1035, 0.2
        %v1600 = vmul.f32 %v1040, 0.2
        %v1601 = vmul.f32 %v1043, 0.2
        %v1602 = vmul.f32 %v1048, 0.2
        %v1603 = vmul.f32 %v1051, 0.2
        %v1604 = vmul.f32 %v1056, 0.2
        %v1605 = vmul.f32 %v1059, 0.2
        %v1606 = vmul.f32 %v1064, 0.2
        %v1607 = vmul.f32 %v1067, 0.2
        %v1608 = vmul.f32 %v1072, 0.2
        %v1609 = vmul.f32 %v1075, 0.2
        %v1610 = vmul.f32 %v1080, 0.2
        %v1611 = vmul.f32 %v1083, 0.2
        %v1612 = vmul.f32 %v1088, 0.2
        %v1613 = vmul.f32 %v1091, 0.2
        %v1614 = vmul.f32 %v1096, 0.2
        %v1615 = vmul.f32 %v1099, 0.2
        %v1616 = vmul.f32 %v1104, 0.2
        %v1617 = vmul.f32 %v1107, 0.2
        %v1618 = vmul.f32 %v1112, 0.2
        %v1619 = vmul.f32 %v1115, 0.2
        %v1620 = vmul.f32 %v1120, 0.2
        %v1621 = vmul.f32 %v1123, 0.2
        %v1622 = vmul.f32 %v1128, 0.2
        %v1623 = vmul.f32 %v1131, 0.2
        %v1624 = vmul.f32 %v1136, 0.2
        %v1625 = vmul.f32 %v1139, 0.2
        %v1626 = vmul.f32 %v1144, 0.2
        %v1627 = vmul.f32 %v1147, 0.2
        %v1628 = vmul.f32 %v1152, 0.2
        %v1629 = vmul.f32 %v1155, 0.2
        %v1630 = vmul.f32 %v1160, 0.2
        %v1631 = vmul.f32 %v1163, 0.2
        %v1632 = vmul.f32 %v1168, 0.2
        %v1633 = vmul.f32 %v1171, 0.2
        %v1634 = vmul.f32 %v1176, 0.2
        %v1635 = vmul.f32 %v1179, 0.2
        %v1636 = vmul.f32 %v1184, 0.2
        %v1637 = vmul.f32 %v1187, 0.2
        %v1638 = vmul.f32 %v1192, 0.2
        %v1639 = vmul.f32 %v1195, 0.2
        %v1640 = vmul.f32 %v1200, 0.2
        %v1641 = vmul.f32 %v1203, 0.2
        %v1642 = vmul.f32 %v1208, 0.2
        %v1643 = vmul.f32 %v1211, 0.2
        %v1644 = vmul.f32 %v1216, 0.2
        %v1645 = vmul.f32 %v1219, 0.2
        %v1646 = vmul.f32 %v1224, 0.2
        %v1647 = vmul.f32 %v1227, 0.2
        %v1648 = vmul.f32 %v1232, 0.2
        %v1649 = vmul.f32 %v1235, 0.2
        %v1650 = vmul.f32 %v1240, 0.2
        %v1651 = vmul.f32 %v1243, 0.2
        %v1652 = vmul.f32 %v1248, 0.2
        %v1653 = vmul.f32 %v1251, 0.2
        %v1654 = vmul.f32 %v1256, 0.2
        %v1655 = vmul.f32 %v1259, 0.2
        %v1656 = vmul.f32 %v1264, 0.2
        %v1657 = vmul.f32 %v1267, 0.2
        %v1658 = vmul.f32 %v1272, 0.2
        %v1659 = vmul.f32 %v1275, 0.2
        %v1660 = vmul.f32 %v1280, 0.2
        %v1661 = vmul.f32 %v1283, 0.2
        %v1662 = vmul.f32 %v1288, 0.2
        %v1663 = vmul.f32 %v1291, 0.2
        %v1664 = vmul.f32 %v1296, 0.2
        %v1665 = vmul.f32 %v1299, 0.2
        %v1666 = vmul.f32 %v1304, 0.2
        %v1667 = vmul.f32 %v1307, 0.2
        %v1668 = vmul.f32 %v1312, 0.2
        %v1669 = vmul.f32 %v1315, 0.2
        %v1670 = vmul.f32 %v1320, 0.2
        %v1671 = vmul.f32 %v1323, 0.2
        %v1672 = vmul.f32 %v1328, 0.2
        %v1673 = vmul.f32 %v1331, 0.2
        %v1674 = vmul.f32 %v1336, 0.2
        %v1675 = vmul.f32 %v1339, 0.2
        %v1676 = vmul.f32 %v1344, 0.2
        %v1677 = vmul.f32 %v1347, 0.2
        %v1678 = vmul.f32 %v1352, 0.2
        %v1679 = vmul.f32 %v1355, 0.2
        %v1680 = vmul.f32 %v1360, 0.2
        %v1681 = vmul.f32 %v1363, 0.2
        %v1682 = vmul.f32 %v1368, 0.2
        %v1683 = vmul.f32 %v1371, 0.2
        %v1684 = vmul.f32 %v1376, 0.2
        %v1685 = vmul.f32 %v1379, 0.2
        %v1686 = vmul.f32 %v1384, 0.2
        %v1687 = vmul.f32 %v1387, 0.2
        %v1688 = vmul.f32 %v1392, 0.2
        %v1689 = vmul.f32 %v1395, 0.2
        %v1690 = vmul.f32 %v1400, 0.2
        %v1691 = vmul.f32 %v1403, 0.2
        %v1692 = vmul.f32 %v1408, 0.2
        %v1693 = vmul.f32 %v1411, 0.2
        %v1694 = vmul.f32 %v1416, 0.2
        %v1695 = vmul.f32 %v1419, 0.2
        %v1696 = vmul.f32 %v1424, 0.2
        %v1697 = vmul.f32 %v1427, 0.2
        %v1698 = vmul.f32 %v1432, 0.2
        %v1699 = vmul.f32 %v1435, 0.2
        %v1700 = vmul.f32 %v1440, 0.2
        %v1701 = vmul.f32 %v1443, 0.2
        %v1702 = vsel %vm1446, %v936, %v1574
        %v1703 = vsel %vm1447, %v939, %v1575
        %v1704 = vsel %vm1448, %v944, %v1576
        %v1705 = vsel %vm1449, %v947, %v1577
        %v1706 = vsel %vm1450, %v952, %v1578
        %v1707 = vsel %vm1451, %v955, %v1579
        %v1708 = vsel %vm1452, %v960, %v1580
        %v1709 = vsel %vm1453, %v963, %v1581
        %v1710 = vsel %vm1454, %v968, %v1582
        %v1711 = vsel %vm1455, %v971, %v1583
        %v1712 = vsel %vm1456, %v976, %v1584
        %v1713 = vsel %vm1457, %v979, %v1585
        %v1714 = vsel %vm1458, %v984, %v1586
        %v1715 = vsel %vm1459, %v987, %v1587
        %v1716 = vsel %vm1460, %v992, %v1588
        %v1717 = vsel %vm1461, %v995, %v1589
        %v1718 = vsel %vm1462, %v1000, %v1590
        %v1719 = vsel %vm1463, %v1003, %v1591
        %v1720 = vsel %vm1464, %v1008, %v1592
        %v1721 = vsel %vm1465, %v1011, %v1593
        %v1722 = vsel %vm1466, %v1016, %v1594
        %v1723 = vsel %vm1467, %v1019, %v1595
        %v1724 = vsel %vm1468, %v1024, %v1596
        %v1725 = vsel %vm1469, %v1027, %v1597
        %v1726 = vsel %vm1470, %v1032, %v1598
        %v1727 = vsel %vm1471, %v1035, %v1599
        %v1728 = vsel %vm1472, %v1040, %v1600
        %v1729 = vsel %vm1473, %v1043, %v1601
        %v1730 = vsel %vm1474, %v1048, %v1602
        %v1731 = vsel %vm1475, %v1051, %v1603
        %v1732 = vsel %vm1476, %v1056, %v1604
        %v1733 = vsel %vm1477, %v1059, %v1605
        %v1734 = vsel %vm1478, %v1064, %v1606
        %v1735 = vsel %vm1479, %v1067, %v1607
        %v1736 = vsel %vm1480, %v1072, %v1608
        %v1737 = vsel %vm1481, %v1075, %v1609
        %v1738 = vsel %vm1482, %v1080, %v1610
        %v1739 = vsel %vm1483, %v1083, %v1611
        %v1740 = vsel %vm1484, %v1088, %v1612
        %v1741 = vsel %vm1485, %v1091, %v1613
        %v1742 = vsel %vm1486, %v1096, %v1614
        %v1743 = vsel %vm1487, %v1099, %v1615
        %v1744 = vsel %vm1488, %v1104, %v1616
        %v1745 = vsel %vm1489, %v1107, %v1617
        %v1746 = vsel %vm1490, %v1112, %v1618
        %v1747 = vsel %vm1491, %v1115, %v1619
        %v1748 = vsel %vm1492, %v1120, %v1620
        %v1749 = vsel %vm1493, %v1123, %v1621
        %v1750 = vsel %vm1494, %v1128, %v1622
        %v1751 = vsel %vm1495, %v1131, %v1623
        %v1752 = vsel %vm1496, %v1136, %v1624
        %v1753 = vsel %vm1497, %v1139, %v1625
        %v1754 = vsel %vm1498, %v1144, %v1626
        %v1755 = vsel %vm1499, %v1147, %v1627
        %v1756 = vsel %vm1500, %v1152, %v1628
        %v1757 = vsel %vm1501, %v1155, %v1629
        %v1758 = vsel %vm1502, %v1160, %v1630
        %v1759 = vsel %vm1503, %v1163, %v1631
        %v1760 = vsel %vm1504, %v1168, %v1632
        %v1761 = vsel %vm1505, %v1171, %v1633
        %v1762 = vsel %vm1506, %v1176, %v1634
        %v1763 = vsel %vm1507, %v1179, %v1635
        %v1764 = vsel %vm1508, %v1184, %v1636
        %v1765 = vsel %vm1509, %v1187, %v1637
        %v1766 = vsel %vm1510, %v1192, %v1638
        %v1767 = vsel %vm1511, %v1195, %v1639
        %v1768 = vsel %vm1512, %v1200, %v1640
        %v1769 = vsel %vm1513, %v1203, %v1641
        %v1770 = vsel %vm1514, %v1208, %v1642
        %v1771 = vsel %vm1515, %v1211, %v1643
        %v1772 = vsel %vm1516, %v1216, %v1644
        %v1773 = vsel %vm1517, %v1219, %v1645
        %v1774 = vsel %vm1518, %v1224, %v1646
        %v1775 = vsel %vm1519, %v1227, %v1647
        %v1776 = vsel %vm1520, %v1232, %v1648
        %v1777 = vsel %vm1521, %v1235, %v1649
        %v1778 = vsel %vm1522, %v1240, %v1650
        %v1779 = vsel %vm1523, %v1243, %v1651
        %v1780 = vsel %vm1524, %v1248, %v1652
        %v1781 = vsel %vm1525, %v1251, %v1653
        %v1782 = vsel %vm1526, %v1256, %v1654
        %v1783 = vsel %vm1527, %v1259, %v1655
        %v1784 = vsel %vm1528, %v1264, %v1656
        %v1785 = vsel %vm1529, %v1267, %v1657
        %v1786 = vsel %vm1530, %v1272, %v1658
        %v1787 = vsel %vm1531, %v1275, %v1659
        %v1788 = vsel %vm1532, %v1280, %v1660
        %v1789 = vsel %vm1533, %v1283, %v1661
        %v1790 = vsel %vm1534, %v1288, %v1662
        %v1791 = vsel %vm1535, %v1291, %v1663
        %v1792 = vsel %vm1536, %v1296, %v1664
        %v1793 = vsel %vm1537, %v1299, %v1665
        %v1794 = vsel %vm1538, %v1304, %v1666
        %v1795 = vsel %vm1539, %v1307, %v1667
        %v1796 = vsel %vm1540, %v1312, %v1668
        %v1797 = vsel %vm1541, %v1315, %v1669
        %v1798 = vsel %vm1542, %v1320, %v1670
        %v1799 = vsel %vm1543, %v1323, %v1671
        %v1800 = vsel %vm1544, %v1328, %v1672
        %v1801 = vsel %vm1545, %v1331, %v1673
        %v1802 = vsel %vm1546, %v1336, %v1674
        %v1803 = vsel %vm1547, %v1339, %v1675
        %v1804 = vsel %vm1548, %v1344, %v1676
        %v1805 = vsel %vm1549, %v1347, %v1677
        %v1806 = vsel %vm1550, %v1352, %v1678
        %v1807 = vsel %vm1551, %v1355, %v1679
        %v1808 = vsel %vm1552, %v1360, %v1680
        %v1809 = vsel %vm1553, %v1363, %v1681
        %v1810 = vsel %vm1554, %v1368, %v1682
        %v1811 = vsel %vm1555, %v1371, %v1683
        %v1812 = vsel %vm1556, %v1376, %v1684
        %v1813 = vsel %vm1557, %v1379, %v1685
        %v1814 = vsel %vm1558, %v1384, %v1686
        %v1815 = vsel %vm1559, %v1387, %v1687
        %v1816 = vsel %vm1560, %v1392, %v1688
        %v1817 = vsel %vm1561, %v1395, %v1689
        %v1818 = vsel %vm1562, %v1400, %v1690
        %v1819 = vsel %vm1563, %v1403, %v1691
        %v1820 = vsel %vm1564, %v1408, %v1692
        %v1821 = vsel %vm1565, %v1411, %v1693
        %v1822 = vsel %vm1566, %v1416, %v1694
        %v1823 = vsel %vm1567, %v1419, %v1695
        %v1824 = vsel %vm1568, %v1424, %v1696
        %v1825 = vsel %vm1569, %v1427, %v1697
        %v1826 = vsel %vm1570, %v1432, %v1698
        %v1827 = vsel %vm1571, %v1435, %v1699
        %v1828 = vsel %vm1572, %v1440, %v1700
        %v1829 = vsel %vm1573, %v1443, %v1701
        %v1830 = vpack.c.bf16 %v1703, %v1702
        %v1831 = vpack.c.bf16 %v1705, %v1704
        %v1832 = vpack.c.bf16 %v1707, %v1706
        %v1833 = vpack.c.bf16 %v1709, %v1708
        %v1834 = vpack.c.bf16 %v1711, %v1710
        %v1835 = vpack.c.bf16 %v1713, %v1712
        %v1836 = vpack.c.bf16 %v1715, %v1714
        %v1837 = vpack.c.bf16 %v1717, %v1716
        %v1838 = vpack.c.bf16 %v1719, %v1718
        %v1839 = vpack.c.bf16 %v1721, %v1720
        %v1840 = vpack.c.bf16 %v1723, %v1722
        %v1841 = vpack.c.bf16 %v1725, %v1724
        %v1842 = vpack.c.bf16 %v1727, %v1726
        %v1843 = vpack.c.bf16 %v1729, %v1728
        %v1844 = vpack.c.bf16 %v1731, %v1730
        %v1845 = vpack.c.bf16 %v1733, %v1732
        %v1846 = vpack.c.bf16 %v1735, %v1734
        %v1847 = vpack.c.bf16 %v1737, %v1736
        %v1848 = vpack.c.bf16 %v1739, %v1738
        %v1849 = vpack.c.bf16 %v1741, %v1740
        %v1850 = vpack.c.bf16 %v1743, %v1742
        %v1851 = vpack.c.bf16 %v1745, %v1744
        %v1852 = vpack.c.bf16 %v1747, %v1746
        %v1853 = vpack.c.bf16 %v1749, %v1748
        %v1854 = vpack.c.bf16 %v1751, %v1750
        %v1855 = vpack.c.bf16 %v1753, %v1752
        %v1856 = vpack.c.bf16 %v1755, %v1754
        %v1857 = vpack.c.bf16 %v1757, %v1756
        %v1858 = vpack.c.bf16 %v1759, %v1758
        %v1859 = vpack.c.bf16 %v1761, %v1760
        %v1860 = vpack.c.bf16 %v1763, %v1762
        %v1861 = vpack.c.bf16 %v1765, %v1764
        %v1862 = vpack.c.bf16 %v1767, %v1766
        %v1863 = vpack.c.bf16 %v1769, %v1768
        %v1864 = vpack.c.bf16 %v1771, %v1770
        %v1865 = vpack.c.bf16 %v1773, %v1772
        %v1866 = vpack.c.bf16 %v1775, %v1774
        %v1867 = vpack.c.bf16 %v1777, %v1776
        %v1868 = vpack.c.bf16 %v1779, %v1778
        %v1869 = vpack.c.bf16 %v1781, %v1780
        %v1870 = vpack.c.bf16 %v1783, %v1782
        %v1871 = vpack.c.bf16 %v1785, %v1784
        %v1872 = vpack.c.bf16 %v1787, %v1786
        %v1873 = vpack.c.bf16 %v1789, %v1788
        %v1874 = vpack.c.bf16 %v1791, %v1790
        %v1875 = vpack.c.bf16 %v1793, %v1792
        %v1876 = vpack.c.bf16 %v1795, %v1794
        %v1877 = vpack.c.bf16 %v1797, %v1796
        %v1878 = vpack.c.bf16 %v1799, %v1798
        %v1879 = vpack.c.bf16 %v1801, %v1800
        %v1880 = vpack.c.bf16 %v1803, %v1802
        %v1881 = vpack.c.bf16 %v1805, %v1804
        %v1882 = vpack.c.bf16 %v1807, %v1806
        %v1883 = vpack.c.bf16 %v1809, %v1808
        %v1884 = vpack.c.bf16 %v1811, %v1810
        %v1885 = vpack.c.bf16 %v1813, %v1812
        %v1886 = vpack.c.bf16 %v1815, %v1814
        %v1887 = vpack.c.bf16 %v1817, %v1816
        %v1888 = vpack.c.bf16 %v1819, %v1818
        %v1889 = vpack.c.bf16 %v1821, %v1820
        %v1890 = vpack.c.bf16 %v1823, %v1822
        %v1891 = vpack.c.bf16 %v1825, %v1824
        %v1892 = vpack.c.bf16 %v1827, %v1826
        %v1893 = vpack.c.bf16 %v1829, %v1828
        %v1958 = vunpack.c.l.b16 %v1830
        %v1959 = vunpack.c.h.b16 %v1830
        %v1960 = vunpack.c.l.b16 %v1831
        %v1961 = vunpack.c.h.b16 %v1831
        %v1962 = vunpack.c.l.b16 %v1832
        %v1963 = vunpack.c.h.b16 %v1832
        %v1964 = vunpack.c.l.b16 %v1833
        %v1965 = vunpack.c.h.b16 %v1833
        %v1966 = vunpack.c.l.b16 %v1834
        %v1967 = vunpack.c.h.b16 %v1834
        %v1968 = vunpack.c.l.b16 %v1835
        %v1969 = vunpack.c.h.b16 %v1835
        %v1970 = vunpack.c.l.b16 %v1836
        %v1971 = vunpack.c.h.b16 %v1836
        %v1972 = vunpack.c.l.b16 %v1837
        %v1973 = vunpack.c.h.b16 %v1837
        %v1974 = vunpack.c.l.b16 %v1838
        %v1975 = vunpack.c.h.b16 %v1838
        %v1976 = vunpack.c.l.b16 %v1839
        %v1977 = vunpack.c.h.b16 %v1839
        %v1978 = vunpack.c.l.b16 %v1840
        %v1979 = vunpack.c.h.b16 %v1840
        %v1980 = vunpack.c.l.b16 %v1841
        %v1981 = vunpack.c.h.b16 %v1841
        %v1982 = vunpack.c.l.b16 %v1842
        %v1983 = vunpack.c.h.b16 %v1842
        %v1984 = vunpack.c.l.b16 %v1843
        %v1985 = vunpack.c.h.b16 %v1843
        %v1986 = vunpack.c.l.b16 %v1844
        %v1987 = vunpack.c.h.b16 %v1844
        %v1988 = vunpack.c.l.b16 %v1845
        %v1989 = vunpack.c.h.b16 %v1845
        %v1990 = vunpack.c.l.b16 %v1846
        %v1991 = vunpack.c.h.b16 %v1846
        %v1992 = vunpack.c.l.b16 %v1847
        %v1993 = vunpack.c.h.b16 %v1847
        %v1994 = vunpack.c.l.b16 %v1848
        %v1995 = vunpack.c.h.b16 %v1848
        %v1996 = vunpack.c.l.b16 %v1849
        %v1997 = vunpack.c.h.b16 %v1849
        %v1998 = vunpack.c.l.b16 %v1850
        %v1999 = vunpack.c.h.b16 %v1850
        %v2000 = vunpack.c.l.b16 %v1851
        %v2001 = vunpack.c.h.b16 %v1851
        %v2002 = vunpack.c.l.b16 %v1852
        %v2003 = vunpack.c.h.b16 %v1852
        %v2004 = vunpack.c.l.b16 %v1853
        %v2005 = vunpack.c.h.b16 %v1853
        %v2006 = vunpack.c.l.b16 %v1854
        %v2007 = vunpack.c.h.b16 %v1854
        %v2008 = vunpack.c.l.b16 %v1855
        %v2009 = vunpack.c.h.b16 %v1855
        %v2010 = vunpack.c.l.b16 %v1856
        %v2011 = vunpack.c.h.b16 %v1856
        %v2012 = vunpack.c.l.b16 %v1857
        %v2013 = vunpack.c.h.b16 %v1857
        %v2014 = vunpack.c.l.b16 %v1858
        %v2015 = vunpack.c.h.b16 %v1858
        %v2016 = vunpack.c.l.b16 %v1859
        %v2017 = vunpack.c.h.b16 %v1859
        %v2018 = vunpack.c.l.b16 %v1860
        %v2019 = vunpack.c.h.b16 %v1860
        %v2020 = vunpack.c.l.b16 %v1861
        %v2021 = vunpack.c.h.b16 %v1861
        %v2022 = vunpack.c.l.b16 %v1862
        %v2023 = vunpack.c.h.b16 %v1862
        %v2024 = vunpack.c.l.b16 %v1863
        %v2025 = vunpack.c.h.b16 %v1863
        %v2026 = vunpack.c.l.b16 %v1864
        %v2027 = vunpack.c.h.b16 %v1864
        %v2028 = vunpack.c.l.b16 %v1865
        %v2029 = vunpack.c.h.b16 %v1865
        %v2030 = vunpack.c.l.b16 %v1866
        %v2031 = vunpack.c.h.b16 %v1866
        %v2032 = vunpack.c.l.b16 %v1867
        %v2033 = vunpack.c.h.b16 %v1867
        %v2034 = vunpack.c.l.b16 %v1868
        %v2035 = vunpack.c.h.b16 %v1868
        %v2036 = vunpack.c.l.b16 %v1869
        %v2037 = vunpack.c.h.b16 %v1869
        %v2038 = vunpack.c.l.b16 %v1870
        %v2039 = vunpack.c.h.b16 %v1870
        %v2040 = vunpack.c.l.b16 %v1871
        %v2041 = vunpack.c.h.b16 %v1871
        %v2042 = vunpack.c.l.b16 %v1872
        %v2043 = vunpack.c.h.b16 %v1872
        %v2044 = vunpack.c.l.b16 %v1873
        %v2045 = vunpack.c.h.b16 %v1873
        %v2046 = vunpack.c.l.b16 %v1874
        %v2047 = vunpack.c.h.b16 %v1874
        %v2048 = vunpack.c.l.b16 %v1875
        %v2049 = vunpack.c.h.b16 %v1875
        %v2050 = vunpack.c.l.b16 %v1876
        %v2051 = vunpack.c.h.b16 %v1876
        %v2052 = vunpack.c.l.b16 %v1877
        %v2053 = vunpack.c.h.b16 %v1877
        %v2054 = vunpack.c.l.b16 %v1878
        %v2055 = vunpack.c.h.b16 %v1878
        %v2056 = vunpack.c.l.b16 %v1879
        %v2057 = vunpack.c.h.b16 %v1879
        %v2058 = vunpack.c.l.b16 %v1880
        %v2059 = vunpack.c.h.b16 %v1880
        %v2060 = vunpack.c.l.b16 %v1881
        %v2061 = vunpack.c.h.b16 %v1881
        %v2062 = vunpack.c.l.b16 %v1882
        %v2063 = vunpack.c.h.b16 %v1882
        %v2064 = vunpack.c.l.b16 %v1883
        %v2065 = vunpack.c.h.b16 %v1883
        %v2066 = vunpack.c.l.b16 %v1884
        %v2067 = vunpack.c.h.b16 %v1884
        %v2068 = vunpack.c.l.b16 %v1885
        %v2069 = vunpack.c.h.b16 %v1885
        %v2070 = vunpack.c.l.b16 %v1886
        %v2071 = vunpack.c.h.b16 %v1886
        %v2072 = vunpack.c.l.b16 %v1887
        %v2073 = vunpack.c.h.b16 %v1887
        %v2074 = vunpack.c.l.b16 %v1888
        %v2075 = vunpack.c.h.b16 %v1888
        %v2076 = vunpack.c.l.b16 %v1889
        %v2077 = vunpack.c.h.b16 %v1889
        %v2078 = vunpack.c.l.b16 %v1890
        %v2079 = vunpack.c.h.b16 %v1890
        %v2080 = vunpack.c.l.b16 %v1891
        %v2081 = vunpack.c.h.b16 %v1891
        %v2082 = vunpack.c.l.b16 %v1892
        %v2083 = vunpack.c.h.b16 %v1892
        %v2084 = vunpack.c.l.b16 %v1893
        %v2085 = vunpack.c.h.b16 %v1893
        %v2086 = vpack.c.b16 %v1958, %v1958
        %v2087 = vpack.c.b16 %v1959, %v1959
        %v2088 = vpack.c.b16 %v1960, %v1960
        %v2089 = vpack.c.b16 %v1961, %v1961
        %v2090 = vpack.c.b16 %v1962, %v1962
        %v2091 = vpack.c.b16 %v1963, %v1963
        %v2092 = vpack.c.b16 %v1964, %v1964
        %v2093 = vpack.c.b16 %v1965, %v1965
        %v2094 = vpack.c.b16 %v1966, %v1966
        %v2095 = vpack.c.b16 %v1967, %v1967
        %v2096 = vpack.c.b16 %v1968, %v1968
        %v2097 = vpack.c.b16 %v1969, %v1969
        %v2098 = vpack.c.b16 %v1970, %v1970
        %v2099 = vpack.c.b16 %v1971, %v1971
        %v2100 = vpack.c.b16 %v1972, %v1972
        %v2101 = vpack.c.b16 %v1973, %v1973
        %v2102 = vpack.c.b16 %v1974, %v1974
        %v2103 = vpack.c.b16 %v1975, %v1975
        %v2104 = vpack.c.b16 %v1976, %v1976
        %v2105 = vpack.c.b16 %v1977, %v1977
        %v2106 = vpack.c.b16 %v1978, %v1978
        %v2107 = vpack.c.b16 %v1979, %v1979
        %v2108 = vpack.c.b16 %v1980, %v1980
        %v2109 = vpack.c.b16 %v1981, %v1981
        %v2110 = vpack.c.b16 %v1982, %v1982
        %v2111 = vpack.c.b16 %v1983, %v1983
        %v2112 = vpack.c.b16 %v1984, %v1984
        %v2113 = vpack.c.b16 %v1985, %v1985
        %v2114 = vpack.c.b16 %v1986, %v1986
        %v2115 = vpack.c.b16 %v1987, %v1987
        %v2116 = vpack.c.b16 %v1988, %v1988
        %v2117 = vpack.c.b16 %v1989, %v1989
        %v2118 = vpack.c.b16 %v1990, %v1990
        %v2119 = vpack.c.b16 %v1991, %v1991
        %v2120 = vpack.c.b16 %v1992, %v1992
        %v2121 = vpack.c.b16 %v1993, %v1993
        %v2122 = vpack.c.b16 %v1994, %v1994
        %v2123 = vpack.c.b16 %v1995, %v1995
        %v2124 = vpack.c.b16 %v1996, %v1996
        %v2125 = vpack.c.b16 %v1997, %v1997
        %v2126 = vpack.c.b16 %v1998, %v1998
        %v2127 = vpack.c.b16 %v1999, %v1999
        %v2128 = vpack.c.b16 %v2000, %v2000
        %v2129 = vpack.c.b16 %v2001, %v2001
        %v2130 = vpack.c.b16 %v2002, %v2002
        %v2131 = vpack.c.b16 %v2003, %v2003
        %v2132 = vpack.c.b16 %v2004, %v2004
        %v2133 = vpack.c.b16 %v2005, %v2005
        %v2134 = vpack.c.b16 %v2006, %v2006
        %v2135 = vpack.c.b16 %v2007, %v2007
        %v2136 = vpack.c.b16 %v2008, %v2008
        %v2137 = vpack.c.b16 %v2009, %v2009
        %v2138 = vpack.c.b16 %v2010, %v2010
        %v2139 = vpack.c.b16 %v2011, %v2011
        %v2140 = vpack.c.b16 %v2012, %v2012
        %v2141 = vpack.c.b16 %v2013, %v2013
        %v2142 = vpack.c.b16 %v2014, %v2014
        %v2143 = vpack.c.b16 %v2015, %v2015
        %v2144 = vpack.c.b16 %v2016, %v2016
        %v2145 = vpack.c.b16 %v2017, %v2017
        %v2146 = vpack.c.b16 %v2018, %v2018
        %v2147 = vpack.c.b16 %v2019, %v2019
        %v2148 = vpack.c.b16 %v2020, %v2020
        %v2149 = vpack.c.b16 %v2021, %v2021
        %v2150 = vpack.c.b16 %v2022, %v2022
        %v2151 = vpack.c.b16 %v2023, %v2023
        %v2152 = vpack.c.b16 %v2024, %v2024
        %v2153 = vpack.c.b16 %v2025, %v2025
        %v2154 = vpack.c.b16 %v2026, %v2026
        %v2155 = vpack.c.b16 %v2027, %v2027
        %v2156 = vpack.c.b16 %v2028, %v2028
        %v2157 = vpack.c.b16 %v2029, %v2029
        %v2158 = vpack.c.b16 %v2030, %v2030
        %v2159 = vpack.c.b16 %v2031, %v2031
        %v2160 = vpack.c.b16 %v2032, %v2032
        %v2161 = vpack.c.b16 %v2033, %v2033
        %v2162 = vpack.c.b16 %v2034, %v2034
        %v2163 = vpack.c.b16 %v2035, %v2035
        %v2164 = vpack.c.b16 %v2036, %v2036
        %v2165 = vpack.c.b16 %v2037, %v2037
        %v2166 = vpack.c.b16 %v2038, %v2038
        %v2167 = vpack.c.b16 %v2039, %v2039
        %v2168 = vpack.c.b16 %v2040, %v2040
        %v2169 = vpack.c.b16 %v2041, %v2041
        %v2170 = vpack.c.b16 %v2042, %v2042
        %v2171 = vpack.c.b16 %v2043, %v2043
        %v2172 = vpack.c.b16 %v2044, %v2044
        %v2173 = vpack.c.b16 %v2045, %v2045
        %v2174 = vpack.c.b16 %v2046, %v2046
        %v2175 = vpack.c.b16 %v2047, %v2047
        %v2176 = vpack.c.b16 %v2048, %v2048
        %v2177 = vpack.c.b16 %v2049, %v2049
        %v2178 = vpack.c.b16 %v2050, %v2050
        %v2179 = vpack.c.b16 %v2051, %v2051
        %v2180 = vpack.c.b16 %v2052, %v2052
        %v2181 = vpack.c.b16 %v2053, %v2053
        %v2182 = vpack.c.b16 %v2054, %v2054
        %v2183 = vpack.c.b16 %v2055, %v2055
        %v2184 = vpack.c.b16 %v2056, %v2056
        %v2185 = vpack.c.b16 %v2057, %v2057
        %v2186 = vpack.c.b16 %v2058, %v2058
        %v2187 = vpack.c.b16 %v2059, %v2059
        %v2188 = vpack.c.b16 %v2060, %v2060
        %v2189 = vpack.c.b16 %v2061, %v2061
        %v2190 = vpack.c.b16 %v2062, %v2062
        %v2191 = vpack.c.b16 %v2063, %v2063
        %v2192 = vpack.c.b16 %v2064, %v2064
        %v2193 = vpack.c.b16 %v2065, %v2065
        %v2194 = vpack.c.b16 %v2066, %v2066
        %v2195 = vpack.c.b16 %v2067, %v2067
        %v2196 = vpack.c.b16 %v2068, %v2068
        %v2197 = vpack.c.b16 %v2069, %v2069
        %v2198 = vpack.c.b16 %v2070, %v2070
        %v2199 = vpack.c.b16 %v2071, %v2071
        %v2200 = vpack.c.b16 %v2072, %v2072
        %v2201 = vpack.c.b16 %v2073, %v2073
        %v2202 = vpack.c.b16 %v2074, %v2074
        %v2203 = vpack.c.b16 %v2075, %v2075
        %v2204 = vpack.c.b16 %v2076, %v2076
        %v2205 = vpack.c.b16 %v2077, %v2077
        %v2206 = vpack.c.b16 %v2078, %v2078
        %v2207 = vpack.c.b16 %v2079, %v2079
        %v2208 = vpack.c.b16 %v2080, %v2080
        %v2209 = vpack.c.b16 %v2081, %v2081
        %v2210 = vpack.c.b16 %v2082, %v2082
        %v2211 = vpack.c.b16 %v2083, %v2083
        %v2212 = vpack.c.b16 %v2084, %v2084
        %v2213 = vpack.c.b16 %v2085, %v2085
        %vm2342 = vcmask 125952
        %2343 = vst.msk [vmem:[%s200] sm:$0xf] %vm2342, %v2086
        %2344 = vst.msk [vmem:[%s200 + $0x4] sm:$0xf] %vm2342, %v2087
        %2345 = vst.msk [vmem:[%s200 + $0x8] sm:$0xf] %vm2342, %v2088
        %2346 = vst.msk [vmem:[%s200 + $0xc] sm:$0xf] %vm2342, %v2089
        %2347 = vst.msk [vmem:[%s200 + $0x10] sm:$0xf] %vm2342, %v2090
        %2348 = vst.msk [vmem:[%s200 + $0x14] sm:$0xf] %vm2342, %v2091
        %2349 = vst.msk [vmem:[%s200 + $0x18] sm:$0xf] %vm2342, %v2092
        %2350 = vst.msk [vmem:[%s200 + $0x1c] sm:$0xf] %vm2342, %v2093
        %2351 = vst.msk [vmem:[%s200 + $0x20] sm:$0xf] %vm2342, %v2094
        %2352 = vst.msk [vmem:[%s200 + $0x24] sm:$0xf] %vm2342, %v2095
        %2353 = vst.msk [vmem:[%s200 + $0x28] sm:$0xf] %vm2342, %v2096
        %2354 = vst.msk [vmem:[%s200 + $0x2c] sm:$0xf] %vm2342, %v2097
        %2355 = vst.msk [vmem:[%s200 + $0x30] sm:$0xf] %vm2342, %v2098
        %2356 = vst.msk [vmem:[%s200 + $0x34] sm:$0xf] %vm2342, %v2099
        %2357 = vst.msk [vmem:[%s200 + $0x38] sm:$0xf] %vm2342, %v2100
        %2358 = vst.msk [vmem:[%s200 + $0x3c] sm:$0xf] %vm2342, %v2101
        %2359 = vst.msk [vmem:[%s200 + $0x40] sm:$0xf] %vm2342, %v2102
        %2360 = vst.msk [vmem:[%s200 + $0x44] sm:$0xf] %vm2342, %v2103
        %2361 = vst.msk [vmem:[%s200 + $0x48] sm:$0xf] %vm2342, %v2104
        %2362 = vst.msk [vmem:[%s200 + $0x4c] sm:$0xf] %vm2342, %v2105
        %2363 = vst.msk [vmem:[%s200 + $0x50] sm:$0xf] %vm2342, %v2106
        %2364 = vst.msk [vmem:[%s200 + $0x54] sm:$0xf] %vm2342, %v2107
        %2365 = vst.msk [vmem:[%s200 + $0x58] sm:$0xf] %vm2342, %v2108
        %2366 = vst.msk [vmem:[%s200 + $0x5c] sm:$0xf] %vm2342, %v2109
        %2367 = vst.msk [vmem:[%s200 + $0x60] sm:$0xf] %vm2342, %v2110
        %2368 = vst.msk [vmem:[%s200 + $0x64] sm:$0xf] %vm2342, %v2111
        %2369 = vst.msk [vmem:[%s200 + $0x68] sm:$0xf] %vm2342, %v2112
        %2370 = vst.msk [vmem:[%s200 + $0x6c] sm:$0xf] %vm2342, %v2113
        %2371 = vst.msk [vmem:[%s200 + $0x70] sm:$0xf] %vm2342, %v2114
        %2372 = vst.msk [vmem:[%s200 + $0x74] sm:$0xf] %vm2342, %v2115
        %2373 = vst.msk [vmem:[%s200 + $0x78] sm:$0xf] %vm2342, %v2116
        %2374 = vst.msk [vmem:[%s200 + $0x7c] sm:$0xf] %vm2342, %v2117
        %2375 = vst.msk [vmem:[%s200 + $0x80] sm:$0xf] %vm2342, %v2118
        %2376 = vst.msk [vmem:[%s200 + $0x84] sm:$0xf] %vm2342, %v2119
        %2377 = vst.msk [vmem:[%s200 + $0x88] sm:$0xf] %vm2342, %v2120
        %2378 = vst.msk [vmem:[%s200 + $0x8c] sm:$0xf] %vm2342, %v2121
        %2379 = vst.msk [vmem:[%s200 + $0x90] sm:$0xf] %vm2342, %v2122
        %2380 = vst.msk [vmem:[%s200 + $0x94] sm:$0xf] %vm2342, %v2123
        %2381 = vst.msk [vmem:[%s200 + $0x98] sm:$0xf] %vm2342, %v2124
        %2382 = vst.msk [vmem:[%s200 + $0x9c] sm:$0xf] %vm2342, %v2125
        %2383 = vst.msk [vmem:[%s200 + $0xa0] sm:$0xf] %vm2342, %v2126
        %2384 = vst.msk [vmem:[%s200 + $0xa4] sm:$0xf] %vm2342, %v2127
        %2385 = vst.msk [vmem:[%s200 + $0xa8] sm:$0xf] %vm2342, %v2128
        %2386 = vst.msk [vmem:[%s200 + $0xac] sm:$0xf] %vm2342, %v2129
        %2387 = vst.msk [vmem:[%s200 + $0xb0] sm:$0xf] %vm2342, %v2130
        %2388 = vst.msk [vmem:[%s200 + $0xb4] sm:$0xf] %vm2342, %v2131
        %2389 = vst.msk [vmem:[%s200 + $0xb8] sm:$0xf] %vm2342, %v2132
        %2390 = vst.msk [vmem:[%s200 + $0xbc] sm:$0xf] %vm2342, %v2133
        %2391 = vst.msk [vmem:[%s200 + $0xc0] sm:$0xf] %vm2342, %v2134
        %2392 = vst.msk [vmem:[%s200 + $0xc4] sm:$0xf] %vm2342, %v2135
        %2393 = vst.msk [vmem:[%s200 + $0xc8] sm:$0xf] %vm2342, %v2136
        %2394 = vst.msk [vmem:[%s200 + $0xcc] sm:$0xf] %vm2342, %v2137
        %2395 = vst.msk [vmem:[%s200 + $0xd0] sm:$0xf] %vm2342, %v2138
        %2396 = vst.msk [vmem:[%s200 + $0xd4] sm:$0xf] %vm2342, %v2139
        %2397 = vst.msk [vmem:[%s200 + $0xd8] sm:$0xf] %vm2342, %v2140
        %2398 = vst.msk [vmem:[%s200 + $0xdc] sm:$0xf] %vm2342, %v2141
        %2399 = vst.msk [vmem:[%s200 + $0xe0] sm:$0xf] %vm2342, %v2142
        %2400 = vst.msk [vmem:[%s200 + $0xe4] sm:$0xf] %vm2342, %v2143
        %2401 = vst.msk [vmem:[%s200 + $0xe8] sm:$0xf] %vm2342, %v2144
        %2402 = vst.msk [vmem:[%s200 + $0xec] sm:$0xf] %vm2342, %v2145
        %2403 = vst.msk [vmem:[%s200 + $0xf0] sm:$0xf] %vm2342, %v2146
        %2404 = vst.msk [vmem:[%s200 + $0xf4] sm:$0xf] %vm2342, %v2147
        %2405 = vst.msk [vmem:[%s200 + $0xf8] sm:$0xf] %vm2342, %v2148
        %2406 = vst.msk [vmem:[%s200 + $0xfc] sm:$0xf] %vm2342, %v2149
        %2407 = vst.msk [vmem:[%s200 + $0x100] sm:$0xf] %vm2342, %v2150
        %2408 = vst.msk [vmem:[%s200 + $0x104] sm:$0xf] %vm2342, %v2151
        %2409 = vst.msk [vmem:[%s200 + $0x108] sm:$0xf] %vm2342, %v2152
        %2410 = vst.msk [vmem:[%s200 + $0x10c] sm:$0xf] %vm2342, %v2153
        %2411 = vst.msk [vmem:[%s200 + $0x110] sm:$0xf] %vm2342, %v2154
        %2412 = vst.msk [vmem:[%s200 + $0x114] sm:$0xf] %vm2342, %v2155
        %2413 = vst.msk [vmem:[%s200 + $0x118] sm:$0xf] %vm2342, %v2156
        %2414 = vst.msk [vmem:[%s200 + $0x11c] sm:$0xf] %vm2342, %v2157
        %2415 = vst.msk [vmem:[%s200 + $0x120] sm:$0xf] %vm2342, %v2158
        %2416 = vst.msk [vmem:[%s200 + $0x124] sm:$0xf] %vm2342, %v2159
        %2417 = vst.msk [vmem:[%s200 + $0x128] sm:$0xf] %vm2342, %v2160
        %2418 = vst.msk [vmem:[%s200 + $0x12c] sm:$0xf] %vm2342, %v2161
        %2419 = vst.msk [vmem:[%s200 + $0x130] sm:$0xf] %vm2342, %v2162
        %2420 = vst.msk [vmem:[%s200 + $0x134] sm:$0xf] %vm2342, %v2163
        %2421 = vst.msk [vmem:[%s200 + $0x138] sm:$0xf] %vm2342, %v2164
        %2422 = vst.msk [vmem:[%s200 + $0x13c] sm:$0xf] %vm2342, %v2165
        %2423 = vst.msk [vmem:[%s200 + $0x140] sm:$0xf] %vm2342, %v2166
        %2424 = vst.msk [vmem:[%s200 + $0x144] sm:$0xf] %vm2342, %v2167
        %2425 = vst.msk [vmem:[%s200 + $0x148] sm:$0xf] %vm2342, %v2168
        %2426 = vst.msk [vmem:[%s200 + $0x14c] sm:$0xf] %vm2342, %v2169
        %2427 = vst.msk [vmem:[%s200 + $0x150] sm:$0xf] %vm2342, %v2170
        %2428 = vst.msk [vmem:[%s200 + $0x154] sm:$0xf] %vm2342, %v2171
        %2429 = vst.msk [vmem:[%s200 + $0x158] sm:$0xf] %vm2342, %v2172
        %2430 = vst.msk [vmem:[%s200 + $0x15c] sm:$0xf] %vm2342, %v2173
        %2431 = vst.msk [vmem:[%s200 + $0x160] sm:$0xf] %vm2342, %v2174
        %2432 = vst.msk [vmem:[%s200 + $0x164] sm:$0xf] %vm2342, %v2175
        %2433 = vst.msk [vmem:[%s200 + $0x168] sm:$0xf] %vm2342, %v2176
        %2434 = vst.msk [vmem:[%s200 + $0x16c] sm:$0xf] %vm2342, %v2177
        %2435 = vst.msk [vmem:[%s200 + $0x170] sm:$0xf] %vm2342, %v2178
        %2436 = vst.msk [vmem:[%s200 + $0x174] sm:$0xf] %vm2342, %v2179
        %2437 = vst.msk [vmem:[%s200 + $0x178] sm:$0xf] %vm2342, %v2180
        %2438 = vst.msk [vmem:[%s200 + $0x17c] sm:$0xf] %vm2342, %v2181
        %2439 = vst.msk [vmem:[%s200 + $0x180] sm:$0xf] %vm2342, %v2182
        %2440 = vst.msk [vmem:[%s200 + $0x184] sm:$0xf] %vm2342, %v2183
        %2441 = vst.msk [vmem:[%s200 + $0x188] sm:$0xf] %vm2342, %v2184
        %2442 = vst.msk [vmem:[%s200 + $0x18c] sm:$0xf] %vm2342, %v2185
        %2443 = vst.msk [vmem:[%s200 + $0x190] sm:$0xf] %vm2342, %v2186
        %2444 = vst.msk [vmem:[%s200 + $0x194] sm:$0xf] %vm2342, %v2187
        %2445 = vst.msk [vmem:[%s200 + $0x198] sm:$0xf] %vm2342, %v2188
        %2446 = vst.msk [vmem:[%s200 + $0x19c] sm:$0xf] %vm2342, %v2189
        %2447 = vst.msk [vmem:[%s200 + $0x1a0] sm:$0xf] %vm2342, %v2190
        %2448 = vst.msk [vmem:[%s200 + $0x1a4] sm:$0xf] %vm2342, %v2191
        %2449 = vst.msk [vmem:[%s200 + $0x1a8] sm:$0xf] %vm2342, %v2192
        %2450 = vst.msk [vmem:[%s200 + $0x1ac] sm:$0xf] %vm2342, %v2193
        %2451 = vst.msk [vmem:[%s200 + $0x1b0] sm:$0xf] %vm2342, %v2194
        %2452 = vst.msk [vmem:[%s200 + $0x1b4] sm:$0xf] %vm2342, %v2195
        %2453 = vst.msk [vmem:[%s200 + $0x1b8] sm:$0xf] %vm2342, %v2196
        %2454 = vst.msk [vmem:[%s200 + $0x1bc] sm:$0xf] %vm2342, %v2197
        %2455 = vst.msk [vmem:[%s200 + $0x1c0] sm:$0xf] %vm2342, %v2198
        %2456 = vst.msk [vmem:[%s200 + $0x1c4] sm:$0xf] %vm2342, %v2199
        %2457 = vst.msk [vmem:[%s200 + $0x1c8] sm:$0xf] %vm2342, %v2200
        %2458 = vst.msk [vmem:[%s200 + $0x1cc] sm:$0xf] %vm2342, %v2201
        %2459 = vst.msk [vmem:[%s200 + $0x1d0] sm:$0xf] %vm2342, %v2202
        %2460 = vst.msk [vmem:[%s200 + $0x1d4] sm:$0xf] %vm2342, %v2203
        %2461 = vst.msk [vmem:[%s200 + $0x1d8] sm:$0xf] %vm2342, %v2204
        %2462 = vst.msk [vmem:[%s200 + $0x1dc] sm:$0xf] %vm2342, %v2205
        %2463 = vst.msk [vmem:[%s200 + $0x1e0] sm:$0xf] %vm2342, %v2206
        %2464 = vst.msk [vmem:[%s200 + $0x1e4] sm:$0xf] %vm2342, %v2207
        %2465 = vst.msk [vmem:[%s200 + $0x1e8] sm:$0xf] %vm2342, %v2208
        %2466 = vst.msk [vmem:[%s200 + $0x1ec] sm:$0xf] %vm2342, %v2209
        %2467 = vst.msk [vmem:[%s200 + $0x1f0] sm:$0xf] %vm2342, %v2210
        %2468 = vst.msk [vmem:[%s200 + $0x1f4] sm:$0xf] %vm2342, %v2211
        %2469 = vst.msk [vmem:[%s200 + $0x1f8] sm:$0xf] %vm2342, %v2212
        %2470 = vst.msk [vmem:[%s200 + $0x1fc] sm:$0xf] %vm2342, %v2213
        %s2471 = smul.u32 128, %s16
        %p2472 = scmp.lt.s32.totalorder %s2471, 1023
        %s2473 = scalar_select %p2472, %s2471, 1023
        %s2474 = smul.addr %s2473, 4
        %s2475 = scalar_lea.vmem %s3, %s2474
        // Predicated region
        $region41: #{forward.7} parent=31 // pred_check
          %p2476 = pneg %p102
        $region42: #{forward.7} parent=31 // pred_check_branch
          %2478 = sbr.rel (%p2476) target = $region44
        $region43: #{forward.7} parent=31 // pred_region
          %s2479 = smul.u32 128, %s16
        $region44: #{forward.7} parent=31 // pred_fallthru
          _
      $region32: #{forward.7} parent=5 // pred_fallthru
        _
      %p2480 = scmp.le.s32.totalorder 2, %s11
      // Predicated region
      $region45: #{forward.7} parent=5 // pred_check
        %p2481 = pneg %p2480
      $region46: #{forward.7} parent=5 // pred_check_branch
        %2483 = sbr.rel (%p2481) target = $region48
      $region47: #{forward.7} parent=5 // pred_region
        %s2484 = ssub.s32 %s11, 2
        // Predicated region
        $region49: #{forward.7} parent=47 // pred_check
          %p2485 = pneg %p108
        $region50: #{forward.7} parent=47 // pred_check_branch
          %2487 = sbr.rel (%p2485) target = $region52
        $region51: #{forward.7} parent=47 // pred_region
          %s2488 = smul.u32 128, %s17
          %p2489 = scmp.lt.s32.totalorder %s2488, 1023
          %s2490 = scalar_select %p2489, %s2488, 1023
          %s2491 = smul.addr %s2490, 4
          %s2492 = scalar_lea.vmem %s3, %s2491
        $region52: #{forward.7} parent=47 // pred_fallthru
          _
      $region48: #{forward.7} parent=5 // pred_fallthru
        _
    $region6: #{forward.7} parent=1 // loop_footer
      %s15 = sadd.s32 1, %s11
    $region7: #{forward.7} parent=1 // loop_footer_branch
      %10 = sbr.rel target = $region3
    $region8: #{forward.7} parent=1 // loop_exit
      _
    %2493 = vsyncpa [#allocation3], 1
    %s2494 = scalar_lea.sflag [#allocation3], 1
    %2495 = vsyncpa %s2494, 1
    %2496 = vsyncpa [#allocation5], 1

// kernel: forward.8
$region0: #{forward.8}
  #allocation0 [shape = 'u32[]', space=smem, size = 0x4, offset = 0x4, fixed_abs, tag = 'smem constant byte address 0x4 - core index']
  #allocation1 [shape = 'u32[144,128]{1,0:T(1,128)}', space=vmem, size = 0x12000, scoped, tag = 'internal scratch']
  %s0 = inlined_call_operand.vmem [shape: bf16[1024,432], index: 0, kind: input, shape index: {}]
  %s1 = inlined_call_operand.vmem [shape: bf16[432,32], index: 1, kind: input, shape index: {}]
  %s2 = inlined_call_operand.vmem [shape: f32[1,32], index: 2, kind: input, shape index: {}]
  %s3 = inlined_call_operand.vmem [shape: bf16[1024,32], index: 3, kind: output, shape index: {}]
  %s4 = sld [smem:[#allocation0]]
  $region45: #{forward.8} parent=0
    _
  %s6 = ssub.s32 1, %s4
  %s7 = scalar_select 0, %s6, %s4
  loop: start=0, step=1, limit=4
  $region2: #{forward.8} parent=0 // loop_pre_header
    _
  $region3: #{forward.8} parent=0 // loop_header
    %s9 = sphi 0, %s13
    %p10 = scmp.ge.s32.totalorder %s9, 4
    %s19 = sphi 0, %s21
    %s22 = sphi 0, %s19
    %s23 = sphi 0, %s22
    %s39 = sphi 0, %s23
    %s43 = sphi 0, %s43
    %s45 = sphi 0, %s43
    %s46 = sphi 0, %s45
    %s60 = sphi 0, %s46
    %s64 = sphi 0, %s64
    %s66 = sphi 0, %s64
    %s67 = sphi 0, %s66
    %s81 = sphi 0, %s67
    %s87 = sphi 0, %s89
    %s90 = sphi 0, %s87
    %s91 = sphi 0, %s90
    %s107 = sphi 0, %s91
  $region4: #{forward.8} parent=0 // loop_header_branch
    %12 = sbr.rel (%p10) target = $region8
  $region5: #{forward.8} parent=0 // loop_body
    %s14 = ssub.s32 %s9, 1
    %s15 = ssub.s32 %s9, 2
    %s16 = sadd.s32 %s9, 1
    %s17 = ssub.s32 %s9, %s16
    %p18 = scmp.eq.s32.totalorder %s17, 0
    %s20 = sadd.s32 %s19, 1
    %s21 = scalar_select %p18, %s19, %s20
    %p24 = pneg %p18
    %p25 = scmp.eq.s32.totalorder %s9, 1
    %p26 = por %p24, %p25
    %p27 = scmp.ne.s32.totalorder %s19, %s22
    %p28 = scmp.eq.s32.totalorder %s9, 0
    %p29 = por %p27, %p28
    %p30 = scmp.ne.s32.totalorder %s19, %s22
    %p31 = scmp.eq.s32.totalorder %s14, 1
    %p32 = por %p30, %p31
    %p33 = scmp.ne.s32.totalorder %s22, %s23
    %p34 = scmp.eq.s32.totalorder %s14, 0
    %p35 = por %p33, %p34
    %p36 = scmp.ne.s32.totalorder %s22, %s23
    %p37 = scmp.eq.s32.totalorder %s15, 1
    %p38 = por %p36, %p37
    %p40 = scmp.ne.s32.totalorder %s23, %s39
    %p41 = scmp.eq.s32.totalorder %s15, 0
    %p42 = por %p40, %p41
    %s44 = sadd.s32 %s43, 1
    %p47 = scmp.eq.s32.totalorder %s9, 1
    %p48 = scmp.ne.s32.totalorder %s43, %s45
    %p49 = scmp.eq.s32.totalorder %s9, 0
    %p50 = por %p48, %p49
    %p51 = scmp.ne.s32.totalorder %s43, %s45
    %p52 = scmp.eq.s32.totalorder %s14, 1
    %p53 = por %p51, %p52
    %p54 = scmp.ne.s32.totalorder %s45, %s46
    %p55 = scmp.eq.s32.totalorder %s14, 0
    %p56 = por %p54, %p55
    %p57 = scmp.ne.s32.totalorder %s45, %s46
    %p58 = scmp.eq.s32.totalorder %s15, 1
    %p59 = por %p57, %p58
    %p61 = scmp.ne.s32.totalorder %s46, %s60
    %p62 = scmp.eq.s32.totalorder %s15, 0
    %p63 = por %p61, %p62
    %s65 = sadd.s32 %s64, 1
    %p68 = scmp.eq.s32.totalorder %s9, 1
    %p69 = scmp.ne.s32.totalorder %s64, %s66
    %p70 = scmp.eq.s32.totalorder %s9, 0
    %p71 = por %p69, %p70
    %p72 = scmp.ne.s32.totalorder %s64, %s66
    %p73 = scmp.eq.s32.totalorder %s14, 1
    %p74 = por %p72, %p73
    %p75 = scmp.ne.s32.totalorder %s66, %s67
    %p76 = scmp.eq.s32.totalorder %s14, 0
    %p77 = por %p75, %p76
    %p78 = scmp.ne.s32.totalorder %s66, %s67
    %p79 = scmp.eq.s32.totalorder %s15, 1
    %p80 = por %p78, %p79
    %p82 = scmp.ne.s32.totalorder %s67, %s81
    %p83 = scmp.eq.s32.totalorder %s15, 0
    %p84 = por %p82, %p83
    %s85 = ssub.s32 %s9, %s16
    %p86 = scmp.eq.s32.totalorder %s85, 0
    %s88 = sadd.s32 %s87, 1
    %s89 = scalar_select %p86, %s87, %s88
    %p92 = pneg %p86
    %p93 = scmp.eq.s32.totalorder %s9, 1
    %p94 = por %p92, %p93
    %p95 = scmp.ne.s32.totalorder %s87, %s90
    %p96 = scmp.eq.s32.totalorder %s9, 0
    %p97 = por %p95, %p96
    %p98 = scmp.ne.s32.totalorder %s87, %s90
    %p99 = scmp.eq.s32.totalorder %s14, 1
    %p100 = por %p98, %p99
    %p101 = scmp.ne.s32.totalorder %s90, %s91
    %p102 = scmp.eq.s32.totalorder %s14, 0
    %p103 = por %p101, %p102
    %p104 = scmp.ne.s32.totalorder %s90, %s91
    %p105 = scmp.eq.s32.totalorder %s15, 1
    %p106 = por %p104, %p105
    %p108 = scmp.ne.s32.totalorder %s91, %s107
    %p109 = scmp.eq.s32.totalorder %s15, 0
    %p110 = por %p108, %p109
    %p111 = scmp.le.s32.totalorder 1, %s9
    %p112 = scmp.lt.s32.totalorder %s9, 3
    %p113 = pnand %p111, %p112
    %p114 = pneg %p113
    // Predicated region
    $region9: #{forward.8} parent=5 // pred_check
      _
    $region10: #{forward.8} parent=5 // pred_check_branch
      %116 = sbr.rel (%p113) target = $region12
    $region11: #{forward.8} parent=5 // pred_region
      %s117 = ssub.s32 %s9, 1
      // Predicated region
      $region13: #{forward.8} parent=11 // pred_check
        %p118 = pneg %p56
      $region14: #{forward.8} parent=11 // pred_check_branch
        %120 = sbr.rel (%p118) target = $region16
      $region15: #{forward.8} parent=11 // pred_region
        _
      $region16: #{forward.8} parent=11 // pred_fallthru
        _
      // Predicated region
      $region17: #{forward.8} parent=11 // pred_check
        %p121 = pneg %p77
      $region18: #{forward.8} parent=11 // pred_check_branch
        %123 = sbr.rel (%p121) target = $region20
      $region19: #{forward.8} parent=11 // pred_region
        _
      $region20: #{forward.8} parent=11 // pred_fallthru
        _
    $region12: #{forward.8} parent=5 // pred_fallthru
      _
    %p124 = scmp.lt.s32.totalorder %s9, 2
    // Predicated region
    $region21: #{forward.8} parent=5 // pred_check
      %p125 = pneg %p124
    $region22: #{forward.8} parent=5 // pred_check_branch
      %127 = sbr.rel (%p125) target = $region24
    $region23: #{forward.8} parent=5 // pred_region
      // Predicated region
      $region25: #{forward.8} parent=23 // pred_check
        %p128 = pneg %p29
      $region26: #{forward.8} parent=23 // pred_check_branch
        %130 = sbr.rel (%p128) target = $region28
      $region27: #{forward.8} parent=23 // pred_region
        %s131 = smul.u32 64, %s9
        %p132 = scmp.lt.s32.totalorder %s131, 127
        %s133 = scalar_select %p132, %s131, 127
        %s134 = smul.addr %s133, 4
        %s135 = smul.addr %s134, 4
        %s136 = scalar_lea.vmem %s0, %s135
        %s137 = smul.u32 64, %s9
      $region28: #{forward.8} parent=23 // pred_fallthru
        _
    $region24: #{forward.8} parent=5 // pred_fallthru
      _
    %p138 = scmp.le.s32.totalorder 1, %s9
    %p139 = scmp.lt.s32.totalorder %s9, 3
    %p140 = pnand %p138, %p139
    %p141 = pneg %p140
    // Predicated region
    $region29: #{forward.8} parent=5 // pred_check
      _
    $region30: #{forward.8} parent=5 // pred_check_branch
      %143 = sbr.rel (%p140) target = $region32
    $region31: #{forward.8} parent=5 // pred_region
      %s144 = ssub.s32 %s9, 1
      %s145 = smul.u32 64, %s14
      %p146 = scmp.lt.s32.totalorder %s145, 127
      %s147 = scalar_select %p146, %s145, 127
      %s148 = smul.addr %s147, 4
      %s149 = smul.addr %s148, 4
      %s150 = scalar_lea.vmem %s0, %s149
      %p151 = pneg %p35
      %p152 = pneg %p32
      %p153 = pneg %p56
      %p154 = pneg %p53
      %p155 = pneg %p77
      %p156 = pneg %p74
      %p157 = pneg %p103
      %p158 = pneg %p100
      %s159 = smul.u32 64, %s14
      %p160 = scmp.lt.s32.totalorder %s159, 127
      %s161 = scalar_select %p160, %s159, 127
      %s162 = smul.addr %s161, 4
      %s163 = scalar_lea.vmem %s3, %s162
      %s164 = smul.u32 64, %s14
      %p165 = scmp.lt.s32.totalorder %s164, 127
      %s166 = scalar_select %p165, %s164, 127
      %s167 = smul.addr %s166, 4
      %s168 = smul.addr %s167, 4
      %s169 = scalar_lea.vmem %s0, %s168
      %s170 = smul.u32 64, %s14
      %s171 = smul.u32 64, %s14
      %p172 = scmp.lt.s32.totalorder %s171, 127
      %s173 = scalar_select %p172, %s171, 127
      %s174 = smul.addr %s173, 4
      %s175 = scalar_lea.vmem %s3, %s174
      %s176 = smul.u32 64, %s14
      %v178 = vld [vmem:[%s169] sm:$0xff]
      %v179 = vld [vmem:[%s169 + $0x8] sm:$0xff]
      %v180 = vld [vmem:[%s169 + $0x10] sm:$0xff]
      %v181 = vld [vmem:[%s169 + $0x18] sm:$0xff]
      %v182 = vld [vmem:[%s169 + $0x20] sm:$0xff]
      %v183 = vld [vmem:[%s169 + $0x28] sm:$0xff]
      %v184 = vld [vmem:[%s169 + $0x30] sm:$0xff]
      %v185 = vld [vmem:[%s169 + $0x38] sm:$0xff]
      %v186 = vld [vmem:[%s169 + $0x40] sm:$0xff]
      %v187 = vld [vmem:[%s169 + $0x48] sm:$0xff]
      %v188 = vld [vmem:[%s169 + $0x50] sm:$0xff]
      %v189 = vld [vmem:[%s169 + $0x58] sm:$0xff]
      %v190 = vld [vmem:[%s169 + $0x60] sm:$0xff]
      %v191 = vld [vmem:[%s169 + $0x68] sm:$0xff]
      %v192 = vld [vmem:[%s169 + $0x70] sm:$0xff]
      %v193 = vld [vmem:[%s169 + $0x78] sm:$0xff]
      %v194 = vld [vmem:[%s169 + $0x80] sm:$0xff]
      %v195 = vld [vmem:[%s169 + $0x88] sm:$0xff]
      %v196 = vld [vmem:[%s169 + $0x90] sm:$0xff]
      %v197 = vld [vmem:[%s169 + $0x98] sm:$0xff]
      %v198 = vld [vmem:[%s169 + $0xa0] sm:$0xff]
      %v199 = vld [vmem:[%s169 + $0xa8] sm:$0xff]
      %v200 = vld [vmem:[%s169 + $0xb0] sm:$0xff]
      %v201 = vld [vmem:[%s169 + $0xb8] sm:$0xff]
      %v202 = vld [vmem:[%s169 + $0xc0] sm:$0xff]
      %v203 = vld [vmem:[%s169 + $0xc8] sm:$0xff]
      %v204 = vld [vmem:[%s169 + $0xd0] sm:$0xff]
      %v205 = vld [vmem:[%s169 + $0xd8] sm:$0xff]
      %v206 = vld [vmem:[%s169 + $0xe0] sm:$0xff]
      %v207 = vld [vmem:[%s169 + $0xe8] sm:$0xff]
      %v208 = vld [vmem:[%s169 + $0xf0] sm:$0xff]
      %v209 = vld [vmem:[%s169 + $0xf8] sm:$0xff]
      %v210 = vld [vmem:[%s169 + $0x100] sm:$0xff]
      %v211 = vld [vmem:[%s169 + $0x108] sm:$0xff]
      %v212 = vld [vmem:[%s169 + $0x110] sm:$0xff]
      %v213 = vld [vmem:[%s169 + $0x118] sm:$0xff]
      %v214 = vld [vmem:[%s169 + $0x120] sm:$0xff]
      %v215 = vld [vmem:[%s169 + $0x128] sm:$0xff]
      %v216 = vld [vmem:[%s169 + $0x130] sm:$0xff]
      %v217 = vld [vmem:[%s169 + $0x138] sm:$0xff]
      %v218 = vld [vmem:[%s169 + $0x140] sm:$0xff]
      %v219 = vld [vmem:[%s169 + $0x148] sm:$0xff]
      %v220 = vld [vmem:[%s169 + $0x150] sm:$0xff]
      %v221 = vld [vmem:[%s169 + $0x158] sm:$0xff]
      %v222 = vld [vmem:[%s169 + $0x160] sm:$0xff]
      %v223 = vld [vmem:[%s169 + $0x168] sm:$0xff]
      %v224 = vld [vmem:[%s169 + $0x170] sm:$0xff]
      %v225 = vld [vmem:[%s169 + $0x178] sm:$0xff]
      %v226 = vld [vmem:[%s169 + $0x180] sm:$0xff]
      %v227 = vld [vmem:[%s169 + $0x188] sm:$0xff]
      %v228 = vld [vmem:[%s169 + $0x190] sm:$0xff]
      %v229 = vld [vmem:[%s169 + $0x198] sm:$0xff]
      %v230 = vld [vmem:[%s169 + $0x1a0] sm:$0xff]
      %v231 = vld [vmem:[%s169 + $0x1a8] sm:$0xff]
      %v232 = vld [vmem:[%s169 + $0x1b0] sm:$0xff]
      %v233 = vld [vmem:[%s169 + $0x1b8] sm:$0xff]
      %v234 = vld [vmem:[%s169 + $0x1c0] sm:$0xff]
      %v235 = vld [vmem:[%s169 + $0x1c8] sm:$0xff]
      %v236 = vld [vmem:[%s169 + $0x1d0] sm:$0xff]
      %v237 = vld [vmem:[%s169 + $0x1d8] sm:$0xff]
      %v238 = vld [vmem:[%s169 + $0x1e0] sm:$0xff]
      %v239 = vld [vmem:[%s169 + $0x1e8] sm:$0xff]
      %v240 = vld [vmem:[%s169 + $0x1f0] sm:$0xff]
      %v241 = vld [vmem:[%s169 + $0x1f8] sm:$0xff]
      %v242 = vld [vmem:[%s169 + $0x200] sm:$0xff]
      %v243 = vld [vmem:[%s169 + $0x208] sm:$0xff]
      %v244 = vld [vmem:[%s169 + $0x210] sm:$0xff]
      %v245 = vld [vmem:[%s169 + $0x218] sm:$0xff]
      %v246 = vld [vmem:[%s169 + $0x220] sm:$0xff]
      %v247 = vld [vmem:[%s169 + $0x228] sm:$0xff]
      %v248 = vld [vmem:[%s169 + $0x230] sm:$0xff]
      %v249 = vld [vmem:[%s169 + $0x238] sm:$0xff]
      %v250 = vld [vmem:[%s169 + $0x240] sm:$0xff]
      %v251 = vld [vmem:[%s169 + $0x248] sm:$0xff]
      %v252 = vld [vmem:[%s169 + $0x250] sm:$0xff]
      %v253 = vld [vmem:[%s169 + $0x258] sm:$0xff]
      %v254 = vld [vmem:[%s169 + $0x260] sm:$0xff]
      %v255 = vld [vmem:[%s169 + $0x268] sm:$0xff]
      %v256 = vld [vmem:[%s169 + $0x270] sm:$0xff]
      %v257 = vld [vmem:[%s169 + $0x278] sm:$0xff]
      %v258 = vld [vmem:[%s169 + $0x280] sm:$0xff]
      %v259 = vld [vmem:[%s169 + $0x288] sm:$0xff]
      %v260 = vld [vmem:[%s169 + $0x290] sm:$0xff]
      %v261 = vld [vmem:[%s169 + $0x298] sm:$0xff]
      %v262 = vld [vmem:[%s169 + $0x2a0] sm:$0xff]
      %v263 = vld [vmem:[%s169 + $0x2a8] sm:$0xff]
      %v264 = vld [vmem:[%s169 + $0x2b0] sm:$0xff]
      %v265 = vld [vmem:[%s169 + $0x2b8] sm:$0xff]
      %v266 = vld [vmem:[%s169 + $0x2c0] sm:$0xff]
      %v267 = vld [vmem:[%s169 + $0x2c8] sm:$0xff]
      %v268 = vld [vmem:[%s169 + $0x2d0] sm:$0xff]
      %v269 = vld [vmem:[%s169 + $0x2d8] sm:$0xff]
      %v270 = vld [vmem:[%s169 + $0x2e0] sm:$0xff]
      %v271 = vld [vmem:[%s169 + $0x2e8] sm:$0xff]
      %v272 = vld [vmem:[%s169 + $0x2f0] sm:$0xff]
      %v273 = vld [vmem:[%s169 + $0x2f8] sm:$0xff]
      %v274 = vld [vmem:[%s169 + $0x300] sm:$0xff]
      %v275 = vld [vmem:[%s169 + $0x308] sm:$0xff]
      %v276 = vld [vmem:[%s169 + $0x310] sm:$0xff]
      %v277 = vld [vmem:[%s169 + $0x318] sm:$0xff]
      %v278 = vld [vmem:[%s169 + $0x320] sm:$0xff]
      %v279 = vld [vmem:[%s169 + $0x328] sm:$0xff]
      %v280 = vld [vmem:[%s169 + $0x330] sm:$0xff]
      %v281 = vld [vmem:[%s169 + $0x338] sm:$0xff]
      %v282 = vld [vmem:[%s169 + $0x340] sm:$0xff]
      %v283 = vld [vmem:[%s169 + $0x348] sm:$0xff]
      %v284 = vld [vmem:[%s169 + $0x350] sm:$0xff]
      %v285 = vld [vmem:[%s169 + $0x358] sm:$0xff]
      %v286 = vld [vmem:[%s169 + $0x360] sm:$0xff]
      %v287 = vld [vmem:[%s169 + $0x368] sm:$0xff]
      %v288 = vld [vmem:[%s169 + $0x370] sm:$0xff]
      %v289 = vld [vmem:[%s169 + $0x378] sm:$0xff]
      %v290 = vld [vmem:[%s169 + $0x380] sm:$0xff]
      %v291 = vld [vmem:[%s169 + $0x388] sm:$0xff]
      %v292 = vld [vmem:[%s169 + $0x390] sm:$0xff]
      %v293 = vld [vmem:[%s169 + $0x398] sm:$0xff]
      %v294 = vld [vmem:[%s169 + $0x3a0] sm:$0xff]
      %v295 = vld [vmem:[%s169 + $0x3a8] sm:$0xff]
      %v296 = vld [vmem:[%s169 + $0x3b0] sm:$0xff]
      %v297 = vld [vmem:[%s169 + $0x3b8] sm:$0xff]
      %v298 = vld [vmem:[%s169 + $0x3c0] sm:$0xff]
      %v299 = vld [vmem:[%s169 + $0x3c8] sm:$0xff]
      %v300 = vld [vmem:[%s169 + $0x3d0] sm:$0xff]
      %v301 = vld [vmem:[%s169 + $0x3d8] sm:$0xff]
      %v302 = vld [vmem:[%s169 + $0x3e0] sm:$0xff]
      %v303 = vld [vmem:[%s169 + $0x3e8] sm:$0xff]
      %v304 = vld [vmem:[%s169 + $0x3f0] sm:$0xff]
      %v305 = vld [vmem:[%s169 + $0x3f8] sm:$0xff]
      %v306 = vld [vmem:[%s1] sm:$0xf]
      %v307 = vld [vmem:[%s1 + $0x4] sm:$0xf]
      %v308 = vld [vmem:[%s1 + $0x8] sm:$0xf]
      %v309 = vld [vmem:[%s1 + $0xc] sm:$0xf]
      %v310 = vld [vmem:[%s1 + $0x10] sm:$0xf]
      %v311 = vld [vmem:[%s1 + $0x14] sm:$0xf]
      %v312 = vld [vmem:[%s1 + $0x18] sm:$0xf]
      %v313 = vld [vmem:[%s1 + $0x1c] sm:$0xf]
      %v314 = vld [vmem:[%s1 + $0x20] sm:$0xf]
      %v315 = vld [vmem:[%s1 + $0x24] sm:$0xf]
      %v316 = vld [vmem:[%s1 + $0x28] sm:$0xf]
      %v317 = vld [vmem:[%s1 + $0x2c] sm:$0xf]
      %v318 = vld [vmem:[%s1 + $0x30] sm:$0xf]
      %v319 = vld [vmem:[%s1 + $0x34] sm:$0xf]
      %v320 = vld [vmem:[%s1 + $0x38] sm:$0xf]
      %v321 = vld [vmem:[%s1 + $0x3c] sm:$0xf]
      %v322 = vld [vmem:[%s1 + $0x40] sm:$0xf]
      %v323 = vld [vmem:[%s1 + $0x44] sm:$0xf]
      %v324 = vld [vmem:[%s1 + $0x48] sm:$0xf]
      %v325 = vld [vmem:[%s1 + $0x4c] sm:$0xf]
      %v326 = vld [vmem:[%s1 + $0x50] sm:$0xf]
      %v327 = vld [vmem:[%s1 + $0x54] sm:$0xf]
      %v328 = vld [vmem:[%s1 + $0x58] sm:$0xf]
      %v329 = vld [vmem:[%s1 + $0x5c] sm:$0xf]
      %v330 = vld [vmem:[%s1 + $0x60] sm:$0xf]
      %v331 = vld [vmem:[%s1 + $0x64] sm:$0xf]
      %v332 = vld [vmem:[%s1 + $0x68] sm:$0xf]
      %v333 = vld [vmem:[%s1 + $0x6c] sm:$0xf]
      %v334 = vld [vmem:[%s1 + $0x70] sm:$0xf]
      %v335 = vld [vmem:[%s1 + $0x74] sm:$0xf]
      %v336 = vld [vmem:[%s1 + $0x78] sm:$0xf]
      %v337 = vld [vmem:[%s1 + $0x7c] sm:$0xf]
      %v338 = vld [vmem:[%s1 + $0x80] sm:$0xf]
      %v339 = vld [vmem:[%s1 + $0x84] sm:$0xf]
      %v340 = vld [vmem:[%s1 + $0x88] sm:$0xf]
      %v341 = vld [vmem:[%s1 + $0x8c] sm:$0xf]
      %v342 = vld [vmem:[%s1 + $0x90] sm:$0xf]
      %v343 = vld [vmem:[%s1 + $0x94] sm:$0xf]
      %v344 = vld [vmem:[%s1 + $0x98] sm:$0xf]
      %v345 = vld [vmem:[%s1 + $0x9c] sm:$0xf]
      %v346 = vld [vmem:[%s1 + $0xa0] sm:$0xf]
      %v347 = vld [vmem:[%s1 + $0xa4] sm:$0xf]
      %v348 = vld [vmem:[%s1 + $0xa8] sm:$0xf]
      %v349 = vld [vmem:[%s1 + $0xac] sm:$0xf]
      %v350 = vld [vmem:[%s1 + $0xb0] sm:$0xf]
      %v351 = vld [vmem:[%s1 + $0xb4] sm:$0xf]
      %v352 = vld [vmem:[%s1 + $0xb8] sm:$0xf]
      %v353 = vld [vmem:[%s1 + $0xbc] sm:$0xf]
      %v354 = vld [vmem:[%s1 + $0xc0] sm:$0xf]
      %v355 = vld [vmem:[%s1 + $0xc4] sm:$0xf]
      %v356 = vld [vmem:[%s1 + $0xc8] sm:$0xf]
      %v357 = vld [vmem:[%s1 + $0xcc] sm:$0xf]
      %v358 = vld [vmem:[%s1 + $0xd0] sm:$0xf]
      %v359 = vld [vmem:[%s1 + $0xd4] sm:$0xf]
      %v360 = vld [vmem:[%s2] sm:$0x1]
      %v362 = vlaneseq
      %v363 = vshrl.u32 %v362, 7
      %v364 = vsub.s32 0, %v363
      %v365 = vrot.slane %v360, %v364
      %v495 = vunpack.c.l.b16 %v178
      %v496 = vunpack.c.h.b16 %v178
      %v497 = vunpack.c.l.b16 %v179
      %v498 = vunpack.c.h.b16 %v179
      %v499 = vunpack.c.l.b16 %v180
      %v500 = vunpack.c.h.b16 %v180
      %v501 = vunpack.c.l.b16 %v181
      %v502 = vunpack.c.h.b16 %v181
      %v503 = vunpack.c.l.b16 %v182
      %v504 = vunpack.c.h.b16 %v182
      %v505 = vunpack.c.l.b16 %v183
      %v506 = vunpack.c.h.b16 %v183
      %v507 = vunpack.c.l.b16 %v184
      %v508 = vunpack.c.h.b16 %v184
      %v509 = vunpack.c.l.b16 %v185
      %v510 = vunpack.c.h.b16 %v185
      %v511 = vunpack.c.l.b16 %v186
      %v512 = vunpack.c.h.b16 %v186
      %v513 = vunpack.c.l.b16 %v187
      %v514 = vunpack.c.h.b16 %v187
      %v515 = vunpack.c.l.b16 %v188
      %v516 = vunpack.c.h.b16 %v188
      %v517 = vunpack.c.l.b16 %v189
      %v518 = vunpack.c.h.b16 %v189
      %v519 = vunpack.c.l.b16 %v190
      %v520 = vunpack.c.h.b16 %v190
      %v521 = vunpack.c.l.b16 %v191
      %v522 = vunpack.c.h.b16 %v191
      %v523 = vunpack.c.l.b16 %v192
      %v524 = vunpack.c.h.b16 %v192
      %v525 = vunpack.c.l.b16 %v193
      %v526 = vunpack.c.h.b16 %v193
      %v527 = vunpack.c.l.b16 %v194
      %v528 = vunpack.c.h.b16 %v194
      %v529 = vunpack.c.l.b16 %v195
      %v530 = vunpack.c.h.b16 %v195
      %v531 = vunpack.c.l.b16 %v196
      %v532 = vunpack.c.h.b16 %v196
      %v533 = vunpack.c.l.b16 %v197
      %v534 = vunpack.c.h.b16 %v197
      %v535 = vunpack.c.l.b16 %v198
      %v536 = vunpack.c.h.b16 %v198
      %v537 = vunpack.c.l.b16 %v199
      %v538 = vunpack.c.h.b16 %v199
      %v539 = vunpack.c.l.b16 %v200
      %v540 = vunpack.c.h.b16 %v200
      %v541 = vunpack.c.l.b16 %v201
      %v542 = vunpack.c.h.b16 %v201
      %v543 = vunpack.c.l.b16 %v202
      %v544 = vunpack.c.h.b16 %v202
      %v545 = vunpack.c.l.b16 %v203
      %v546 = vunpack.c.h.b16 %v203
      %v547 = vunpack.c.l.b16 %v204
      %v548 = vunpack.c.h.b16 %v204
      %v549 = vunpack.c.l.b16 %v205
      %v550 = vunpack.c.h.b16 %v205
      %v551 = vunpack.c.l.b16 %v206
      %v552 = vunpack.c.h.b16 %v206
      %v553 = vunpack.c.l.b16 %v207
      %v554 = vunpack.c.h.b16 %v207
      %v555 = vunpack.c.l.b16 %v208
      %v556 = vunpack.c.h.b16 %v208
      %v557 = vunpack.c.l.b16 %v209
      %v558 = vunpack.c.h.b16 %v209
      %v559 = vunpack.c.l.b16 %v210
      %v560 = vunpack.c.h.b16 %v210
      %v561 = vunpack.c.l.b16 %v211
      %v562 = vunpack.c.h.b16 %v211
      %v563 = vunpack.c.l.b16 %v212
      %v564 = vunpack.c.h.b16 %v212
      %v565 = vunpack.c.l.b16 %v213
      %v566 = vunpack.c.h.b16 %v213
      %v567 = vunpack.c.l.b16 %v214
      %v568 = vunpack.c.h.b16 %v214
      %v569 = vunpack.c.l.b16 %v215
      %v570 = vunpack.c.h.b16 %v215
      %v571 = vunpack.c.l.b16 %v216
      %v572 = vunpack.c.h.b16 %v216
      %v573 = vunpack.c.l.b16 %v217
      %v574 = vunpack.c.h.b16 %v217
      %v575 = vunpack.c.l.b16 %v218
      %v576 = vunpack.c.h.b16 %v218
      %v577 = vunpack.c.l.b16 %v219
      %v578 = vunpack.c.h.b16 %v219
      %v579 = vunpack.c.l.b16 %v220
      %v580 = vunpack.c.h.b16 %v220
      %v581 = vunpack.c.l.b16 %v221
      %v582 = vunpack.c.h.b16 %v221
      %v583 = vunpack.c.l.b16 %v222
      %v584 = vunpack.c.h.b16 %v222
      %v585 = vunpack.c.l.b16 %v223
      %v586 = vunpack.c.h.b16 %v223
      %v587 = vunpack.c.l.b16 %v224
      %v588 = vunpack.c.h.b16 %v224
      %v589 = vunpack.c.l.b16 %v225
      %v590 = vunpack.c.h.b16 %v225
      %v591 = vunpack.c.l.b16 %v226
      %v592 = vunpack.c.h.b16 %v226
      %v593 = vunpack.c.l.b16 %v227
      %v594 = vunpack.c.h.b16 %v227
      %v595 = vunpack.c.l.b16 %v228
      %v596 = vunpack.c.h.b16 %v228
      %v597 = vunpack.c.l.b16 %v229
      %v598 = vunpack.c.h.b16 %v229
      %v599 = vunpack.c.l.b16 %v230
      %v600 = vunpack.c.h.b16 %v230
      %v601 = vunpack.c.l.b16 %v231
      %v602 = vunpack.c.h.b16 %v231
      %v603 = vunpack.c.l.b16 %v232
      %v604 = vunpack.c.h.b16 %v232
      %v605 = vunpack.c.l.b16 %v233
      %v606 = vunpack.c.h.b16 %v233
      %v607 = vunpack.c.l.b16 %v234
      %v608 = vunpack.c.h.b16 %v234
      %v609 = vunpack.c.l.b16 %v235
      %v610 = vunpack.c.h.b16 %v235
      %v611 = vunpack.c.l.b16 %v236
      %v612 = vunpack.c.h.b16 %v236
      %v613 = vunpack.c.l.b16 %v237
      %v614 = vunpack.c.h.b16 %v237
      %v615 = vunpack.c.l.b16 %v238
      %v616 = vunpack.c.h.b16 %v238
      %v617 = vunpack.c.l.b16 %v239
      %v618 = vunpack.c.h.b16 %v239
      %v619 = vunpack.c.l.b16 %v240
      %v620 = vunpack.c.h.b16 %v240
      %v621 = vunpack.c.l.b16 %v241
      %v622 = vunpack.c.h.b16 %v241
      %v623 = vunpack.c.l.b16 %v242
      %v624 = vunpack.c.h.b16 %v242
      %v625 = vunpack.c.l.b16 %v243
      %v626 = vunpack.c.h.b16 %v243
      %v627 = vunpack.c.l.b16 %v244
      %v628 = vunpack.c.h.b16 %v244
      %v629 = vunpack.c.l.b16 %v245
      %v630 = vunpack.c.h.b16 %v245
      %v631 = vunpack.c.l.b16 %v246
      %v632 = vunpack.c.h.b16 %v246
      %v633 = vunpack.c.l.b16 %v247
      %v634 = vunpack.c.h.b16 %v247
      %v635 = vunpack.c.l.b16 %v248
      %v636 = vunpack.c.h.b16 %v248
      %v637 = vunpack.c.l.b16 %v249
      %v638 = vunpack.c.h.b16 %v249
      %v639 = vunpack.c.l.b16 %v250
      %v640 = vunpack.c.h.b16 %v250
      %v641 = vunpack.c.l.b16 %v251
      %v642 = vunpack.c.h.b16 %v251
      %v643 = vunpack.c.l.b16 %v252
      %v644 = vunpack.c.h.b16 %v252
      %v645 = vunpack.c.l.b16 %v253
      %v646 = vunpack.c.h.b16 %v253
      %v647 = vunpack.c.l.b16 %v254
      %v648 = vunpack.c.h.b16 %v254
      %v649 = vunpack.c.l.b16 %v255
      %v650 = vunpack.c.h.b16 %v255
      %v651 = vunpack.c.l.b16 %v256
      %v652 = vunpack.c.h.b16 %v256
      %v653 = vunpack.c.l.b16 %v257
      %v654 = vunpack.c.h.b16 %v257
      %v655 = vunpack.c.l.b16 %v258
      %v656 = vunpack.c.h.b16 %v258
      %v657 = vunpack.c.l.b16 %v259
      %v658 = vunpack.c.h.b16 %v259
      %v659 = vunpack.c.l.b16 %v260
      %v660 = vunpack.c.h.b16 %v260
      %v661 = vunpack.c.l.b16 %v261
      %v662 = vunpack.c.h.b16 %v261
      %v663 = vunpack.c.l.b16 %v262
      %v664 = vunpack.c.h.b16 %v262
      %v665 = vunpack.c.l.b16 %v263
      %v666 = vunpack.c.h.b16 %v263
      %v667 = vunpack.c.l.b16 %v264
      %v668 = vunpack.c.h.b16 %v264
      %v669 = vunpack.c.l.b16 %v265
      %v670 = vunpack.c.h.b16 %v265
      %v671 = vunpack.c.l.b16 %v266
      %v672 = vunpack.c.h.b16 %v266
      %v673 = vunpack.c.l.b16 %v267
      %v674 = vunpack.c.h.b16 %v267
      %v675 = vunpack.c.l.b16 %v268
      %v676 = vunpack.c.h.b16 %v268
      %v677 = vunpack.c.l.b16 %v269
      %v678 = vunpack.c.h.b16 %v269
      %v679 = vunpack.c.l.b16 %v270
      %v680 = vunpack.c.h.b16 %v270
      %v681 = vunpack.c.l.b16 %v271
      %v682 = vunpack.c.h.b16 %v271
      %v683 = vunpack.c.l.b16 %v272
      %v684 = vunpack.c.h.b16 %v272
      %v685 = vunpack.c.l.b16 %v273
      %v686 = vunpack.c.h.b16 %v273
      %v687 = vunpack.c.l.b16 %v274
      %v688 = vunpack.c.h.b16 %v274
      %v689 = vunpack.c.l.b16 %v275
      %v690 = vunpack.c.h.b16 %v275
      %v691 = vunpack.c.l.b16 %v276
      %v692 = vunpack.c.h.b16 %v276
      %v693 = vunpack.c.l.b16 %v277
      %v694 = vunpack.c.h.b16 %v277
      %v695 = vunpack.c.l.b16 %v278
      %v696 = vunpack.c.h.b16 %v278
      %v697 = vunpack.c.l.b16 %v279
      %v698 = vunpack.c.h.b16 %v279
      %v699 = vunpack.c.l.b16 %v280
      %v700 = vunpack.c.h.b16 %v280
      %v701 = vunpack.c.l.b16 %v281
      %v702 = vunpack.c.h.b16 %v281
      %v703 = vunpack.c.l.b16 %v282
      %v704 = vunpack.c.h.b16 %v282
      %v705 = vunpack.c.l.b16 %v283
      %v706 = vunpack.c.h.b16 %v283
      %v707 = vunpack.c.l.b16 %v284
      %v708 = vunpack.c.h.b16 %v284
      %v709 = vunpack.c.l.b16 %v285
      %v710 = vunpack.c.h.b16 %v285
      %v711 = vunpack.c.l.b16 %v286
      %v712 = vunpack.c.h.b16 %v286
      %v713 = vunpack.c.l.b16 %v287
      %v714 = vunpack.c.h.b16 %v287
      %v715 = vunpack.c.l.b16 %v288
      %v716 = vunpack.c.h.b16 %v288
      %v717 = vunpack.c.l.b16 %v289
      %v718 = vunpack.c.h.b16 %v289
      %v719 = vunpack.c.l.b16 %v290
      %v720 = vunpack.c.h.b16 %v290
      %v721 = vunpack.c.l.b16 %v291
      %v722 = vunpack.c.h.b16 %v291
      %v723 = vunpack.c.l.b16 %v292
      %v724 = vunpack.c.h.b16 %v292
      %v725 = vunpack.c.l.b16 %v293
      %v726 = vunpack.c.h.b16 %v293
      %v727 = vunpack.c.l.b16 %v294
      %v728 = vunpack.c.h.b16 %v294
      %v729 = vunpack.c.l.b16 %v295
      %v730 = vunpack.c.h.b16 %v295
      %v731 = vunpack.c.l.b16 %v296
      %v732 = vunpack.c.h.b16 %v296
      %v733 = vunpack.c.l.b16 %v297
      %v734 = vunpack.c.h.b16 %v297
      %v735 = vunpack.c.l.b16 %v298
      %v736 = vunpack.c.h.b16 %v298
      %v737 = vunpack.c.l.b16 %v299
      %v738 = vunpack.c.h.b16 %v299
      %v739 = vunpack.c.l.b16 %v300
      %v740 = vunpack.c.h.b16 %v300
      %v741 = vunpack.c.l.b16 %v301
      %v742 = vunpack.c.h.b16 %v301
      %v743 = vunpack.c.l.b16 %v302
      %v744 = vunpack.c.h.b16 %v302
      %v745 = vunpack.c.l.b16 %v303
      %v746 = vunpack.c.h.b16 %v303
      %v747 = vunpack.c.l.b16 %v304
      %v748 = vunpack.c.h.b16 %v304
      %v749 = vunpack.c.l.b16 %v305
      %v750 = vunpack.c.h.b16 %v305
      %v751 = vpack.c.b16 %v499, %v495
      %v752 = vpack.c.b16 %v500, %v496
      %v753 = vpack.c.b16 %v501, %v497
      %v754 = vpack.c.b16 %v502, %v498
      %v755 = vpack.c.b16 %v507, %v503
      %v756 = vpack.c.b16 %v508, %v504
      %v757 = vpack.c.b16 %v509, %v505
      %v758 = vpack.c.b16 %v510, %v506
      %v759 = vpack.c.b16 %v515, %v511
      %v760 = vpack.c.b16 %v516, %v512
      %v761 = vpack.c.b16 %v517, %v513
      %v762 = vpack.c.b16 %v518, %v514
      %v763 = vpack.c.b16 %v523, %v519
      %v764 = vpack.c.b16 %v524, %v520
      %v765 = vpack.c.b16 %v525, %v521
      %v766 = vpack.c.b16 %v526, %v522
      %v767 = vpack.c.b16 %v531, %v527
      %v768 = vpack.c.b16 %v532, %v528
      %v769 = vpack.c.b16 %v533, %v529
      %v770 = vpack.c.b16 %v534, %v530
      %v771 = vpack.c.b16 %v539, %v535
      %v772 = vpack.c.b16 %v540, %v536
      %v773 = vpack.c.b16 %v541, %v537
      %v774 = vpack.c.b16 %v542, %v538
      %v775 = vpack.c.b16 %v547, %v543
      %v776 = vpack.c.b16 %v548, %v544
      %v777 = vpack.c.b16 %v549, %v545
      %v778 = vpack.c.b16 %v550, %v546
      %v779 = vpack.c.b16 %v555, %v551
      %v780 = vpack.c.b16 %v556, %v552
      %v781 = vpack.c.b16 %v557, %v553
      %v782 = vpack.c.b16 %v558, %v554
      %v783 = vpack.c.b16 %v563, %v559
      %v784 = vpack.c.b16 %v564, %v560
      %v785 = vpack.c.b16 %v565, %v561
      %v786 = vpack.c.b16 %v566, %v562
      %v787 = vpack.c.b16 %v571, %v567
      %v788 = vpack.c.b16 %v572, %v568
      %v789 = vpack.c.b16 %v573, %v569
      %v790 = vpack.c.b16 %v574, %v570
      %v791 = vpack.c.b16 %v579, %v575
      %v792 = vpack.c.b16 %v580, %v576
      %v793 = vpack.c.b16 %v581, %v577
      %v794 = vpack.c.b16 %v582, %v578
      %v795 = vpack.c.b16 %v587, %v583
      %v796 = vpack.c.b16 %v588, %v584
      %v797 = vpack.c.b16 %v589, %v585
      %v798 = vpack.c.b16 %v590, %v586
      %v799 = vpack.c.b16 %v595, %v591
      %v800 = vpack.c.b16 %v596, %v592
      %v801 = vpack.c.b16 %v597, %v593
      %v802 = vpack.c.b16 %v598, %v594
      %v803 = vpack.c.b16 %v603, %v599
      %v804 = vpack.c.b16 %v604, %v600
      %v805 = vpack.c.b16 %v605, %v601
      %v806 = vpack.c.b16 %v606, %v602
      %v807 = vpack.c.b16 %v611, %v607
      %v808 = vpack.c.b16 %v612, %v608
      %v809 = vpack.c.b16 %v613, %v609
      %v810 = vpack.c.b16 %v614, %v610
      %v811 = vpack.c.b16 %v619, %v615
      %v812 = vpack.c.b16 %v620, %v616
      %v813 = vpack.c.b16 %v621, %v617
      %v814 = vpack.c.b16 %v622, %v618
      %v815 = vpack.c.b16 %v627, %v623
      %v816 = vpack.c.b16 %v628, %v624
      %v817 = vpack.c.b16 %v629, %v625
      %v818 = vpack.c.b16 %v630, %v626
      %v819 = vpack.c.b16 %v635, %v631
      %v820 = vpack.c.b16 %v636, %v632
      %v821 = vpack.c.b16 %v637, %v633
      %v822 = vpack.c.b16 %v638, %v634
      %v823 = vpack.c.b16 %v643, %v639
      %v824 = vpack.c.b16 %v644, %v640
      %v825 = vpack.c.b16 %v645, %v641
      %v826 = vpack.c.b16 %v646, %v642
      %v827 = vpack.c.b16 %v651, %v647
      %v828 = vpack.c.b16 %v652, %v648
      %v829 = vpack.c.b16 %v653, %v649
      %v830 = vpack.c.b16 %v654, %v650
      %v831 = vpack.c.b16 %v659, %v655
      %v832 = vpack.c.b16 %v660, %v656
      %v833 = vpack.c.b16 %v661, %v657
      %v834 = vpack.c.b16 %v662, %v658
      %v835 = vpack.c.b16 %v667, %v663
      %v836 = vpack.c.b16 %v668, %v664
      %v837 = vpack.c.b16 %v669, %v665
      %v838 = vpack.c.b16 %v670, %v666
      %v839 = vpack.c.b16 %v675, %v671
      %v840 = vpack.c.b16 %v676, %v672
      %v841 = vpack.c.b16 %v677, %v673
      %v842 = vpack.c.b16 %v678, %v674
      %v843 = vpack.c.b16 %v683, %v679
      %v844 = vpack.c.b16 %v684, %v680
      %v845 = vpack.c.b16 %v685, %v681
      %v846 = vpack.c.b16 %v686, %v682
      %v847 = vpack.c.b16 %v691, %v687
      %v848 = vpack.c.b16 %v692, %v688
      %v849 = vpack.c.b16 %v693, %v689
      %v850 = vpack.c.b16 %v694, %v690
      %v851 = vpack.c.b16 %v699, %v695
      %v852 = vpack.c.b16 %v700, %v696
      %v853 = vpack.c.b16 %v701, %v697
      %v854 = vpack.c.b16 %v702, %v698
      %v855 = vpack.c.b16 %v707, %v703
      %v856 = vpack.c.b16 %v708, %v704
      %v857 = vpack.c.b16 %v709, %v705
      %v858 = vpack.c.b16 %v710, %v706
      %v859 = vpack.c.b16 %v715, %v711
      %v860 = vpack.c.b16 %v716, %v712
      %v861 = vpack.c.b16 %v717, %v713
      %v862 = vpack.c.b16 %v718, %v714
      %v863 = vpack.c.b16 %v723, %v719
      %v864 = vpack.c.b16 %v724, %v720
      %v865 = vpack.c.b16 %v725, %v721
      %v866 = vpack.c.b16 %v726, %v722
      %v867 = vpack.c.b16 %v731, %v727
      %v868 = vpack.c.b16 %v732, %v728
      %v869 = vpack.c.b16 %v733, %v729
      %v870 = vpack.c.b16 %v734, %v730
      %v871 = vpack.c.b16 %v739, %v735
      %v872 = vpack.c.b16 %v740, %v736
      %v873 = vpack.c.b16 %v741, %v737
      %v874 = vpack.c.b16 %v742, %v738
      %v875 = vpack.c.b16 %v747, %v743
      %v876 = vpack.c.b16 %v748, %v744
      %v877 = vpack.c.b16 %v749, %v745
      %v878 = vpack.c.b16 %v750, %v746
      %v1029 = vunpack.c.l.b16 %v306
      %v1030 = vunpack.c.l.b16 %v307
      %v1031 = vunpack.c.l.b16 %v308
      %v1032 = vunpack.c.l.b16 %v309
      %v1033 = vunpack.c.l.b16 %v310
      %v1034 = vunpack.c.l.b16 %v311
      %v1035 = vunpack.c.l.b16 %v312
      %v1036 = vunpack.c.l.b16 %v313
      %v1037 = vunpack.c.l.b16 %v314
      %v1038 = vunpack.c.l.b16 %v315
      %v1039 = vunpack.c.l.b16 %v316
      %v1040 = vunpack.c.l.b16 %v317
      %v1041 = vunpack.c.l.b16 %v318
      %v1042 = vunpack.c.l.b16 %v319
      %v1043 = vunpack.c.l.b16 %v320
      %v1044 = vunpack.c.l.b16 %v321
      %v1045 = vunpack.c.l.b16 %v322
      %v1046 = vunpack.c.l.b16 %v323
      %v1047 = vunpack.c.l.b16 %v324
      %v1048 = vunpack.c.l.b16 %v325
      %v1049 = vunpack.c.l.b16 %v326
      %v1050 = vunpack.c.l.b16 %v327
      %v1051 = vunpack.c.l.b16 %v328
      %v1052 = vunpack.c.l.b16 %v329
      %v1053 = vunpack.c.l.b16 %v330
      %v1054 = vunpack.c.l.b16 %v331
      %v1055 = vunpack.c.l.b16 %v332
      %v1056 = vunpack.c.l.b16 %v333
      %v1057 = vunpack.c.l.b16 %v334
      %v1058 = vunpack.c.l.b16 %v335
      %v1059 = vunpack.c.l.b16 %v336
      %v1060 = vunpack.c.l.b16 %v337
      %v1061 = vunpack.c.l.b16 %v338
      %v1062 = vunpack.c.l.b16 %v339
      %v1063 = vunpack.c.l.b16 %v340
      %v1064 = vunpack.c.l.b16 %v341
      %v1065 = vunpack.c.l.b16 %v342
      %v1066 = vunpack.c.l.b16 %v343
      %v1067 = vunpack.c.l.b16 %v344
      %v1068 = vunpack.c.l.b16 %v345
      %v1069 = vunpack.c.l.b16 %v346
      %v1070 = vunpack.c.l.b16 %v347
      %v1071 = vunpack.c.l.b16 %v348
      %v1072 = vunpack.c.l.b16 %v349
      %v1073 = vunpack.c.l.b16 %v350
      %v1074 = vunpack.c.l.b16 %v351
      %v1075 = vunpack.c.l.b16 %v352
      %v1076 = vunpack.c.l.b16 %v353
      %v1077 = vunpack.c.l.b16 %v354
      %v1078 = vunpack.c.l.b16 %v355
      %v1079 = vunpack.c.l.b16 %v356
      %v1080 = vunpack.c.l.b16 %v357
      %v1081 = vunpack.c.l.b16 %v358
      %v1082 = vunpack.c.l.b16 %v359
      %v1083 = vpack.c.b16 %v1030, %v1029
      %v1084 = vpack.c.b16 %v1032, %v1031
      %v1085 = vpack.c.b16 %v1034, %v1033
      %v1086 = vpack.c.b16 %v1036, %v1035
      %v1087 = vpack.c.b16 %v1038, %v1037
      %v1088 = vpack.c.b16 %v1040, %v1039
      %v1089 = vpack.c.b16 %v1042, %v1041
      %v1090 = vpack.c.b16 %v1044, %v1043
      %v1091 = vpack.c.b16 %v1046, %v1045
      %v1092 = vpack.c.b16 %v1048, %v1047
      %v1093 = vpack.c.b16 %v1050, %v1049
      %v1094 = vpack.c.b16 %v1052, %v1051
      %v1095 = vpack.c.b16 %v1054, %v1053
      %v1096 = vpack.c.b16 %v1056, %v1055
      %v1097 = vpack.c.b16 %v1058, %v1057
      %v1098 = vpack.c.b16 %v1060, %v1059
      %v1099 = vpack.c.b16 %v1062, %v1061
      %v1100 = vpack.c.b16 %v1064, %v1063
      %v1101 = vpack.c.b16 %v1066, %v1065
      %v1102 = vpack.c.b16 %v1068, %v1067
      %v1103 = vpack.c.b16 %v1070, %v1069
      %v1104 = vpack.c.b16 %v1072, %v1071
      %v1105 = vpack.c.b16 %v1074, %v1073
      %v1106 = vpack.c.b16 %v1076, %v1075
      %v1107 = vpack.c.b16 %v1078, %v1077
      %v1108 = vpack.c.b16 %v1080, %v1079
      %v1109 = vpack.c.b16 %v1082, %v1081
      %vm1137 = vcmask 392192
      %v1139 = vsel %vm1137, %v754, 0
      %v1142 = vsel %vm1137, %v758, 0
      %v1145 = vsel %vm1137, %v762, 0
      %v1148 = vsel %vm1137, %v766, 0
      %v1151 = vsel %vm1137, %v770, 0
      %v1154 = vsel %vm1137, %v774, 0
      %v1157 = vsel %vm1137, %v778, 0
      %v1160 = vsel %vm1137, %v782, 0
      %v1163 = vsel %vm1137, %v786, 0
      %v1166 = vsel %vm1137, %v790, 0
      %v1169 = vsel %vm1137, %v794, 0
      %v1172 = vsel %vm1137, %v798, 0
      %v1175 = vsel %vm1137, %v802, 0
      %v1178 = vsel %vm1137, %v806, 0
      %v1181 = vsel %vm1137, %v810, 0
      %v1184 = vsel %vm1137, %v814, 0
      %v1187 = vsel %vm1137, %v818, 0
      %v1190 = vsel %vm1137, %v822, 0
      %v1193 = vsel %vm1137, %v826, 0
      %v1196 = vsel %vm1137, %v830, 0
      %v1199 = vsel %vm1137, %v834, 0
      %v1202 = vsel %vm1137, %v838, 0
      %v1205 = vsel %vm1137, %v842, 0
      %v1208 = vsel %vm1137, %v846, 0
      %v1211 = vsel %vm1137, %v850, 0
      %v1214 = vsel %vm1137, %v854, 0
      %v1217 = vsel %vm1137, %v858, 0
      %v1220 = vsel %vm1137, %v862, 0
      %v1223 = vsel %vm1137, %v866, 0
      %v1226 = vsel %vm1137, %v870, 0
      %v1229 = vsel %vm1137, %v874, 0
      %v1232 = vsel %vm1137, %v878, 0
      %1234 = vmatprep.subr.bf16.mxu0 0
      %1235 = vmatpush1.bf16.msra.mxu0 %v1083
      %1236 = vmatprep.subr.bf16.mxu0 0
      %1237 = vmatpush1.bf16.msra.mxu0 %v1084
      %1238 = vmatprep.subr.bf16.mxu0 0
      %1239 = vmatpush1.bf16.msra.mxu0 %v1085
      %1240 = vmatprep.subr.bf16.mxu0 0
      %1241 = vmatpush1.bf16.msra.mxu0 %v1086
      %1242 = vmatprep.subr.bf16.mxu0 0
      %1243 = vmatpush1.bf16.msra.mxu0 %v1087
      %1244 = vmatprep.subr.bf16.mxu0 0
      %1245 = vmatpush1.bf16.msra.mxu0 %v1088
      %1246 = vmatprep.subr.bf16.mxu0 0
      %1247 = vmatpush1.bf16.msra.mxu0 %v1089
      %1248 = vmatprep.subr.bf16.mxu0 0
      %1249 = vmatpush1.bf16.msra.mxu0 %v1090
      %1250 = vmatprep.subr.bf16.mxu0 0
      %1251 = vmatpush1.bf16.msra.mxu0 %v1091
      %1252 = vmatprep.subr.bf16.mxu0 0
      %1253 = vmatpush1.bf16.msra.mxu0 %v1092
      %1254 = vmatprep.subr.bf16.mxu0 0
      %1255 = vmatpush1.bf16.msra.mxu0 %v1093
      %1256 = vmatprep.subr.bf16.mxu0 0
      %1257 = vmatpush1.bf16.msra.mxu0 %v1094
      %1258 = vmatprep.subr.bf16.mxu0 0
      %1259 = vmatpush1.bf16.msra.mxu0 %v1095
      %1260 = vmatprep.subr.bf16.mxu0 0
      %1261 = vmatpush1.bf16.msra.mxu0 %v1096
      %1262 = vmatprep.subr.bf16.mxu0 0
      %1263 = vmatpush1.bf16.msra.mxu0 %v1097
      %1264 = vmatprep.subr.bf16.mxu0 0
      %1265 = vmatpush1.bf16.msra.mxu0 %v1098
      %1266 = vmatprep.mubr.bf16.mxu0 %v752
      %1267 = vmatmul.mubr.bf16.gmra.mrb[0].mxu0 %v751
      %v1268 = vpop.f32.mrb[0].mxu0
      %v1269 = vadd.f32 %v365, %v1268
      %v1270 = vpop.f32.mrb[0].mxu0
      %v1271 = vpop.f32.mrb[0].mxu0
      %v1272 = vadd.f32 %v365, %v1271
      %v1273 = vpop.f32.mrb[0].mxu0
      %1274 = vmatprep.mubr.bf16.mxu0 %v756
      %1275 = vmatmul.mubr.bf16.gmra.mrb[0].mxu0 %v755
      %v1276 = vpop.f32.mrb[0].mxu0
      %v1277 = vadd.f32 %v365, %v1276
      %v1278 = vpop.f32.mrb[0].mxu0
      %v1279 = vpop.f32.mrb[0].mxu0
      %v1280 = vadd.f32 %v365, %v1279
      %v1281 = vpop.f32.mrb[0].mxu0
      %1282 = vmatprep.mubr.bf16.mxu0 %v760
      %1283 = vmatmul.mubr.bf16.gmra.mrb[0].mxu0 %v759
      %v1284 = vpop.f32.mrb[0].mxu0
      %v1285 = vadd.f32 %v365, %v1284
      %v1286 = vpop.f32.mrb[0].mxu0
      %v1287 = vpop.f32.mrb[0].mxu0
      %v1288 = vadd.f32 %v365, %v1287
      %v1289 = vpop.f32.mrb[0].mxu0
      %1290 = vmatprep.mubr.bf16.mxu0 %v764
      %1291 = vmatmul.mubr.bf16.gmra.mrb[0].mxu0 %v763
      %v1292 = vpop.f32.mrb[0].mxu0
      %v1293 = vadd.f32 %v365, %v1292
      %v1294 = vpop.f32.mrb[0].mxu0
      %v1295 = vpop.f32.mrb[0].mxu0
      %v1296 = vadd.f32 %v365, %v1295
      %v1297 = vpop.f32.mrb[0].mxu0
      %1298 = vmatprep.mubr.bf16.mxu0 %v768
      %1299 = vmatmul.mubr.bf16.gmra.mrb[0].mxu0 %v767
      %v1300 = vpop.f32.mrb[0].mxu0
      %v1301 = vadd.f32 %v365, %v1300
      %v1302 = vpop.f32.mrb[0].mxu0
      %v1303 = vpop.f32.mrb[0].mxu0
      %v1304 = vadd.f32 %v365, %v1303
      %v1305 = vpop.f32.mrb[0].mxu0
      %1306 = vmatprep.mubr.bf16.mxu0 %v772
      %1307 = vmatmul.mubr.bf16.gmra.mrb[0].mxu0 %v771
      %v1308 = vpop.f32.mrb[0].mxu0
      %v1309 = vadd.f32 %v365, %v1308
      %v1310 = vpop.f32.mrb[0].mxu0
      %v1311 = vpop.f32.mrb[0].mxu0
      %v1312 = vadd.f32 %v365, %v1311
      %v1313 = vpop.f32.mrb[0].mxu0
      %1314 = vmatprep.mubr.bf16.mxu0 %v776
      %1315 = vmatmul.mubr.bf16.gmra.mrb[0].mxu0 %v775
      %v1316 = vpop.f32.mrb[0].mxu0
      %v1317 = vadd.f32 %v365, %v1316
      %v1318 = vpop.f32.mrb[0].mxu0
      %v1319 = vpop.f32.mrb[0].mxu0
      %v1320 = vadd.f32 %v365, %v1319
      %v1321 = vpop.f32.mrb[0].mxu0
      %1322 = vmatprep.mubr.bf16.mxu0 %v780
      %1323 = vmatmul.mubr.bf16.gmra.mrb[0].mxu0 %v779
      %v1324 = vpop.f32.mrb[0].mxu0
      %v1325 = vadd.f32 %v365, %v1324
      %v1326 = vpop.f32.mrb[0].mxu0
      %v1327 = vpop.f32.mrb[0].mxu0
      %v1328 = vadd.f32 %v365, %v1327
      %v1329 = vpop.f32.mrb[0].mxu0
      %1330 = vmatprep.mubr.bf16.mxu0 %v784
      %1331 = vmatmul.mubr.bf16.gmra.mrb[0].mxu0 %v783
      %v1332 = vpop.f32.mrb[0].mxu0
      %v1333 = vadd.f32 %v365, %v1332
      %v1334 = vpop.f32.mrb[0].mxu0
      %v1335 = vpop.f32.mrb[0].mxu0
      %v1336 = vadd.f32 %v365, %v1335
      %v1337 = vpop.f32.mrb[0].mxu0
      %1338 = vmatprep.mubr.bf16.mxu0 %v788
      %1339 = vmatmul.mubr.bf16.gmra.mrb[0].mxu0 %v787
      %v1340 = vpop.f32.mrb[0].mxu0
      %v1341 = vadd.f32 %v365, %v1340
      %v1342 = vpop.f32.mrb[0].mxu0
      %v1343 = vpop.f32.mrb[0].mxu0
      %v1344 = vadd.f32 %v365, %v1343
      %v1345 = vpop.f32.mrb[0].mxu0
      %1346 = vmatprep.mubr.bf16.mxu0 %v792
      %1347 = vmatmul.mubr.bf16.gmra.mrb[0].mxu0 %v791
      %v1348 = vpop.f32.mrb[0].mxu0
      %v1349 = vadd.f32 %v365, %v1348
      %v1350 = vpop.f32.mrb[0].mxu0
      %v1351 = vpop.f32.mrb[0].mxu0
      %v1352 = vadd.f32 %v365, %v1351
      %v1353 = vpop.f32.mrb[0].mxu0
      %1354 = vmatprep.mubr.bf16.mxu0 %v796
      %1355 = vmatmul.mubr.bf16.gmra.mrb[0].mxu0 %v795
      %v1356 = vpop.f32.mrb[0].mxu0
      %v1357 = vadd.f32 %v365, %v1356
      %v1358 = vpop.f32.mrb[0].mxu0
      %v1359 = vpop.f32.mrb[0].mxu0
      %v1360 = vadd.f32 %v365, %v1359
      %v1361 = vpop.f32.mrb[0].mxu0
      %1362 = vmatprep.mubr.bf16.mxu0 %v800
      %1363 = vmatmul.mubr.bf16.gmra.mrb[0].mxu0 %v799
      %v1364 = vpop.f32.mrb[0].mxu0
      %v1365 = vadd.f32 %v365, %v1364
      %v1366 = vpop.f32.mrb[0].mxu0
      %v1367 = vpop.f32.mrb[0].mxu0
      %v1368 = vadd.f32 %v365, %v1367
      %v1369 = vpop.f32.mrb[0].mxu0
      %1370 = vmatprep.mubr.bf16.mxu0 %v804
      %1371 = vmatmul.mubr.bf16.gmra.mrb[0].mxu0 %v803
      %v1372 = vpop.f32.mrb[0].mxu0
      %v1373 = vadd.f32 %v365, %v1372
      %v1374 = vpop.f32.mrb[0].mxu0
      %v1375 = vpop.f32.mrb[0].mxu0
      %v1376 = vadd.f32 %v365, %v1375
      %v1377 = vpop.f32.mrb[0].mxu0
      %1378 = vmatprep.mubr.bf16.mxu0 %v808
      %1379 = vmatmul.mubr.bf16.gmra.mrb[0].mxu0 %v807
      %v1380 = vpop.f32.mrb[0].mxu0
      %v1381 = vadd.f32 %v365, %v1380
      %v1382 = vpop.f32.mrb[0].mxu0
      %v1383 = vpop.f32.mrb[0].mxu0
      %v1384 = vadd.f32 %v365, %v1383
      %v1385 = vpop.f32.mrb[0].mxu0
      %1386 = vmatprep.mubr.bf16.mxu0 %v812
      %1387 = vmatmul.mubr.bf16.gmra.mrb[0].mxu0 %v811
      %v1388 = vpop.f32.mrb[0].mxu0
      %v1389 = vadd.f32 %v365, %v1388
      %v1390 = vpop.f32.mrb[0].mxu0
      %v1391 = vpop.f32.mrb[0].mxu0
      %v1392 = vadd.f32 %v365, %v1391
      %v1393 = vpop.f32.mrb[0].mxu0
      %1394 = vmatprep.mubr.bf16.mxu0 %v816
      %1395 = vmatmul.mubr.bf16.gmra.mrb[0].mxu0 %v815
      %v1396 = vpop.f32.mrb[0].mxu0
      %v1397 = vadd.f32 %v365, %v1396
      %v1398 = vpop.f32.mrb[0].mxu0
      %v1399 = vpop.f32.mrb[0].mxu0
      %v1400 = vadd.f32 %v365, %v1399
      %v1401 = vpop.f32.mrb[0].mxu0
      %1402 = vmatprep.mubr.bf16.mxu0 %v820
      %1403 = vmatmul.mubr.bf16.gmra.mrb[0].mxu0 %v819
      %v1404 = vpop.f32.mrb[0].mxu0
      %v1405 = vadd.f32 %v365, %v1404
      %v1406 = vpop.f32.mrb[0].mxu0
      %v1407 = vpop.f32.mrb[0].mxu0
      %v1408 = vadd.f32 %v365, %v1407
      %v1409 = vpop.f32.mrb[0].mxu0
      %1410 = vmatprep.mubr.bf16.mxu0 %v824
      %1411 = vmatmul.mubr.bf16.gmra.mrb[0].mxu0 %v823
      %v1412 = vpop.f32.mrb[0].mxu0
      %v1413 = vadd.f32 %v365, %v1412
      %v1414 = vpop.f32.mrb[0].mxu0
      %v1415 = vpop.f32.mrb[0].mxu0
      %v1416 = vadd.f32 %v365, %v1415
      %v1417 = vpop.f32.mrb[0].mxu0
      %1418 = vmatprep.mubr.bf16.mxu0 %v828
      %1419 = vmatmul.mubr.bf16.gmra.mrb[0].mxu0 %v827
      %v1420 = vpop.f32.mrb[0].mxu0
      %v1421 = vadd.f32 %v365, %v1420
      %v1422 = vpop.f32.mrb[0].mxu0
      %v1423 = vpop.f32.mrb[0].mxu0
      %v1424 = vadd.f32 %v365, %v1423
      %v1425 = vpop.f32.mrb[0].mxu0
      %1426 = vmatprep.mubr.bf16.mxu0 %v832
      %1427 = vmatmul.mubr.bf16.gmra.mrb[0].mxu0 %v831
      %v1428 = vpop.f32.mrb[0].mxu0
      %v1429 = vadd.f32 %v365, %v1428
      %v1430 = vpop.f32.mrb[0].mxu0
      %v1431 = vpop.f32.mrb[0].mxu0
      %v1432 = vadd.f32 %v365, %v1431
      %v1433 = vpop.f32.mrb[0].mxu0
      %1434 = vmatprep.mubr.bf16.mxu0 %v836
      %1435 = vmatmul.mubr.bf16.gmra.mrb[0].mxu0 %v835
      %v1436 = vpop.f32.mrb[0].mxu0
      %v1437 = vadd.f32 %v365, %v1436
      %v1438 = vpop.f32.mrb[0].mxu0
      %v1439 = vpop.f32.mrb[0].mxu0
      %v1440 = vadd.f32 %v365, %v1439
      %v1441 = vpop.f32.mrb[0].mxu0
      %1442 = vmatprep.mubr.bf16.mxu0 %v840
      %1443 = vmatmul.mubr.bf16.gmra.mrb[0].mxu0 %v839
      %v1444 = vpop.f32.mrb[0].mxu0
      %v1445 = vadd.f32 %v365, %v1444
      %v1446 = vpop.f32.mrb[0].mxu0
      %v1447 = vpop.f32.mrb[0].mxu0
      %v1448 = vadd.f32 %v365, %v1447
      %v1449 = vpop.f32.mrb[0].mxu0
      %1450 = vmatprep.mubr.bf16.mxu0 %v844
      %1451 = vmatmul.mubr.bf16.gmra.mrb[0].mxu0 %v843
      %v1452 = vpop.f32.mrb[0].mxu0
      %v1453 = vadd.f32 %v365, %v1452
      %v1454 = vpop.f32.mrb[0].mxu0
      %v1455 = vpop.f32.mrb[0].mxu0
      %v1456 = vadd.f32 %v365, %v1455
      %v1457 = vpop.f32.mrb[0].mxu0
      %1458 = vmatprep.mubr.bf16.mxu0 %v848
      %1459 = vmatmul.mubr.bf16.gmra.mrb[0].mxu0 %v847
      %v1460 = vpop.f32.mrb[0].mxu0
      %v1461 = vadd.f32 %v365, %v1460
      %v1462 = vpop.f32.mrb[0].mxu0
      %v1463 = vpop.f32.mrb[0].mxu0
      %v1464 = vadd.f32 %v365, %v1463
      %v1465 = vpop.f32.mrb[0].mxu0
      %1466 = vmatprep.mubr.bf16.mxu0 %v852
      %1467 = vmatmul.mubr.bf16.gmra.mrb[0].mxu0 %v851
      %v1468 = vpop.f32.mrb[0].mxu0
      %v1469 = vadd.f32 %v365, %v1468
      %v1470 = vpop.f32.mrb[0].mxu0
      %v1471 = vpop.f32.mrb[0].mxu0
      %v1472 = vadd.f32 %v365, %v1471
      %v1473 = vpop.f32.mrb[0].mxu0
      %1474 = vmatprep.mubr.bf16.mxu0 %v856
      %1475 = vmatmul.mubr.bf16.gmra.mrb[0].mxu0 %v855
      %v1476 = vpop.f32.mrb[0].mxu0
      %v1477 = vadd.f32 %v365, %v1476
      %v1478 = vpop.f32.mrb[0].mxu0
      %v1479 = vpop.f32.mrb[0].mxu0
      %v1480 = vadd.f32 %v365, %v1479
      %v1481 = vpop.f32.mrb[0].mxu0
      %1482 = vmatprep.mubr.bf16.mxu0 %v860
      %1483 = vmatmul.mubr.bf16.gmra.mrb[0].mxu0 %v859
      %v1484 = vpop.f32.mrb[0].mxu0
      %v1485 = vadd.f32 %v365, %v1484
      %v1486 = vpop.f32.mrb[0].mxu0
      %v1487 = vpop.f32.mrb[0].mxu0
      %v1488 = vadd.f32 %v365, %v1487
      %v1489 = vpop.f32.mrb[0].mxu0
      %1490 = vmatprep.mubr.bf16.mxu0 %v864
      %1491 = vmatmul.mubr.bf16.gmra.mrb[0].mxu0 %v863
      %v1492 = vpop.f32.mrb[0].mxu0
      %v1493 = vadd.f32 %v365, %v1492
      %v1494 = vpop.f32.mrb[0].mxu0
      %v1495 = vpop.f32.mrb[0].mxu0
      %v1496 = vadd.f32 %v365, %v1495
      %v1497 = vpop.f32.mrb[0].mxu0
      %1498 = vmatprep.mubr.bf16.mxu0 %v868
      %1499 = vmatmul.mubr.bf16.gmra.mrb[0].mxu0 %v867
      %v1500 = vpop.f32.mrb[0].mxu0
      %v1501 = vadd.f32 %v365, %v1500
      %v1502 = vpop.f32.mrb[0].mxu0
      %v1503 = vpop.f32.mrb[0].mxu0
      %v1504 = vadd.f32 %v365, %v1503
      %v1505 = vpop.f32.mrb[0].mxu0
      %1506 = vmatprep.mubr.bf16.mxu0 %v872
      %1507 = vmatmul.mubr.bf16.gmra.mrb[0].mxu0 %v871
      %v1508 = vpop.f32.mrb[0].mxu0
      %v1509 = vadd.f32 %v365, %v1508
      %v1510 = vpop.f32.mrb[0].mxu0
      %v1511 = vpop.f32.mrb[0].mxu0
      %v1512 = vadd.f32 %v365, %v1511
      %v1513 = vpop.f32.mrb[0].mxu0
      %1514 = vmatprep.mubr.bf16.mxu0 %v876
      %1515 = vmatmul.mubr.bf16.gmra.mrb[0].mxu0 %v875
      %v1516 = vpop.f32.mrb[0].mxu0
      %v1517 = vadd.f32 %v365, %v1516
      %v1518 = vpop.f32.mrb[0].mxu0
      %v1519 = vpop.f32.mrb[0].mxu0
      %v1520 = vadd.f32 %v365, %v1519
      %v1521 = vpop.f32.mrb[0].mxu0
      %1522 = vdwg.mxu0
      %1523 = vmatprep.subr.bf16.mxu0 0
      %1524 = vmatpush1.bf16.msra.mxu0 %v1099
      %1525 = vmatprep.subr.bf16.mxu0 0
      %1526 = vmatpush1.bf16.msra.mxu0 %v1100
      %1527 = vmatprep.subr.bf16.mxu0 0
      %1528 = vmatpush1.bf16.msra.mxu0 %v1101
      %1529 = vmatprep.subr.bf16.mxu0 0
      %1530 = vmatpush1.bf16.msra.mxu0 %v1102
      %1531 = vmatprep.subr.bf16.mxu0 0
      %1532 = vmatpush1.bf16.msra.mxu0 %v1103
      %1533 = vmatprep.subr.bf16.mxu0 0
      %1534 = vmatpush1.bf16.msra.mxu0 %v1104
      %1535 = vmatprep.subr.bf16.mxu0 0
      %1536 = vmatpush1.bf16.msra.mxu0 %v1105
      %1537 = vmatprep.subr.bf16.mxu0 0
      %1538 = vmatpush1.bf16.msra.mxu0 %v1106
      %1539 = vmatprep.subr.bf16.mxu0 0
      %1540 = vmatpush1.bf16.msra.mxu0 %v1107
      %1541 = vmatprep.subr.bf16.mxu0 0
      %1542 = vmatpush1.bf16.msra.mxu0 %v1108
      %1543 = vmatprep.subr.bf16.mxu0 0
      %1544 = vmatpush1.bf16.msra.mxu0 %v1109
      %1545 = vmatprep.subr.bf16.mxu0 0
      %1546 = vmatpush1.bf16.msra.mxu0 0
      %1547 = vmatprep.subr.bf16.mxu0 0
      %1548 = vmatpush1.bf16.msra.mxu0 0
      %1549 = vmatprep.subr.bf16.mxu0 0
      %1550 = vmatpush1.bf16.msra.mxu0 0
      %1551 = vmatprep.subr.bf16.mxu0 0
      %1552 = vmatpush1.bf16.msra.mxu0 0
      %1553 = vmatprep.subr.bf16.mxu0 0
      %1554 = vmatpush1.bf16.msra.mxu0 0
      %1555 = vmatprep.mubr.bf16.mxu0 %v1139
      %1556 = vmatmul.mubr.bf16.gmra.mrb[0].mxu0 %v753
      %v1557 = vpop.f32.mrb[0].mxu0
      %v1558 = vadd.f32 %v1269, %v1557
      %v1559 = vpop.f32.mrb[0].mxu0
      %v1560 = vpop.f32.mrb[0].mxu0
      %v1561 = vadd.f32 %v1272, %v1560
      %v1562 = vpop.f32.mrb[0].mxu0
      %1563 = vmatprep.mubr.bf16.mxu0 %v1142
      %1564 = vmatmul.mubr.bf16.gmra.mrb[0].mxu0 %v757
      %v1565 = vpop.f32.mrb[0].mxu0
      %v1566 = vadd.f32 %v1277, %v1565
      %v1567 = vpop.f32.mrb[0].mxu0
      %v1568 = vpop.f32.mrb[0].mxu0
      %v1569 = vadd.f32 %v1280, %v1568
      %v1570 = vpop.f32.mrb[0].mxu0
      %1571 = vmatprep.mubr.bf16.mxu0 %v1145
      %1572 = vmatmul.mubr.bf16.gmra.mrb[0].mxu0 %v761
      %v1573 = vpop.f32.mrb[0].mxu0
      %v1574 = vadd.f32 %v1285, %v1573
      %v1575 = vpop.f32.mrb[0].mxu0
      %v1576 = vpop.f32.mrb[0].mxu0
      %v1577 = vadd.f32 %v1288, %v1576
      %v1578 = vpop.f32.mrb[0].mxu0
      %1579 = vmatprep.mubr.bf16.mxu0 %v1148
      %1580 = vmatmul.mubr.bf16.gmra.mrb[0].mxu0 %v765
      %v1581 = vpop.f32.mrb[0].mxu0
      %v1582 = vadd.f32 %v1293, %v1581
      %v1583 = vpop.f32.mrb[0].mxu0
      %v1584 = vpop.f32.mrb[0].mxu0
      %v1585 = vadd.f32 %v1296, %v1584
      %v1586 = vpop.f32.mrb[0].mxu0
      %1587 = vmatprep.mubr.bf16.mxu0 %v1151
      %1588 = vmatmul.mubr.bf16.gmra.mrb[0].mxu0 %v769
      %v1589 = vpop.f32.mrb[0].mxu0
      %v1590 = vadd.f32 %v1301, %v1589
      %v1591 = vpop.f32.mrb[0].mxu0
      %v1592 = vpop.f32.mrb[0].mxu0
      %v1593 = vadd.f32 %v1304, %v1592
      %v1594 = vpop.f32.mrb[0].mxu0
      %1595 = vmatprep.mubr.bf16.mxu0 %v1154
      %1596 = vmatmul.mubr.bf16.gmra.mrb[0].mxu0 %v773
      %v1597 = vpop.f32.mrb[0].mxu0
      %v1598 = vadd.f32 %v1309, %v1597
      %v1599 = vpop.f32.mrb[0].mxu0
      %v1600 = vpop.f32.mrb[0].mxu0
      %v1601 = vadd.f32 %v1312, %v1600
      %v1602 = vpop.f32.mrb[0].mxu0
      %1603 = vmatprep.mubr.bf16.mxu0 %v1157
      %1604 = vmatmul.mubr.bf16.gmra.mrb[0].mxu0 %v777
      %v1605 = vpop.f32.mrb[0].mxu0
      %v1606 = vadd.f32 %v1317, %v1605
      %v1607 = vpop.f32.mrb[0].mxu0
      %v1608 = vpop.f32.mrb[0].mxu0
      %v1609 = vadd.f32 %v1320, %v1608
      %v1610 = vpop.f32.mrb[0].mxu0
      %1611 = vmatprep.mubr.bf16.mxu0 %v1160
      %1612 = vmatmul.mubr.bf16.gmra.mrb[0].mxu0 %v781
      %v1613 = vpop.f32.mrb[0].mxu0
      %v1614 = vadd.f32 %v1325, %v1613
      %v1615 = vpop.f32.mrb[0].mxu0
      %v1616 = vpop.f32.mrb[0].mxu0
      %v1617 = vadd.f32 %v1328, %v1616
      %v1618 = vpop.f32.mrb[0].mxu0
      %1619 = vmatprep.mubr.bf16.mxu0 %v1163
      %1620 = vmatmul.mubr.bf16.gmra.mrb[0].mxu0 %v785
      %v1621 = vpop.f32.mrb[0].mxu0
      %v1622 = vadd.f32 %v1333, %v1621
      %v1623 = vpop.f32.mrb[0].mxu0
      %v1624 = vpop.f32.mrb[0].mxu0
      %v1625 = vadd.f32 %v1336, %v1624
      %v1626 = vpop.f32.mrb[0].mxu0
      %1627 = vmatprep.mubr.bf16.mxu0 %v1166
      %1628 = vmatmul.mubr.bf16.gmra.mrb[0].mxu0 %v789
      %v1629 = vpop.f32.mrb[0].mxu0
      %v1630 = vadd.f32 %v1341, %v1629
      %v1631 = vpop.f32.mrb[0].mxu0
      %v1632 = vpop.f32.mrb[0].mxu0
      %v1633 = vadd.f32 %v1344, %v1632
      %v1634 = vpop.f32.mrb[0].mxu0
      %1635 = vmatprep.mubr.bf16.mxu0 %v1169
      %1636 = vmatmul.mubr.bf16.gmra.mrb[0].mxu0 %v793
      %v1637 = vpop.f32.mrb[0].mxu0
      %v1638 = vadd.f32 %v1349, %v1637
      %v1639 = vpop.f32.mrb[0].mxu0
      %v1640 = vpop.f32.mrb[0].mxu0
      %v1641 = vadd.f32 %v1352, %v1640
      %v1642 = vpop.f32.mrb[0].mxu0
      %1643 = vmatprep.mubr.bf16.mxu0 %v1172
      %1644 = vmatmul.mubr.bf16.gmra.mrb[0].mxu0 %v797
      %v1645 = vpop.f32.mrb[0].mxu0
      %v1646 = vadd.f32 %v1357, %v1645
      %v1647 = vpop.f32.mrb[0].mxu0
      %v1648 = vpop.f32.mrb[0].mxu0
      %v1649 = vadd.f32 %v1360, %v1648
      %v1650 = vpop.f32.mrb[0].mxu0
      %1651 = vmatprep.mubr.bf16.mxu0 %v1175
      %1652 = vmatmul.mubr.bf16.gmra.mrb[0].mxu0 %v801
      %v1653 = vpop.f32.mrb[0].mxu0
      %v1654 = vadd.f32 %v1365, %v1653
      %v1655 = vpop.f32.mrb[0].mxu0
      %v1656 = vpop.f32.mrb[0].mxu0
      %v1657 = vadd.f32 %v1368, %v1656
      %v1658 = vpop.f32.mrb[0].mxu0
      %1659 = vmatprep.mubr.bf16.mxu0 %v1178
      %1660 = vmatmul.mubr.bf16.gmra.mrb[0].mxu0 %v805
      %v1661 = vpop.f32.mrb[0].mxu0
      %v1662 = vadd.f32 %v1373, %v1661
      %v1663 = vpop.f32.mrb[0].mxu0
      %v1664 = vpop.f32.mrb[0].mxu0
      %v1665 = vadd.f32 %v1376, %v1664
      %v1666 = vpop.f32.mrb[0].mxu0
      %1667 = vmatprep.mubr.bf16.mxu0 %v1181
      %1668 = vmatmul.mubr.bf16.gmra.mrb[0].mxu0 %v809
      %v1669 = vpop.f32.mrb[0].mxu0
      %v1670 = vadd.f32 %v1381, %v1669
      %v1671 = vpop.f32.mrb[0].mxu0
      %v1672 = vpop.f32.mrb[0].mxu0
      %v1673 = vadd.f32 %v1384, %v1672
      %v1674 = vpop.f32.mrb[0].mxu0
      %1675 = vmatprep.mubr.bf16.mxu0 %v1184
      %1676 = vmatmul.mubr.bf16.gmra.mrb[0].mxu0 %v813
      %v1677 = vpop.f32.mrb[0].mxu0
      %v1678 = vadd.f32 %v1389, %v1677
      %v1679 = vpop.f32.mrb[0].mxu0
      %v1680 = vpop.f32.mrb[0].mxu0
      %v1681 = vadd.f32 %v1392, %v1680
      %v1682 = vpop.f32.mrb[0].mxu0
      %1683 = vmatprep.mubr.bf16.mxu0 %v1187
      %1684 = vmatmul.mubr.bf16.gmra.mrb[0].mxu0 %v817
      %v1685 = vpop.f32.mrb[0].mxu0
      %v1686 = vadd.f32 %v1397, %v1685
      %v1687 = vpop.f32.mrb[0].mxu0
      %v1688 = vpop.f32.mrb[0].mxu0
      %v1689 = vadd.f32 %v1400, %v1688
      %v1690 = vpop.f32.mrb[0].mxu0
      %1691 = vmatprep.mubr.bf16.mxu0 %v1190
      %1692 = vmatmul.mubr.bf16.gmra.mrb[0].mxu0 %v821
      %v1693 = vpop.f32.mrb[0].mxu0
      %v1694 = vadd.f32 %v1405, %v1693
      %v1695 = vpop.f32.mrb[0].mxu0
      %v1696 = vpop.f32.mrb[0].mxu0
      %v1697 = vadd.f32 %v1408, %v1696
      %v1698 = vpop.f32.mrb[0].mxu0
      %1699 = vmatprep.mubr.bf16.mxu0 %v1193
      %1700 = vmatmul.mubr.bf16.gmra.mrb[0].mxu0 %v825
      %v1701 = vpop.f32.mrb[0].mxu0
      %v1702 = vadd.f32 %v1413, %v1701
      %v1703 = vpop.f32.mrb[0].mxu0
      %v1704 = vpop.f32.mrb[0].mxu0
      %v1705 = vadd.f32 %v1416, %v1704
      %v1706 = vpop.f32.mrb[0].mxu0
      %1707 = vmatprep.mubr.bf16.mxu0 %v1196
      %1708 = vmatmul.mubr.bf16.gmra.mrb[0].mxu0 %v829
      %v1709 = vpop.f32.mrb[0].mxu0
      %v1710 = vadd.f32 %v1421, %v1709
      %v1711 = vpop.f32.mrb[0].mxu0
      %v1712 = vpop.f32.mrb[0].mxu0
      %v1713 = vadd.f32 %v1424, %v1712
      %v1714 = vpop.f32.mrb[0].mxu0
      %1715 = vmatprep.mubr.bf16.mxu0 %v1199
      %1716 = vmatmul.mubr.bf16.gmra.mrb[0].mxu0 %v833
      %v1717 = vpop.f32.mrb[0].mxu0
      %v1718 = vadd.f32 %v1429, %v1717
      %v1719 = vpop.f32.mrb[0].mxu0
      %v1720 = vpop.f32.mrb[0].mxu0
      %v1721 = vadd.f32 %v1432, %v1720
      %v1722 = vpop.f32.mrb[0].mxu0
      %1723 = vmatprep.mubr.bf16.mxu0 %v1202
      %1724 = vmatmul.mubr.bf16.gmra.mrb[0].mxu0 %v837
      %v1725 = vpop.f32.mrb[0].mxu0
      %v1726 = vadd.f32 %v1437, %v1725
      %v1727 = vpop.f32.mrb[0].mxu0
      %v1728 = vpop.f32.mrb[0].mxu0
      %v1729 = vadd.f32 %v1440, %v1728
      %v1730 = vpop.f32.mrb[0].mxu0
      %1731 = vmatprep.mubr.bf16.mxu0 %v1205
      %1732 = vmatmul.mubr.bf16.gmra.mrb[0].mxu0 %v841
      %v1733 = vpop.f32.mrb[0].mxu0
      %v1734 = vadd.f32 %v1445, %v1733
      %v1735 = vpop.f32.mrb[0].mxu0
      %v1736 = vpop.f32.mrb[0].mxu0
      %v1737 = vadd.f32 %v1448, %v1736
      %v1738 = vpop.f32.mrb[0].mxu0
      %1739 = vmatprep.mubr.bf16.mxu0 %v1208
      %1740 = vmatmul.mubr.bf16.gmra.mrb[0].mxu0 %v845
      %v1741 = vpop.f32.mrb[0].mxu0
      %v1742 = vadd.f32 %v1453, %v1741
      %v1743 = vpop.f32.mrb[0].mxu0
      %v1744 = vpop.f32.mrb[0].mxu0
      %v1745 = vadd.f32 %v1456, %v1744
      %v1746 = vpop.f32.mrb[0].mxu0
      %1747 = vmatprep.mubr.bf16.mxu0 %v1211
      %1748 = vmatmul.mubr.bf16.gmra.mrb[0].mxu0 %v849
      %v1749 = vpop.f32.mrb[0].mxu0
      %v1750 = vadd.f32 %v1461, %v1749
      %v1751 = vpop.f32.mrb[0].mxu0
      %v1752 = vpop.f32.mrb[0].mxu0
      %v1753 = vadd.f32 %v1464, %v1752
      %v1754 = vpop.f32.mrb[0].mxu0
      %1755 = vmatprep.mubr.bf16.mxu0 %v1214
      %1756 = vmatmul.mubr.bf16.gmra.mrb[0].mxu0 %v853
      %v1757 = vpop.f32.mrb[0].mxu0
      %v1758 = vadd.f32 %v1469, %v1757
      %v1759 = vpop.f32.mrb[0].mxu0
      %v1760 = vpop.f32.mrb[0].mxu0
      %v1761 = vadd.f32 %v1472, %v1760
      %v1762 = vpop.f32.mrb[0].mxu0
      %1763 = vmatprep.mubr.bf16.mxu0 %v1217
      %1764 = vmatmul.mubr.bf16.gmra.mrb[0].mxu0 %v857
      %v1765 = vpop.f32.mrb[0].mxu0
      %v1766 = vadd.f32 %v1477, %v1765
      %v1767 = vpop.f32.mrb[0].mxu0
      %v1768 = vpop.f32.mrb[0].mxu0
      %v1769 = vadd.f32 %v1480, %v1768
      %v1770 = vpop.f32.mrb[0].mxu0
      %1771 = vmatprep.mubr.bf16.mxu0 %v1220
      %1772 = vmatmul.mubr.bf16.gmra.mrb[0].mxu0 %v861
      %v1773 = vpop.f32.mrb[0].mxu0
      %v1774 = vadd.f32 %v1485, %v1773
      %v1775 = vpop.f32.mrb[0].mxu0
      %v1776 = vpop.f32.mrb[0].mxu0
      %v1777 = vadd.f32 %v1488, %v1776
      %v1778 = vpop.f32.mrb[0].mxu0
      %1779 = vmatprep.mubr.bf16.mxu0 %v1223
      %1780 = vmatmul.mubr.bf16.gmra.mrb[0].mxu0 %v865
      %v1781 = vpop.f32.mrb[0].mxu0
      %v1782 = vadd.f32 %v1493, %v1781
      %v1783 = vpop.f32.mrb[0].mxu0
      %v1784 = vpop.f32.mrb[0].mxu0
      %v1785 = vadd.f32 %v1496, %v1784
      %v1786 = vpop.f32.mrb[0].mxu0
      %1787 = vmatprep.mubr.bf16.mxu0 %v1226
      %1788 = vmatmul.mubr.bf16.gmra.mrb[0].mxu0 %v869
      %v1789 = vpop.f32.mrb[0].mxu0
      %v1790 = vadd.f32 %v1501, %v1789
      %v1791 = vpop.f32.mrb[0].mxu0
      %v1792 = vpop.f32.mrb[0].mxu0
      %v1793 = vadd.f32 %v1504, %v1792
      %v1794 = vpop.f32.mrb[0].mxu0
      %1795 = vmatprep.mubr.bf16.mxu0 %v1229
      %1796 = vmatmul.mubr.bf16.gmra.mrb[0].mxu0 %v873
      %v1797 = vpop.f32.mrb[0].mxu0
      %v1798 = vadd.f32 %v1509, %v1797
      %v1799 = vpop.f32.mrb[0].mxu0
      %v1800 = vpop.f32.mrb[0].mxu0
      %v1801 = vadd.f32 %v1512, %v1800
      %v1802 = vpop.f32.mrb[0].mxu0
      %1803 = vmatprep.mubr.bf16.mxu0 %v1232
      %1804 = vmatmul.mubr.bf16.gmra.mrb[0].mxu0 %v877
      %v1805 = vpop.f32.mrb[0].mxu0
      %v1806 = vadd.f32 %v1517, %v1805
      %v1807 = vpop.f32.mrb[0].mxu0
      %v1808 = vpop.f32.mrb[0].mxu0
      %v1809 = vadd.f32 %v1520, %v1808
      %v1810 = vpop.f32.mrb[0].mxu0
      %1811 = vdwg.mxu0
      %vm1812 = vcmp.ge.f32.partialorder %v1558, 0.0
      %vm1813 = vcmp.ge.f32.partialorder %v1561, 0.0
      %vm1814 = vcmp.ge.f32.partialorder %v1566, 0.0
      %vm1815 = vcmp.ge.f32.partialorder %v1569, 0.0
      %vm1816 = vcmp.ge.f32.partialorder %v1574, 0.0
      %vm1817 = vcmp.ge.f32.partialorder %v1577, 0.0
      %vm1818 = vcmp.ge.f32.partialorder %v1582, 0.0
      %vm1819 = vcmp.ge.f32.partialorder %v1585, 0.0
      %vm1820 = vcmp.ge.f32.partialorder %v1590, 0.0
      %vm1821 = vcmp.ge.f32.partialorder %v1593, 0.0
      %vm1822 = vcmp.ge.f32.partialorder %v1598, 0.0
      %vm1823 = vcmp.ge.f32.partialorder %v1601, 0.0
      %vm1824 = vcmp.ge.f32.partialorder %v1606, 0.0
      %vm1825 = vcmp.ge.f32.partialorder %v1609, 0.0
      %vm1826 = vcmp.ge.f32.partialorder %v1614, 0.0
      %vm1827 = vcmp.ge.f32.partialorder %v1617, 0.0
      %vm1828 = vcmp.ge.f32.partialorder %v1622, 0.0
      %vm1829 = vcmp.ge.f32.partialorder %v1625, 0.0
      %vm1830 = vcmp.ge.f32.partialorder %v1630, 0.0
      %vm1831 = vcmp.ge.f32.partialorder %v1633, 0.0
      %vm1832 = vcmp.ge.f32.partialorder %v1638, 0.0
      %vm1833 = vcmp.ge.f32.partialorder %v1641, 0.0
      %vm1834 = vcmp.ge.f32.partialorder %v1646, 0.0
      %vm1835 = vcmp.ge.f32.partialorder %v1649, 0.0
      %vm1836 = vcmp.ge.f32.partialorder %v1654, 0.0
      %vm1837 = vcmp.ge.f32.partialorder %v1657, 0.0
      %vm1838 = vcmp.ge.f32.partialorder %v1662, 0.0
      %vm1839 = vcmp.ge.f32.partialorder %v1665, 0.0
      %vm1840 = vcmp.ge.f32.partialorder %v1670, 0.0
      %vm1841 = vcmp.ge.f32.partialorder %v1673, 0.0
      %vm1842 = vcmp.ge.f32.partialorder %v1678, 0.0
      %vm1843 = vcmp.ge.f32.partialorder %v1681, 0.0
      %vm1844 = vcmp.ge.f32.partialorder %v1686, 0.0
      %vm1845 = vcmp.ge.f32.partialorder %v1689, 0.0
      %vm1846 = vcmp.ge.f32.partialorder %v1694, 0.0
      %vm1847 = vcmp.ge.f32.partialorder %v1697, 0.0
      %vm1848 = vcmp.ge.f32.partialorder %v1702, 0.0
      %vm1849 = vcmp.ge.f32.partialorder %v1705, 0.0
      %vm1850 = vcmp.ge.f32.partialorder %v1710, 0.0
      %vm1851 = vcmp.ge.f32.partialorder %v1713, 0.0
      %vm1852 = vcmp.ge.f32.partialorder %v1718, 0.0
      %vm1853 = vcmp.ge.f32.partialorder %v1721, 0.0
      %vm1854 = vcmp.ge.f32.partialorder %v1726, 0.0
      %vm1855 = vcmp.ge.f32.partialorder %v1729, 0.0
      %vm1856 = vcmp.ge.f32.partialorder %v1734, 0.0
      %vm1857 = vcmp.ge.f32.partialorder %v1737, 0.0
      %vm1858 = vcmp.ge.f32.partialorder %v1742, 0.0
      %vm1859 = vcmp.ge.f32.partialorder %v1745, 0.0
      %vm1860 = vcmp.ge.f32.partialorder %v1750, 0.0
      %vm1861 = vcmp.ge.f32.partialorder %v1753, 0.0
      %vm1862 = vcmp.ge.f32.partialorder %v1758, 0.0
      %vm1863 = vcmp.ge.f32.partialorder %v1761, 0.0
      %vm1864 = vcmp.ge.f32.partialorder %v1766, 0.0
      %vm1865 = vcmp.ge.f32.partialorder %v1769, 0.0
      %vm1866 = vcmp.ge.f32.partialorder %v1774, 0.0
      %vm1867 = vcmp.ge.f32.partialorder %v1777, 0.0
      %vm1868 = vcmp.ge.f32.partialorder %v1782, 0.0
      %vm1869 = vcmp.ge.f32.partialorder %v1785, 0.0
      %vm1870 = vcmp.ge.f32.partialorder %v1790, 0.0
      %vm1871 = vcmp.ge.f32.partialorder %v1793, 0.0
      %vm1872 = vcmp.ge.f32.partialorder %v1798, 0.0
      %vm1873 = vcmp.ge.f32.partialorder %v1801, 0.0
      %vm1874 = vcmp.ge.f32.partialorder %v1806, 0.0
      %vm1875 = vcmp.ge.f32.partialorder %v1809, 0.0
      %v1876 = vmul.f32 %v1558, 0.2
      %v1877 = vmul.f32 %v1561, 0.2
      %v1878 = vmul.f32 %v1566, 0.2
      %v1879 = vmul.f32 %v1569, 0.2
      %v1880 = vmul.f32 %v1574, 0.2
      %v1881 = vmul.f32 %v1577, 0.2
      %v1882 = vmul.f32 %v1582, 0.2
      %v1883 = vmul.f32 %v1585, 0.2
      %v1884 = vmul.f32 %v1590, 0.2
      %v1885 = vmul.f32 %v1593, 0.2
      %v1886 = vmul.f32 %v1598, 0.2
      %v1887 = vmul.f32 %v1601, 0.2
      %v1888 = vmul.f32 %v1606, 0.2
      %v1889 = vmul.f32 %v1609, 0.2
      %v1890 = vmul.f32 %v1614, 0.2
      %v1891 = vmul.f32 %v1617, 0.2
      %v1892 = vmul.f32 %v1622, 0.2
      %v1893 = vmul.f32 %v1625, 0.2
      %v1894 = vmul.f32 %v1630, 0.2
      %v1895 = vmul.f32 %v1633, 0.2
      %v1896 = vmul.f32 %v1638, 0.2
      %v1897 = vmul.f32 %v1641, 0.2
      %v1898 = vmul.f32 %v1646, 0.2
      %v1899 = vmul.f32 %v1649, 0.2
      %v1900 = vmul.f32 %v1654, 0.2
      %v1901 = vmul.f32 %v1657, 0.2
      %v1902 = vmul.f32 %v1662, 0.2
      %v1903 = vmul.f32 %v1665, 0.2
      %v1904 = vmul.f32 %v1670, 0.2
      %v1905 = vmul.f32 %v1673, 0.2
      %v1906 = vmul.f32 %v1678, 0.2
      %v1907 = vmul.f32 %v1681, 0.2
      %v1908 = vmul.f32 %v1686, 0.2
      %v1909 = vmul.f32 %v1689, 0.2
      %v1910 = vmul.f32 %v1694, 0.2
      %v1911 = vmul.f32 %v1697, 0.2
      %v1912 = vmul.f32 %v1702, 0.2
      %v1913 = vmul.f32 %v1705, 0.2
      %v1914 = vmul.f32 %v1710, 0.2
      %v1915 = vmul.f32 %v1713, 0.2
      %v1916 = vmul.f32 %v1718, 0.2
      %v1917 = vmul.f32 %v1721, 0.2
      %v1918 = vmul.f32 %v1726, 0.2
      %v1919 = vmul.f32 %v1729, 0.2
      %v1920 = vmul.f32 %v1734, 0.2
      %v1921 = vmul.f32 %v1737, 0.2
      %v1922 = vmul.f32 %v1742, 0.2
      %v1923 = vmul.f32 %v1745, 0.2
      %v1924 = vmul.f32 %v1750, 0.2
      %v1925 = vmul.f32 %v1753, 0.2
      %v1926 = vmul.f32 %v1758, 0.2
      %v1927 = vmul.f32 %v1761, 0.2
      %v1928 = vmul.f32 %v1766, 0.2
      %v1929 = vmul.f32 %v1769, 0.2
      %v1930 = vmul.f32 %v1774, 0.2
      %v1931 = vmul.f32 %v1777, 0.2
      %v1932 = vmul.f32 %v1782, 0.2
      %v1933 = vmul.f32 %v1785, 0.2
      %v1934 = vmul.f32 %v1790, 0.2
      %v1935 = vmul.f32 %v1793, 0.2
      %v1936 = vmul.f32 %v1798, 0.2
      %v1937 = vmul.f32 %v1801, 0.2
      %v1938 = vmul.f32 %v1806, 0.2
      %v1939 = vmul.f32 %v1809, 0.2
      %v1940 = vsel %vm1812, %v1558, %v1876
      %v1941 = vsel %vm1813, %v1561, %v1877
      %v1942 = vsel %vm1814, %v1566, %v1878
      %v1943 = vsel %vm1815, %v1569, %v1879
      %v1944 = vsel %vm1816, %v1574, %v1880
      %v1945 = vsel %vm1817, %v1577, %v1881
      %v1946 = vsel %vm1818, %v1582, %v1882
      %v1947 = vsel %vm1819, %v1585, %v1883
      %v1948 = vsel %vm1820, %v1590, %v1884
      %v1949 = vsel %vm1821, %v1593, %v1885
      %v1950 = vsel %vm1822, %v1598, %v1886
      %v1951 = vsel %vm1823, %v1601, %v1887
      %v1952 = vsel %vm1824, %v1606, %v1888
      %v1953 = vsel %vm1825, %v1609, %v1889
      %v1954 = vsel %vm1826, %v1614, %v1890
      %v1955 = vsel %vm1827, %v1617, %v1891
      %v1956 = vsel %vm1828, %v1622, %v1892
      %v1957 = vsel %vm1829, %v1625, %v1893
      %v1958 = vsel %vm1830, %v1630, %v1894
      %v1959 = vsel %vm1831, %v1633, %v1895
      %v1960 = vsel %vm1832, %v1638, %v1896
      %v1961 = vsel %vm1833, %v1641, %v1897
      %v1962 = vsel %vm1834, %v1646, %v1898
      %v1963 = vsel %vm1835, %v1649, %v1899
      %v1964 = vsel %vm1836, %v1654, %v1900
      %v1965 = vsel %vm1837, %v1657, %v1901
      %v1966 = vsel %vm1838, %v1662, %v1902
      %v1967 = vsel %vm1839, %v1665, %v1903
      %v1968 = vsel %vm1840, %v1670, %v1904
      %v1969 = vsel %vm1841, %v1673, %v1905
      %v1970 = vsel %vm1842, %v1678, %v1906
      %v1971 = vsel %vm1843, %v1681, %v1907
      %v1972 = vsel %vm1844, %v1686, %v1908
      %v1973 = vsel %vm1845, %v1689, %v1909
      %v1974 = vsel %vm1846, %v1694, %v1910
      %v1975 = vsel %vm1847, %v1697, %v1911
      %v1976 = vsel %vm1848, %v1702, %v1912
      %v1977 = vsel %vm1849, %v1705, %v1913
      %v1978 = vsel %vm1850, %v1710, %v1914
      %v1979 = vsel %vm1851, %v1713, %v1915
      %v1980 = vsel %vm1852, %v1718, %v1916
      %v1981 = vsel %vm1853, %v1721, %v1917
      %v1982 = vsel %vm1854, %v1726, %v1918
      %v1983 = vsel %vm1855, %v1729, %v1919
      %v1984 = vsel %vm1856, %v1734, %v1920
      %v1985 = vsel %vm1857, %v1737, %v1921
      %v1986 = vsel %vm1858, %v1742, %v1922
      %v1987 = vsel %vm1859, %v1745, %v1923
      %v1988 = vsel %vm1860, %v1750, %v1924
      %v1989 = vsel %vm1861, %v1753, %v1925
      %v1990 = vsel %vm1862, %v1758, %v1926
      %v1991 = vsel %vm1863, %v1761, %v1927
      %v1992 = vsel %vm1864, %v1766, %v1928
      %v1993 = vsel %vm1865, %v1769, %v1929
      %v1994 = vsel %vm1866, %v1774, %v1930
      %v1995 = vsel %vm1867, %v1777, %v1931
      %v1996 = vsel %vm1868, %v1782, %v1932
      %v1997 = vsel %vm1869, %v1785, %v1933
      %v1998 = vsel %vm1870, %v1790, %v1934
      %v1999 = vsel %vm1871, %v1793, %v1935
      %v2000 = vsel %vm1872, %v1798, %v1936
      %v2001 = vsel %vm1873, %v1801, %v1937
      %v2002 = vsel %vm1874, %v1806, %v1938
      %v2003 = vsel %vm1875, %v1809, %v1939
      %v2004 = vpack.c.bf16 %v1941, %v1940
      %v2005 = vpack.c.bf16 %v1943, %v1942
      %v2006 = vpack.c.bf16 %v1945, %v1944
      %v2007 = vpack.c.bf16 %v1947, %v1946
      %v2008 = vpack.c.bf16 %v1949, %v1948
      %v2009 = vpack.c.bf16 %v1951, %v1950
      %v2010 = vpack.c.bf16 %v1953, %v1952
      %v2011 = vpack.c.bf16 %v1955, %v1954
      %v2012 = vpack.c.bf16 %v1957, %v1956
      %v2013 = vpack.c.bf16 %v1959, %v1958
      %v2014 = vpack.c.bf16 %v1961, %v1960
      %v2015 = vpack.c.bf16 %v1963, %v1962
      %v2016 = vpack.c.bf16 %v1965, %v1964
      %v2017 = vpack.c.bf16 %v1967, %v1966
      %v2018 = vpack.c.bf16 %v1969, %v1968
      %v2019 = vpack.c.bf16 %v1971, %v1970
      %v2020 = vpack.c.bf16 %v1973, %v1972
      %v2021 = vpack.c.bf16 %v1975, %v1974
      %v2022 = vpack.c.bf16 %v1977, %v1976
      %v2023 = vpack.c.bf16 %v1979, %v1978
      %v2024 = vpack.c.bf16 %v1981, %v1980
      %v2025 = vpack.c.bf16 %v1983, %v1982
      %v2026 = vpack.c.bf16 %v1985, %v1984
      %v2027 = vpack.c.bf16 %v1987, %v1986
      %v2028 = vpack.c.bf16 %v1989, %v1988
      %v2029 = vpack.c.bf16 %v1991, %v1990
      %v2030 = vpack.c.bf16 %v1993, %v1992
      %v2031 = vpack.c.bf16 %v1995, %v1994
      %v2032 = vpack.c.bf16 %v1997, %v1996
      %v2033 = vpack.c.bf16 %v1999, %v1998
      %v2034 = vpack.c.bf16 %v2001, %v2000
      %v2035 = vpack.c.bf16 %v2003, %v2002
      %v2068 = vunpack.c.l.b16 %v2004
      %v2069 = vunpack.c.h.b16 %v2004
      %v2070 = vunpack.c.l.b16 %v2005
      %v2071 = vunpack.c.h.b16 %v2005
      %v2072 = vunpack.c.l.b16 %v2006
      %v2073 = vunpack.c.h.b16 %v2006
      %v2074 = vunpack.c.l.b16 %v2007
      %v2075 = vunpack.c.h.b16 %v2007
      %v2076 = vunpack.c.l.b16 %v2008
      %v2077 = vunpack.c.h.b16 %v2008
      %v2078 = vunpack.c.l.b16 %v2009
      %v2079 = vunpack.c.h.b16 %v2009
      %v2080 = vunpack.c.l.b16 %v2010
      %v2081 = vunpack.c.h.b16 %v2010
      %v2082 = vunpack.c.l.b16 %v2011
      %v2083 = vunpack.c.h.b16 %v2011
      %v2084 = vunpack.c.l.b16 %v2012
      %v2085 = vunpack.c.h.b16 %v2012
      %v2086 = vunpack.c.l.b16 %v2013
      %v2087 = vunpack.c.h.b16 %v2013
      %v2088 = vunpack.c.l.b16 %v2014
      %v2089 = vunpack.c.h.b16 %v2014
      %v2090 = vunpack.c.l.b16 %v2015
      %v2091 = vunpack.c.h.b16 %v2015
      %v2092 = vunpack.c.l.b16 %v2016
      %v2093 = vunpack.c.h.b16 %v2016
      %v2094 = vunpack.c.l.b16 %v2017
      %v2095 = vunpack.c.h.b16 %v2017
      %v2096 = vunpack.c.l.b16 %v2018
      %v2097 = vunpack.c.h.b16 %v2018
      %v2098 = vunpack.c.l.b16 %v2019
      %v2099 = vunpack.c.h.b16 %v2019
      %v2100 = vunpack.c.l.b16 %v2020
      %v2101 = vunpack.c.h.b16 %v2020
      %v2102 = vunpack.c.l.b16 %v2021
      %v2103 = vunpack.c.h.b16 %v2021
      %v2104 = vunpack.c.l.b16 %v2022
      %v2105 = vunpack.c.h.b16 %v2022
      %v2106 = vunpack.c.l.b16 %v2023
      %v2107 = vunpack.c.h.b16 %v2023
      %v2108 = vunpack.c.l.b16 %v2024
      %v2109 = vunpack.c.h.b16 %v2024
      %v2110 = vunpack.c.l.b16 %v2025
      %v2111 = vunpack.c.h.b16 %v2025
      %v2112 = vunpack.c.l.b16 %v2026
      %v2113 = vunpack.c.h.b16 %v2026
      %v2114 = vunpack.c.l.b16 %v2027
      %v2115 = vunpack.c.h.b16 %v2027
      %v2116 = vunpack.c.l.b16 %v2028
      %v2117 = vunpack.c.h.b16 %v2028
      %v2118 = vunpack.c.l.b16 %v2029
      %v2119 = vunpack.c.h.b16 %v2029
      %v2120 = vunpack.c.l.b16 %v2030
      %v2121 = vunpack.c.h.b16 %v2030
      %v2122 = vunpack.c.l.b16 %v2031
      %v2123 = vunpack.c.h.b16 %v2031
      %v2124 = vunpack.c.l.b16 %v2032
      %v2125 = vunpack.c.h.b16 %v2032
      %v2126 = vunpack.c.l.b16 %v2033
      %v2127 = vunpack.c.h.b16 %v2033
      %v2128 = vunpack.c.l.b16 %v2034
      %v2129 = vunpack.c.h.b16 %v2034
      %v2130 = vunpack.c.l.b16 %v2035
      %v2131 = vunpack.c.h.b16 %v2035
      %v2132 = vpack.c.b16 %v2068, %v2068
      %v2133 = vpack.c.b16 %v2069, %v2069
      %v2134 = vpack.c.b16 %v2070, %v2070
      %v2135 = vpack.c.b16 %v2071, %v2071
      %v2136 = vpack.c.b16 %v2072, %v2072
      %v2137 = vpack.c.b16 %v2073, %v2073
      %v2138 = vpack.c.b16 %v2074, %v2074
      %v2139 = vpack.c.b16 %v2075, %v2075
      %v2140 = vpack.c.b16 %v2076, %v2076
      %v2141 = vpack.c.b16 %v2077, %v2077
      %v2142 = vpack.c.b16 %v2078, %v2078
      %v2143 = vpack.c.b16 %v2079, %v2079
      %v2144 = vpack.c.b16 %v2080, %v2080
      %v2145 = vpack.c.b16 %v2081, %v2081
      %v2146 = vpack.c.b16 %v2082, %v2082
      %v2147 = vpack.c.b16 %v2083, %v2083
      %v2148 = vpack.c.b16 %v2084, %v2084
      %v2149 = vpack.c.b16 %v2085, %v2085
      %v2150 = vpack.c.b16 %v2086, %v2086
      %v2151 = vpack.c.b16 %v2087, %v2087
      %v2152 = vpack.c.b16 %v2088, %v2088
      %v2153 = vpack.c.b16 %v2089, %v2089
      %v2154 = vpack.c.b16 %v2090, %v2090
      %v2155 = vpack.c.b16 %v2091, %v2091
      %v2156 = vpack.c.b16 %v2092, %v2092
      %v2157 = vpack.c.b16 %v2093, %v2093
      %v2158 = vpack.c.b16 %v2094, %v2094
      %v2159 = vpack.c.b16 %v2095, %v2095
      %v2160 = vpack.c.b16 %v2096, %v2096
      %v2161 = vpack.c.b16 %v2097, %v2097
      %v2162 = vpack.c.b16 %v2098, %v2098
      %v2163 = vpack.c.b16 %v2099, %v2099
      %v2164 = vpack.c.b16 %v2100, %v2100
      %v2165 = vpack.c.b16 %v2101, %v2101
      %v2166 = vpack.c.b16 %v2102, %v2102
      %v2167 = vpack.c.b16 %v2103, %v2103
      %v2168 = vpack.c.b16 %v2104, %v2104
      %v2169 = vpack.c.b16 %v2105, %v2105
      %v2170 = vpack.c.b16 %v2106, %v2106
      %v2171 = vpack.c.b16 %v2107, %v2107
      %v2172 = vpack.c.b16 %v2108, %v2108
      %v2173 = vpack.c.b16 %v2109, %v2109
      %v2174 = vpack.c.b16 %v2110, %v2110
      %v2175 = vpack.c.b16 %v2111, %v2111
      %v2176 = vpack.c.b16 %v2112, %v2112
      %v2177 = vpack.c.b16 %v2113, %v2113
      %v2178 = vpack.c.b16 %v2114, %v2114
      %v2179 = vpack.c.b16 %v2115, %v2115
      %v2180 = vpack.c.b16 %v2116, %v2116
      %v2181 = vpack.c.b16 %v2117, %v2117
      %v2182 = vpack.c.b16 %v2118, %v2118
      %v2183 = vpack.c.b16 %v2119, %v2119
      %v2184 = vpack.c.b16 %v2120, %v2120
      %v2185 = vpack.c.b16 %v2121, %v2121
      %v2186 = vpack.c.b16 %v2122, %v2122
      %v2187 = vpack.c.b16 %v2123, %v2123
      %v2188 = vpack.c.b16 %v2124, %v2124
      %v2189 = vpack.c.b16 %v2125, %v2125
      %v2190 = vpack.c.b16 %v2126, %v2126
      %v2191 = vpack.c.b16 %v2127, %v2127
      %v2192 = vpack.c.b16 %v2128, %v2128
      %v2193 = vpack.c.b16 %v2129, %v2129
      %v2194 = vpack.c.b16 %v2130, %v2130
      %v2195 = vpack.c.b16 %v2131, %v2131
      %vm2260 = vcmask 257024
      %2261 = vst.msk [vmem:[%s175] sm:$0xf] %vm2260, %v2132
      %2262 = vst.msk [vmem:[%s175 + $0x4] sm:$0xf] %vm2260, %v2133
      %2263 = vst.msk [vmem:[%s175 + $0x8] sm:$0xf] %vm2260, %v2134
      %2264 = vst.msk [vmem:[%s175 + $0xc] sm:$0xf] %vm2260, %v2135
      %2265 = vst.msk [vmem:[%s175 + $0x10] sm:$0xf] %vm2260, %v2136
      %2266 = vst.msk [vmem:[%s175 + $0x14] sm:$0xf] %vm2260, %v2137
      %2267 = vst.msk [vmem:[%s175 + $0x18] sm:$0xf] %vm2260, %v2138
      %2268 = vst.msk [vmem:[%s175 + $0x1c] sm:$0xf] %vm2260, %v2139
      %2269 = vst.msk [vmem:[%s175 + $0x20] sm:$0xf] %vm2260, %v2140
      %2270 = vst.msk [vmem:[%s175 + $0x24] sm:$0xf] %vm2260, %v2141
      %2271 = vst.msk [vmem:[%s175 + $0x28] sm:$0xf] %vm2260, %v2142
      %2272 = vst.msk [vmem:[%s175 + $0x2c] sm:$0xf] %vm2260, %v2143
      %2273 = vst.msk [vmem:[%s175 + $0x30] sm:$0xf] %vm2260, %v2144
      %2274 = vst.msk [vmem:[%s175 + $0x34] sm:$0xf] %vm2260, %v2145
      %2275 = vst.msk [vmem:[%s175 + $0x38] sm:$0xf] %vm2260, %v2146
      %2276 = vst.msk [vmem:[%s175 + $0x3c] sm:$0xf] %vm2260, %v2147
      %2277 = vst.msk [vmem:[%s175 + $0x40] sm:$0xf] %vm2260, %v2148
      %2278 = vst.msk [vmem:[%s175 + $0x44] sm:$0xf] %vm2260, %v2149
      %2279 = vst.msk [vmem:[%s175 + $0x48] sm:$0xf] %vm2260, %v2150
      %2280 = vst.msk [vmem:[%s175 + $0x4c] sm:$0xf] %vm2260, %v2151
      %2281 = vst.msk [vmem:[%s175 + $0x50] sm:$0xf] %vm2260, %v2152
      %2282 = vst.msk [vmem:[%s175 + $0x54] sm:$0xf] %vm2260, %v2153
      %2283 = vst.msk [vmem:[%s175 + $0x58] sm:$0xf] %vm2260, %v2154
      %2284 = vst.msk [vmem:[%s175 + $0x5c] sm:$0xf] %vm2260, %v2155
      %2285 = vst.msk [vmem:[%s175 + $0x60] sm:$0xf] %vm2260, %v2156
      %2286 = vst.msk [vmem:[%s175 + $0x64] sm:$0xf] %vm2260, %v2157
      %2287 = vst.msk [vmem:[%s175 + $0x68] sm:$0xf] %vm2260, %v2158
      %2288 = vst.msk [vmem:[%s175 + $0x6c] sm:$0xf] %vm2260, %v2159
      %2289 = vst.msk [vmem:[%s175 + $0x70] sm:$0xf] %vm2260, %v2160
      %2290 = vst.msk [vmem:[%s175 + $0x74] sm:$0xf] %vm2260, %v2161
      %2291 = vst.msk [vmem:[%s175 + $0x78] sm:$0xf] %vm2260, %v2162
      %2292 = vst.msk [vmem:[%s175 + $0x7c] sm:$0xf] %vm2260, %v2163
      %2293 = vst.msk [vmem:[%s175 + $0x80] sm:$0xf] %vm2260, %v2164
      %2294 = vst.msk [vmem:[%s175 + $0x84] sm:$0xf] %vm2260, %v2165
      %2295 = vst.msk [vmem:[%s175 + $0x88] sm:$0xf] %vm2260, %v2166
      %2296 = vst.msk [vmem:[%s175 + $0x8c] sm:$0xf] %vm2260, %v2167
      %2297 = vst.msk [vmem:[%s175 + $0x90] sm:$0xf] %vm2260, %v2168
      %2298 = vst.msk [vmem:[%s175 + $0x94] sm:$0xf] %vm2260, %v2169
      %2299 = vst.msk [vmem:[%s175 + $0x98] sm:$0xf] %vm2260, %v2170
      %2300 = vst.msk [vmem:[%s175 + $0x9c] sm:$0xf] %vm2260, %v2171
      %2301 = vst.msk [vmem:[%s175 + $0xa0] sm:$0xf] %vm2260, %v2172
      %2302 = vst.msk [vmem:[%s175 + $0xa4] sm:$0xf] %vm2260, %v2173
      %2303 = vst.msk [vmem:[%s175 + $0xa8] sm:$0xf] %vm2260, %v2174
      %2304 = vst.msk [vmem:[%s175 + $0xac] sm:$0xf] %vm2260, %v2175
      %2305 = vst.msk [vmem:[%s175 + $0xb0] sm:$0xf] %vm2260, %v2176
      %2306 = vst.msk [vmem:[%s175 + $0xb4] sm:$0xf] %vm2260, %v2177
      %2307 = vst.msk [vmem:[%s175 + $0xb8] sm:$0xf] %vm2260, %v2178
      %2308 = vst.msk [vmem:[%s175 + $0xbc] sm:$0xf] %vm2260, %v2179
      %2309 = vst.msk [vmem:[%s175 + $0xc0] sm:$0xf] %vm2260, %v2180
      %2310 = vst.msk [vmem:[%s175 + $0xc4] sm:$0xf] %vm2260, %v2181
      %2311 = vst.msk [vmem:[%s175 + $0xc8] sm:$0xf] %vm2260, %v2182
      %2312 = vst.msk [vmem:[%s175 + $0xcc] sm:$0xf] %vm2260, %v2183
      %2313 = vst.msk [vmem:[%s175 + $0xd0] sm:$0xf] %vm2260, %v2184
      %2314 = vst.msk [vmem:[%s175 + $0xd4] sm:$0xf] %vm2260, %v2185
      %2315 = vst.msk [vmem:[%s175 + $0xd8] sm:$0xf] %vm2260, %v2186
      %2316 = vst.msk [vmem:[%s175 + $0xdc] sm:$0xf] %vm2260, %v2187
      %2317 = vst.msk [vmem:[%s175 + $0xe0] sm:$0xf] %vm2260, %v2188
      %2318 = vst.msk [vmem:[%s175 + $0xe4] sm:$0xf] %vm2260, %v2189
      %2319 = vst.msk [vmem:[%s175 + $0xe8] sm:$0xf] %vm2260, %v2190
      %2320 = vst.msk [vmem:[%s175 + $0xec] sm:$0xf] %vm2260, %v2191
      %2321 = vst.msk [vmem:[%s175 + $0xf0] sm:$0xf] %vm2260, %v2192
      %2322 = vst.msk [vmem:[%s175 + $0xf4] sm:$0xf] %vm2260, %v2193
      %2323 = vst.msk [vmem:[%s175 + $0xf8] sm:$0xf] %vm2260, %v2194
      %2324 = vst.msk [vmem:[%s175 + $0xfc] sm:$0xf] %vm2260, %v2195
      %s2325 = smul.u32 64, %s14
      %p2326 = scmp.lt.s32.totalorder %s2325, 127
      %s2327 = scalar_select %p2326, %s2325, 127
      %s2328 = smul.addr %s2327, 4
      %s2329 = scalar_lea.vmem %s3, %s2328
      // Predicated region
      $region33: #{forward.8} parent=31 // pred_check
        %p2330 = pneg %p100
      $region34: #{forward.8} parent=31 // pred_check_branch
        %2332 = sbr.rel (%p2330) target = $region36
      $region35: #{forward.8} parent=31 // pred_region
        %s2333 = smul.u32 64, %s14
      $region36: #{forward.8} parent=31 // pred_fallthru
        _
    $region32: #{forward.8} parent=5 // pred_fallthru
      _
    %p2334 = scmp.le.s32.totalorder 2, %s9
    // Predicated region
    $region37: #{forward.8} parent=5 // pred_check
      %p2335 = pneg %p2334
    $region38: #{forward.8} parent=5 // pred_check_branch
      %2337 = sbr.rel (%p2335) target = $region40
    $region39: #{forward.8} parent=5 // pred_region
      %s2338 = ssub.s32 %s9, 2
      // Predicated region
      $region41: #{forward.8} parent=39 // pred_check
        %p2339 = pneg %p106
      $region42: #{forward.8} parent=39 // pred_check_branch
        %2341 = sbr.rel (%p2339) target = $region44
      $region43: #{forward.8} parent=39 // pred_region
        %s2342 = smul.u32 64, %s15
        %p2343 = scmp.lt.s32.totalorder %s2342, 127
        %s2344 = scalar_select %p2343, %s2342, 127
        %s2345 = smul.addr %s2344, 4
        %s2346 = scalar_lea.vmem %s3, %s2345
      $region44: #{forward.8} parent=39 // pred_fallthru
        _
    $region40: #{forward.8} parent=5 // pred_fallthru
      _
  $region6: #{forward.8} parent=0 // loop_footer
    %s13 = sadd.s32 1, %s9
  $region7: #{forward.8} parent=0 // loop_footer_branch
    %8 = sbr.rel target = $region3
  $region8: #{forward.8} parent=0 // loop_exit
    _

// kernel: forward.9
$region0: #{forward.9}
  #allocation0 [shape = 'u32[]', space=smem, size = 0x4, offset = 0x4, fixed_abs, tag = 'smem constant byte address 0x4 - core index']
  #allocation1 [shape = 'u32[144,128]{1,0:T(1,128)}', space=vmem, size = 0x12000, scoped, tag = 'internal scratch']
  %s0 = inlined_call_operand.vmem [shape: bf16[128,864], index: 0, kind: input, shape index: {}]
  %s1 = inlined_call_operand.vmem [shape: bf16[864,32], index: 1, kind: input, shape index: {}]
  %s2 = inlined_call_operand.vmem [shape: f32[1,32], index: 2, kind: input, shape index: {}]
  %s3 = inlined_call_operand.vmem [shape: bf16[128,32], index: 3, kind: output, shape index: {}]
  %s4 = sld [smem:[#allocation0]]
  $region22: #{forward.9} parent=0
    _
  %s6 = ssub.s32 1, %s4
  %s7 = scalar_select 0, %s6, %s4
  // Predicated region
  $region2: #{forward.9} parent=0 // pred_check
    _
  $region3: #{forward.9} parent=0 // pred_check_branch
    %9 = sbr.rel (0) target = $region5
  $region4: #{forward.9} parent=0 // pred_region
    _
  $region5: #{forward.9} parent=0 // pred_fallthru
    _
  // Predicated region
  $region6: #{forward.9} parent=0 // pred_check
    _
  $region7: #{forward.9} parent=0 // pred_check_branch
    %11 = sbr.rel (0) target = $region9
  $region8: #{forward.9} parent=0 // pred_region
    _
  $region9: #{forward.9} parent=0 // pred_fallthru
    _
  // Predicated region
  $region10: #{forward.9} parent=0 // pred_check
    _
  $region11: #{forward.9} parent=0 // pred_check_branch
    %13 = sbr.rel (0) target = $region13
  $region12: #{forward.9} parent=0 // pred_region
    _
  $region13: #{forward.9} parent=0 // pred_fallthru
    _
  %v15 = vld [vmem:[%s0] sm:$0xff]
  %v16 = vld [vmem:[%s0 + $0x8] sm:$0xff]
  %v17 = vld [vmem:[%s0 + $0x10] sm:$0xff]
  %v18 = vld [vmem:[%s0 + $0x18] sm:$0xf]
  %v19 = vld [vmem:[%s0 + $0x1c] sm:$0xff]
  %v20 = vld [vmem:[%s0 + $0x24] sm:$0xff]
  %v21 = vld [vmem:[%s0 + $0x2c] sm:$0xff]
  %v22 = vld [vmem:[%s0 + $0x34] sm:$0xf]
  %v23 = vld [vmem:[%s0 + $0x38] sm:$0xff]
  %v24 = vld [vmem:[%s0 + $0x40] sm:$0xff]
  %v25 = vld [vmem:[%s0 + $0x48] sm:$0xff]
  %v26 = vld [vmem:[%s0 + $0x50] sm:$0xf]
  %v27 = vld [vmem:[%s0 + $0x54] sm:$0xff]
  %v28 = vld [vmem:[%s0 + $0x5c] sm:$0xff]
  %v29 = vld [vmem:[%s0 + $0x64] sm:$0xff]
  %v30 = vld [vmem:[%s0 + $0x6c] sm:$0xf]
  %v31 = vld [vmem:[%s0 + $0x70] sm:$0xff]
  %v32 = vld [vmem:[%s0 + $0x78] sm:$0xff]
  %v33 = vld [vmem:[%s0 + $0x80] sm:$0xff]
  %v34 = vld [vmem:[%s0 + $0x88] sm:$0xf]
  %v35 = vld [vmem:[%s0 + $0x8c] sm:$0xff]
  %v36 = vld [vmem:[%s0 + $0x94] sm:$0xff]
  %v37 = vld [vmem:[%s0 + $0x9c] sm:$0xff]
  %v38 = vld [vmem:[%s0 + $0xa4] sm:$0xf]
  %v39 = vld [vmem:[%s0 + $0xa8] sm:$0xff]
  %v40 = vld [vmem:[%s0 + $0xb0] sm:$0xff]
  %v41 = vld [vmem:[%s0 + $0xb8] sm:$0xff]
  %v42 = vld [vmem:[%s0 + $0xc0] sm:$0xf]
  %v43 = vld [vmem:[%s0 + $0xc4] sm:$0xff]
  %v44 = vld [vmem:[%s0 + $0xcc] sm:$0xff]
  %v45 = vld [vmem:[%s0 + $0xd4] sm:$0xff]
  %v46 = vld [vmem:[%s0 + $0xdc] sm:$0xf]
  %v47 = vld [vmem:[%s0 + $0xe0] sm:$0xff]
  %v48 = vld [vmem:[%s0 + $0xe8] sm:$0xff]
  %v49 = vld [vmem:[%s0 + $0xf0] sm:$0xff]
  %v50 = vld [vmem:[%s0 + $0xf8] sm:$0xf]
  %v51 = vld [vmem:[%s0 + $0xfc] sm:$0xff]
  %v52 = vld [vmem:[%s0 + $0x104] sm:$0xff]
  %v53 = vld [vmem:[%s0 + $0x10c] sm:$0xff]
  %v54 = vld [vmem:[%s0 + $0x114] sm:$0xf]
  %v55 = vld [vmem:[%s0 + $0x118] sm:$0xff]
  %v56 = vld [vmem:[%s0 + $0x120] sm:$0xff]
  %v57 = vld [vmem:[%s0 + $0x128] sm:$0xff]
  %v58 = vld [vmem:[%s0 + $0x130] sm:$0xf]
  %v59 = vld [vmem:[%s0 + $0x134] sm:$0xff]
  %v60 = vld [vmem:[%s0 + $0x13c] sm:$0xff]
  %v61 = vld [vmem:[%s0 + $0x144] sm:$0xff]
  %v62 = vld [vmem:[%s0 + $0x14c] sm:$0xf]
  %v63 = vld [vmem:[%s0 + $0x150] sm:$0xff]
  %v64 = vld [vmem:[%s0 + $0x158] sm:$0xff]
  %v65 = vld [vmem:[%s0 + $0x160] sm:$0xff]
  %v66 = vld [vmem:[%s0 + $0x168] sm:$0xf]
  %v67 = vld [vmem:[%s0 + $0x16c] sm:$0xff]
  %v68 = vld [vmem:[%s0 + $0x174] sm:$0xff]
  %v69 = vld [vmem:[%s0 + $0x17c] sm:$0xff]
  %v70 = vld [vmem:[%s0 + $0x184] sm:$0xf]
  %v71 = vld [vmem:[%s0 + $0x188] sm:$0xff]
  %v72 = vld [vmem:[%s0 + $0x190] sm:$0xff]
  %v73 = vld [vmem:[%s0 + $0x198] sm:$0xff]
  %v74 = vld [vmem:[%s0 + $0x1a0] sm:$0xf]
  %v75 = vld [vmem:[%s0 + $0x1a4] sm:$0xff]
  %v76 = vld [vmem:[%s0 + $0x1ac] sm:$0xff]
  %v77 = vld [vmem:[%s0 + $0x1b4] sm:$0xff]
  %v78 = vld [vmem:[%s0 + $0x1bc] sm:$0xf]
  %v79 = vld [vmem:[%s1] sm:$0xf]
  %v80 = vld [vmem:[%s1 + $0x4] sm:$0xf]
  %v81 = vld [vmem:[%s1 + $0x8] sm:$0xf]
  %v82 = vld [vmem:[%s1 + $0xc] sm:$0xf]
  %v83 = vld [vmem:[%s1 + $0x10] sm:$0xf]
  %v84 = vld [vmem:[%s1 + $0x14] sm:$0xf]
  %v85 = vld [vmem:[%s1 + $0x18] sm:$0xf]
  %v86 = vld [vmem:[%s1 + $0x1c] sm:$0xf]
  %v87 = vld [vmem:[%s1 + $0x20] sm:$0xf]
  %v88 = vld [vmem:[%s1 + $0x24] sm:$0xf]
  %v89 = vld [vmem:[%s1 + $0x28] sm:$0xf]
  %v90 = vld [vmem:[%s1 + $0x2c] sm:$0xf]
  %v91 = vld [vmem:[%s1 + $0x30] sm:$0xf]
  %v92 = vld [vmem:[%s1 + $0x34] sm:$0xf]
  %v93 = vld [vmem:[%s1 + $0x38] sm:$0xf]
  %v94 = vld [vmem:[%s1 + $0x3c] sm:$0xf]
  %v95 = vld [vmem:[%s1 + $0x40] sm:$0xf]
  %v96 = vld [vmem:[%s1 + $0x44] sm:$0xf]
  %v97 = vld [vmem:[%s1 + $0x48] sm:$0xf]
  %v98 = vld [vmem:[%s1 + $0x4c] sm:$0xf]
  %v99 = vld [vmem:[%s1 + $0x50] sm:$0xf]
  %v100 = vld [vmem:[%s1 + $0x54] sm:$0xf]
  %v101 = vld [vmem:[%s1 + $0x58] sm:$0xf]
  %v102 = vld [vmem:[%s1 + $0x5c] sm:$0xf]
  %v103 = vld [vmem:[%s1 + $0x60] sm:$0xf]
  %v104 = vld [vmem:[%s1 + $0x64] sm:$0xf]
  %v105 = vld [vmem:[%s1 + $0x68] sm:$0xf]
  %v106 = vld [vmem:[%s1 + $0x6c] sm:$0xf]
  %v107 = vld [vmem:[%s1 + $0x70] sm:$0xf]
  %v108 = vld [vmem:[%s1 + $0x74] sm:$0xf]
  %v109 = vld [vmem:[%s1 + $0x78] sm:$0xf]
  %v110 = vld [vmem:[%s1 + $0x7c] sm:$0xf]
  %v111 = vld [vmem:[%s1 + $0x80] sm:$0xf]
  %v112 = vld [vmem:[%s1 + $0x84] sm:$0xf]
  %v113 = vld [vmem:[%s1 + $0x88] sm:$0xf]
  %v114 = vld [vmem:[%s1 + $0x8c] sm:$0xf]
  %v115 = vld [vmem:[%s1 + $0x90] sm:$0xf]
  %v116 = vld [vmem:[%s1 + $0x94] sm:$0xf]
  %v117 = vld [vmem:[%s1 + $0x98] sm:$0xf]
  %v118 = vld [vmem:[%s1 + $0x9c] sm:$0xf]
  %v119 = vld [vmem:[%s1 + $0xa0] sm:$0xf]
  %v120 = vld [vmem:[%s1 + $0xa4] sm:$0xf]
  %v121 = vld [vmem:[%s1 + $0xa8] sm:$0xf]
  %v122 = vld [vmem:[%s1 + $0xac] sm:$0xf]
  %v123 = vld [vmem:[%s1 + $0xb0] sm:$0xf]
  %v124 = vld [vmem:[%s1 + $0xb4] sm:$0xf]
  %v125 = vld [vmem:[%s1 + $0xb8] sm:$0xf]
  %v126 = vld [vmem:[%s1 + $0xbc] sm:$0xf]
  %v127 = vld [vmem:[%s1 + $0xc0] sm:$0xf]
  %v128 = vld [vmem:[%s1 + $0xc4] sm:$0xf]
  %v129 = vld [vmem:[%s1 + $0xc8] sm:$0xf]
  %v130 = vld [vmem:[%s1 + $0xcc] sm:$0xf]
  %v131 = vld [vmem:[%s1 + $0xd0] sm:$0xf]
  %v132 = vld [vmem:[%s1 + $0xd4] sm:$0xf]
  %v133 = vld [vmem:[%s1 + $0xd8] sm:$0xf]
  %v134 = vld [vmem:[%s1 + $0xdc] sm:$0xf]
  %v135 = vld [vmem:[%s1 + $0xe0] sm:$0xf]
  %v136 = vld [vmem:[%s1 + $0xe4] sm:$0xf]
  %v137 = vld [vmem:[%s1 + $0xe8] sm:$0xf]
  %v138 = vld [vmem:[%s1 + $0xec] sm:$0xf]
  %v139 = vld [vmem:[%s1 + $0xf0] sm:$0xf]
  %v140 = vld [vmem:[%s1 + $0xf4] sm:$0xf]
  %v141 = vld [vmem:[%s1 + $0xf8] sm:$0xf]
  %v142 = vld [vmem:[%s1 + $0xfc] sm:$0xf]
  %v143 = vld [vmem:[%s1 + $0x100] sm:$0xf]
  %v144 = vld [vmem:[%s1 + $0x104] sm:$0xf]
  %v145 = vld [vmem:[%s1 + $0x108] sm:$0xf]
  %v146 = vld [vmem:[%s1 + $0x10c] sm:$0xf]
  %v147 = vld [vmem:[%s1 + $0x110] sm:$0xf]
  %v148 = vld [vmem:[%s1 + $0x114] sm:$0xf]
  %v149 = vld [vmem:[%s1 + $0x118] sm:$0xf]
  %v150 = vld [vmem:[%s1 + $0x11c] sm:$0xf]
  %v151 = vld [vmem:[%s1 + $0x120] sm:$0xf]
  %v152 = vld [vmem:[%s1 + $0x124] sm:$0xf]
  %v153 = vld [vmem:[%s1 + $0x128] sm:$0xf]
  %v154 = vld [vmem:[%s1 + $0x12c] sm:$0xf]
  %v155 = vld [vmem:[%s1 + $0x130] sm:$0xf]
  %v156 = vld [vmem:[%s1 + $0x134] sm:$0xf]
  %v157 = vld [vmem:[%s1 + $0x138] sm:$0xf]
  %v158 = vld [vmem:[%s1 + $0x13c] sm:$0xf]
  %v159 = vld [vmem:[%s1 + $0x140] sm:$0xf]
  %v160 = vld [vmem:[%s1 + $0x144] sm:$0xf]
  %v161 = vld [vmem:[%s1 + $0x148] sm:$0xf]
  %v162 = vld [vmem:[%s1 + $0x14c] sm:$0xf]
  %v163 = vld [vmem:[%s1 + $0x150] sm:$0xf]
  %v164 = vld [vmem:[%s1 + $0x154] sm:$0xf]
  %v165 = vld [vmem:[%s1 + $0x158] sm:$0xf]
  %v166 = vld [vmem:[%s1 + $0x15c] sm:$0xf]
  %v167 = vld [vmem:[%s1 + $0x160] sm:$0xf]
  %v168 = vld [vmem:[%s1 + $0x164] sm:$0xf]
  %v169 = vld [vmem:[%s1 + $0x168] sm:$0xf]
  %v170 = vld [vmem:[%s1 + $0x16c] sm:$0xf]
  %v171 = vld [vmem:[%s1 + $0x170] sm:$0xf]
  %v172 = vld [vmem:[%s1 + $0x174] sm:$0xf]
  %v173 = vld [vmem:[%s1 + $0x178] sm:$0xf]
  %v174 = vld [vmem:[%s1 + $0x17c] sm:$0xf]
  %v175 = vld [vmem:[%s1 + $0x180] sm:$0xf]
  %v176 = vld [vmem:[%s1 + $0x184] sm:$0xf]
  %v177 = vld [vmem:[%s1 + $0x188] sm:$0xf]
  %v178 = vld [vmem:[%s1 + $0x18c] sm:$0xf]
  %v179 = vld [vmem:[%s1 + $0x190] sm:$0xf]
  %v180 = vld [vmem:[%s1 + $0x194] sm:$0xf]
  %v181 = vld [vmem:[%s1 + $0x198] sm:$0xf]
  %v182 = vld [vmem:[%s1 + $0x19c] sm:$0xf]
  %v183 = vld [vmem:[%s1 + $0x1a0] sm:$0xf]
  %v184 = vld [vmem:[%s1 + $0x1a4] sm:$0xf]
  %v185 = vld [vmem:[%s1 + $0x1a8] sm:$0xf]
  %v186 = vld [vmem:[%s1 + $0x1ac] sm:$0xf]
  %v187 = vld [vmem:[%s2] sm:$0x1]
  %v189 = vlaneseq
  %v190 = vshrl.u32 %v189, 7
  %v191 = vsub.s32 0, %v190
  %v192 = vrot.slane %v187, %v191
  %v258 = vunpack.c.l.b16 %v15
  %v259 = vunpack.c.h.b16 %v15
  %v260 = vunpack.c.l.b16 %v16
  %v261 = vunpack.c.h.b16 %v16
  %v262 = vunpack.c.l.b16 %v17
  %v263 = vunpack.c.h.b16 %v17
  %v264 = vunpack.c.l.b16 %v18
  %v265 = vunpack.c.l.b16 %v19
  %v266 = vunpack.c.h.b16 %v19
  %v267 = vunpack.c.l.b16 %v20
  %v268 = vunpack.c.h.b16 %v20
  %v269 = vunpack.c.l.b16 %v21
  %v270 = vunpack.c.h.b16 %v21
  %v271 = vunpack.c.l.b16 %v22
  %v272 = vunpack.c.l.b16 %v23
  %v273 = vunpack.c.h.b16 %v23
  %v274 = vunpack.c.l.b16 %v24
  %v275 = vunpack.c.h.b16 %v24
  %v276 = vunpack.c.l.b16 %v25
  %v277 = vunpack.c.h.b16 %v25
  %v278 = vunpack.c.l.b16 %v26
  %v279 = vunpack.c.l.b16 %v27
  %v280 = vunpack.c.h.b16 %v27
  %v281 = vunpack.c.l.b16 %v28
  %v282 = vunpack.c.h.b16 %v28
  %v283 = vunpack.c.l.b16 %v29
  %v284 = vunpack.c.h.b16 %v29
  %v285 = vunpack.c.l.b16 %v30
  %v286 = vunpack.c.l.b16 %v31
  %v287 = vunpack.c.h.b16 %v31
  %v288 = vunpack.c.l.b16 %v32
  %v289 = vunpack.c.h.b16 %v32
  %v290 = vunpack.c.l.b16 %v33
  %v291 = vunpack.c.h.b16 %v33
  %v292 = vunpack.c.l.b16 %v34
  %v293 = vunpack.c.l.b16 %v35
  %v294 = vunpack.c.h.b16 %v35
  %v295 = vunpack.c.l.b16 %v36
  %v296 = vunpack.c.h.b16 %v36
  %v297 = vunpack.c.l.b16 %v37
  %v298 = vunpack.c.h.b16 %v37
  %v299 = vunpack.c.l.b16 %v38
  %v300 = vunpack.c.l.b16 %v39
  %v301 = vunpack.c.h.b16 %v39
  %v302 = vunpack.c.l.b16 %v40
  %v303 = vunpack.c.h.b16 %v40
  %v304 = vunpack.c.l.b16 %v41
  %v305 = vunpack.c.h.b16 %v41
  %v306 = vunpack.c.l.b16 %v42
  %v307 = vunpack.c.l.b16 %v43
  %v308 = vunpack.c.h.b16 %v43
  %v309 = vunpack.c.l.b16 %v44
  %v310 = vunpack.c.h.b16 %v44
  %v311 = vunpack.c.l.b16 %v45
  %v312 = vunpack.c.h.b16 %v45
  %v313 = vunpack.c.l.b16 %v46
  %v314 = vunpack.c.l.b16 %v47
  %v315 = vunpack.c.h.b16 %v47
  %v316 = vunpack.c.l.b16 %v48
  %v317 = vunpack.c.h.b16 %v48
  %v318 = vunpack.c.l.b16 %v49
  %v319 = vunpack.c.h.b16 %v49
  %v320 = vunpack.c.l.b16 %v50
  %v321 = vunpack.c.l.b16 %v51
  %v322 = vunpack.c.h.b16 %v51
  %v323 = vunpack.c.l.b16 %v52
  %v324 = vunpack.c.h.b16 %v52
  %v325 = vunpack.c.l.b16 %v53
  %v326 = vunpack.c.h.b16 %v53
  %v327 = vunpack.c.l.b16 %v54
  %v328 = vunpack.c.l.b16 %v55
  %v329 = vunpack.c.h.b16 %v55
  %v330 = vunpack.c.l.b16 %v56
  %v331 = vunpack.c.h.b16 %v56
  %v332 = vunpack.c.l.b16 %v57
  %v333 = vunpack.c.h.b16 %v57
  %v334 = vunpack.c.l.b16 %v58
  %v335 = vunpack.c.l.b16 %v59
  %v336 = vunpack.c.h.b16 %v59
  %v337 = vunpack.c.l.b16 %v60
  %v338 = vunpack.c.h.b16 %v60
  %v339 = vunpack.c.l.b16 %v61
  %v340 = vunpack.c.h.b16 %v61
  %v341 = vunpack.c.l.b16 %v62
  %v342 = vunpack.c.l.b16 %v63
  %v343 = vunpack.c.h.b16 %v63
  %v344 = vunpack.c.l.b16 %v64
  %v345 = vunpack.c.h.b16 %v64
  %v346 = vunpack.c.l.b16 %v65
  %v347 = vunpack.c.h.b16 %v65
  %v348 = vunpack.c.l.b16 %v66
  %v349 = vunpack.c.l.b16 %v67
  %v350 = vunpack.c.h.b16 %v67
  %v351 = vunpack.c.l.b16 %v68
  %v352 = vunpack.c.h.b16 %v68
  %v353 = vunpack.c.l.b16 %v69
  %v354 = vunpack.c.h.b16 %v69
  %v355 = vunpack.c.l.b16 %v70
  %v356 = vunpack.c.l.b16 %v71
  %v357 = vunpack.c.h.b16 %v71
  %v358 = vunpack.c.l.b16 %v72
  %v359 = vunpack.c.h.b16 %v72
  %v360 = vunpack.c.l.b16 %v73
  %v361 = vunpack.c.h.b16 %v73
  %v362 = vunpack.c.l.b16 %v74
  %v363 = vunpack.c.l.b16 %v75
  %v364 = vunpack.c.h.b16 %v75
  %v365 = vunpack.c.l.b16 %v76
  %v366 = vunpack.c.h.b16 %v76
  %v367 = vunpack.c.l.b16 %v77
  %v368 = vunpack.c.h.b16 %v77
  %v369 = vunpack.c.l.b16 %v78
  %v370 = vpack.c.b16 %v265, %v258
  %v371 = vpack.c.b16 %v266, %v259
  %v372 = vpack.c.b16 %v267, %v260
  %v373 = vpack.c.b16 %v268, %v261
  %v374 = vpack.c.b16 %v269, %v262
  %v375 = vpack.c.b16 %v270, %v263
  %v376 = vpack.c.b16 %v271, %v264
  %v377 = vpack.c.b16 %v279, %v272
  %v378 = vpack.c.b16 %v280, %v273
  %v379 = vpack.c.b16 %v281, %v274
  %v380 = vpack.c.b16 %v282, %v275
  %v381 = vpack.c.b16 %v283, %v276
  %v382 = vpack.c.b16 %v284, %v277
  %v383 = vpack.c.b16 %v285, %v278
  %v384 = vpack.c.b16 %v293, %v286
  %v385 = vpack.c.b16 %v294, %v287
  %v386 = vpack.c.b16 %v295, %v288
  %v387 = vpack.c.b16 %v296, %v289
  %v388 = vpack.c.b16 %v297, %v290
  %v389 = vpack.c.b16 %v298, %v291
  %v390 = vpack.c.b16 %v299, %v292
  %v391 = vpack.c.b16 %v307, %v300
  %v392 = vpack.c.b16 %v308, %v301
  %v393 = vpack.c.b16 %v309, %v302
  %v394 = vpack.c.b16 %v310, %v303
  %v395 = vpack.c.b16 %v311, %v304
  %v396 = vpack.c.b16 %v312, %v305
  %v397 = vpack.c.b16 %v313, %v306
  %v398 = vpack.c.b16 %v321, %v314
  %v399 = vpack.c.b16 %v322, %v315
  %v400 = vpack.c.b16 %v323, %v316
  %v401 = vpack.c.b16 %v324, %v317
  %v402 = vpack.c.b16 %v325, %v318
  %v403 = vpack.c.b16 %v326, %v319
  %v404 = vpack.c.b16 %v327, %v320
  %v405 = vpack.c.b16 %v335, %v328
  %v406 = vpack.c.b16 %v336, %v329
  %v407 = vpack.c.b16 %v337, %v330
  %v408 = vpack.c.b16 %v338, %v331
  %v409 = vpack.c.b16 %v339, %v332
  %v410 = vpack.c.b16 %v340, %v333
  %v411 = vpack.c.b16 %v341, %v334
  %v412 = vpack.c.b16 %v349, %v342
  %v413 = vpack.c.b16 %v350, %v343
  %v414 = vpack.c.b16 %v351, %v344
  %v415 = vpack.c.b16 %v352, %v345
  %v416 = vpack.c.b16 %v353, %v346
  %v417 = vpack.c.b16 %v354, %v347
  %v418 = vpack.c.b16 %v355, %v348
  %v419 = vpack.c.b16 %v363, %v356
  %v420 = vpack.c.b16 %v364, %v357
  %v421 = vpack.c.b16 %v365, %v358
  %v422 = vpack.c.b16 %v366, %v359
  %v423 = vpack.c.b16 %v367, %v360
  %v424 = vpack.c.b16 %v368, %v361
  %v425 = vpack.c.b16 %v369, %v362
  %v582 = vunpack.c.l.b16 %v79
  %v583 = vunpack.c.l.b16 %v80
  %v584 = vunpack.c.l.b16 %v81
  %v585 = vunpack.c.l.b16 %v82
  %v586 = vunpack.c.l.b16 %v83
  %v587 = vunpack.c.l.b16 %v84
  %v588 = vunpack.c.l.b16 %v85
  %v589 = vunpack.c.l.b16 %v86
  %v590 = vunpack.c.l.b16 %v87
  %v591 = vunpack.c.l.b16 %v88
  %v592 = vunpack.c.l.b16 %v89
  %v593 = vunpack.c.l.b16 %v90
  %v594 = vunpack.c.l.b16 %v91
  %v595 = vunpack.c.l.b16 %v92
  %v596 = vunpack.c.l.b16 %v93
  %v597 = vunpack.c.l.b16 %v94
  %v598 = vunpack.c.l.b16 %v95
  %v599 = vunpack.c.l.b16 %v96
  %v600 = vunpack.c.l.b16 %v97
  %v601 = vunpack.c.l.b16 %v98
  %v602 = vunpack.c.l.b16 %v99
  %v603 = vunpack.c.l.b16 %v100
  %v604 = vunpack.c.l.b16 %v101
  %v605 = vunpack.c.l.b16 %v102
  %v606 = vunpack.c.l.b16 %v103
  %v607 = vunpack.c.l.b16 %v104
  %v608 = vunpack.c.l.b16 %v105
  %v609 = vunpack.c.l.b16 %v106
  %v610 = vunpack.c.l.b16 %v107
  %v611 = vunpack.c.l.b16 %v108
  %v612 = vunpack.c.l.b16 %v109
  %v613 = vunpack.c.l.b16 %v110
  %v614 = vunpack.c.l.b16 %v111
  %v615 = vunpack.c.l.b16 %v112
  %v616 = vunpack.c.l.b16 %v113
  %v617 = vunpack.c.l.b16 %v114
  %v618 = vunpack.c.l.b16 %v115
  %v619 = vunpack.c.l.b16 %v116
  %v620 = vunpack.c.l.b16 %v117
  %v621 = vunpack.c.l.b16 %v118
  %v622 = vunpack.c.l.b16 %v119
  %v623 = vunpack.c.l.b16 %v120
  %v624 = vunpack.c.l.b16 %v121
  %v625 = vunpack.c.l.b16 %v122
  %v626 = vunpack.c.l.b16 %v123
  %v627 = vunpack.c.l.b16 %v124
  %v628 = vunpack.c.l.b16 %v125
  %v629 = vunpack.c.l.b16 %v126
  %v630 = vunpack.c.l.b16 %v127
  %v631 = vunpack.c.l.b16 %v128
  %v632 = vunpack.c.l.b16 %v129
  %v633 = vunpack.c.l.b16 %v130
  %v634 = vunpack.c.l.b16 %v131
  %v635 = vunpack.c.l.b16 %v132
  %v636 = vunpack.c.l.b16 %v133
  %v637 = vunpack.c.l.b16 %v134
  %v638 = vunpack.c.l.b16 %v135
  %v639 = vunpack.c.l.b16 %v136
  %v640 = vunpack.c.l.b16 %v137
  %v641 = vunpack.c.l.b16 %v138
  %v642 = vunpack.c.l.b16 %v139
  %v643 = vunpack.c.l.b16 %v140
  %v644 = vunpack.c.l.b16 %v141
  %v645 = vunpack.c.l.b16 %v142
  %v646 = vunpack.c.l.b16 %v143
  %v647 = vunpack.c.l.b16 %v144
  %v648 = vunpack.c.l.b16 %v145
  %v649 = vunpack.c.l.b16 %v146
  %v650 = vunpack.c.l.b16 %v147
  %v651 = vunpack.c.l.b16 %v148
  %v652 = vunpack.c.l.b16 %v149
  %v653 = vunpack.c.l.b16 %v150
  %v654 = vunpack.c.l.b16 %v151
  %v655 = vunpack.c.l.b16 %v152
  %v656 = vunpack.c.l.b16 %v153
  %v657 = vunpack.c.l.b16 %v154
  %v658 = vunpack.c.l.b16 %v155
  %v659 = vunpack.c.l.b16 %v156
  %v660 = vunpack.c.l.b16 %v157
  %v661 = vunpack.c.l.b16 %v158
  %v662 = vunpack.c.l.b16 %v159
  %v663 = vunpack.c.l.b16 %v160
  %v664 = vunpack.c.l.b16 %v161
  %v665 = vunpack.c.l.b16 %v162
  %v666 = vunpack.c.l.b16 %v163
  %v667 = vunpack.c.l.b16 %v164
  %v668 = vunpack.c.l.b16 %v165
  %v669 = vunpack.c.l.b16 %v166
  %v670 = vunpack.c.l.b16 %v167
  %v671 = vunpack.c.l.b16 %v168
  %v672 = vunpack.c.l.b16 %v169
  %v673 = vunpack.c.l.b16 %v170
  %v674 = vunpack.c.l.b16 %v171
  %v675 = vunpack.c.l.b16 %v172
  %v676 = vunpack.c.l.b16 %v173
  %v677 = vunpack.c.l.b16 %v174
  %v678 = vunpack.c.l.b16 %v175
  %v679 = vunpack.c.l.b16 %v176
  %v680 = vunpack.c.l.b16 %v177
  %v681 = vunpack.c.l.b16 %v178
  %v682 = vunpack.c.l.b16 %v179
  %v683 = vunpack.c.l.b16 %v180
  %v684 = vunpack.c.l.b16 %v181
  %v685 = vunpack.c.l.b16 %v182
  %v686 = vunpack.c.l.b16 %v183
  %v687 = vunpack.c.l.b16 %v184
  %v688 = vunpack.c.l.b16 %v185
  %v689 = vunpack.c.l.b16 %v186
  %v690 = vpack.c.b16 %v583, %v582
  %v691 = vpack.c.b16 %v585, %v584
  %v692 = vpack.c.b16 %v587, %v586
  %v693 = vpack.c.b16 %v589, %v588
  %v694 = vpack.c.b16 %v591, %v590
  %v695 = vpack.c.b16 %v593, %v592
  %v696 = vpack.c.b16 %v595, %v594
  %v697 = vpack.c.b16 %v597, %v596
  %v698 = vpack.c.b16 %v599, %v598
  %v699 = vpack.c.b16 %v601, %v600
  %v700 = vpack.c.b16 %v603, %v602
  %v701 = vpack.c.b16 %v605, %v604
  %v702 = vpack.c.b16 %v607, %v606
  %v703 = vpack.c.b16 %v609, %v608
  %v704 = vpack.c.b16 %v611, %v610
  %v705 = vpack.c.b16 %v613, %v612
  %v706 = vpack.c.b16 %v615, %v614
  %v707 = vpack.c.b16 %v617, %v616
  %v708 = vpack.c.b16 %v619, %v618
  %v709 = vpack.c.b16 %v621, %v620
  %v710 = vpack.c.b16 %v623, %v622
  %v711 = vpack.c.b16 %v625, %v624
  %v712 = vpack.c.b16 %v627, %v626
  %v713 = vpack.c.b16 %v629, %v628
  %v714 = vpack.c.b16 %v631, %v630
  %v715 = vpack.c.b16 %v633, %v632
  %v716 = vpack.c.b16 %v635, %v634
  %v717 = vpack.c.b16 %v637, %v636
  %v718 = vpack.c.b16 %v639, %v638
  %v719 = vpack.c.b16 %v641, %v640
  %v720 = vpack.c.b16 %v643, %v642
  %v721 = vpack.c.b16 %v645, %v644
  %v722 = vpack.c.b16 %v647, %v646
  %v723 = vpack.c.b16 %v649, %v648
  %v724 = vpack.c.b16 %v651, %v650
  %v725 = vpack.c.b16 %v653, %v652
  %v726 = vpack.c.b16 %v655, %v654
  %v727 = vpack.c.b16 %v657, %v656
  %v728 = vpack.c.b16 %v659, %v658
  %v729 = vpack.c.b16 %v661, %v660
  %v730 = vpack.c.b16 %v663, %v662
  %v731 = vpack.c.b16 %v665, %v664
  %v732 = vpack.c.b16 %v667, %v666
  %v733 = vpack.c.b16 %v669, %v668
  %v734 = vpack.c.b16 %v671, %v670
  %v735 = vpack.c.b16 %v673, %v672
  %v736 = vpack.c.b16 %v675, %v674
  %v737 = vpack.c.b16 %v677, %v676
  %v738 = vpack.c.b16 %v679, %v678
  %v739 = vpack.c.b16 %v681, %v680
  %v740 = vpack.c.b16 %v683, %v682
  %v741 = vpack.c.b16 %v685, %v684
  %v742 = vpack.c.b16 %v687, %v686
  %v743 = vpack.c.b16 %v689, %v688
  %vm798 = vcmask 785408
  %v800 = vsel %vm798, %v376, 0
  %v803 = vsel %vm798, %v383, 0
  %v806 = vsel %vm798, %v390, 0
  %v809 = vsel %vm798, %v397, 0
  %v812 = vsel %vm798, %v404, 0
  %v815 = vsel %vm798, %v411, 0
  %v818 = vsel %vm798, %v418, 0
  %v821 = vsel %vm798, %v425, 0
  %823 = vmatprep.subr.bf16.mxu0 0
  %824 = vmatpush1.bf16.msra.mxu0 %v690
  %825 = vmatprep.subr.bf16.mxu0 0
  %826 = vmatpush1.bf16.msra.mxu0 %v691
  %827 = vmatprep.subr.bf16.mxu0 0
  %828 = vmatpush1.bf16.msra.mxu0 %v692
  %829 = vmatprep.subr.bf16.mxu0 0
  %830 = vmatpush1.bf16.msra.mxu0 %v693
  %831 = vmatprep.subr.bf16.mxu0 0
  %832 = vmatpush1.bf16.msra.mxu0 %v694
  %833 = vmatprep.subr.bf16.mxu0 0
  %834 = vmatpush1.bf16.msra.mxu0 %v695
  %835 = vmatprep.subr.bf16.mxu0 0
  %836 = vmatpush1.bf16.msra.mxu0 %v696
  %837 = vmatprep.subr.bf16.mxu0 0
  %838 = vmatpush1.bf16.msra.mxu0 %v697
  %839 = vmatprep.subr.bf16.mxu0 0
  %840 = vmatpush1.bf16.msra.mxu0 %v698
  %841 = vmatprep.subr.bf16.mxu0 0
  %842 = vmatpush1.bf16.msra.mxu0 %v699
  %843 = vmatprep.subr.bf16.mxu0 0
  %844 = vmatpush1.bf16.msra.mxu0 %v700
  %845 = vmatprep.subr.bf16.mxu0 0
  %846 = vmatpush1.bf16.msra.mxu0 %v701
  %847 = vmatprep.subr.bf16.mxu0 0
  %848 = vmatpush1.bf16.msra.mxu0 %v702
  %849 = vmatprep.subr.bf16.mxu0 0
  %850 = vmatpush1.bf16.msra.mxu0 %v703
  %851 = vmatprep.subr.bf16.mxu0 0
  %852 = vmatpush1.bf16.msra.mxu0 %v704
  %853 = vmatprep.subr.bf16.mxu0 0
  %854 = vmatpush1.bf16.msra.mxu0 %v705
  %855 = vmatprep.mubr.bf16.mxu0 %v371
  %856 = vmatmul.mubr.bf16.gmra.mrb[0].mxu0 %v370
  %v857 = vpop.f32.mrb[0].mxu0
  %v858 = vadd.f32 %v192, %v857
  %v859 = vpop.f32.mrb[0].mxu0
  %v860 = vpop.f32.mrb[0].mxu0
  %v861 = vadd.f32 %v192, %v860
  %v862 = vpop.f32.mrb[0].mxu0
  %863 = vmatprep.mubr.bf16.mxu0 %v378
  %864 = vmatmul.mubr.bf16.gmra.mrb[0].mxu0 %v377
  %v865 = vpop.f32.mrb[0].mxu0
  %v866 = vadd.f32 %v192, %v865
  %v867 = vpop.f32.mrb[0].mxu0
  %v868 = vpop.f32.mrb[0].mxu0
  %v869 = vadd.f32 %v192, %v868
  %v870 = vpop.f32.mrb[0].mxu0
  %871 = vmatprep.mubr.bf16.mxu0 %v385
  %872 = vmatmul.mubr.bf16.gmra.mrb[0].mxu0 %v384
  %v873 = vpop.f32.mrb[0].mxu0
  %v874 = vadd.f32 %v192, %v873
  %v875 = vpop.f32.mrb[0].mxu0
  %v876 = vpop.f32.mrb[0].mxu0
  %v877 = vadd.f32 %v192, %v876
  %v878 = vpop.f32.mrb[0].mxu0
  %879 = vmatprep.mubr.bf16.mxu0 %v392
  %880 = vmatmul.mubr.bf16.gmra.mrb[0].mxu0 %v391
  %v881 = vpop.f32.mrb[0].mxu0
  %v882 = vadd.f32 %v192, %v881
  %v883 = vpop.f32.mrb[0].mxu0
  %v884 = vpop.f32.mrb[0].mxu0
  %v885 = vadd.f32 %v192, %v884
  %v886 = vpop.f32.mrb[0].mxu0
  %887 = vmatprep.mubr.bf16.mxu0 %v399
  %888 = vmatmul.mubr.bf16.gmra.mrb[0].mxu0 %v398
  %v889 = vpop.f32.mrb[0].mxu0
  %v890 = vadd.f32 %v192, %v889
  %v891 = vpop.f32.mrb[0].mxu0
  %v892 = vpop.f32.mrb[0].mxu0
  %v893 = vadd.f32 %v192, %v892
  %v894 = vpop.f32.mrb[0].mxu0
  %895 = vmatprep.mubr.bf16.mxu0 %v406
  %896 = vmatmul.mubr.bf16.gmra.mrb[0].mxu0 %v405
  %v897 = vpop.f32.mrb[0].mxu0
  %v898 = vadd.f32 %v192, %v897
  %v899 = vpop.f32.mrb[0].mxu0
  %v900 = vpop.f32.mrb[0].mxu0
  %v901 = vadd.f32 %v192, %v900
  %v902 = vpop.f32.mrb[0].mxu0
  %903 = vmatprep.mubr.bf16.mxu0 %v413
  %904 = vmatmul.mubr.bf16.gmra.mrb[0].mxu0 %v412
  %v905 = vpop.f32.mrb[0].mxu0
  %v906 = vadd.f32 %v192, %v905
  %v907 = vpop.f32.mrb[0].mxu0
  %v908 = vpop.f32.mrb[0].mxu0
  %v909 = vadd.f32 %v192, %v908
  %v910 = vpop.f32.mrb[0].mxu0
  %911 = vmatprep.mubr.bf16.mxu0 %v420
  %912 = vmatmul.mubr.bf16.gmra.mrb[0].mxu0 %v419
  %v913 = vpop.f32.mrb[0].mxu0
  %v914 = vadd.f32 %v192, %v913
  %v915 = vpop.f32.mrb[0].mxu0
  %v916 = vpop.f32.mrb[0].mxu0
  %v917 = vadd.f32 %v192, %v916
  %v918 = vpop.f32.mrb[0].mxu0
  %919 = vdwg.mxu0
  %920 = vmatprep.subr.bf16.mxu0 0
  %921 = vmatpush1.bf16.msra.mxu0 %v706
  %922 = vmatprep.subr.bf16.mxu0 0
  %923 = vmatpush1.bf16.msra.mxu0 %v707
  %924 = vmatprep.subr.bf16.mxu0 0
  %925 = vmatpush1.bf16.msra.mxu0 %v708
  %926 = vmatprep.subr.bf16.mxu0 0
  %927 = vmatpush1.bf16.msra.mxu0 %v709
  %928 = vmatprep.subr.bf16.mxu0 0
  %929 = vmatpush1.bf16.msra.mxu0 %v710
  %930 = vmatprep.subr.bf16.mxu0 0
  %931 = vmatpush1.bf16.msra.mxu0 %v711
  %932 = vmatprep.subr.bf16.mxu0 0
  %933 = vmatpush1.bf16.msra.mxu0 %v712
  %934 = vmatprep.subr.bf16.mxu0 0
  %935 = vmatpush1.bf16.msra.mxu0 %v713
  %936 = vmatprep.subr.bf16.mxu0 0
  %937 = vmatpush1.bf16.msra.mxu0 %v714
  %938 = vmatprep.subr.bf16.mxu0 0
  %939 = vmatpush1.bf16.msra.mxu0 %v715
  %940 = vmatprep.subr.bf16.mxu0 0
  %941 = vmatpush1.bf16.msra.mxu0 %v716
  %942 = vmatprep.subr.bf16.mxu0 0
  %943 = vmatpush1.bf16.msra.mxu0 %v717
  %944 = vmatprep.subr.bf16.mxu0 0
  %945 = vmatpush1.bf16.msra.mxu0 %v718
  %946 = vmatprep.subr.bf16.mxu0 0
  %947 = vmatpush1.bf16.msra.mxu0 %v719
  %948 = vmatprep.subr.bf16.mxu0 0
  %949 = vmatpush1.bf16.msra.mxu0 %v720
  %950 = vmatprep.subr.bf16.mxu0 0
  %951 = vmatpush1.bf16.msra.mxu0 %v721
  %952 = vmatprep.mubr.bf16.mxu0 %v373
  %953 = vmatmul.mubr.bf16.gmra.mrb[0].mxu0 %v372
  %v954 = vpop.f32.mrb[0].mxu0
  %v955 = vadd.f32 %v858, %v954
  %v956 = vpop.f32.mrb[0].mxu0
  %v957 = vpop.f32.mrb[0].mxu0
  %v958 = vadd.f32 %v861, %v957
  %v959 = vpop.f32.mrb[0].mxu0
  %960 = vmatprep.mubr.bf16.mxu0 %v380
  %961 = vmatmul.mubr.bf16.gmra.mrb[0].mxu0 %v379
  %v962 = vpop.f32.mrb[0].mxu0
  %v963 = vadd.f32 %v866, %v962
  %v964 = vpop.f32.mrb[0].mxu0
  %v965 = vpop.f32.mrb[0].mxu0
  %v966 = vadd.f32 %v869, %v965
  %v967 = vpop.f32.mrb[0].mxu0
  %968 = vmatprep.mubr.bf16.mxu0 %v387
  %969 = vmatmul.mubr.bf16.gmra.mrb[0].mxu0 %v386
  %v970 = vpop.f32.mrb[0].mxu0
  %v971 = vadd.f32 %v874, %v970
  %v972 = vpop.f32.mrb[0].mxu0
  %v973 = vpop.f32.mrb[0].mxu0
  %v974 = vadd.f32 %v877, %v973
  %v975 = vpop.f32.mrb[0].mxu0
  %976 = vmatprep.mubr.bf16.mxu0 %v394
  %977 = vmatmul.mubr.bf16.gmra.mrb[0].mxu0 %v393
  %v978 = vpop.f32.mrb[0].mxu0
  %v979 = vadd.f32 %v882, %v978
  %v980 = vpop.f32.mrb[0].mxu0
  %v981 = vpop.f32.mrb[0].mxu0
  %v982 = vadd.f32 %v885, %v981
  %v983 = vpop.f32.mrb[0].mxu0
  %984 = vmatprep.mubr.bf16.mxu0 %v401
  %985 = vmatmul.mubr.bf16.gmra.mrb[0].mxu0 %v400
  %v986 = vpop.f32.mrb[0].mxu0
  %v987 = vadd.f32 %v890, %v986
  %v988 = vpop.f32.mrb[0].mxu0
  %v989 = vpop.f32.mrb[0].mxu0
  %v990 = vadd.f32 %v893, %v989
  %v991 = vpop.f32.mrb[0].mxu0
  %992 = vmatprep.mubr.bf16.mxu0 %v408
  %993 = vmatmul.mubr.bf16.gmra.mrb[0].mxu0 %v407
  %v994 = vpop.f32.mrb[0].mxu0
  %v995 = vadd.f32 %v898, %v994
  %v996 = vpop.f32.mrb[0].mxu0
  %v997 = vpop.f32.mrb[0].mxu0
  %v998 = vadd.f32 %v901, %v997
  %v999 = vpop.f32.mrb[0].mxu0
  %1000 = vmatprep.mubr.bf16.mxu0 %v415
  %1001 = vmatmul.mubr.bf16.gmra.mrb[0].mxu0 %v414
  %v1002 = vpop.f32.mrb[0].mxu0
  %v1003 = vadd.f32 %v906, %v1002
  %v1004 = vpop.f32.mrb[0].mxu0
  %v1005 = vpop.f32.mrb[0].mxu0
  %v1006 = vadd.f32 %v909, %v1005
  %v1007 = vpop.f32.mrb[0].mxu0
  %1008 = vmatprep.mubr.bf16.mxu0 %v422
  %1009 = vmatmul.mubr.bf16.gmra.mrb[0].mxu0 %v421
  %v1010 = vpop.f32.mrb[0].mxu0
  %v1011 = vadd.f32 %v914, %v1010
  %v1012 = vpop.f32.mrb[0].mxu0
  %v1013 = vpop.f32.mrb[0].mxu0
  %v1014 = vadd.f32 %v917, %v1013
  %v1015 = vpop.f32.mrb[0].mxu0
  %1016 = vdwg.mxu0
  %1017 = vmatprep.subr.bf16.mxu0 0
  %1018 = vmatpush1.bf16.msra.mxu0 %v722
  %1019 = vmatprep.subr.bf16.mxu0 0
  %1020 = vmatpush1.bf16.msra.mxu0 %v723
  %1021 = vmatprep.subr.bf16.mxu0 0
  %1022 = vmatpush1.bf16.msra.mxu0 %v724
  %1023 = vmatprep.subr.bf16.mxu0 0
  %1024 = vmatpush1.bf16.msra.mxu0 %v725
  %1025 = vmatprep.subr.bf16.mxu0 0
  %1026 = vmatpush1.bf16.msra.mxu0 %v726
  %1027 = vmatprep.subr.bf16.mxu0 0
  %1028 = vmatpush1.bf16.msra.mxu0 %v727
  %1029 = vmatprep.subr.bf16.mxu0 0
  %1030 = vmatpush1.bf16.msra.mxu0 %v728
  %1031 = vmatprep.subr.bf16.mxu0 0
  %1032 = vmatpush1.bf16.msra.mxu0 %v729
  %1033 = vmatprep.subr.bf16.mxu0 0
  %1034 = vmatpush1.bf16.msra.mxu0 %v730
  %1035 = vmatprep.subr.bf16.mxu0 0
  %1036 = vmatpush1.bf16.msra.mxu0 %v731
  %1037 = vmatprep.subr.bf16.mxu0 0
  %1038 = vmatpush1.bf16.msra.mxu0 %v732
  %1039 = vmatprep.subr.bf16.mxu0 0
  %1040 = vmatpush1.bf16.msra.mxu0 %v733
  %1041 = vmatprep.subr.bf16.mxu0 0
  %1042 = vmatpush1.bf16.msra.mxu0 %v734
  %1043 = vmatprep.subr.bf16.mxu0 0
  %1044 = vmatpush1.bf16.msra.mxu0 %v735
  %1045 = vmatprep.subr.bf16.mxu0 0
  %1046 = vmatpush1.bf16.msra.mxu0 %v736
  %1047 = vmatprep.subr.bf16.mxu0 0
  %1048 = vmatpush1.bf16.msra.mxu0 %v737
  %1049 = vmatprep.mubr.bf16.mxu0 %v375
  %1050 = vmatmul.mubr.bf16.gmra.mrb[0].mxu0 %v374
  %v1051 = vpop.f32.mrb[0].mxu0
  %v1052 = vadd.f32 %v955, %v1051
  %v1053 = vpop.f32.mrb[0].mxu0
  %v1054 = vpop.f32.mrb[0].mxu0
  %v1055 = vadd.f32 %v958, %v1054
  %v1056 = vpop.f32.mrb[0].mxu0
  %1057 = vmatprep.mubr.bf16.mxu0 %v382
  %1058 = vmatmul.mubr.bf16.gmra.mrb[0].mxu0 %v381
  %v1059 = vpop.f32.mrb[0].mxu0
  %v1060 = vadd.f32 %v963, %v1059
  %v1061 = vpop.f32.mrb[0].mxu0
  %v1062 = vpop.f32.mrb[0].mxu0
  %v1063 = vadd.f32 %v966, %v1062
  %v1064 = vpop.f32.mrb[0].mxu0
  %1065 = vmatprep.mubr.bf16.mxu0 %v389
  %1066 = vmatmul.mubr.bf16.gmra.mrb[0].mxu0 %v388
  %v1067 = vpop.f32.mrb[0].mxu0
  %v1068 = vadd.f32 %v971, %v1067
  %v1069 = vpop.f32.mrb[0].mxu0
  %v1070 = vpop.f32.mrb[0].mxu0
  %v1071 = vadd.f32 %v974, %v1070
  %v1072 = vpop.f32.mrb[0].mxu0
  %1073 = vmatprep.mubr.bf16.mxu0 %v396
  %1074 = vmatmul.mubr.bf16.gmra.mrb[0].mxu0 %v395
  %v1075 = vpop.f32.mrb[0].mxu0
  %v1076 = vadd.f32 %v979, %v1075
  %v1077 = vpop.f32.mrb[0].mxu0
  %v1078 = vpop.f32.mrb[0].mxu0
  %v1079 = vadd.f32 %v982, %v1078
  %v1080 = vpop.f32.mrb[0].mxu0
  %1081 = vmatprep.mubr.bf16.mxu0 %v403
  %1082 = vmatmul.mubr.bf16.gmra.mrb[0].mxu0 %v402
  %v1083 = vpop.f32.mrb[0].mxu0
  %v1084 = vadd.f32 %v987, %v1083
  %v1085 = vpop.f32.mrb[0].mxu0
  %v1086 = vpop.f32.mrb[0].mxu0
  %v1087 = vadd.f32 %v990, %v1086
  %v1088 = vpop.f32.mrb[0].mxu0
  %1089 = vmatprep.mubr.bf16.mxu0 %v410
  %1090 = vmatmul.mubr.bf16.gmra.mrb[0].mxu0 %v409
  %v1091 = vpop.f32.mrb[0].mxu0
  %v1092 = vadd.f32 %v995, %v1091
  %v1093 = vpop.f32.mrb[0].mxu0
  %v1094 = vpop.f32.mrb[0].mxu0
  %v1095 = vadd.f32 %v998, %v1094
  %v1096 = vpop.f32.mrb[0].mxu0
  %1097 = vmatprep.mubr.bf16.mxu0 %v417
  %1098 = vmatmul.mubr.bf16.gmra.mrb[0].mxu0 %v416
  %v1099 = vpop.f32.mrb[0].mxu0
  %v1100 = vadd.f32 %v1003, %v1099
  %v1101 = vpop.f32.mrb[0].mxu0
  %v1102 = vpop.f32.mrb[0].mxu0
  %v1103 = vadd.f32 %v1006, %v1102
  %v1104 = vpop.f32.mrb[0].mxu0
  %1105 = vmatprep.mubr.bf16.mxu0 %v424
  %1106 = vmatmul.mubr.bf16.gmra.mrb[0].mxu0 %v423
  %v1107 = vpop.f32.mrb[0].mxu0
  %v1108 = vadd.f32 %v1011, %v1107
  %v1109 = vpop.f32.mrb[0].mxu0
  %v1110 = vpop.f32.mrb[0].mxu0
  %v1111 = vadd.f32 %v1014, %v1110
  %v1112 = vpop.f32.mrb[0].mxu0
  %1113 = vdwg.mxu0
  %1114 = vmatprep.subr.bf16.mxu0 0
  %1115 = vmatpush1.bf16.msra.mxu0 %v738
  %1116 = vmatprep.subr.bf16.mxu0 0
  %1117 = vmatpush1.bf16.msra.mxu0 %v739
  %1118 = vmatprep.subr.bf16.mxu0 0
  %1119 = vmatpush1.bf16.msra.mxu0 %v740
  %1120 = vmatprep.subr.bf16.mxu0 0
  %1121 = vmatpush1.bf16.msra.mxu0 %v741
  %1122 = vmatprep.subr.bf16.mxu0 0
  %1123 = vmatpush1.bf16.msra.mxu0 %v742
  %1124 = vmatprep.subr.bf16.mxu0 0
  %1125 = vmatpush1.bf16.msra.mxu0 %v743
  %1126 = vmatprep.subr.bf16.mxu0 0
  %1127 = vmatpush1.bf16.msra.mxu0 0
  %1128 = vmatprep.subr.bf16.mxu0 0
  %1129 = vmatpush1.bf16.msra.mxu0 0
  %1130 = vmatprep.subr.bf16.mxu0 0
  %1131 = vmatpush1.bf16.msra.mxu0 0
  %1132 = vmatprep.subr.bf16.mxu0 0
  %1133 = vmatpush1.bf16.msra.mxu0 0
  %1134 = vmatprep.subr.bf16.mxu0 0
  %1135 = vmatpush1.bf16.msra.mxu0 0
  %1136 = vmatprep.subr.bf16.mxu0 0
  %1137 = vmatpush1.bf16.msra.mxu0 0
  %1138 = vmatprep.subr.bf16.mxu0 0
  %1139 = vmatpush1.bf16.msra.mxu0 0
  %1140 = vmatprep.subr.bf16.mxu0 0
  %1141 = vmatpush1.bf16.msra.mxu0 0
  %1142 = vmatprep.subr.bf16.mxu0 0
  %1143 = vmatpush1.bf16.msra.mxu0 0
  %1144 = vmatprep.subr.bf16.mxu0 0
  %1145 = vmatpush1.bf16.msra.mxu0 0
  %1146 = vmatprep.mubr.bf16.mxu0 0
  %1147 = vmatmul.mubr.bf16.gmra.mrb[0].mxu0 %v800
  %v1148 = vpop.f32.mrb[0].mxu0
  %v1149 = vadd.f32 %v1052, %v1148
  %v1150 = vpop.f32.mrb[0].mxu0
  %v1151 = vpop.f32.mrb[0].mxu0
  %v1152 = vadd.f32 %v1055, %v1151
  %v1153 = vpop.f32.mrb[0].mxu0
  %1154 = vmatprep.mubr.bf16.mxu0 0
  %1155 = vmatmul.mubr.bf16.gmra.mrb[0].mxu0 %v803
  %v1156 = vpop.f32.mrb[0].mxu0
  %v1157 = vadd.f32 %v1060, %v1156
  %v1158 = vpop.f32.mrb[0].mxu0
  %v1159 = vpop.f32.mrb[0].mxu0
  %v1160 = vadd.f32 %v1063, %v1159
  %v1161 = vpop.f32.mrb[0].mxu0
  %1162 = vmatprep.mubr.bf16.mxu0 0
  %1163 = vmatmul.mubr.bf16.gmra.mrb[0].mxu0 %v806
  %v1164 = vpop.f32.mrb[0].mxu0
  %v1165 = vadd.f32 %v1068, %v1164
  %v1166 = vpop.f32.mrb[0].mxu0
  %v1167 = vpop.f32.mrb[0].mxu0
  %v1168 = vadd.f32 %v1071, %v1167
  %v1169 = vpop.f32.mrb[0].mxu0
  %1170 = vmatprep.mubr.bf16.mxu0 0
  %1171 = vmatmul.mubr.bf16.gmra.mrb[0].mxu0 %v809
  %v1172 = vpop.f32.mrb[0].mxu0
  %v1173 = vadd.f32 %v1076, %v1172
  %v1174 = vpop.f32.mrb[0].mxu0
  %v1175 = vpop.f32.mrb[0].mxu0
  %v1176 = vadd.f32 %v1079, %v1175
  %v1177 = vpop.f32.mrb[0].mxu0
  %1178 = vmatprep.mubr.bf16.mxu0 0
  %1179 = vmatmul.mubr.bf16.gmra.mrb[0].mxu0 %v812
  %v1180 = vpop.f32.mrb[0].mxu0
  %v1181 = vadd.f32 %v1084, %v1180
  %v1182 = vpop.f32.mrb[0].mxu0
  %v1183 = vpop.f32.mrb[0].mxu0
  %v1184 = vadd.f32 %v1087, %v1183
  %v1185 = vpop.f32.mrb[0].mxu0
  %1186 = vmatprep.mubr.bf16.mxu0 0
  %1187 = vmatmul.mubr.bf16.gmra.mrb[0].mxu0 %v815
  %v1188 = vpop.f32.mrb[0].mxu0
  %v1189 = vadd.f32 %v1092, %v1188
  %v1190 = vpop.f32.mrb[0].mxu0
  %v1191 = vpop.f32.mrb[0].mxu0
  %v1192 = vadd.f32 %v1095, %v1191
  %v1193 = vpop.f32.mrb[0].mxu0
  %1194 = vmatprep.mubr.bf16.mxu0 0
  %1195 = vmatmul.mubr.bf16.gmra.mrb[0].mxu0 %v818
  %v1196 = vpop.f32.mrb[0].mxu0
  %v1197 = vadd.f32 %v1100, %v1196
  %v1198 = vpop.f32.mrb[0].mxu0
  %v1199 = vpop.f32.mrb[0].mxu0
  %v1200 = vadd.f32 %v1103, %v1199
  %v1201 = vpop.f32.mrb[0].mxu0
  %1202 = vmatprep.mubr.bf16.mxu0 0
  %1203 = vmatmul.mubr.bf16.gmra.mrb[0].mxu0 %v821
  %v1204 = vpop.f32.mrb[0].mxu0
  %v1205 = vadd.f32 %v1108, %v1204
  %v1206 = vpop.f32.mrb[0].mxu0
  %v1207 = vpop.f32.mrb[0].mxu0
  %v1208 = vadd.f32 %v1111, %v1207
  %v1209 = vpop.f32.mrb[0].mxu0
  %1210 = vdwg.mxu0
  %vm1211 = vcmp.ge.f32.partialorder %v1149, 0.0
  %vm1212 = vcmp.ge.f32.partialorder %v1152, 0.0
  %vm1213 = vcmp.ge.f32.partialorder %v1157, 0.0
  %vm1214 = vcmp.ge.f32.partialorder %v1160, 0.0
  %vm1215 = vcmp.ge.f32.partialorder %v1165, 0.0
  %vm1216 = vcmp.ge.f32.partialorder %v1168, 0.0
  %vm1217 = vcmp.ge.f32.partialorder %v1173, 0.0
  %vm1218 = vcmp.ge.f32.partialorder %v1176, 0.0
  %vm1219 = vcmp.ge.f32.partialorder %v1181, 0.0
  %vm1220 = vcmp.ge.f32.partialorder %v1184, 0.0
  %vm1221 = vcmp.ge.f32.partialorder %v1189, 0.0
  %vm1222 = vcmp.ge.f32.partialorder %v1192, 0.0
  %vm1223 = vcmp.ge.f32.partialorder %v1197, 0.0
  %vm1224 = vcmp.ge.f32.partialorder %v1200, 0.0
  %vm1225 = vcmp.ge.f32.partialorder %v1205, 0.0
  %vm1226 = vcmp.ge.f32.partialorder %v1208, 0.0
  %v1227 = vmul.f32 %v1149, 0.2
  %v1228 = vmul.f32 %v1152, 0.2
  %v1229 = vmul.f32 %v1157, 0.2
  %v1230 = vmul.f32 %v1160, 0.2
  %v1231 = vmul.f32 %v1165, 0.2
  %v1232 = vmul.f32 %v1168, 0.2
  %v1233 = vmul.f32 %v1173, 0.2
  %v1234 = vmul.f32 %v1176, 0.2
  %v1235 = vmul.f32 %v1181, 0.2
  %v1236 = vmul.f32 %v1184, 0.2
  %v1237 = vmul.f32 %v1189, 0.2
  %v1238 = vmul.f32 %v1192, 0.2
  %v1239 = vmul.f32 %v1197, 0.2
  %v1240 = vmul.f32 %v1200, 0.2
  %v1241 = vmul.f32 %v1205, 0.2
  %v1242 = vmul.f32 %v1208, 0.2
  %v1243 = vsel %vm1211, %v1149, %v1227
  %v1244 = vsel %vm1212, %v1152, %v1228
  %v1245 = vsel %vm1213, %v1157, %v1229
  %v1246 = vsel %vm1214, %v1160, %v1230
  %v1247 = vsel %vm1215, %v1165, %v1231
  %v1248 = vsel %vm1216, %v1168, %v1232
  %v1249 = vsel %vm1217, %v1173, %v1233
  %v1250 = vsel %vm1218, %v1176, %v1234
  %v1251 = vsel %vm1219, %v1181, %v1235
  %v1252 = vsel %vm1220, %v1184, %v1236
  %v1253 = vsel %vm1221, %v1189, %v1237
  %v1254 = vsel %vm1222, %v1192, %v1238
  %v1255 = vsel %vm1223, %v1197, %v1239
  %v1256 = vsel %vm1224, %v1200, %v1240
  %v1257 = vsel %vm1225, %v1205, %v1241
  %v1258 = vsel %vm1226, %v1208, %v1242
  %v1259 = vpack.c.bf16 %v1244, %v1243
  %v1260 = vpack.c.bf16 %v1246, %v1245
  %v1261 = vpack.c.bf16 %v1248, %v1247
  %v1262 = vpack.c.bf16 %v1250, %v1249
  %v1263 = vpack.c.bf16 %v1252, %v1251
  %v1264 = vpack.c.bf16 %v1254, %v1253
  %v1265 = vpack.c.bf16 %v1256, %v1255
  %v1266 = vpack.c.bf16 %v1258, %v1257
  %v1275 = vunpack.c.l.b16 %v1259
  %v1276 = vunpack.c.h.b16 %v1259
  %v1277 = vunpack.c.l.b16 %v1260
  %v1278 = vunpack.c.h.b16 %v1260
  %v1279 = vunpack.c.l.b16 %v1261
  %v1280 = vunpack.c.h.b16 %v1261
  %v1281 = vunpack.c.l.b16 %v1262
  %v1282 = vunpack.c.h.b16 %v1262
  %v1283 = vunpack.c.l.b16 %v1263
  %v1284 = vunpack.c.h.b16 %v1263
  %v1285 = vunpack.c.l.b16 %v1264
  %v1286 = vunpack.c.h.b16 %v1264
  %v1287 = vunpack.c.l.b16 %v1265
  %v1288 = vunpack.c.h.b16 %v1265
  %v1289 = vunpack.c.l.b16 %v1266
  %v1290 = vunpack.c.h.b16 %v1266
  %v1291 = vpack.c.b16 %v1275, %v1275
  %v1292 = vpack.c.b16 %v1276, %v1276
  %v1293 = vpack.c.b16 %v1277, %v1277
  %v1294 = vpack.c.b16 %v1278, %v1278
  %v1295 = vpack.c.b16 %v1279, %v1279
  %v1296 = vpack.c.b16 %v1280, %v1280
  %v1297 = vpack.c.b16 %v1281, %v1281
  %v1298 = vpack.c.b16 %v1282, %v1282
  %v1299 = vpack.c.b16 %v1283, %v1283
  %v1300 = vpack.c.b16 %v1284, %v1284
  %v1301 = vpack.c.b16 %v1285, %v1285
  %v1302 = vpack.c.b16 %v1286, %v1286
  %v1303 = vpack.c.b16 %v1287, %v1287
  %v1304 = vpack.c.b16 %v1288, %v1288
  %v1305 = vpack.c.b16 %v1289, %v1289
  %v1306 = vpack.c.b16 %v1290, %v1290
  %vm1323 = vcmask 257024
  %1324 = vst.msk [vmem:[%s3] sm:$0xf] %vm1323, %v1291
  %1325 = vst.msk [vmem:[%s3 + $0x4] sm:$0xf] %vm1323, %v1292
  %1326 = vst.msk [vmem:[%s3 + $0x8] sm:$0xf] %vm1323, %v1293
  %1327 = vst.msk [vmem:[%s3 + $0xc] sm:$0xf] %vm1323, %v1294
  %1328 = vst.msk [vmem:[%s3 + $0x10] sm:$0xf] %vm1323, %v1295
  %1329 = vst.msk [vmem:[%s3 + $0x14] sm:$0xf] %vm1323, %v1296
  %1330 = vst.msk [vmem:[%s3 + $0x18] sm:$0xf] %vm1323, %v1297
  %1331 = vst.msk [vmem:[%s3 + $0x1c] sm:$0xf] %vm1323, %v1298
  %1332 = vst.msk [vmem:[%s3 + $0x20] sm:$0xf] %vm1323, %v1299
  %1333 = vst.msk [vmem:[%s3 + $0x24] sm:$0xf] %vm1323, %v1300
  %1334 = vst.msk [vmem:[%s3 + $0x28] sm:$0xf] %vm1323, %v1301
  %1335 = vst.msk [vmem:[%s3 + $0x2c] sm:$0xf] %vm1323, %v1302
  %1336 = vst.msk [vmem:[%s3 + $0x30] sm:$0xf] %vm1323, %v1303
  %1337 = vst.msk [vmem:[%s3 + $0x34] sm:$0xf] %vm1323, %v1304
  %1338 = vst.msk [vmem:[%s3 + $0x38] sm:$0xf] %vm1323, %v1305
  %1339 = vst.msk [vmem:[%s3 + $0x3c] sm:$0xf] %vm1323, %v1306
  // Predicated region
  $region14: #{forward.9} parent=0 // pred_check
    _
  $region15: #{forward.9} parent=0 // pred_check_branch
    %1341 = sbr.rel (0) target = $region17
  $region16: #{forward.9} parent=0 // pred_region
    _
  $region17: #{forward.9} parent=0 // pred_fallthru
    _
  // Predicated region
  $region18: #{forward.9} parent=0 // pred_check
    _
  $region19: #{forward.9} parent=0 // pred_check_branch
    %1343 = sbr.rel (0) target = $region21
  $region20: #{forward.9} parent=0 // pred_region
    _
  $region21: #{forward.9} parent=0 // pred_fallthru
    _

// kernel: forward.10
$region0: #{forward.10}
  #allocation0 [shape = 'u32[]', space=smem, size = 0x4, offset = 0x4, fixed_abs, tag = 'smem constant byte address 0x4 - core index']
  #allocation1 [shape = 'u32[144,128]{1,0:T(1,128)}', space=vmem, size = 0x12000, scoped, tag = 'internal scratch']
  %s0 = inlined_call_operand.vmem [shape: bf16[16,864], index: 0, kind: input, shape index: {}]
  %s1 = inlined_call_operand.vmem [shape: bf16[864,32], index: 1, kind: input, shape index: {}]
  %s2 = inlined_call_operand.vmem [shape: f32[1,32], index: 2, kind: input, shape index: {}]
  %s3 = inlined_call_operand.vmem [shape: bf16[16,32], index: 3, kind: output, shape index: {}]
  %s4 = sld [smem:[#allocation0]]
  $region22: #{forward.10} parent=0
    _
  %s6 = ssub.s32 1, %s4
  %s7 = scalar_select 0, %s6, %s4
  // Predicated region
  $region2: #{forward.10} parent=0 // pred_check
    _
  $region3: #{forward.10} parent=0 // pred_check_branch
    %9 = sbr.rel (0) target = $region5
  $region4: #{forward.10} parent=0 // pred_region
    _
  $region5: #{forward.10} parent=0 // pred_fallthru
    _
  // Predicated region
  $region6: #{forward.10} parent=0 // pred_check
    _
  $region7: #{forward.10} parent=0 // pred_check_branch
    %11 = sbr.rel (0) target = $region9
  $region8: #{forward.10} parent=0 // pred_region
    _
  $region9: #{forward.10} parent=0 // pred_fallthru
    _
  // Predicated region
  $region10: #{forward.10} parent=0 // pred_check
    _
  $region11: #{forward.10} parent=0 // pred_check_branch
    %13 = sbr.rel (0) target = $region13
  $region12: #{forward.10} parent=0 // pred_region
    _
  $region13: #{forward.10} parent=0 // pred_fallthru
    _
  %v15 = vld [vmem:[%s0] sm:$0xff]
  %v16 = vld [vmem:[%s0 + $0x8] sm:$0xff]
  %v17 = vld [vmem:[%s0 + $0x10] sm:$0xff]
  %v18 = vld [vmem:[%s0 + $0x18] sm:$0xf]
  %v19 = vld [vmem:[%s0 + $0x1c] sm:$0xff]
  %v20 = vld [vmem:[%s0 + $0x24] sm:$0xff]
  %v21 = vld [vmem:[%s0 + $0x2c] sm:$0xff]
  %v22 = vld [vmem:[%s0 + $0x34] sm:$0xf]
  %v23 = vld [vmem:[%s1] sm:$0xf]
  %v24 = vld [vmem:[%s1 + $0x4] sm:$0xf]
  %v25 = vld [vmem:[%s1 + $0x8] sm:$0xf]
  %v26 = vld [vmem:[%s1 + $0xc] sm:$0xf]
  %v27 = vld [vmem:[%s1 + $0x10] sm:$0xf]
  %v28 = vld [vmem:[%s1 + $0x14] sm:$0xf]
  %v29 = vld [vmem:[%s1 + $0x18] sm:$0xf]
  %v30 = vld [vmem:[%s1 + $0x1c] sm:$0xf]
  %v31 = vld [vmem:[%s1 + $0x20] sm:$0xf]
  %v32 = vld [vmem:[%s1 + $0x24] sm:$0xf]
  %v33 = vld [vmem:[%s1 + $0x28] sm:$0xf]
  %v34 = vld [vmem:[%s1 + $0x2c] sm:$0xf]
  %v35 = vld [vmem:[%s1 + $0x30] sm:$0xf]
  %v36 = vld [vmem:[%s1 + $0x34] sm:$0xf]
  %v37 = vld [vmem:[%s1 + $0x38] sm:$0xf]
  %v38 = vld [vmem:[%s1 + $0x3c] sm:$0xf]
  %v39 = vld [vmem:[%s1 + $0x40] sm:$0xf]
  %v40 = vld [vmem:[%s1 + $0x44] sm:$0xf]
  %v41 = vld [vmem:[%s1 + $0x48] sm:$0xf]
  %v42 = vld [vmem:[%s1 + $0x4c] sm:$0xf]
  %v43 = vld [vmem:[%s1 + $0x50] sm:$0xf]
  %v44 = vld [vmem:[%s1 + $0x54] sm:$0xf]
  %v45 = vld [vmem:[%s1 + $0x58] sm:$0xf]
  %v46 = vld [vmem:[%s1 + $0x5c] sm:$0xf]
  %v47 = vld [vmem:[%s1 + $0x60] sm:$0xf]
  %v48 = vld [vmem:[%s1 + $0x64] sm:$0xf]
  %v49 = vld [vmem:[%s1 + $0x68] sm:$0xf]
  %v50 = vld [vmem:[%s1 + $0x6c] sm:$0xf]
  %v51 = vld [vmem:[%s1 + $0x70] sm:$0xf]
  %v52 = vld [vmem:[%s1 + $0x74] sm:$0xf]
  %v53 = vld [vmem:[%s1 + $0x78] sm:$0xf]
  %v54 = vld [vmem:[%s1 + $0x7c] sm:$0xf]
  %v55 = vld [vmem:[%s1 + $0x80] sm:$0xf]
  %v56 = vld [vmem:[%s1 + $0x84] sm:$0xf]
  %v57 = vld [vmem:[%s1 + $0x88] sm:$0xf]
  %v58 = vld [vmem:[%s1 + $0x8c] sm:$0xf]
  %v59 = vld [vmem:[%s1 + $0x90] sm:$0xf]
  %v60 = vld [vmem:[%s1 + $0x94] sm:$0xf]
  %v61 = vld [vmem:[%s1 + $0x98] sm:$0xf]
  %v62 = vld [vmem:[%s1 + $0x9c] sm:$0xf]
  %v63 = vld [vmem:[%s1 + $0xa0] sm:$0xf]
  %v64 = vld [vmem:[%s1 + $0xa4] sm:$0xf]
  %v65 = vld [vmem:[%s1 + $0xa8] sm:$0xf]
  %v66 = vld [vmem:[%s1 + $0xac] sm:$0xf]
  %v67 = vld [vmem:[%s1 + $0xb0] sm:$0xf]
  %v68 = vld [vmem:[%s1 + $0xb4] sm:$0xf]
  %v69 = vld [vmem:[%s1 + $0xb8] sm:$0xf]
  %v70 = vld [vmem:[%s1 + $0xbc] sm:$0xf]
  %v71 = vld [vmem:[%s1 + $0xc0] sm:$0xf]
  %v72 = vld [vmem:[%s1 + $0xc4] sm:$0xf]
  %v73 = vld [vmem:[%s1 + $0xc8] sm:$0xf]
  %v74 = vld [vmem:[%s1 + $0xcc] sm:$0xf]
  %v75 = vld [vmem:[%s1 + $0xd0] sm:$0xf]
  %v76 = vld [vmem:[%s1 + $0xd4] sm:$0xf]
  %v77 = vld [vmem:[%s1 + $0xd8] sm:$0xf]
  %v78 = vld [vmem:[%s1 + $0xdc] sm:$0xf]
  %v79 = vld [vmem:[%s1 + $0xe0] sm:$0xf]
  %v80 = vld [vmem:[%s1 + $0xe4] sm:$0xf]
  %v81 = vld [vmem:[%s1 + $0xe8] sm:$0xf]
  %v82 = vld [vmem:[%s1 + $0xec] sm:$0xf]
  %v83 = vld [vmem:[%s1 + $0xf0] sm:$0xf]
  %v84 = vld [vmem:[%s1 + $0xf4] sm:$0xf]
  %v85 = vld [vmem:[%s1 + $0xf8] sm:$0xf]
  %v86 = vld [vmem:[%s1 + $0xfc] sm:$0xf]
  %v87 = vld [vmem:[%s1 + $0x100] sm:$0xf]
  %v88 = vld [vmem:[%s1 + $0x104] sm:$0xf]
  %v89 = vld [vmem:[%s1 + $0x108] sm:$0xf]
  %v90 = vld [vmem:[%s1 + $0x10c] sm:$0xf]
  %v91 = vld [vmem:[%s1 + $0x110] sm:$0xf]
  %v92 = vld [vmem:[%s1 + $0x114] sm:$0xf]
  %v93 = vld [vmem:[%s1 + $0x118] sm:$0xf]
  %v94 = vld [vmem:[%s1 + $0x11c] sm:$0xf]
  %v95 = vld [vmem:[%s1 + $0x120] sm:$0xf]
  %v96 = vld [vmem:[%s1 + $0x124] sm:$0xf]
  %v97 = vld [vmem:[%s1 + $0x128] sm:$0xf]
  %v98 = vld [vmem:[%s1 + $0x12c] sm:$0xf]
  %v99 = vld [vmem:[%s1 + $0x130] sm:$0xf]
  %v100 = vld [vmem:[%s1 + $0x134] sm:$0xf]
  %v101 = vld [vmem:[%s1 + $0x138] sm:$0xf]
  %v102 = vld [vmem:[%s1 + $0x13c] sm:$0xf]
  %v103 = vld [vmem:[%s1 + $0x140] sm:$0xf]
  %v104 = vld [vmem:[%s1 + $0x144] sm:$0xf]
  %v105 = vld [vmem:[%s1 + $0x148] sm:$0xf]
  %v106 = vld [vmem:[%s1 + $0x14c] sm:$0xf]
  %v107 = vld [vmem:[%s1 + $0x150] sm:$0xf]
  %v108 = vld [vmem:[%s1 + $0x154] sm:$0xf]
  %v109 = vld [vmem:[%s1 + $0x158] sm:$0xf]
  %v110 = vld [vmem:[%s1 + $0x15c] sm:$0xf]
  %v111 = vld [vmem:[%s1 + $0x160] sm:$0xf]
  %v112 = vld [vmem:[%s1 + $0x164] sm:$0xf]
  %v113 = vld [vmem:[%s1 + $0x168] sm:$0xf]
  %v114 = vld [vmem:[%s1 + $0x16c] sm:$0xf]
  %v115 = vld [vmem:[%s1 + $0x170] sm:$0xf]
  %v116 = vld [vmem:[%s1 + $0x174] sm:$0xf]
  %v117 = vld [vmem:[%s1 + $0x178] sm:$0xf]
  %v118 = vld [vmem:[%s1 + $0x17c] sm:$0xf]
  %v119 = vld [vmem:[%s1 + $0x180] sm:$0xf]
  %v120 = vld [vmem:[%s1 + $0x184] sm:$0xf]
  %v121 = vld [vmem:[%s1 + $0x188] sm:$0xf]
  %v122 = vld [vmem:[%s1 + $0x18c] sm:$0xf]
  %v123 = vld [vmem:[%s1 + $0x190] sm:$0xf]
  %v124 = vld [vmem:[%s1 + $0x194] sm:$0xf]
  %v125 = vld [vmem:[%s1 + $0x198] sm:$0xf]
  %v126 = vld [vmem:[%s1 + $0x19c] sm:$0xf]
  %v127 = vld [vmem:[%s1 + $0x1a0] sm:$0xf]
  %v128 = vld [vmem:[%s1 + $0x1a4] sm:$0xf]
  %v129 = vld [vmem:[%s1 + $0x1a8] sm:$0xf]
  %v130 = vld [vmem:[%s1 + $0x1ac] sm:$0xf]
  %v131 = vld [vmem:[%s2] sm:$0x1]
  %v133 = vlaneseq
  %v134 = vshrl.u32 %v133, 7
  %v135 = vsub.s32 0, %v134
  %v136 = vrot.slane %v131, %v135
  %v146 = vunpack.c.l.b16 %v15
  %v147 = vunpack.c.h.b16 %v15
  %v148 = vunpack.c.l.b16 %v16
  %v149 = vunpack.c.h.b16 %v16
  %v150 = vunpack.c.l.b16 %v17
  %v151 = vunpack.c.h.b16 %v17
  %v152 = vunpack.c.l.b16 %v18
  %v153 = vunpack.c.l.b16 %v19
  %v154 = vunpack.c.h.b16 %v19
  %v155 = vunpack.c.l.b16 %v20
  %v156 = vunpack.c.h.b16 %v20
  %v157 = vunpack.c.l.b16 %v21
  %v158 = vunpack.c.h.b16 %v21
  %v159 = vunpack.c.l.b16 %v22
  %v160 = vpack.c.b16 %v153, %v146
  %v161 = vpack.c.b16 %v154, %v147
  %v162 = vpack.c.b16 %v155, %v148
  %v163 = vpack.c.b16 %v156, %v149
  %v164 = vpack.c.b16 %v157, %v150
  %v165 = vpack.c.b16 %v158, %v151
  %v166 = vpack.c.b16 %v159, %v152
  %v281 = vunpack.c.l.b16 %v23
  %v282 = vunpack.c.l.b16 %v24
  %v283 = vunpack.c.l.b16 %v25
  %v284 = vunpack.c.l.b16 %v26
  %v285 = vunpack.c.l.b16 %v27
  %v286 = vunpack.c.l.b16 %v28
  %v287 = vunpack.c.l.b16 %v29
  %v288 = vunpack.c.l.b16 %v30
  %v289 = vunpack.c.l.b16 %v31
  %v290 = vunpack.c.l.b16 %v32
  %v291 = vunpack.c.l.b16 %v33
  %v292 = vunpack.c.l.b16 %v34
  %v293 = vunpack.c.l.b16 %v35
  %v294 = vunpack.c.l.b16 %v36
  %v295 = vunpack.c.l.b16 %v37
  %v296 = vunpack.c.l.b16 %v38
  %v297 = vunpack.c.l.b16 %v39
  %v298 = vunpack.c.l.b16 %v40
  %v299 = vunpack.c.l.b16 %v41
  %v300 = vunpack.c.l.b16 %v42
  %v301 = vunpack.c.l.b16 %v43
  %v302 = vunpack.c.l.b16 %v44
  %v303 = vunpack.c.l.b16 %v45
  %v304 = vunpack.c.l.b16 %v46
  %v305 = vunpack.c.l.b16 %v47
  %v306 = vunpack.c.l.b16 %v48
  %v307 = vunpack.c.l.b16 %v49
  %v308 = vunpack.c.l.b16 %v50
  %v309 = vunpack.c.l.b16 %v51
  %v310 = vunpack.c.l.b16 %v52
  %v311 = vunpack.c.l.b16 %v53
  %v312 = vunpack.c.l.b16 %v54
  %v313 = vunpack.c.l.b16 %v55
  %v314 = vunpack.c.l.b16 %v56
  %v315 = vunpack.c.l.b16 %v57
  %v316 = vunpack.c.l.b16 %v58
  %v317 = vunpack.c.l.b16 %v59
  %v318 = vunpack.c.l.b16 %v60
  %v319 = vunpack.c.l.b16 %v61
  %v320 = vunpack.c.l.b16 %v62
  %v321 = vunpack.c.l.b16 %v63
  %v322 = vunpack.c.l.b16 %v64
  %v323 = vunpack.c.l.b16 %v65
  %v324 = vunpack.c.l.b16 %v66
  %v325 = vunpack.c.l.b16 %v67
  %v326 = vunpack.c.l.b16 %v68
  %v327 = vunpack.c.l.b16 %v69
  %v328 = vunpack.c.l.b16 %v70
  %v329 = vunpack.c.l.b16 %v71
  %v330 = vunpack.c.l.b16 %v72
  %v331 = vunpack.c.l.b16 %v73
  %v332 = vunpack.c.l.b16 %v74
  %v333 = vunpack.c.l.b16 %v75
  %v334 = vunpack.c.l.b16 %v76
  %v335 = vunpack.c.l.b16 %v77
  %v336 = vunpack.c.l.b16 %v78
  %v337 = vunpack.c.l.b16 %v79
  %v338 = vunpack.c.l.b16 %v80
  %v339 = vunpack.c.l.b16 %v81
  %v340 = vunpack.c.l.b16 %v82
  %v341 = vunpack.c.l.b16 %v83
  %v342 = vunpack.c.l.b16 %v84
  %v343 = vunpack.c.l.b16 %v85
  %v344 = vunpack.c.l.b16 %v86
  %v345 = vunpack.c.l.b16 %v87
  %v346 = vunpack.c.l.b16 %v88
  %v347 = vunpack.c.l.b16 %v89
  %v348 = vunpack.c.l.b16 %v90
  %v349 = vunpack.c.l.b16 %v91
  %v350 = vunpack.c.l.b16 %v92
  %v351 = vunpack.c.l.b16 %v93
  %v352 = vunpack.c.l.b16 %v94
  %v353 = vunpack.c.l.b16 %v95
  %v354 = vunpack.c.l.b16 %v96
  %v355 = vunpack.c.l.b16 %v97
  %v356 = vunpack.c.l.b16 %v98
  %v357 = vunpack.c.l.b16 %v99
  %v358 = vunpack.c.l.b16 %v100
  %v359 = vunpack.c.l.b16 %v101
  %v360 = vunpack.c.l.b16 %v102
  %v361 = vunpack.c.l.b16 %v103
  %v362 = vunpack.c.l.b16 %v104
  %v363 = vunpack.c.l.b16 %v105
  %v364 = vunpack.c.l.b16 %v106
  %v365 = vunpack.c.l.b16 %v107
  %v366 = vunpack.c.l.b16 %v108
  %v367 = vunpack.c.l.b16 %v109
  %v368 = vunpack.c.l.b16 %v110
  %v369 = vunpack.c.l.b16 %v111
  %v370 = vunpack.c.l.b16 %v112
  %v371 = vunpack.c.l.b16 %v113
  %v372 = vunpack.c.l.b16 %v114
  %v373 = vunpack.c.l.b16 %v115
  %v374 = vunpack.c.l.b16 %v116
  %v375 = vunpack.c.l.b16 %v117
  %v376 = vunpack.c.l.b16 %v118
  %v377 = vunpack.c.l.b16 %v119
  %v378 = vunpack.c.l.b16 %v120
  %v379 = vunpack.c.l.b16 %v121
  %v380 = vunpack.c.l.b16 %v122
  %v381 = vunpack.c.l.b16 %v123
  %v382 = vunpack.c.l.b16 %v124
  %v383 = vunpack.c.l.b16 %v125
  %v384 = vunpack.c.l.b16 %v126
  %v385 = vunpack.c.l.b16 %v127
  %v386 = vunpack.c.l.b16 %v128
  %v387 = vunpack.c.l.b16 %v129
  %v388 = vunpack.c.l.b16 %v130
  %v389 = vpack.c.b16 %v282, %v281
  %v390 = vpack.c.b16 %v284, %v283
  %v391 = vpack.c.b16 %v286, %v285
  %v392 = vpack.c.b16 %v288, %v287
  %v393 = vpack.c.b16 %v290, %v289
  %v394 = vpack.c.b16 %v292, %v291
  %v395 = vpack.c.b16 %v294, %v293
  %v396 = vpack.c.b16 %v296, %v295
  %v397 = vpack.c.b16 %v298, %v297
  %v398 = vpack.c.b16 %v300, %v299
  %v399 = vpack.c.b16 %v302, %v301
  %v400 = vpack.c.b16 %v304, %v303
  %v401 = vpack.c.b16 %v306, %v305
  %v402 = vpack.c.b16 %v308, %v307
  %v403 = vpack.c.b16 %v310, %v309
  %v404 = vpack.c.b16 %v312, %v311
  %v405 = vpack.c.b16 %v314, %v313
  %v406 = vpack.c.b16 %v316, %v315
  %v407 = vpack.c.b16 %v318, %v317
  %v408 = vpack.c.b16 %v320, %v319
  %v409 = vpack.c.b16 %v322, %v321
  %v410 = vpack.c.b16 %v324, %v323
  %v411 = vpack.c.b16 %v326, %v325
  %v412 = vpack.c.b16 %v328, %v327
  %v413 = vpack.c.b16 %v330, %v329
  %v414 = vpack.c.b16 %v332, %v331
  %v415 = vpack.c.b16 %v334, %v333
  %v416 = vpack.c.b16 %v336, %v335
  %v417 = vpack.c.b16 %v338, %v337
  %v418 = vpack.c.b16 %v340, %v339
  %v419 = vpack.c.b16 %v342, %v341
  %v420 = vpack.c.b16 %v344, %v343
  %v421 = vpack.c.b16 %v346, %v345
  %v422 = vpack.c.b16 %v348, %v347
  %v423 = vpack.c.b16 %v350, %v349
  %v424 = vpack.c.b16 %v352, %v351
  %v425 = vpack.c.b16 %v354, %v353
  %v426 = vpack.c.b16 %v356, %v355
  %v427 = vpack.c.b16 %v358, %v357
  %v428 = vpack.c.b16 %v360, %v359
  %v429 = vpack.c.b16 %v362, %v361
  %v430 = vpack.c.b16 %v364, %v363
  %v431 = vpack.c.b16 %v366, %v365
  %v432 = vpack.c.b16 %v368, %v367
  %v433 = vpack.c.b16 %v370, %v369
  %v434 = vpack.c.b16 %v372, %v371
  %v435 = vpack.c.b16 %v374, %v373
  %v436 = vpack.c.b16 %v376, %v375
  %v437 = vpack.c.b16 %v378, %v377
  %v438 = vpack.c.b16 %v380, %v379
  %v439 = vpack.c.b16 %v382, %v381
  %v440 = vpack.c.b16 %v384, %v383
  %v441 = vpack.c.b16 %v386, %v385
  %v442 = vpack.c.b16 %v388, %v387
  %vm497 = vcmask 785408
  %v499 = vsel %vm497, %v166, 0
  %501 = vmatprep.subr.bf16.mxu0 0
  %502 = vmatpush1.bf16.msra.mxu0 %v389
  %503 = vmatprep.subr.bf16.mxu0 0
  %504 = vmatpush1.bf16.msra.mxu0 %v390
  %505 = vmatprep.subr.bf16.mxu0 0
  %506 = vmatpush1.bf16.msra.mxu0 %v391
  %507 = vmatprep.subr.bf16.mxu0 0
  %508 = vmatpush1.bf16.msra.mxu0 %v392
  %509 = vmatprep.subr.bf16.mxu0 0
  %510 = vmatpush1.bf16.msra.mxu0 %v393
  %511 = vmatprep.subr.bf16.mxu0 0
  %512 = vmatpush1.bf16.msra.mxu0 %v394
  %513 = vmatprep.subr.bf16.mxu0 0
  %514 = vmatpush1.bf16.msra.mxu0 %v395
  %515 = vmatprep.subr.bf16.mxu0 0
  %516 = vmatpush1.bf16.msra.mxu0 %v396
  %517 = vmatprep.subr.bf16.mxu0 0
  %518 = vmatpush1.bf16.msra.mxu0 %v397
  %519 = vmatprep.subr.bf16.mxu0 0
  %520 = vmatpush1.bf16.msra.mxu0 %v398
  %521 = vmatprep.subr.bf16.mxu0 0
  %522 = vmatpush1.bf16.msra.mxu0 %v399
  %523 = vmatprep.subr.bf16.mxu0 0
  %524 = vmatpush1.bf16.msra.mxu0 %v400
  %525 = vmatprep.subr.bf16.mxu0 0
  %526 = vmatpush1.bf16.msra.mxu0 %v401
  %527 = vmatprep.subr.bf16.mxu0 0
  %528 = vmatpush1.bf16.msra.mxu0 %v402
  %529 = vmatprep.subr.bf16.mxu0 0
  %530 = vmatpush1.bf16.msra.mxu0 %v403
  %531 = vmatprep.subr.bf16.mxu0 0
  %532 = vmatpush1.bf16.msra.mxu0 %v404
  %533 = vmatprep.mubr.bf16.mxu0 %v161
  %534 = vmatmul.mubr.bf16.gmra.mrb[0].mxu0 %v160
  %v535 = vpop.f32.mrb[0].mxu0
  %v536 = vadd.f32 %v136, %v535
  %v537 = vpop.f32.mrb[0].mxu0
  %v538 = vpop.f32.mrb[0].mxu0
  %v539 = vadd.f32 %v136, %v538
  %v540 = vpop.f32.mrb[0].mxu0
  %541 = vdwg.mxu0
  %542 = vmatprep.subr.bf16.mxu0 0
  %543 = vmatpush1.bf16.msra.mxu0 %v405
  %544 = vmatprep.subr.bf16.mxu0 0
  %545 = vmatpush1.bf16.msra.mxu0 %v406
  %546 = vmatprep.subr.bf16.mxu0 0
  %547 = vmatpush1.bf16.msra.mxu0 %v407
  %548 = vmatprep.subr.bf16.mxu0 0
  %549 = vmatpush1.bf16.msra.mxu0 %v408
  %550 = vmatprep.subr.bf16.mxu0 0
  %551 = vmatpush1.bf16.msra.mxu0 %v409
  %552 = vmatprep.subr.bf16.mxu0 0
  %553 = vmatpush1.bf16.msra.mxu0 %v410
  %554 = vmatprep.subr.bf16.mxu0 0
  %555 = vmatpush1.bf16.msra.mxu0 %v411
  %556 = vmatprep.subr.bf16.mxu0 0
  %557 = vmatpush1.bf16.msra.mxu0 %v412
  %558 = vmatprep.subr.bf16.mxu0 0
  %559 = vmatpush1.bf16.msra.mxu0 %v413
  %560 = vmatprep.subr.bf16.mxu0 0
  %561 = vmatpush1.bf16.msra.mxu0 %v414
  %562 = vmatprep.subr.bf16.mxu0 0
  %563 = vmatpush1.bf16.msra.mxu0 %v415
  %564 = vmatprep.subr.bf16.mxu0 0
  %565 = vmatpush1.bf16.msra.mxu0 %v416
  %566 = vmatprep.subr.bf16.mxu0 0
  %567 = vmatpush1.bf16.msra.mxu0 %v417
  %568 = vmatprep.subr.bf16.mxu0 0
  %569 = vmatpush1.bf16.msra.mxu0 %v418
  %570 = vmatprep.subr.bf16.mxu0 0
  %571 = vmatpush1.bf16.msra.mxu0 %v419
  %572 = vmatprep.subr.bf16.mxu0 0
  %573 = vmatpush1.bf16.msra.mxu0 %v420
  %574 = vmatprep.mubr.bf16.mxu0 %v163
  %575 = vmatmul.mubr.bf16.gmra.mrb[0].mxu0 %v162
  %v576 = vpop.f32.mrb[0].mxu0
  %v577 = vadd.f32 %v536, %v576
  %v578 = vpop.f32.mrb[0].mxu0
  %v579 = vpop.f32.mrb[0].mxu0
  %v580 = vadd.f32 %v539, %v579
  %v581 = vpop.f32.mrb[0].mxu0
  %582 = vdwg.mxu0
  %583 = vmatprep.subr.bf16.mxu0 0
  %584 = vmatpush1.bf16.msra.mxu0 %v421
  %585 = vmatprep.subr.bf16.mxu0 0
  %586 = vmatpush1.bf16.msra.mxu0 %v422
  %587 = vmatprep.subr.bf16.mxu0 0
  %588 = vmatpush1.bf16.msra.mxu0 %v423
  %589 = vmatprep.subr.bf16.mxu0 0
  %590 = vmatpush1.bf16.msra.mxu0 %v424
  %591 = vmatprep.subr.bf16.mxu0 0
  %592 = vmatpush1.bf16.msra.mxu0 %v425
  %593 = vmatprep.subr.bf16.mxu0 0
  %594 = vmatpush1.bf16.msra.mxu0 %v426
  %595 = vmatprep.subr.bf16.mxu0 0
  %596 = vmatpush1.bf16.msra.mxu0 %v427
  %597 = vmatprep.subr.bf16.mxu0 0
  %598 = vmatpush1.bf16.msra.mxu0 %v428
  %599 = vmatprep.subr.bf16.mxu0 0
  %600 = vmatpush1.bf16.msra.mxu0 %v429
  %601 = vmatprep.subr.bf16.mxu0 0
  %602 = vmatpush1.bf16.msra.mxu0 %v430
  %603 = vmatprep.subr.bf16.mxu0 0
  %604 = vmatpush1.bf16.msra.mxu0 %v431
  %605 = vmatprep.subr.bf16.mxu0 0
  %606 = vmatpush1.bf16.msra.mxu0 %v432
  %607 = vmatprep.subr.bf16.mxu0 0
  %608 = vmatpush1.bf16.msra.mxu0 %v433
  %609 = vmatprep.subr.bf16.mxu0 0
  %610 = vmatpush1.bf16.msra.mxu0 %v434
  %611 = vmatprep.subr.bf16.mxu0 0
  %612 = vmatpush1.bf16.msra.mxu0 %v435
  %613 = vmatprep.subr.bf16.mxu0 0
  %614 = vmatpush1.bf16.msra.mxu0 %v436
  %615 = vmatprep.mubr.bf16.mxu0 %v165
  %616 = vmatmul.mubr.bf16.gmra.mrb[0].mxu0 %v164
  %v617 = vpop.f32.mrb[0].mxu0
  %v618 = vadd.f32 %v577, %v617
  %v619 = vpop.f32.mrb[0].mxu0
  %v620 = vpop.f32.mrb[0].mxu0
  %v621 = vadd.f32 %v580, %v620
  %v622 = vpop.f32.mrb[0].mxu0
  %623 = vdwg.mxu0
  %624 = vmatprep.subr.bf16.mxu0 0
  %625 = vmatpush1.bf16.msra.mxu0 %v437
  %626 = vmatprep.subr.bf16.mxu0 0
  %627 = vmatpush1.bf16.msra.mxu0 %v438
  %628 = vmatprep.subr.bf16.mxu0 0
  %629 = vmatpush1.bf16.msra.mxu0 %v439
  %630 = vmatprep.subr.bf16.mxu0 0
  %631 = vmatpush1.bf16.msra.mxu0 %v440
  %632 = vmatprep.subr.bf16.mxu0 0
  %633 = vmatpush1.bf16.msra.mxu0 %v441
  %634 = vmatprep.subr.bf16.mxu0 0
  %635 = vmatpush1.bf16.msra.mxu0 %v442
  %636 = vmatprep.subr.bf16.mxu0 0
  %637 = vmatpush1.bf16.msra.mxu0 0
  %638 = vmatprep.subr.bf16.mxu0 0
  %639 = vmatpush1.bf16.msra.mxu0 0
  %640 = vmatprep.subr.bf16.mxu0 0
  %641 = vmatpush1.bf16.msra.mxu0 0
  %642 = vmatprep.subr.bf16.mxu0 0
  %643 = vmatpush1.bf16.msra.mxu0 0
  %644 = vmatprep.subr.bf16.mxu0 0
  %645 = vmatpush1.bf16.msra.mxu0 0
  %646 = vmatprep.subr.bf16.mxu0 0
  %647 = vmatpush1.bf16.msra.mxu0 0
  %648 = vmatprep.subr.bf16.mxu0 0
  %649 = vmatpush1.bf16.msra.mxu0 0
  %650 = vmatprep.subr.bf16.mxu0 0
  %651 = vmatpush1.bf16.msra.mxu0 0
  %652 = vmatprep.subr.bf16.mxu0 0
  %653 = vmatpush1.bf16.msra.mxu0 0
  %654 = vmatprep.subr.bf16.mxu0 0
  %655 = vmatpush1.bf16.msra.mxu0 0
  %656 = vmatprep.mubr.bf16.mxu0 0
  %657 = vmatmul.mubr.bf16.gmra.mrb[0].mxu0 %v499
  %v658 = vpop.f32.mrb[0].mxu0
  %v659 = vadd.f32 %v618, %v658
  %v660 = vpop.f32.mrb[0].mxu0
  %v661 = vpop.f32.mrb[0].mxu0
  %v662 = vadd.f32 %v621, %v661
  %v663 = vpop.f32.mrb[0].mxu0
  %664 = vdwg.mxu0
  %vm665 = vcmp.ge.f32.partialorder %v659, 0.0
  %vm666 = vcmp.ge.f32.partialorder %v662, 0.0
  %v667 = vmul.f32 %v659, 0.2
  %v668 = vmul.f32 %v662, 0.2
  %v669 = vsel %vm665, %v659, %v667
  %v670 = vsel %vm666, %v662, %v668
  %v671 = vpack.c.bf16 %v670, %v669
  %v673 = vunpack.c.l.b16 %v671
  %v674 = vunpack.c.h.b16 %v671
  %v675 = vpack.c.b16 %v673, %v673
  %v676 = vpack.c.b16 %v674, %v674
  %vm679 = vcmask 257024
  %680 = vst.msk [vmem:[%s3] sm:$0xf] %vm679, %v675
  %681 = vst.msk [vmem:[%s3 + $0x4] sm:$0xf] %vm679, %v676
  // Predicated region
  $region14: #{forward.10} parent=0 // pred_check
    _
  $region15: #{forward.10} parent=0 // pred_check_branch
    %683 = sbr.rel (0) target = $region17
  $region16: #{forward.10} parent=0 // pred_region
    _
  $region17: #{forward.10} parent=0 // pred_fallthru
    _
  // Predicated region
  $region18: #{forward.10} parent=0 // pred_check
    _
  $region19: #{forward.10} parent=0 // pred_check_branch
    %685 = sbr.rel (0) target = $region21
  $region20: #{forward.10} parent=0 // pred_region
    _
  $region21: #{forward.10} parent=0 // pred_fallthru
    _

// kernel: forward.11
$region0: #{forward.11}
  #allocation0 [shape = 'u32[]', space=smem, size = 0x4, offset = 0x4, fixed_abs, tag = 'smem constant byte address 0x4 - core index']
  #allocation1 [shape = 'u32[144,128]{1,0:T(1,128)}', space=vmem, size = 0x12000, scoped, tag = 'internal scratch']
  %s0 = inlined_call_operand.vmem [shape: bf16[8,864], index: 0, kind: input, shape index: {}]
  %s1 = inlined_call_operand.vmem [shape: bf16[864,32], index: 1, kind: input, shape index: {}]
  %s2 = inlined_call_operand.vmem [shape: f32[1,32], index: 2, kind: input, shape index: {}]
  %s3 = inlined_call_operand.vmem [shape: bf16[8,32], index: 3, kind: output, shape index: {}]
  %s4 = sld [smem:[#allocation0]]
  $region22: #{forward.11} parent=0
    _
  %s6 = ssub.s32 1, %s4
  %s7 = scalar_select 0, %s6, %s4
  // Predicated region
  $region2: #{forward.11} parent=0 // pred_check
    _
  $region3: #{forward.11} parent=0 // pred_check_branch
    %9 = sbr.rel (0) target = $region5
  $region4: #{forward.11} parent=0 // pred_region
    _
  $region5: #{forward.11} parent=0 // pred_fallthru
    _
  // Predicated region
  $region6: #{forward.11} parent=0 // pred_check
    _
  $region7: #{forward.11} parent=0 // pred_check_branch
    %11 = sbr.rel (0) target = $region9
  $region8: #{forward.11} parent=0 // pred_region
    _
  $region9: #{forward.11} parent=0 // pred_fallthru
    _
  // Predicated region
  $region10: #{forward.11} parent=0 // pred_check
    _
  $region11: #{forward.11} parent=0 // pred_check_branch
    %13 = sbr.rel (0) target = $region13
  $region12: #{forward.11} parent=0 // pred_region
    _
  $region13: #{forward.11} parent=0 // pred_fallthru
    _
  %v15 = vld [vmem:[%s0] sm:$0xff]
  %v16 = vld [vmem:[%s0 + $0x8] sm:$0xff]
  %v17 = vld [vmem:[%s0 + $0x10] sm:$0xff]
  %v18 = vld [vmem:[%s0 + $0x18] sm:$0xf]
  %v19 = vld [vmem:[%s1] sm:$0xf]
  %v20 = vld [vmem:[%s1 + $0x4] sm:$0xf]
  %v21 = vld [vmem:[%s1 + $0x8] sm:$0xf]
  %v22 = vld [vmem:[%s1 + $0xc] sm:$0xf]
  %v23 = vld [vmem:[%s1 + $0x10] sm:$0xf]
  %v24 = vld [vmem:[%s1 + $0x14] sm:$0xf]
  %v25 = vld [vmem:[%s1 + $0x18] sm:$0xf]
  %v26 = vld [vmem:[%s1 + $0x1c] sm:$0xf]
  %v27 = vld [vmem:[%s1 + $0x20] sm:$0xf]
  %v28 = vld [vmem:[%s1 + $0x24] sm:$0xf]
  %v29 = vld [vmem:[%s1 + $0x28] sm:$0xf]
  %v30 = vld [vmem:[%s1 + $0x2c] sm:$0xf]
  %v31 = vld [vmem:[%s1 + $0x30] sm:$0xf]
  %v32 = vld [vmem:[%s1 + $0x34] sm:$0xf]
  %v33 = vld [vmem:[%s1 + $0x38] sm:$0xf]
  %v34 = vld [vmem:[%s1 + $0x3c] sm:$0xf]
  %v35 = vld [vmem:[%s1 + $0x40] sm:$0xf]
  %v36 = vld [vmem:[%s1 + $0x44] sm:$0xf]
  %v37 = vld [vmem:[%s1 + $0x48] sm:$0xf]
  %v38 = vld [vmem:[%s1 + $0x4c] sm:$0xf]
  %v39 = vld [vmem:[%s1 + $0x50] sm:$0xf]
  %v40 = vld [vmem:[%s1 + $0x54] sm:$0xf]
  %v41 = vld [vmem:[%s1 + $0x58] sm:$0xf]
  %v42 = vld [vmem:[%s1 + $0x5c] sm:$0xf]
  %v43 = vld [vmem:[%s1 + $0x60] sm:$0xf]
  %v44 = vld [vmem:[%s1 + $0x64] sm:$0xf]
  %v45 = vld [vmem:[%s1 + $0x68] sm:$0xf]
  %v46 = vld [vmem:[%s1 + $0x6c] sm:$0xf]
  %v47 = vld [vmem:[%s1 + $0x70] sm:$0xf]
  %v48 = vld [vmem:[%s1 + $0x74] sm:$0xf]
  %v49 = vld [vmem:[%s1 + $0x78] sm:$0xf]
  %v50 = vld [vmem:[%s1 + $0x7c] sm:$0xf]
  %v51 = vld [vmem:[%s1 + $0x80] sm:$0xf]
  %v52 = vld [vmem:[%s1 + $0x84] sm:$0xf]
  %v53 = vld [vmem:[%s1 + $0x88] sm:$0xf]
  %v54 = vld [vmem:[%s1 + $0x8c] sm:$0xf]
  %v55 = vld [vmem:[%s1 + $0x90] sm:$0xf]
  %v56 = vld [vmem:[%s1 + $0x94] sm:$0xf]
  %v57 = vld [vmem:[%s1 + $0x98] sm:$0xf]
  %v58 = vld [vmem:[%s1 + $0x9c] sm:$0xf]
  %v59 = vld [vmem:[%s1 + $0xa0] sm:$0xf]
  %v60 = vld [vmem:[%s1 + $0xa4] sm:$0xf]
  %v61 = vld [vmem:[%s1 + $0xa8] sm:$0xf]
  %v62 = vld [vmem:[%s1 + $0xac] sm:$0xf]
  %v63 = vld [vmem:[%s1 + $0xb0] sm:$0xf]
  %v64 = vld [vmem:[%s1 + $0xb4] sm:$0xf]
  %v65 = vld [vmem:[%s1 + $0xb8] sm:$0xf]
  %v66 = vld [vmem:[%s1 + $0xbc] sm:$0xf]
  %v67 = vld [vmem:[%s1 + $0xc0] sm:$0xf]
  %v68 = vld [vmem:[%s1 + $0xc4] sm:$0xf]
  %v69 = vld [vmem:[%s1 + $0xc8] sm:$0xf]
  %v70 = vld [vmem:[%s1 + $0xcc] sm:$0xf]
  %v71 = vld [vmem:[%s1 + $0xd0] sm:$0xf]
  %v72 = vld [vmem:[%s1 + $0xd4] sm:$0xf]
  %v73 = vld [vmem:[%s1 + $0xd8] sm:$0xf]
  %v74 = vld [vmem:[%s1 + $0xdc] sm:$0xf]
  %v75 = vld [vmem:[%s1 + $0xe0] sm:$0xf]
  %v76 = vld [vmem:[%s1 + $0xe4] sm:$0xf]
  %v77 = vld [vmem:[%s1 + $0xe8] sm:$0xf]
  %v78 = vld [vmem:[%s1 + $0xec] sm:$0xf]
  %v79 = vld [vmem:[%s1 + $0xf0] sm:$0xf]
  %v80 = vld [vmem:[%s1 + $0xf4] sm:$0xf]
  %v81 = vld [vmem:[%s1 + $0xf8] sm:$0xf]
  %v82 = vld [vmem:[%s1 + $0xfc] sm:$0xf]
  %v83 = vld [vmem:[%s1 + $0x100] sm:$0xf]
  %v84 = vld [vmem:[%s1 + $0x104] sm:$0xf]
  %v85 = vld [vmem:[%s1 + $0x108] sm:$0xf]
  %v86 = vld [vmem:[%s1 + $0x10c] sm:$0xf]
  %v87 = vld [vmem:[%s1 + $0x110] sm:$0xf]
  %v88 = vld [vmem:[%s1 + $0x114] sm:$0xf]
  %v89 = vld [vmem:[%s1 + $0x118] sm:$0xf]
  %v90 = vld [vmem:[%s1 + $0x11c] sm:$0xf]
  %v91 = vld [vmem:[%s1 + $0x120] sm:$0xf]
  %v92 = vld [vmem:[%s1 + $0x124] sm:$0xf]
  %v93 = vld [vmem:[%s1 + $0x128] sm:$0xf]
  %v94 = vld [vmem:[%s1 + $0x12c] sm:$0xf]
  %v95 = vld [vmem:[%s1 + $0x130] sm:$0xf]
  %v96 = vld [vmem:[%s1 + $0x134] sm:$0xf]
  %v97 = vld [vmem:[%s1 + $0x138] sm:$0xf]
  %v98 = vld [vmem:[%s1 + $0x13c] sm:$0xf]
  %v99 = vld [vmem:[%s1 + $0x140] sm:$0xf]
  %v100 = vld [vmem:[%s1 + $0x144] sm:$0xf]
  %v101 = vld [vmem:[%s1 + $0x148] sm:$0xf]
  %v102 = vld [vmem:[%s1 + $0x14c] sm:$0xf]
  %v103 = vld [vmem:[%s1 + $0x150] sm:$0xf]
  %v104 = vld [vmem:[%s1 + $0x154] sm:$0xf]
  %v105 = vld [vmem:[%s1 + $0x158] sm:$0xf]
  %v106 = vld [vmem:[%s1 + $0x15c] sm:$0xf]
  %v107 = vld [vmem:[%s1 + $0x160] sm:$0xf]
  %v108 = vld [vmem:[%s1 + $0x164] sm:$0xf]
  %v109 = vld [vmem:[%s1 + $0x168] sm:$0xf]
  %v110 = vld [vmem:[%s1 + $0x16c] sm:$0xf]
  %v111 = vld [vmem:[%s1 + $0x170] sm:$0xf]
  %v112 = vld [vmem:[%s1 + $0x174] sm:$0xf]
  %v113 = vld [vmem:[%s1 + $0x178] sm:$0xf]
  %v114 = vld [vmem:[%s1 + $0x17c] sm:$0xf]
  %v115 = vld [vmem:[%s1 + $0x180] sm:$0xf]
  %v116 = vld [vmem:[%s1 + $0x184] sm:$0xf]
  %v117 = vld [vmem:[%s1 + $0x188] sm:$0xf]
  %v118 = vld [vmem:[%s1 + $0x18c] sm:$0xf]
  %v119 = vld [vmem:[%s1 + $0x190] sm:$0xf]
  %v120 = vld [vmem:[%s1 + $0x194] sm:$0xf]
  %v121 = vld [vmem:[%s1 + $0x198] sm:$0xf]
  %v122 = vld [vmem:[%s1 + $0x19c] sm:$0xf]
  %v123 = vld [vmem:[%s1 + $0x1a0] sm:$0xf]
  %v124 = vld [vmem:[%s1 + $0x1a4] sm:$0xf]
  %v125 = vld [vmem:[%s1 + $0x1a8] sm:$0xf]
  %v126 = vld [vmem:[%s1 + $0x1ac] sm:$0xf]
  %v127 = vld [vmem:[%s2] sm:$0x1]
  %v129 = vlaneseq
  %v130 = vshrl.u32 %v129, 7
  %v131 = vsub.s32 0, %v130
  %v132 = vrot.slane %v127, %v131
  %v138 = vunpack.c.l.b16 %v15
  %v139 = vunpack.c.h.b16 %v15
  %v140 = vunpack.c.l.b16 %v16
  %v141 = vunpack.c.h.b16 %v16
  %v142 = vunpack.c.l.b16 %v17
  %v143 = vunpack.c.h.b16 %v17
  %v144 = vunpack.c.l.b16 %v18
  %v145 = vpack.c.b16 %v138, %v138
  %v146 = vpack.c.b16 %v139, %v139
  %v147 = vpack.c.b16 %v140, %v140
  %v148 = vpack.c.b16 %v141, %v141
  %v149 = vpack.c.b16 %v142, %v142
  %v150 = vpack.c.b16 %v143, %v143
  %v151 = vpack.c.b16 %v144, %v144
  %v266 = vunpack.c.l.b16 %v19
  %v267 = vunpack.c.l.b16 %v20
  %v268 = vunpack.c.l.b16 %v21
  %v269 = vunpack.c.l.b16 %v22
  %v270 = vunpack.c.l.b16 %v23
  %v271 = vunpack.c.l.b16 %v24
  %v272 = vunpack.c.l.b16 %v25
  %v273 = vunpack.c.l.b16 %v26
  %v274 = vunpack.c.l.b16 %v27
  %v275 = vunpack.c.l.b16 %v28
  %v276 = vunpack.c.l.b16 %v29
  %v277 = vunpack.c.l.b16 %v30
  %v278 = vunpack.c.l.b16 %v31
  %v279 = vunpack.c.l.b16 %v32
  %v280 = vunpack.c.l.b16 %v33
  %v281 = vunpack.c.l.b16 %v34
  %v282 = vunpack.c.l.b16 %v35
  %v283 = vunpack.c.l.b16 %v36
  %v284 = vunpack.c.l.b16 %v37
  %v285 = vunpack.c.l.b16 %v38
  %v286 = vunpack.c.l.b16 %v39
  %v287 = vunpack.c.l.b16 %v40
  %v288 = vunpack.c.l.b16 %v41
  %v289 = vunpack.c.l.b16 %v42
  %v290 = vunpack.c.l.b16 %v43
  %v291 = vunpack.c.l.b16 %v44
  %v292 = vunpack.c.l.b16 %v45
  %v293 = vunpack.c.l.b16 %v46
  %v294 = vunpack.c.l.b16 %v47
  %v295 = vunpack.c.l.b16 %v48
  %v296 = vunpack.c.l.b16 %v49
  %v297 = vunpack.c.l.b16 %v50
  %v298 = vunpack.c.l.b16 %v51
  %v299 = vunpack.c.l.b16 %v52
  %v300 = vunpack.c.l.b16 %v53
  %v301 = vunpack.c.l.b16 %v54
  %v302 = vunpack.c.l.b16 %v55
  %v303 = vunpack.c.l.b16 %v56
  %v304 = vunpack.c.l.b16 %v57
  %v305 = vunpack.c.l.b16 %v58
  %v306 = vunpack.c.l.b16 %v59
  %v307 = vunpack.c.l.b16 %v60
  %v308 = vunpack.c.l.b16 %v61
  %v309 = vunpack.c.l.b16 %v62
  %v310 = vunpack.c.l.b16 %v63
  %v311 = vunpack.c.l.b16 %v64
  %v312 = vunpack.c.l.b16 %v65
  %v313 = vunpack.c.l.b16 %v66
  %v314 = vunpack.c.l.b16 %v67
  %v315 = vunpack.c.l.b16 %v68
  %v316 = vunpack.c.l.b16 %v69
  %v317 = vunpack.c.l.b16 %v70
  %v318 = vunpack.c.l.b16 %v71
  %v319 = vunpack.c.l.b16 %v72
  %v320 = vunpack.c.l.b16 %v73
  %v321 = vunpack.c.l.b16 %v74
  %v322 = vunpack.c.l.b16 %v75
  %v323 = vunpack.c.l.b16 %v76
  %v324 = vunpack.c.l.b16 %v77
  %v325 = vunpack.c.l.b16 %v78
  %v326 = vunpack.c.l.b16 %v79
  %v327 = vunpack.c.l.b16 %v80
  %v328 = vunpack.c.l.b16 %v81
  %v329 = vunpack.c.l.b16 %v82
  %v330 = vunpack.c.l.b16 %v83
  %v331 = vunpack.c.l.b16 %v84
  %v332 = vunpack.c.l.b16 %v85
  %v333 = vunpack.c.l.b16 %v86
  %v334 = vunpack.c.l.b16 %v87
  %v335 = vunpack.c.l.b16 %v88
  %v336 = vunpack.c.l.b16 %v89
  %v337 = vunpack.c.l.b16 %v90
  %v338 = vunpack.c.l.b16 %v91
  %v339 = vunpack.c.l.b16 %v92
  %v340 = vunpack.c.l.b16 %v93
  %v341 = vunpack.c.l.b16 %v94
  %v342 = vunpack.c.l.b16 %v95
  %v343 = vunpack.c.l.b16 %v96
  %v344 = vunpack.c.l.b16 %v97
  %v345 = vunpack.c.l.b16 %v98
  %v346 = vunpack.c.l.b16 %v99
  %v347 = vunpack.c.l.b16 %v100
  %v348 = vunpack.c.l.b16 %v101
  %v349 = vunpack.c.l.b16 %v102
  %v350 = vunpack.c.l.b16 %v103
  %v351 = vunpack.c.l.b16 %v104
  %v352 = vunpack.c.l.b16 %v105
  %v353 = vunpack.c.l.b16 %v106
  %v354 = vunpack.c.l.b16 %v107
  %v355 = vunpack.c.l.b16 %v108
  %v356 = vunpack.c.l.b16 %v109
  %v357 = vunpack.c.l.b16 %v110
  %v358 = vunpack.c.l.b16 %v111
  %v359 = vunpack.c.l.b16 %v112
  %v360 = vunpack.c.l.b16 %v113
  %v361 = vunpack.c.l.b16 %v114
  %v362 = vunpack.c.l.b16 %v115
  %v363 = vunpack.c.l.b16 %v116
  %v364 = vunpack.c.l.b16 %v117
  %v365 = vunpack.c.l.b16 %v118
  %v366 = vunpack.c.l.b16 %v119
  %v367 = vunpack.c.l.b16 %v120
  %v368 = vunpack.c.l.b16 %v121
  %v369 = vunpack.c.l.b16 %v122
  %v370 = vunpack.c.l.b16 %v123
  %v371 = vunpack.c.l.b16 %v124
  %v372 = vunpack.c.l.b16 %v125
  %v373 = vunpack.c.l.b16 %v126
  %v374 = vpack.c.b16 %v267, %v266
  %v375 = vpack.c.b16 %v269, %v268
  %v376 = vpack.c.b16 %v271, %v270
  %v377 = vpack.c.b16 %v273, %v272
  %v378 = vpack.c.b16 %v275, %v274
  %v379 = vpack.c.b16 %v277, %v276
  %v380 = vpack.c.b16 %v279, %v278
  %v381 = vpack.c.b16 %v281, %v280
  %v382 = vpack.c.b16 %v283, %v282
  %v383 = vpack.c.b16 %v285, %v284
  %v384 = vpack.c.b16 %v287, %v286
  %v385 = vpack.c.b16 %v289, %v288
  %v386 = vpack.c.b16 %v291, %v290
  %v387 = vpack.c.b16 %v293, %v292
  %v388 = vpack.c.b16 %v295, %v294
  %v389 = vpack.c.b16 %v297, %v296
  %v390 = vpack.c.b16 %v299, %v298
  %v391 = vpack.c.b16 %v301, %v300
  %v392 = vpack.c.b16 %v303, %v302
  %v393 = vpack.c.b16 %v305, %v304
  %v394 = vpack.c.b16 %v307, %v306
  %v395 = vpack.c.b16 %v309, %v308
  %v396 = vpack.c.b16 %v311, %v310
  %v397 = vpack.c.b16 %v313, %v312
  %v398 = vpack.c.b16 %v315, %v314
  %v399 = vpack.c.b16 %v317, %v316
  %v400 = vpack.c.b16 %v319, %v318
  %v401 = vpack.c.b16 %v321, %v320
  %v402 = vpack.c.b16 %v323, %v322
  %v403 = vpack.c.b16 %v325, %v324
  %v404 = vpack.c.b16 %v327, %v326
  %v405 = vpack.c.b16 %v329, %v328
  %v406 = vpack.c.b16 %v331, %v330
  %v407 = vpack.c.b16 %v333, %v332
  %v408 = vpack.c.b16 %v335, %v334
  %v409 = vpack.c.b16 %v337, %v336
  %v410 = vpack.c.b16 %v339, %v338
  %v411 = vpack.c.b16 %v341, %v340
  %v412 = vpack.c.b16 %v343, %v342
  %v413 = vpack.c.b16 %v345, %v344
  %v414 = vpack.c.b16 %v347, %v346
  %v415 = vpack.c.b16 %v349, %v348
  %v416 = vpack.c.b16 %v351, %v350
  %v417 = vpack.c.b16 %v353, %v352
  %v418 = vpack.c.b16 %v355, %v354
  %v419 = vpack.c.b16 %v357, %v356
  %v420 = vpack.c.b16 %v359, %v358
  %v421 = vpack.c.b16 %v361, %v360
  %v422 = vpack.c.b16 %v363, %v362
  %v423 = vpack.c.b16 %v365, %v364
  %v424 = vpack.c.b16 %v367, %v366
  %v425 = vpack.c.b16 %v369, %v368
  %v426 = vpack.c.b16 %v371, %v370
  %v427 = vpack.c.b16 %v373, %v372
  %vm482 = vcmask 785408
  %v484 = vsel %vm482, %v151, 0
  %486 = vmatprep.subr.bf16.mxu0 0
  %487 = vmatpush1.bf16.msra.mxu0 %v374
  %488 = vmatprep.subr.bf16.mxu0 0
  %489 = vmatpush1.bf16.msra.mxu0 %v375
  %490 = vmatprep.subr.bf16.mxu0 0
  %491 = vmatpush1.bf16.msra.mxu0 %v376
  %492 = vmatprep.subr.bf16.mxu0 0
  %493 = vmatpush1.bf16.msra.mxu0 %v377
  %494 = vmatprep.subr.bf16.mxu0 0
  %495 = vmatpush1.bf16.msra.mxu0 %v378
  %496 = vmatprep.subr.bf16.mxu0 0
  %497 = vmatpush1.bf16.msra.mxu0 %v379
  %498 = vmatprep.subr.bf16.mxu0 0
  %499 = vmatpush1.bf16.msra.mxu0 %v380
  %500 = vmatprep.subr.bf16.mxu0 0
  %501 = vmatpush1.bf16.msra.mxu0 %v381
  %502 = vmatprep.subr.bf16.mxu0 0
  %503 = vmatpush1.bf16.msra.mxu0 %v382
  %504 = vmatprep.subr.bf16.mxu0 0
  %505 = vmatpush1.bf16.msra.mxu0 %v383
  %506 = vmatprep.subr.bf16.mxu0 0
  %507 = vmatpush1.bf16.msra.mxu0 %v384
  %508 = vmatprep.subr.bf16.mxu0 0
  %509 = vmatpush1.bf16.msra.mxu0 %v385
  %510 = vmatprep.subr.bf16.mxu0 0
  %511 = vmatpush1.bf16.msra.mxu0 %v386
  %512 = vmatprep.subr.bf16.mxu0 0
  %513 = vmatpush1.bf16.msra.mxu0 %v387
  %514 = vmatprep.subr.bf16.mxu0 0
  %515 = vmatpush1.bf16.msra.mxu0 %v388
  %516 = vmatprep.subr.bf16.mxu0 0
  %517 = vmatpush1.bf16.msra.mxu0 %v389
  %518 = vmatprep.mubr.bf16.mxu0 %v146
  %519 = vmatmul.mubr.bf16.gmra.mrb[0].mxu0 %v145
  %v520 = vpop.f32.mrb[0].mxu0
  %v521 = vadd.f32 %v132, %v520
  %v522 = vpop.f32.mrb[0].mxu0
  %v523 = vpop.f32.mrb[0].mxu0
  %v524 = vpop.f32.mrb[0].mxu0
  %525 = vdwg.mxu0
  %526 = vmatprep.subr.bf16.mxu0 0
  %527 = vmatpush1.bf16.msra.mxu0 %v390
  %528 = vmatprep.subr.bf16.mxu0 0
  %529 = vmatpush1.bf16.msra.mxu0 %v391
  %530 = vmatprep.subr.bf16.mxu0 0
  %531 = vmatpush1.bf16.msra.mxu0 %v392
  %532 = vmatprep.subr.bf16.mxu0 0
  %533 = vmatpush1.bf16.msra.mxu0 %v393
  %534 = vmatprep.subr.bf16.mxu0 0
  %535 = vmatpush1.bf16.msra.mxu0 %v394
  %536 = vmatprep.subr.bf16.mxu0 0
  %537 = vmatpush1.bf16.msra.mxu0 %v395
  %538 = vmatprep.subr.bf16.mxu0 0
  %539 = vmatpush1.bf16.msra.mxu0 %v396
  %540 = vmatprep.subr.bf16.mxu0 0
  %541 = vmatpush1.bf16.msra.mxu0 %v397
  %542 = vmatprep.subr.bf16.mxu0 0
  %543 = vmatpush1.bf16.msra.mxu0 %v398
  %544 = vmatprep.subr.bf16.mxu0 0
  %545 = vmatpush1.bf16.msra.mxu0 %v399
  %546 = vmatprep.subr.bf16.mxu0 0
  %547 = vmatpush1.bf16.msra.mxu0 %v400
  %548 = vmatprep.subr.bf16.mxu0 0
  %549 = vmatpush1.bf16.msra.mxu0 %v401
  %550 = vmatprep.subr.bf16.mxu0 0
  %551 = vmatpush1.bf16.msra.mxu0 %v402
  %552 = vmatprep.subr.bf16.mxu0 0
  %553 = vmatpush1.bf16.msra.mxu0 %v403
  %554 = vmatprep.subr.bf16.mxu0 0
  %555 = vmatpush1.bf16.msra.mxu0 %v404
  %556 = vmatprep.subr.bf16.mxu0 0
  %557 = vmatpush1.bf16.msra.mxu0 %v405
  %558 = vmatprep.mubr.bf16.mxu0 %v148
  %559 = vmatmul.mubr.bf16.gmra.mrb[0].mxu0 %v147
  %v560 = vpop.f32.mrb[0].mxu0
  %v561 = vadd.f32 %v521, %v560
  %v562 = vpop.f32.mrb[0].mxu0
  %v563 = vpop.f32.mrb[0].mxu0
  %v564 = vpop.f32.mrb[0].mxu0
  %565 = vdwg.mxu0
  %566 = vmatprep.subr.bf16.mxu0 0
  %567 = vmatpush1.bf16.msra.mxu0 %v406
  %568 = vmatprep.subr.bf16.mxu0 0
  %569 = vmatpush1.bf16.msra.mxu0 %v407
  %570 = vmatprep.subr.bf16.mxu0 0
  %571 = vmatpush1.bf16.msra.mxu0 %v408
  %572 = vmatprep.subr.bf16.mxu0 0
  %573 = vmatpush1.bf16.msra.mxu0 %v409
  %574 = vmatprep.subr.bf16.mxu0 0
  %575 = vmatpush1.bf16.msra.mxu0 %v410
  %576 = vmatprep.subr.bf16.mxu0 0
  %577 = vmatpush1.bf16.msra.mxu0 %v411
  %578 = vmatprep.subr.bf16.mxu0 0
  %579 = vmatpush1.bf16.msra.mxu0 %v412
  %580 = vmatprep.subr.bf16.mxu0 0
  %581 = vmatpush1.bf16.msra.mxu0 %v413
  %582 = vmatprep.subr.bf16.mxu0 0
  %583 = vmatpush1.bf16.msra.mxu0 %v414
  %584 = vmatprep.subr.bf16.mxu0 0
  %585 = vmatpush1.bf16.msra.mxu0 %v415
  %586 = vmatprep.subr.bf16.mxu0 0
  %587 = vmatpush1.bf16.msra.mxu0 %v416
  %588 = vmatprep.subr.bf16.mxu0 0
  %589 = vmatpush1.bf16.msra.mxu0 %v417
  %590 = vmatprep.subr.bf16.mxu0 0
  %591 = vmatpush1.bf16.msra.mxu0 %v418
  %592 = vmatprep.subr.bf16.mxu0 0
  %593 = vmatpush1.bf16.msra.mxu0 %v419
  %594 = vmatprep.subr.bf16.mxu0 0
  %595 = vmatpush1.bf16.msra.mxu0 %v420
  %596 = vmatprep.subr.bf16.mxu0 0
  %597 = vmatpush1.bf16.msra.mxu0 %v421
  %598 = vmatprep.mubr.bf16.mxu0 %v150
  %599 = vmatmul.mubr.bf16.gmra.mrb[0].mxu0 %v149
  %v600 = vpop.f32.mrb[0].mxu0
  %v601 = vadd.f32 %v561, %v600
  %v602 = vpop.f32.mrb[0].mxu0
  %v603 = vpop.f32.mrb[0].mxu0
  %v604 = vpop.f32.mrb[0].mxu0
  %605 = vdwg.mxu0
  %606 = vmatprep.subr.bf16.mxu0 0
  %607 = vmatpush1.bf16.msra.mxu0 %v422
  %608 = vmatprep.subr.bf16.mxu0 0
  %609 = vmatpush1.bf16.msra.mxu0 %v423
  %610 = vmatprep.subr.bf16.mxu0 0
  %611 = vmatpush1.bf16.msra.mxu0 %v424
  %612 = vmatprep.subr.bf16.mxu0 0
  %613 = vmatpush1.bf16.msra.mxu0 %v425
  %614 = vmatprep.subr.bf16.mxu0 0
  %615 = vmatpush1.bf16.msra.mxu0 %v426
  %616 = vmatprep.subr.bf16.mxu0 0
  %617 = vmatpush1.bf16.msra.mxu0 %v427
  %618 = vmatprep.subr.bf16.mxu0 0
  %619 = vmatpush1.bf16.msra.mxu0 0
  %620 = vmatprep.subr.bf16.mxu0 0
  %621 = vmatpush1.bf16.msra.mxu0 0
  %622 = vmatprep.subr.bf16.mxu0 0
  %623 = vmatpush1.bf16.msra.mxu0 0
  %624 = vmatprep.subr.bf16.mxu0 0
  %625 = vmatpush1.bf16.msra.mxu0 0
  %626 = vmatprep.subr.bf16.mxu0 0
  %627 = vmatpush1.bf16.msra.mxu0 0
  %628 = vmatprep.subr.bf16.mxu0 0
  %629 = vmatpush1.bf16.msra.mxu0 0
  %630 = vmatprep.subr.bf16.mxu0 0
  %631 = vmatpush1.bf16.msra.mxu0 0
  %632 = vmatprep.subr.bf16.mxu0 0
  %633 = vmatpush1.bf16.msra.mxu0 0
  %634 = vmatprep.subr.bf16.mxu0 0
  %635 = vmatpush1.bf16.msra.mxu0 0
  %636 = vmatprep.subr.bf16.mxu0 0
  %637 = vmatpush1.bf16.msra.mxu0 0
  %638 = vmatprep.mubr.bf16.mxu0 0
  %639 = vmatmul.mubr.bf16.gmra.mrb[0].mxu0 %v484
  %v640 = vpop.f32.mrb[0].mxu0
  %v641 = vadd.f32 %v601, %v640
  %v642 = vpop.f32.mrb[0].mxu0
  %v643 = vpop.f32.mrb[0].mxu0
  %v644 = vpop.f32.mrb[0].mxu0
  %645 = vdwg.mxu0
  %vm646 = vcmp.ge.f32.partialorder %v641, 0.0
  %v647 = vmul.f32 %v641, 0.2
  %v648 = vsel %vm646, %v641, %v647
  %v649 = vpack.c.bf16 %v648, %v648
  %vm650 = vcmask 257024
  %651 = vst.msk [vmem:[%s3] sm:$0xf] %vm650, %v649
  // Predicated region
  $region14: #{forward.11} parent=0 // pred_check
    _
  $region15: #{forward.11} parent=0 // pred_check_branch
    %653 = sbr.rel (0) target = $region17
  $region16: #{forward.11} parent=0 // pred_region
    _
  $region17: #{forward.11} parent=0 // pred_fallthru
    _
  // Predicated region
  $region18: #{forward.11} parent=0 // pred_check
    _
  $region19: #{forward.11} parent=0 // pred_check_branch
    %655 = sbr.rel (0) target = $region21
  $region20: #{forward.11} parent=0 // pred_region
    _
  $region21: #{forward.11} parent=0 // pred_fallthru
    _

// kernel: forward.13
$region0: #{forward.13}
  #allocation0 [shape = 'u32[]', space=smem, size = 0x4, offset = 0x4, fixed_abs, tag = 'smem constant byte address 0x4 - core index']
  #allocation1 [shape = 'u32[144,128]{1,0:T(1,128)}', space=vmem, size = 0x12000, scoped, tag = 'internal scratch']
  %s0 = inlined_call_operand.vmem [shape: bf16[8,32], index: 0, kind: input, shape index: {}]
  %s1 = inlined_call_operand.vmem [shape: bf16[32,800], index: 1, kind: input, shape index: {}]
  %s2 = inlined_call_operand.vmem [shape: f32[1,800], index: 2, kind: input, shape index: {}]
  %s3 = inlined_call_operand.vmem [shape: bf16[800,256], index: 3, kind: input, shape index: {}]
  %s4 = inlined_call_operand.vmem [shape: f32[1,256], index: 4, kind: input, shape index: {}]
  %s5 = inlined_call_operand.vmem [shape: bf16[256,8], index: 5, kind: input, shape index: {}]
  %s6 = inlined_call_operand.vmem [shape: f32[1,8], index: 6, kind: input, shape index: {}]
  %s7 = inlined_call_operand.vmem [shape: f32[8,12288], index: 7, kind: input, shape index: {}]
  %s8 = inlined_call_operand.vmem [shape: f32[1,12288], index: 8, kind: input, shape index: {}]
  %s9 = inlined_call_operand.hbm [shape: f32[8,8], index: 9, kind: output, shape index: {0}]
  %s10 = inlined_call_operand.vmem [shape: f32[8,12288], index: 10, kind: output, shape index: {1}]
  %11 = xla_tuple %s9, %s10
  %s12 = sld [smem:[#allocation0]]
  $region54: #{forward.13} parent=0
    _
  %s14 = ssub.s32 1, %s12
  %s15 = scalar_select 0, %s14, %s12
  $region1: #{forward.13} parent=0
    #allocation2 [shape = 'u8[4096]{0}', space=vmem, size = 0x1000, scoped, tag = 'output window, operand 0, single buffered']
    #allocation3 [shape = 's32[1]{0}', space=sflag, size = 0x4, scoped, tag = 'scoped memory for forward.13']
    %16 = vsyncpa [#allocation3], 0
    // Predicated region
    $region2: #{forward.13} parent=1 // pred_check
      _
    $region3: #{forward.13} parent=1 // pred_check_branch
      %18 = sbr.rel (0) target = $region5
    $region4: #{forward.13} parent=1 // pred_region
      _
    $region5: #{forward.13} parent=1 // pred_fallthru
      _
    // Predicated region
    $region6: #{forward.13} parent=1 // pred_check
      _
    $region7: #{forward.13} parent=1 // pred_check_branch
      %20 = sbr.rel (0) target = $region9
    $region8: #{forward.13} parent=1 // pred_region
      _
    $region9: #{forward.13} parent=1 // pred_fallthru
      _
    // Predicated region
    $region10: #{forward.13} parent=1 // pred_check
      _
    $region11: #{forward.13} parent=1 // pred_check_branch
      %22 = sbr.rel (0) target = $region13
    $region12: #{forward.13} parent=1 // pred_region
      _
    $region13: #{forward.13} parent=1 // pred_fallthru
      _
    // Predicated region
    $region14: #{forward.13} parent=1 // pred_check
      _
    $region15: #{forward.13} parent=1 // pred_check_branch
      %24 = sbr.rel (0) target = $region17
    $region16: #{forward.13} parent=1 // pred_region
      _
    $region17: #{forward.13} parent=1 // pred_fallthru
      _
    // Predicated region
    $region18: #{forward.13} parent=1 // pred_check
      _
    $region19: #{forward.13} parent=1 // pred_check_branch
      %26 = sbr.rel (0) target = $region21
    $region20: #{forward.13} parent=1 // pred_region
      _
    $region21: #{forward.13} parent=1 // pred_fallthru
      _
    // Predicated region
    $region22: #{forward.13} parent=1 // pred_check
      _
    $region23: #{forward.13} parent=1 // pred_check_branch
      %28 = sbr.rel (0) target = $region25
    $region24: #{forward.13} parent=1 // pred_region
      _
    $region25: #{forward.13} parent=1 // pred_fallthru
      _
    // Predicated region
    $region26: #{forward.13} parent=1 // pred_check
      _
    $region27: #{forward.13} parent=1 // pred_check_branch
      %30 = sbr.rel (0) target = $region29
    $region28: #{forward.13} parent=1 // pred_region
      _
    $region29: #{forward.13} parent=1 // pred_fallthru
      _
    // Predicated region
    $region30: #{forward.13} parent=1 // pred_check
      _
    $region31: #{forward.13} parent=1 // pred_check_branch
      %32 = sbr.rel (0) target = $region33
    $region32: #{forward.13} parent=1 // pred_region
      _
    $region33: #{forward.13} parent=1 // pred_fallthru
      _
    // Predicated region
    $region34: #{forward.13} parent=1 // pred_check
      _
    $region35: #{forward.13} parent=1 // pred_check_branch
      %34 = sbr.rel (0) target = $region37
    $region36: #{forward.13} parent=1 // pred_region
      _
    $region37: #{forward.13} parent=1 // pred_fallthru
      _
    %v36 = vld [vmem:[%s0] sm:$0xf]
    %v37 = vld [vmem:[%s1] sm:$0xff]
    %v38 = vld [vmem:[%s1 + $0x8] sm:$0xff]
    %v39 = vld [vmem:[%s1 + $0x10] sm:$0xff]
    %v40 = vld [vmem:[%s1 + $0x18] sm:$0xf]
    %v41 = vld [vmem:[%s1 + $0x1c] sm:$0xff]
    %v42 = vld [vmem:[%s1 + $0x24] sm:$0xff]
    %v43 = vld [vmem:[%s1 + $0x2c] sm:$0xff]
    %v44 = vld [vmem:[%s1 + $0x34] sm:$0xf]
    %v45 = vld [vmem:[%s1 + $0x38] sm:$0xff]
    %v46 = vld [vmem:[%s1 + $0x40] sm:$0xff]
    %v47 = vld [vmem:[%s1 + $0x48] sm:$0xff]
    %v48 = vld [vmem:[%s1 + $0x50] sm:$0xf]
    %v49 = vld [vmem:[%s1 + $0x54] sm:$0xff]
    %v50 = vld [vmem:[%s1 + $0x5c] sm:$0xff]
    %v51 = vld [vmem:[%s1 + $0x64] sm:$0xff]
    %v52 = vld [vmem:[%s1 + $0x6c] sm:$0xf]
    %v53 = vld [vmem:[%s2] sm:$0x7f]
    %v55 = vlaneseq
    %v56 = vshrl.u32 %v55, 7
    %v57 = vsub.s32 0, %v56
    %v58 = vrot.slane %v53, %v57
    %v59 = vlaneseq
    %v60 = vshrl.u32 %v59, 7
    %v61 = vsub.s32 1, %v60
    %v62 = vrot.slane %v53, %v61
    %v63 = vlaneseq
    %v64 = vshrl.u32 %v63, 7
    %v65 = vsub.s32 2, %v64
    %v66 = vrot.slane %v53, %v65
    %v67 = vlaneseq
    %v68 = vshrl.u32 %v67, 7
    %v69 = vsub.s32 3, %v68
    %v70 = vrot.slane %v53, %v69
    %v71 = vlaneseq
    %v72 = vshrl.u32 %v71, 7
    %v73 = vsub.s32 4, %v72
    %v74 = vrot.slane %v53, %v73
    %v75 = vlaneseq
    %v76 = vshrl.u32 %v75, 7
    %v77 = vsub.s32 5, %v76
    %v78 = vrot.slane %v53, %v77
    %v79 = vlaneseq
    %v80 = vshrl.u32 %v79, 7
    %v81 = vsub.s32 6, %v80
    %v82 = vrot.slane %v53, %v81
    %v106 = vunpack.c.l.b16 %v37
    %v107 = vunpack.c.h.b16 %v37
    %v108 = vunpack.c.l.b16 %v38
    %v109 = vunpack.c.h.b16 %v38
    %v110 = vunpack.c.l.b16 %v39
    %v111 = vunpack.c.h.b16 %v39
    %v112 = vunpack.c.l.b16 %v40
    %v113 = vunpack.c.l.b16 %v41
    %v114 = vunpack.c.h.b16 %v41
    %v115 = vunpack.c.l.b16 %v42
    %v116 = vunpack.c.h.b16 %v42
    %v117 = vunpack.c.l.b16 %v43
    %v118 = vunpack.c.h.b16 %v43
    %v119 = vunpack.c.l.b16 %v44
    %v120 = vunpack.c.l.b16 %v45
    %v121 = vunpack.c.h.b16 %v45
    %v122 = vunpack.c.l.b16 %v46
    %v123 = vunpack.c.h.b16 %v46
    %v124 = vunpack.c.l.b16 %v47
    %v125 = vunpack.c.h.b16 %v47
    %v126 = vunpack.c.l.b16 %v48
    %v127 = vunpack.c.l.b16 %v49
    %v128 = vunpack.c.h.b16 %v49
    %v129 = vunpack.c.l.b16 %v50
    %v130 = vunpack.c.h.b16 %v50
    %v131 = vunpack.c.l.b16 %v51
    %v132 = vunpack.c.h.b16 %v51
    %v133 = vunpack.c.l.b16 %v52
    %v134 = vpack.c.b16 %v113, %v106
    %v135 = vpack.c.b16 %v114, %v107
    %v136 = vpack.c.b16 %v115, %v108
    %v137 = vpack.c.b16 %v116, %v109
    %v138 = vpack.c.b16 %v117, %v110
    %v139 = vpack.c.b16 %v118, %v111
    %v140 = vpack.c.b16 %v119, %v112
    %v141 = vpack.c.b16 %v127, %v120
    %v142 = vpack.c.b16 %v128, %v121
    %v143 = vpack.c.b16 %v129, %v122
    %v144 = vpack.c.b16 %v130, %v123
    %v145 = vpack.c.b16 %v131, %v124
    %v146 = vpack.c.b16 %v132, %v125
    %v147 = vpack.c.b16 %v133, %v126
    %vm162 = vcmask 261120
    %v164 = vsel %vm162, %v36, 0
    %166 = vmatprep.subr.bf16.mxu0 %v135
    %167 = vmatpush1.bf16.msra.mxu0 %v134
    %168 = vmatprep.subr.bf16.mxu0 %v142
    %169 = vmatpush1.bf16.msra.mxu0 %v141
    %170 = vmatprep.subr.bf16.mxu0 0
    %171 = vmatpush1.bf16.msra.mxu0 0
    %172 = vmatprep.subr.bf16.mxu0 0
    %173 = vmatpush1.bf16.msra.mxu0 0
    %174 = vmatprep.subr.bf16.mxu0 0
    %175 = vmatpush1.bf16.msra.mxu0 0
    %176 = vmatprep.subr.bf16.mxu0 0
    %177 = vmatpush1.bf16.msra.mxu0 0
    %178 = vmatprep.subr.bf16.mxu0 0
    %179 = vmatpush1.bf16.msra.mxu0 0
    %180 = vmatprep.subr.bf16.mxu0 0
    %181 = vmatpush1.bf16.msra.mxu0 0
    %182 = vmatprep.subr.bf16.mxu0 0
    %183 = vmatpush1.bf16.msra.mxu0 0
    %184 = vmatprep.subr.bf16.mxu0 0
    %185 = vmatpush1.bf16.msra.mxu0 0
    %186 = vmatprep.subr.bf16.mxu0 0
    %187 = vmatpush1.bf16.msra.mxu0 0
    %188 = vmatprep.subr.bf16.mxu0 0
    %189 = vmatpush1.bf16.msra.mxu0 0
    %190 = vmatprep.subr.bf16.mxu0 0
    %191 = vmatpush1.bf16.msra.mxu0 0
    %192 = vmatprep.subr.bf16.mxu0 0
    %193 = vmatpush1.bf16.msra.mxu0 0
    %194 = vmatprep.subr.bf16.mxu0 0
    %195 = vmatpush1.bf16.msra.mxu0 0
    %196 = vmatprep.subr.bf16.mxu0 0
    %197 = vmatpush1.bf16.msra.mxu0 0
    %198 = vmatprep.mubr.bf16.mxu0 0
    %199 = vmatmul.mubr.bf16.gmra.mrb[0].mxu0 %v164
    %v200 = vpop.f32.mrb[0].mxu0
    %v201 = vadd.f32 %v58, %v200
    %v202 = vpop.f32.mrb[0].mxu0
    %v203 = vadd.f32 %v62, %v202
    %v204 = vpop.f32.mrb[0].mxu0
    %v205 = vpop.f32.mrb[0].mxu0
    %206 = vdwg.mxu0
    %207 = vmatprep.subr.bf16.mxu0 %v137
    %208 = vmatpush1.bf16.msra.mxu0 %v136
    %209 = vmatprep.subr.bf16.mxu0 %v144
    %210 = vmatpush1.bf16.msra.mxu0 %v143
    %211 = vmatprep.subr.bf16.mxu0 0
    %212 = vmatpush1.bf16.msra.mxu0 0
    %213 = vmatprep.subr.bf16.mxu0 0
    %214 = vmatpush1.bf16.msra.mxu0 0
    %215 = vmatprep.subr.bf16.mxu0 0
    %216 = vmatpush1.bf16.msra.mxu0 0
    %217 = vmatprep.subr.bf16.mxu0 0
    %218 = vmatpush1.bf16.msra.mxu0 0
    %219 = vmatprep.subr.bf16.mxu0 0
    %220 = vmatpush1.bf16.msra.mxu0 0
    %221 = vmatprep.subr.bf16.mxu0 0
    %222 = vmatpush1.bf16.msra.mxu0 0
    %223 = vmatprep.subr.bf16.mxu0 0
    %224 = vmatpush1.bf16.msra.mxu0 0
    %225 = vmatprep.subr.bf16.mxu0 0
    %226 = vmatpush1.bf16.msra.mxu0 0
    %227 = vmatprep.subr.bf16.mxu0 0
    %228 = vmatpush1.bf16.msra.mxu0 0
    %229 = vmatprep.subr.bf16.mxu0 0
    %230 = vmatpush1.bf16.msra.mxu0 0
    %231 = vmatprep.subr.bf16.mxu0 0
    %232 = vmatpush1.bf16.msra.mxu0 0
    %233 = vmatprep.subr.bf16.mxu0 0
    %234 = vmatpush1.bf16.msra.mxu0 0
    %235 = vmatprep.subr.bf16.mxu0 0
    %236 = vmatpush1.bf16.msra.mxu0 0
    %237 = vmatprep.subr.bf16.mxu0 0
    %238 = vmatpush1.bf16.msra.mxu0 0
    %239 = vmatprep.mubr.bf16.mxu0 0
    %240 = vmatmul.mubr.bf16.gmra.mrb[0].mxu0 %v164
    %v241 = vpop.f32.mrb[0].mxu0
    %v242 = vadd.f32 %v66, %v241
    %v243 = vpop.f32.mrb[0].mxu0
    %v244 = vadd.f32 %v70, %v243
    %v245 = vpop.f32.mrb[0].mxu0
    %v246 = vpop.f32.mrb[0].mxu0
    %247 = vdwg.mxu0
    %248 = vmatprep.subr.bf16.mxu0 %v139
    %249 = vmatpush1.bf16.msra.mxu0 %v138
    %250 = vmatprep.subr.bf16.mxu0 %v146
    %251 = vmatpush1.bf16.msra.mxu0 %v145
    %252 = vmatprep.subr.bf16.mxu0 0
    %253 = vmatpush1.bf16.msra.mxu0 0
    %254 = vmatprep.subr.bf16.mxu0 0
    %255 = vmatpush1.bf16.msra.mxu0 0
    %256 = vmatprep.subr.bf16.mxu0 0
    %257 = vmatpush1.bf16.msra.mxu0 0
    %258 = vmatprep.subr.bf16.mxu0 0
    %259 = vmatpush1.bf16.msra.mxu0 0
    %260 = vmatprep.subr.bf16.mxu0 0
    %261 = vmatpush1.bf16.msra.mxu0 0
    %262 = vmatprep.subr.bf16.mxu0 0
    %263 = vmatpush1.bf16.msra.mxu0 0
    %264 = vmatprep.subr.bf16.mxu0 0
    %265 = vmatpush1.bf16.msra.mxu0 0
    %266 = vmatprep.subr.bf16.mxu0 0
    %267 = vmatpush1.bf16.msra.mxu0 0
    %268 = vmatprep.subr.bf16.mxu0 0
    %269 = vmatpush1.bf16.msra.mxu0 0
    %270 = vmatprep.subr.bf16.mxu0 0
    %271 = vmatpush1.bf16.msra.mxu0 0
    %272 = vmatprep.subr.bf16.mxu0 0
    %273 = vmatpush1.bf16.msra.mxu0 0
    %274 = vmatprep.subr.bf16.mxu0 0
    %275 = vmatpush1.bf16.msra.mxu0 0
    %276 = vmatprep.subr.bf16.mxu0 0
    %277 = vmatpush1.bf16.msra.mxu0 0
    %278 = vmatprep.subr.bf16.mxu0 0
    %279 = vmatpush1.bf16.msra.mxu0 0
    %280 = vmatprep.mubr.bf16.mxu0 0
    %281 = vmatmul.mubr.bf16.gmra.mrb[0].mxu0 %v164
    %v282 = vpop.f32.mrb[0].mxu0
    %v283 = vadd.f32 %v74, %v282
    %v284 = vpop.f32.mrb[0].mxu0
    %v285 = vadd.f32 %v78, %v284
    %v286 = vpop.f32.mrb[0].mxu0
    %v287 = vpop.f32.mrb[0].mxu0
    %288 = vdwg.mxu0
    %289 = vmatprep.subr.bf16.mxu0 0
    %290 = vmatpush1.bf16.msra.mxu0 %v140
    %291 = vmatprep.subr.bf16.mxu0 0
    %292 = vmatpush1.bf16.msra.mxu0 %v147
    %293 = vmatprep.subr.bf16.mxu0 0
    %294 = vmatpush1.bf16.msra.mxu0 0
    %295 = vmatprep.subr.bf16.mxu0 0
    %296 = vmatpush1.bf16.msra.mxu0 0
    %297 = vmatprep.subr.bf16.mxu0 0
    %298 = vmatpush1.bf16.msra.mxu0 0
    %299 = vmatprep.subr.bf16.mxu0 0
    %300 = vmatpush1.bf16.msra.mxu0 0
    %301 = vmatprep.subr.bf16.mxu0 0
    %302 = vmatpush1.bf16.msra.mxu0 0
    %303 = vmatprep.subr.bf16.mxu0 0
    %304 = vmatpush1.bf16.msra.mxu0 0
    %305 = vmatprep.subr.bf16.mxu0 0
    %306 = vmatpush1.bf16.msra.mxu0 0
    %307 = vmatprep.subr.bf16.mxu0 0
    %308 = vmatpush1.bf16.msra.mxu0 0
    %309 = vmatprep.subr.bf16.mxu0 0
    %310 = vmatpush1.bf16.msra.mxu0 0
    %311 = vmatprep.subr.bf16.mxu0 0
    %312 = vmatpush1.bf16.msra.mxu0 0
    %313 = vmatprep.subr.bf16.mxu0 0
    %314 = vmatpush1.bf16.msra.mxu0 0
    %315 = vmatprep.subr.bf16.mxu0 0
    %316 = vmatpush1.bf16.msra.mxu0 0
    %317 = vmatprep.subr.bf16.mxu0 0
    %318 = vmatpush1.bf16.msra.mxu0 0
    %319 = vmatprep.subr.bf16.mxu0 0
    %320 = vmatpush1.bf16.msra.mxu0 0
    %321 = vmatprep.mubr.bf16.mxu0 0
    %322 = vmatmul.mubr.bf16.gmra.mrb[0].mxu0 %v164
    %v323 = vpop.f32.mrb[0].mxu0
    %v324 = vadd.f32 %v82, %v323
    %v325 = vpop.f32.mrb[0].mxu0
    %v326 = vpop.f32.mrb[0].mxu0
    %v327 = vpop.f32.mrb[0].mxu0
    %328 = vdwg.mxu0
    %vm329 = vcmp.ge.f32.partialorder %v201, 0.0
    %vm330 = vcmp.ge.f32.partialorder %v203, 0.0
    %vm331 = vcmp.ge.f32.partialorder %v242, 0.0
    %vm332 = vcmp.ge.f32.partialorder %v244, 0.0
    %vm333 = vcmp.ge.f32.partialorder %v283, 0.0
    %vm334 = vcmp.ge.f32.partialorder %v285, 0.0
    %vm335 = vcmp.ge.f32.partialorder %v324, 0.0
    %v336 = vmul.f32 %v201, 0.2
    %v337 = vmul.f32 %v203, 0.2
    %v338 = vmul.f32 %v242, 0.2
    %v339 = vmul.f32 %v244, 0.2
    %v340 = vmul.f32 %v283, 0.2
    %v341 = vmul.f32 %v285, 0.2
    %v342 = vmul.f32 %v324, 0.2
    %v343 = vsel %vm329, %v201, %v336
    %v344 = vsel %vm330, %v203, %v337
    %v345 = vsel %vm331, %v242, %v338
    %v346 = vsel %vm332, %v244, %v339
    %v347 = vsel %vm333, %v283, %v340
    %v348 = vsel %vm334, %v285, %v341
    %v349 = vsel %vm335, %v324, %v342
    %v350 = vpack.c.bf16 %v343, %v343
    %v351 = vpack.c.bf16 %v344, %v344
    %v352 = vpack.c.bf16 %v345, %v345
    %v353 = vpack.c.bf16 %v346, %v346
    %v354 = vpack.c.bf16 %v347, %v347
    %v355 = vpack.c.bf16 %v348, %v348
    %v356 = vpack.c.bf16 %v349, %v349
    %v357 = vld [vmem:[%s3] sm:$0xff]
    %v358 = vld [vmem:[%s3 + $0x8] sm:$0xff]
    %v359 = vld [vmem:[%s3 + $0x10] sm:$0xff]
    %v360 = vld [vmem:[%s3 + $0x18] sm:$0xff]
    %v361 = vld [vmem:[%s3 + $0x20] sm:$0xff]
    %v362 = vld [vmem:[%s3 + $0x28] sm:$0xff]
    %v363 = vld [vmem:[%s3 + $0x30] sm:$0xff]
    %v364 = vld [vmem:[%s3 + $0x38] sm:$0xff]
    %v365 = vld [vmem:[%s3 + $0x40] sm:$0xff]
    %v366 = vld [vmem:[%s3 + $0x48] sm:$0xff]
    %v367 = vld [vmem:[%s3 + $0x50] sm:$0xff]
    %v368 = vld [vmem:[%s3 + $0x58] sm:$0xff]
    %v369 = vld [vmem:[%s3 + $0x60] sm:$0xff]
    %v370 = vld [vmem:[%s3 + $0x68] sm:$0xff]
    %v371 = vld [vmem:[%s3 + $0x70] sm:$0xff]
    %v372 = vld [vmem:[%s3 + $0x78] sm:$0xff]
    %v373 = vld [vmem:[%s3 + $0x80] sm:$0xff]
    %v374 = vld [vmem:[%s3 + $0x88] sm:$0xff]
    %v375 = vld [vmem:[%s3 + $0x90] sm:$0xff]
    %v376 = vld [vmem:[%s3 + $0x98] sm:$0xff]
    %v377 = vld [vmem:[%s3 + $0xa0] sm:$0xff]
    %v378 = vld [vmem:[%s3 + $0xa8] sm:$0xff]
    %v379 = vld [vmem:[%s3 + $0xb0] sm:$0xff]
    %v380 = vld [vmem:[%s3 + $0xb8] sm:$0xff]
    %v381 = vld [vmem:[%s3 + $0xc0] sm:$0xff]
    %v382 = vld [vmem:[%s3 + $0xc8] sm:$0xff]
    %v383 = vld [vmem:[%s3 + $0xd0] sm:$0xff]
    %v384 = vld [vmem:[%s3 + $0xd8] sm:$0xff]
    %v385 = vld [vmem:[%s3 + $0xe0] sm:$0xff]
    %v386 = vld [vmem:[%s3 + $0xe8] sm:$0xff]
    %v387 = vld [vmem:[%s3 + $0xf0] sm:$0xff]
    %v388 = vld [vmem:[%s3 + $0xf8] sm:$0xff]
    %v389 = vld [vmem:[%s3 + $0x100] sm:$0xff]
    %v390 = vld [vmem:[%s3 + $0x108] sm:$0xff]
    %v391 = vld [vmem:[%s3 + $0x110] sm:$0xff]
    %v392 = vld [vmem:[%s3 + $0x118] sm:$0xff]
    %v393 = vld [vmem:[%s3 + $0x120] sm:$0xff]
    %v394 = vld [vmem:[%s3 + $0x128] sm:$0xff]
    %v395 = vld [vmem:[%s3 + $0x130] sm:$0xff]
    %v396 = vld [vmem:[%s3 + $0x138] sm:$0xff]
    %v397 = vld [vmem:[%s3 + $0x140] sm:$0xff]
    %v398 = vld [vmem:[%s3 + $0x148] sm:$0xff]
    %v399 = vld [vmem:[%s3 + $0x150] sm:$0xff]
    %v400 = vld [vmem:[%s3 + $0x158] sm:$0xff]
    %v401 = vld [vmem:[%s3 + $0x160] sm:$0xff]
    %v402 = vld [vmem:[%s3 + $0x168] sm:$0xff]
    %v403 = vld [vmem:[%s3 + $0x170] sm:$0xff]
    %v404 = vld [vmem:[%s3 + $0x178] sm:$0xff]
    %v405 = vld [vmem:[%s3 + $0x180] sm:$0xff]
    %v406 = vld [vmem:[%s3 + $0x188] sm:$0xff]
    %v407 = vld [vmem:[%s3 + $0x190] sm:$0xff]
    %v408 = vld [vmem:[%s3 + $0x198] sm:$0xff]
    %v409 = vld [vmem:[%s3 + $0x1a0] sm:$0xff]
    %v410 = vld [vmem:[%s3 + $0x1a8] sm:$0xff]
    %v411 = vld [vmem:[%s3 + $0x1b0] sm:$0xff]
    %v412 = vld [vmem:[%s3 + $0x1b8] sm:$0xff]
    %v413 = vld [vmem:[%s3 + $0x1c0] sm:$0xff]
    %v414 = vld [vmem:[%s3 + $0x1c8] sm:$0xff]
    %v415 = vld [vmem:[%s3 + $0x1d0] sm:$0xff]
    %v416 = vld [vmem:[%s3 + $0x1d8] sm:$0xff]
    %v417 = vld [vmem:[%s3 + $0x1e0] sm:$0xff]
    %v418 = vld [vmem:[%s3 + $0x1e8] sm:$0xff]
    %v419 = vld [vmem:[%s3 + $0x1f0] sm:$0xff]
    %v420 = vld [vmem:[%s3 + $0x1f8] sm:$0xff]
    %v421 = vld [vmem:[%s3 + $0x200] sm:$0xff]
    %v422 = vld [vmem:[%s3 + $0x208] sm:$0xff]
    %v423 = vld [vmem:[%s3 + $0x210] sm:$0xff]
    %v424 = vld [vmem:[%s3 + $0x218] sm:$0xff]
    %v425 = vld [vmem:[%s3 + $0x220] sm:$0xff]
    %v426 = vld [vmem:[%s3 + $0x228] sm:$0xff]
    %v427 = vld [vmem:[%s3 + $0x230] sm:$0xff]
    %v428 = vld [vmem:[%s3 + $0x238] sm:$0xff]
    %v429 = vld [vmem:[%s3 + $0x240] sm:$0xff]
    %v430 = vld [vmem:[%s3 + $0x248] sm:$0xff]
    %v431 = vld [vmem:[%s3 + $0x250] sm:$0xff]
    %v432 = vld [vmem:[%s3 + $0x258] sm:$0xff]
    %v433 = vld [vmem:[%s3 + $0x260] sm:$0xff]
    %v434 = vld [vmem:[%s3 + $0x268] sm:$0xff]
    %v435 = vld [vmem:[%s3 + $0x270] sm:$0xff]
    %v436 = vld [vmem:[%s3 + $0x278] sm:$0xff]
    %v437 = vld [vmem:[%s3 + $0x280] sm:$0xff]
    %v438 = vld [vmem:[%s3 + $0x288] sm:$0xff]
    %v439 = vld [vmem:[%s3 + $0x290] sm:$0xff]
    %v440 = vld [vmem:[%s3 + $0x298] sm:$0xff]
    %v441 = vld [vmem:[%s3 + $0x2a0] sm:$0xff]
    %v442 = vld [vmem:[%s3 + $0x2a8] sm:$0xff]
    %v443 = vld [vmem:[%s3 + $0x2b0] sm:$0xff]
    %v444 = vld [vmem:[%s3 + $0x2b8] sm:$0xff]
    %v445 = vld [vmem:[%s3 + $0x2c0] sm:$0xff]
    %v446 = vld [vmem:[%s3 + $0x2c8] sm:$0xff]
    %v447 = vld [vmem:[%s3 + $0x2d0] sm:$0xff]
    %v448 = vld [vmem:[%s3 + $0x2d8] sm:$0xff]
    %v449 = vld [vmem:[%s3 + $0x2e0] sm:$0xff]
    %v450 = vld [vmem:[%s3 + $0x2e8] sm:$0xff]
    %v451 = vld [vmem:[%s3 + $0x2f0] sm:$0xff]
    %v452 = vld [vmem:[%s3 + $0x2f8] sm:$0xff]
    %v453 = vld [vmem:[%s3 + $0x300] sm:$0xff]
    %v454 = vld [vmem:[%s3 + $0x308] sm:$0xff]
    %v455 = vld [vmem:[%s3 + $0x310] sm:$0xff]
    %v456 = vld [vmem:[%s3 + $0x318] sm:$0xff]
    %v457 = vld [vmem:[%s4] sm:$0x3]
    %v459 = vlaneseq
    %v460 = vshrl.u32 %v459, 7
    %v461 = vsub.s32 0, %v460
    %v462 = vrot.slane %v457, %v461
    %v463 = vlaneseq
    %v464 = vshrl.u32 %v463, 7
    %v465 = vsub.s32 1, %v464
    %v466 = vrot.slane %v457, %v465
    %v569 = vunpack.c.l.b16 %v357
    %v570 = vunpack.c.h.b16 %v357
    %v571 = vunpack.c.l.b16 %v358
    %v572 = vunpack.c.h.b16 %v358
    %v573 = vunpack.c.l.b16 %v359
    %v574 = vunpack.c.h.b16 %v359
    %v575 = vunpack.c.l.b16 %v360
    %v576 = vunpack.c.h.b16 %v360
    %v577 = vunpack.c.l.b16 %v361
    %v578 = vunpack.c.h.b16 %v361
    %v579 = vunpack.c.l.b16 %v362
    %v580 = vunpack.c.h.b16 %v362
    %v581 = vunpack.c.l.b16 %v363
    %v582 = vunpack.c.h.b16 %v363
    %v583 = vunpack.c.l.b16 %v364
    %v584 = vunpack.c.h.b16 %v364
    %v585 = vunpack.c.l.b16 %v365
    %v586 = vunpack.c.h.b16 %v365
    %v587 = vunpack.c.l.b16 %v366
    %v588 = vunpack.c.h.b16 %v366
    %v589 = vunpack.c.l.b16 %v367
    %v590 = vunpack.c.h.b16 %v367
    %v591 = vunpack.c.l.b16 %v368
    %v592 = vunpack.c.h.b16 %v368
    %v593 = vunpack.c.l.b16 %v369
    %v594 = vunpack.c.h.b16 %v369
    %v595 = vunpack.c.l.b16 %v370
    %v596 = vunpack.c.h.b16 %v370
    %v597 = vunpack.c.l.b16 %v371
    %v598 = vunpack.c.h.b16 %v371
    %v599 = vunpack.c.l.b16 %v372
    %v600 = vunpack.c.h.b16 %v372
    %v601 = vunpack.c.l.b16 %v373
    %v602 = vunpack.c.h.b16 %v373
    %v603 = vunpack.c.l.b16 %v374
    %v604 = vunpack.c.h.b16 %v374
    %v605 = vunpack.c.l.b16 %v375
    %v606 = vunpack.c.h.b16 %v375
    %v607 = vunpack.c.l.b16 %v376
    %v608 = vunpack.c.h.b16 %v376
    %v609 = vunpack.c.l.b16 %v377
    %v610 = vunpack.c.h.b16 %v377
    %v611 = vunpack.c.l.b16 %v378
    %v612 = vunpack.c.h.b16 %v378
    %v613 = vunpack.c.l.b16 %v379
    %v614 = vunpack.c.h.b16 %v379
    %v615 = vunpack.c.l.b16 %v380
    %v616 = vunpack.c.h.b16 %v380
    %v617 = vunpack.c.l.b16 %v381
    %v618 = vunpack.c.h.b16 %v381
    %v619 = vunpack.c.l.b16 %v382
    %v620 = vunpack.c.h.b16 %v382
    %v621 = vunpack.c.l.b16 %v383
    %v622 = vunpack.c.h.b16 %v383
    %v623 = vunpack.c.l.b16 %v384
    %v624 = vunpack.c.h.b16 %v384
    %v625 = vunpack.c.l.b16 %v385
    %v626 = vunpack.c.h.b16 %v385
    %v627 = vunpack.c.l.b16 %v386
    %v628 = vunpack.c.h.b16 %v386
    %v629 = vunpack.c.l.b16 %v387
    %v630 = vunpack.c.h.b16 %v387
    %v631 = vunpack.c.l.b16 %v388
    %v632 = vunpack.c.h.b16 %v388
    %v633 = vunpack.c.l.b16 %v389
    %v634 = vunpack.c.h.b16 %v389
    %v635 = vunpack.c.l.b16 %v390
    %v636 = vunpack.c.h.b16 %v390
    %v637 = vunpack.c.l.b16 %v391
    %v638 = vunpack.c.h.b16 %v391
    %v639 = vunpack.c.l.b16 %v392
    %v640 = vunpack.c.h.b16 %v392
    %v641 = vunpack.c.l.b16 %v393
    %v642 = vunpack.c.h.b16 %v393
    %v643 = vunpack.c.l.b16 %v394
    %v644 = vunpack.c.h.b16 %v394
    %v645 = vunpack.c.l.b16 %v395
    %v646 = vunpack.c.h.b16 %v395
    %v647 = vunpack.c.l.b16 %v396
    %v648 = vunpack.c.h.b16 %v396
    %v649 = vunpack.c.l.b16 %v397
    %v650 = vunpack.c.h.b16 %v397
    %v651 = vunpack.c.l.b16 %v398
    %v652 = vunpack.c.h.b16 %v398
    %v653 = vunpack.c.l.b16 %v399
    %v654 = vunpack.c.h.b16 %v399
    %v655 = vunpack.c.l.b16 %v400
    %v656 = vunpack.c.h.b16 %v400
    %v657 = vunpack.c.l.b16 %v401
    %v658 = vunpack.c.h.b16 %v401
    %v659 = vunpack.c.l.b16 %v402
    %v660 = vunpack.c.h.b16 %v402
    %v661 = vunpack.c.l.b16 %v403
    %v662 = vunpack.c.h.b16 %v403
    %v663 = vunpack.c.l.b16 %v404
    %v664 = vunpack.c.h.b16 %v404
    %v665 = vunpack.c.l.b16 %v405
    %v666 = vunpack.c.h.b16 %v405
    %v667 = vunpack.c.l.b16 %v406
    %v668 = vunpack.c.h.b16 %v406
    %v669 = vunpack.c.l.b16 %v407
    %v670 = vunpack.c.h.b16 %v407
    %v671 = vunpack.c.l.b16 %v408
    %v672 = vunpack.c.h.b16 %v408
    %v673 = vunpack.c.l.b16 %v409
    %v674 = vunpack.c.h.b16 %v409
    %v675 = vunpack.c.l.b16 %v410
    %v676 = vunpack.c.h.b16 %v410
    %v677 = vunpack.c.l.b16 %v411
    %v678 = vunpack.c.h.b16 %v411
    %v679 = vunpack.c.l.b16 %v412
    %v680 = vunpack.c.h.b16 %v412
    %v681 = vunpack.c.l.b16 %v413
    %v682 = vunpack.c.h.b16 %v413
    %v683 = vunpack.c.l.b16 %v414
    %v684 = vunpack.c.h.b16 %v414
    %v685 = vunpack.c.l.b16 %v415
    %v686 = vunpack.c.h.b16 %v415
    %v687 = vunpack.c.l.b16 %v416
    %v688 = vunpack.c.h.b16 %v416
    %v689 = vunpack.c.l.b16 %v417
    %v690 = vunpack.c.h.b16 %v417
    %v691 = vunpack.c.l.b16 %v418
    %v692 = vunpack.c.h.b16 %v418
    %v693 = vunpack.c.l.b16 %v419
    %v694 = vunpack.c.h.b16 %v419
    %v695 = vunpack.c.l.b16 %v420
    %v696 = vunpack.c.h.b16 %v420
    %v697 = vunpack.c.l.b16 %v421
    %v698 = vunpack.c.h.b16 %v421
    %v699 = vunpack.c.l.b16 %v422
    %v700 = vunpack.c.h.b16 %v422
    %v701 = vunpack.c.l.b16 %v423
    %v702 = vunpack.c.h.b16 %v423
    %v703 = vunpack.c.l.b16 %v424
    %v704 = vunpack.c.h.b16 %v424
    %v705 = vunpack.c.l.b16 %v425
    %v706 = vunpack.c.h.b16 %v425
    %v707 = vunpack.c.l.b16 %v426
    %v708 = vunpack.c.h.b16 %v426
    %v709 = vunpack.c.l.b16 %v427
    %v710 = vunpack.c.h.b16 %v427
    %v711 = vunpack.c.l.b16 %v428
    %v712 = vunpack.c.h.b16 %v428
    %v713 = vunpack.c.l.b16 %v429
    %v714 = vunpack.c.h.b16 %v429
    %v715 = vunpack.c.l.b16 %v430
    %v716 = vunpack.c.h.b16 %v430
    %v717 = vunpack.c.l.b16 %v431
    %v718 = vunpack.c.h.b16 %v431
    %v719 = vunpack.c.l.b16 %v432
    %v720 = vunpack.c.h.b16 %v432
    %v721 = vunpack.c.l.b16 %v433
    %v722 = vunpack.c.h.b16 %v433
    %v723 = vunpack.c.l.b16 %v434
    %v724 = vunpack.c.h.b16 %v434
    %v725 = vunpack.c.l.b16 %v435
    %v726 = vunpack.c.h.b16 %v435
    %v727 = vunpack.c.l.b16 %v436
    %v728 = vunpack.c.h.b16 %v436
    %v729 = vunpack.c.l.b16 %v437
    %v730 = vunpack.c.h.b16 %v437
    %v731 = vunpack.c.l.b16 %v438
    %v732 = vunpack.c.h.b16 %v438
    %v733 = vunpack.c.l.b16 %v439
    %v734 = vunpack.c.h.b16 %v439
    %v735 = vunpack.c.l.b16 %v440
    %v736 = vunpack.c.h.b16 %v440
    %v737 = vunpack.c.l.b16 %v441
    %v738 = vunpack.c.h.b16 %v441
    %v739 = vunpack.c.l.b16 %v442
    %v740 = vunpack.c.h.b16 %v442
    %v741 = vunpack.c.l.b16 %v443
    %v742 = vunpack.c.h.b16 %v443
    %v743 = vunpack.c.l.b16 %v444
    %v744 = vunpack.c.h.b16 %v444
    %v745 = vunpack.c.l.b16 %v445
    %v746 = vunpack.c.h.b16 %v445
    %v747 = vunpack.c.l.b16 %v446
    %v748 = vunpack.c.h.b16 %v446
    %v749 = vunpack.c.l.b16 %v447
    %v750 = vunpack.c.h.b16 %v447
    %v751 = vunpack.c.l.b16 %v448
    %v752 = vunpack.c.h.b16 %v448
    %v753 = vunpack.c.l.b16 %v449
    %v754 = vunpack.c.h.b16 %v449
    %v755 = vunpack.c.l.b16 %v450
    %v756 = vunpack.c.h.b16 %v450
    %v757 = vunpack.c.l.b16 %v451
    %v758 = vunpack.c.h.b16 %v451
    %v759 = vunpack.c.l.b16 %v452
    %v760 = vunpack.c.h.b16 %v452
    %v761 = vunpack.c.l.b16 %v453
    %v762 = vunpack.c.h.b16 %v453
    %v763 = vunpack.c.l.b16 %v454
    %v764 = vunpack.c.h.b16 %v454
    %v765 = vunpack.c.l.b16 %v455
    %v766 = vunpack.c.h.b16 %v455
    %v767 = vunpack.c.l.b16 %v456
    %v768 = vunpack.c.h.b16 %v456
    %v769 = vpack.c.b16 %v571, %v569
    %v770 = vpack.c.b16 %v572, %v570
    %v771 = vpack.c.b16 %v575, %v573
    %v772 = vpack.c.b16 %v576, %v574
    %v773 = vpack.c.b16 %v579, %v577
    %v774 = vpack.c.b16 %v580, %v578
    %v775 = vpack.c.b16 %v583, %v581
    %v776 = vpack.c.b16 %v584, %v582
    %v777 = vpack.c.b16 %v587, %v585
    %v778 = vpack.c.b16 %v588, %v586
    %v779 = vpack.c.b16 %v591, %v589
    %v780 = vpack.c.b16 %v592, %v590
    %v781 = vpack.c.b16 %v595, %v593
    %v782 = vpack.c.b16 %v596, %v594
    %v783 = vpack.c.b16 %v599, %v597
    %v784 = vpack.c.b16 %v600, %v598
    %v785 = vpack.c.b16 %v603, %v601
    %v786 = vpack.c.b16 %v604, %v602
    %v787 = vpack.c.b16 %v607, %v605
    %v788 = vpack.c.b16 %v608, %v606
    %v789 = vpack.c.b16 %v611, %v609
    %v790 = vpack.c.b16 %v612, %v610
    %v791 = vpack.c.b16 %v615, %v613
    %v792 = vpack.c.b16 %v616, %v614
    %v793 = vpack.c.b16 %v619, %v617
    %v794 = vpack.c.b16 %v620, %v618
    %v795 = vpack.c.b16 %v623, %v621
    %v796 = vpack.c.b16 %v624, %v622
    %v797 = vpack.c.b16 %v627, %v625
    %v798 = vpack.c.b16 %v628, %v626
    %v799 = vpack.c.b16 %v631, %v629
    %v800 = vpack.c.b16 %v632, %v630
    %v801 = vpack.c.b16 %v635, %v633
    %v802 = vpack.c.b16 %v636, %v634
    %v803 = vpack.c.b16 %v639, %v637
    %v804 = vpack.c.b16 %v640, %v638
    %v805 = vpack.c.b16 %v643, %v641
    %v806 = vpack.c.b16 %v644, %v642
    %v807 = vpack.c.b16 %v647, %v645
    %v808 = vpack.c.b16 %v648, %v646
    %v809 = vpack.c.b16 %v651, %v649
    %v810 = vpack.c.b16 %v652, %v650
    %v811 = vpack.c.b16 %v655, %v653
    %v812 = vpack.c.b16 %v656, %v654
    %v813 = vpack.c.b16 %v659, %v657
    %v814 = vpack.c.b16 %v660, %v658
    %v815 = vpack.c.b16 %v663, %v661
    %v816 = vpack.c.b16 %v664, %v662
    %v817 = vpack.c.b16 %v667, %v665
    %v818 = vpack.c.b16 %v668, %v666
    %v819 = vpack.c.b16 %v671, %v669
    %v820 = vpack.c.b16 %v672, %v670
    %v821 = vpack.c.b16 %v675, %v673
    %v822 = vpack.c.b16 %v676, %v674
    %v823 = vpack.c.b16 %v679, %v677
    %v824 = vpack.c.b16 %v680, %v678
    %v825 = vpack.c.b16 %v683, %v681
    %v826 = vpack.c.b16 %v684, %v682
    %v827 = vpack.c.b16 %v687, %v685
    %v828 = vpack.c.b16 %v688, %v686
    %v829 = vpack.c.b16 %v691, %v689
    %v830 = vpack.c.b16 %v692, %v690
    %v831 = vpack.c.b16 %v695, %v693
    %v832 = vpack.c.b16 %v696, %v694
    %v833 = vpack.c.b16 %v699, %v697
    %v834 = vpack.c.b16 %v700, %v698
    %v835 = vpack.c.b16 %v703, %v701
    %v836 = vpack.c.b16 %v704, %v702
    %v837 = vpack.c.b16 %v707, %v705
    %v838 = vpack.c.b16 %v708, %v706
    %v839 = vpack.c.b16 %v711, %v709
    %v840 = vpack.c.b16 %v712, %v710
    %v841 = vpack.c.b16 %v715, %v713
    %v842 = vpack.c.b16 %v716, %v714
    %v843 = vpack.c.b16 %v719, %v717
    %v844 = vpack.c.b16 %v720, %v718
    %v845 = vpack.c.b16 %v723, %v721
    %v846 = vpack.c.b16 %v724, %v722
    %v847 = vpack.c.b16 %v727, %v725
    %v848 = vpack.c.b16 %v728, %v726
    %v849 = vpack.c.b16 %v731, %v729
    %v850 = vpack.c.b16 %v732, %v730
    %v851 = vpack.c.b16 %v735, %v733
    %v852 = vpack.c.b16 %v736, %v734
    %v853 = vpack.c.b16 %v739, %v737
    %v854 = vpack.c.b16 %v740, %v738
    %v855 = vpack.c.b16 %v743, %v741
    %v856 = vpack.c.b16 %v744, %v742
    %v857 = vpack.c.b16 %v747, %v745
    %v858 = vpack.c.b16 %v748, %v746
    %v859 = vpack.c.b16 %v751, %v749
    %v860 = vpack.c.b16 %v752, %v750
    %v861 = vpack.c.b16 %v755, %v753
    %v862 = vpack.c.b16 %v756, %v754
    %v863 = vpack.c.b16 %v759, %v757
    %v864 = vpack.c.b16 %v760, %v758
    %v865 = vpack.c.b16 %v763, %v761
    %v866 = vpack.c.b16 %v764, %v762
    %v867 = vpack.c.b16 %v767, %v765
    %v868 = vpack.c.b16 %v768, %v766
    %v970 = vsel %vm162, %v356, 0
    %972 = vmatprep.subr.bf16.mxu0 %v770
    %973 = vmatpush1.bf16.msra.mxu0 %v769
    %974 = vmatprep.subr.bf16.mxu0 %v772
    %975 = vmatpush1.bf16.msra.mxu0 %v771
    %976 = vmatprep.subr.bf16.mxu0 %v774
    %977 = vmatpush1.bf16.msra.mxu0 %v773
    %978 = vmatprep.subr.bf16.mxu0 %v776
    %979 = vmatpush1.bf16.msra.mxu0 %v775
    %980 = vmatprep.subr.bf16.mxu0 %v778
    %981 = vmatpush1.bf16.msra.mxu0 %v777
    %982 = vmatprep.subr.bf16.mxu0 %v780
    %983 = vmatpush1.bf16.msra.mxu0 %v779
    %984 = vmatprep.subr.bf16.mxu0 %v782
    %985 = vmatpush1.bf16.msra.mxu0 %v781
    %986 = vmatprep.subr.bf16.mxu0 %v784
    %987 = vmatpush1.bf16.msra.mxu0 %v783
    %988 = vmatprep.subr.bf16.mxu0 %v786
    %989 = vmatpush1.bf16.msra.mxu0 %v785
    %990 = vmatprep.subr.bf16.mxu0 %v788
    %991 = vmatpush1.bf16.msra.mxu0 %v787
    %992 = vmatprep.subr.bf16.mxu0 %v790
    %993 = vmatpush1.bf16.msra.mxu0 %v789
    %994 = vmatprep.subr.bf16.mxu0 %v792
    %995 = vmatpush1.bf16.msra.mxu0 %v791
    %996 = vmatprep.subr.bf16.mxu0 %v794
    %997 = vmatpush1.bf16.msra.mxu0 %v793
    %998 = vmatprep.subr.bf16.mxu0 %v796
    %999 = vmatpush1.bf16.msra.mxu0 %v795
    %1000 = vmatprep.subr.bf16.mxu0 %v798
    %1001 = vmatpush1.bf16.msra.mxu0 %v797
    %1002 = vmatprep.subr.bf16.mxu0 %v800
    %1003 = vmatpush1.bf16.msra.mxu0 %v799
    %1004 = vmatprep.mubr.bf16.mxu0 %v351
    %1005 = vmatmul.mubr.bf16.gmra.mrb[0].mxu0 %v350
    %v1006 = vpop.f32.mrb[0].mxu0
    %v1007 = vadd.f32 %v462, %v1006
    %v1008 = vpop.f32.mrb[0].mxu0
    %v1009 = vadd.f32 %v466, %v1008
    %v1010 = vpop.f32.mrb[0].mxu0
    %v1011 = vpop.f32.mrb[0].mxu0
    %1012 = vdwg.mxu0
    %1013 = vmatprep.subr.bf16.mxu0 %v802
    %1014 = vmatpush1.bf16.msra.mxu0 %v801
    %1015 = vmatprep.subr.bf16.mxu0 %v804
    %1016 = vmatpush1.bf16.msra.mxu0 %v803
    %1017 = vmatprep.subr.bf16.mxu0 %v806
    %1018 = vmatpush1.bf16.msra.mxu0 %v805
    %1019 = vmatprep.subr.bf16.mxu0 %v808
    %1020 = vmatpush1.bf16.msra.mxu0 %v807
    %1021 = vmatprep.subr.bf16.mxu0 %v810
    %1022 = vmatpush1.bf16.msra.mxu0 %v809
    %1023 = vmatprep.subr.bf16.mxu0 %v812
    %1024 = vmatpush1.bf16.msra.mxu0 %v811
    %1025 = vmatprep.subr.bf16.mxu0 %v814
    %1026 = vmatpush1.bf16.msra.mxu0 %v813
    %1027 = vmatprep.subr.bf16.mxu0 %v816
    %1028 = vmatpush1.bf16.msra.mxu0 %v815
    %1029 = vmatprep.subr.bf16.mxu0 %v818
    %1030 = vmatpush1.bf16.msra.mxu0 %v817
    %1031 = vmatprep.subr.bf16.mxu0 %v820
    %1032 = vmatpush1.bf16.msra.mxu0 %v819
    %1033 = vmatprep.subr.bf16.mxu0 %v822
    %1034 = vmatpush1.bf16.msra.mxu0 %v821
    %1035 = vmatprep.subr.bf16.mxu0 %v824
    %1036 = vmatpush1.bf16.msra.mxu0 %v823
    %1037 = vmatprep.subr.bf16.mxu0 %v826
    %1038 = vmatpush1.bf16.msra.mxu0 %v825
    %1039 = vmatprep.subr.bf16.mxu0 %v828
    %1040 = vmatpush1.bf16.msra.mxu0 %v827
    %1041 = vmatprep.subr.bf16.mxu0 %v830
    %1042 = vmatpush1.bf16.msra.mxu0 %v829
    %1043 = vmatprep.subr.bf16.mxu0 %v832
    %1044 = vmatpush1.bf16.msra.mxu0 %v831
    %1045 = vmatprep.mubr.bf16.mxu0 %v353
    %1046 = vmatmul.mubr.bf16.gmra.mrb[0].mxu0 %v352
    %v1047 = vpop.f32.mrb[0].mxu0
    %v1048 = vadd.f32 %v1007, %v1047
    %v1049 = vpop.f32.mrb[0].mxu0
    %v1050 = vadd.f32 %v1009, %v1049
    %v1051 = vpop.f32.mrb[0].mxu0
    %v1052 = vpop.f32.mrb[0].mxu0
    %1053 = vdwg.mxu0
    %1054 = vmatprep.subr.bf16.mxu0 %v834
    %1055 = vmatpush1.bf16.msra.mxu0 %v833
    %1056 = vmatprep.subr.bf16.mxu0 %v836
    %1057 = vmatpush1.bf16.msra.mxu0 %v835
    %1058 = vmatprep.subr.bf16.mxu0 %v838
    %1059 = vmatpush1.bf16.msra.mxu0 %v837
    %1060 = vmatprep.subr.bf16.mxu0 %v840
    %1061 = vmatpush1.bf16.msra.mxu0 %v839
    %1062 = vmatprep.subr.bf16.mxu0 %v842
    %1063 = vmatpush1.bf16.msra.mxu0 %v841
    %1064 = vmatprep.subr.bf16.mxu0 %v844
    %1065 = vmatpush1.bf16.msra.mxu0 %v843
    %1066 = vmatprep.subr.bf16.mxu0 %v846
    %1067 = vmatpush1.bf16.msra.mxu0 %v845
    %1068 = vmatprep.subr.bf16.mxu0 %v848
    %1069 = vmatpush1.bf16.msra.mxu0 %v847
    %1070 = vmatprep.subr.bf16.mxu0 %v850
    %1071 = vmatpush1.bf16.msra.mxu0 %v849
    %1072 = vmatprep.subr.bf16.mxu0 %v852
    %1073 = vmatpush1.bf16.msra.mxu0 %v851
    %1074 = vmatprep.subr.bf16.mxu0 %v854
    %1075 = vmatpush1.bf16.msra.mxu0 %v853
    %1076 = vmatprep.subr.bf16.mxu0 %v856
    %1077 = vmatpush1.bf16.msra.mxu0 %v855
    %1078 = vmatprep.subr.bf16.mxu0 %v858
    %1079 = vmatpush1.bf16.msra.mxu0 %v857
    %1080 = vmatprep.subr.bf16.mxu0 %v860
    %1081 = vmatpush1.bf16.msra.mxu0 %v859
    %1082 = vmatprep.subr.bf16.mxu0 %v862
    %1083 = vmatpush1.bf16.msra.mxu0 %v861
    %1084 = vmatprep.subr.bf16.mxu0 %v864
    %1085 = vmatpush1.bf16.msra.mxu0 %v863
    %1086 = vmatprep.mubr.bf16.mxu0 %v355
    %1087 = vmatmul.mubr.bf16.gmra.mrb[0].mxu0 %v354
    %v1088 = vpop.f32.mrb[0].mxu0
    %v1089 = vadd.f32 %v1048, %v1088
    %v1090 = vpop.f32.mrb[0].mxu0
    %v1091 = vadd.f32 %v1050, %v1090
    %v1092 = vpop.f32.mrb[0].mxu0
    %v1093 = vpop.f32.mrb[0].mxu0
    %1094 = vdwg.mxu0
    %1095 = vmatprep.subr.bf16.mxu0 %v866
    %1096 = vmatpush1.bf16.msra.mxu0 %v865
    %1097 = vmatprep.subr.bf16.mxu0 %v868
    %1098 = vmatpush1.bf16.msra.mxu0 %v867
    %1099 = vmatprep.subr.bf16.mxu0 0
    %1100 = vmatpush1.bf16.msra.mxu0 0
    %1101 = vmatprep.subr.bf16.mxu0 0
    %1102 = vmatpush1.bf16.msra.mxu0 0
    %1103 = vmatprep.subr.bf16.mxu0 0
    %1104 = vmatpush1.bf16.msra.mxu0 0
    %1105 = vmatprep.subr.bf16.mxu0 0
    %1106 = vmatpush1.bf16.msra.mxu0 0
    %1107 = vmatprep.subr.bf16.mxu0 0
    %1108 = vmatpush1.bf16.msra.mxu0 0
    %1109 = vmatprep.subr.bf16.mxu0 0
    %1110 = vmatpush1.bf16.msra.mxu0 0
    %1111 = vmatprep.subr.bf16.mxu0 0
    %1112 = vmatpush1.bf16.msra.mxu0 0
    %1113 = vmatprep.subr.bf16.mxu0 0
    %1114 = vmatpush1.bf16.msra.mxu0 0
    %1115 = vmatprep.subr.bf16.mxu0 0
    %1116 = vmatpush1.bf16.msra.mxu0 0
    %1117 = vmatprep.subr.bf16.mxu0 0
    %1118 = vmatpush1.bf16.msra.mxu0 0
    %1119 = vmatprep.subr.bf16.mxu0 0
    %1120 = vmatpush1.bf16.msra.mxu0 0
    %1121 = vmatprep.subr.bf16.mxu0 0
    %1122 = vmatpush1.bf16.msra.mxu0 0
    %1123 = vmatprep.subr.bf16.mxu0 0
    %1124 = vmatpush1.bf16.msra.mxu0 0
    %1125 = vmatprep.subr.bf16.mxu0 0
    %1126 = vmatpush1.bf16.msra.mxu0 0
    %1127 = vmatprep.mubr.bf16.mxu0 0
    %1128 = vmatmul.mubr.bf16.gmra.mrb[0].mxu0 %v970
    %v1129 = vpop.f32.mrb[0].mxu0
    %v1130 = vadd.f32 %v1089, %v1129
    %v1131 = vpop.f32.mrb[0].mxu0
    %v1132 = vadd.f32 %v1091, %v1131
    %v1133 = vpop.f32.mrb[0].mxu0
    %v1134 = vpop.f32.mrb[0].mxu0
    %1135 = vdwg.mxu0
    %vm1136 = vcmp.ge.f32.partialorder %v1130, 0.0
    %vm1137 = vcmp.ge.f32.partialorder %v1132, 0.0
    %v1138 = vmul.f32 %v1130, 0.2
    %v1139 = vmul.f32 %v1132, 0.2
    %v1140 = vsel %vm1136, %v1130, %v1138
    %v1141 = vsel %vm1137, %v1132, %v1139
    %v1142 = vpack.c.bf16 %v1140, %v1140
    %v1143 = vpack.c.bf16 %v1141, %v1141
    %v1144 = vld [vmem:[%s5] sm:$0xf]
    %v1145 = vld [vmem:[%s5 + $0x4] sm:$0xf]
    %v1146 = vld [vmem:[%s5 + $0x8] sm:$0xf]
    %v1147 = vld [vmem:[%s5 + $0xc] sm:$0xf]
    %v1148 = vld [vmem:[%s5 + $0x10] sm:$0xf]
    %v1149 = vld [vmem:[%s5 + $0x14] sm:$0xf]
    %v1150 = vld [vmem:[%s5 + $0x18] sm:$0xf]
    %v1151 = vld [vmem:[%s5 + $0x1c] sm:$0xf]
    %v1152 = vld [vmem:[%s5 + $0x20] sm:$0xf]
    %v1153 = vld [vmem:[%s5 + $0x24] sm:$0xf]
    %v1154 = vld [vmem:[%s5 + $0x28] sm:$0xf]
    %v1155 = vld [vmem:[%s5 + $0x2c] sm:$0xf]
    %v1156 = vld [vmem:[%s5 + $0x30] sm:$0xf]
    %v1157 = vld [vmem:[%s5 + $0x34] sm:$0xf]
    %v1158 = vld [vmem:[%s5 + $0x38] sm:$0xf]
    %v1159 = vld [vmem:[%s5 + $0x3c] sm:$0xf]
    %v1160 = vld [vmem:[%s5 + $0x40] sm:$0xf]
    %v1161 = vld [vmem:[%s5 + $0x44] sm:$0xf]
    %v1162 = vld [vmem:[%s5 + $0x48] sm:$0xf]
    %v1163 = vld [vmem:[%s5 + $0x4c] sm:$0xf]
    %v1164 = vld [vmem:[%s5 + $0x50] sm:$0xf]
    %v1165 = vld [vmem:[%s5 + $0x54] sm:$0xf]
    %v1166 = vld [vmem:[%s5 + $0x58] sm:$0xf]
    %v1167 = vld [vmem:[%s5 + $0x5c] sm:$0xf]
    %v1168 = vld [vmem:[%s5 + $0x60] sm:$0xf]
    %v1169 = vld [vmem:[%s5 + $0x64] sm:$0xf]
    %v1170 = vld [vmem:[%s5 + $0x68] sm:$0xf]
    %v1171 = vld [vmem:[%s5 + $0x6c] sm:$0xf]
    %v1172 = vld [vmem:[%s5 + $0x70] sm:$0xf]
    %v1173 = vld [vmem:[%s5 + $0x74] sm:$0xf]
    %v1174 = vld [vmem:[%s5 + $0x78] sm:$0xf]
    %v1175 = vld [vmem:[%s5 + $0x7c] sm:$0xf]
    %v1176 = vld [vmem:[%s6] sm:$0x1]
    %v1178 = vlaneseq
    %v1179 = vshrl.u32 %v1178, 7
    %v1180 = vsub.s32 0, %v1179
    %v1181 = vrot.slane %v1176, %v1180
    %v1215 = vunpack.c.l.b16 %v1144
    %v1216 = vunpack.c.l.b16 %v1145
    %v1217 = vunpack.c.l.b16 %v1146
    %v1218 = vunpack.c.l.b16 %v1147
    %v1219 = vunpack.c.l.b16 %v1148
    %v1220 = vunpack.c.l.b16 %v1149
    %v1221 = vunpack.c.l.b16 %v1150
    %v1222 = vunpack.c.l.b16 %v1151
    %v1223 = vunpack.c.l.b16 %v1152
    %v1224 = vunpack.c.l.b16 %v1153
    %v1225 = vunpack.c.l.b16 %v1154
    %v1226 = vunpack.c.l.b16 %v1155
    %v1227 = vunpack.c.l.b16 %v1156
    %v1228 = vunpack.c.l.b16 %v1157
    %v1229 = vunpack.c.l.b16 %v1158
    %v1230 = vunpack.c.l.b16 %v1159
    %v1231 = vunpack.c.l.b16 %v1160
    %v1232 = vunpack.c.l.b16 %v1161
    %v1233 = vunpack.c.l.b16 %v1162
    %v1234 = vunpack.c.l.b16 %v1163
    %v1235 = vunpack.c.l.b16 %v1164
    %v1236 = vunpack.c.l.b16 %v1165
    %v1237 = vunpack.c.l.b16 %v1166
    %v1238 = vunpack.c.l.b16 %v1167
    %v1239 = vunpack.c.l.b16 %v1168
    %v1240 = vunpack.c.l.b16 %v1169
    %v1241 = vunpack.c.l.b16 %v1170
    %v1242 = vunpack.c.l.b16 %v1171
    %v1243 = vunpack.c.l.b16 %v1172
    %v1244 = vunpack.c.l.b16 %v1173
    %v1245 = vunpack.c.l.b16 %v1174
    %v1246 = vunpack.c.l.b16 %v1175
    %v1247 = vpack.c.b16 %v1216, %v1215
    %v1248 = vpack.c.b16 %v1218, %v1217
    %v1249 = vpack.c.b16 %v1220, %v1219
    %v1250 = vpack.c.b16 %v1222, %v1221
    %v1251 = vpack.c.b16 %v1224, %v1223
    %v1252 = vpack.c.b16 %v1226, %v1225
    %v1253 = vpack.c.b16 %v1228, %v1227
    %v1254 = vpack.c.b16 %v1230, %v1229
    %v1255 = vpack.c.b16 %v1232, %v1231
    %v1256 = vpack.c.b16 %v1234, %v1233
    %v1257 = vpack.c.b16 %v1236, %v1235
    %v1258 = vpack.c.b16 %v1238, %v1237
    %v1259 = vpack.c.b16 %v1240, %v1239
    %v1260 = vpack.c.b16 %v1242, %v1241
    %v1261 = vpack.c.b16 %v1244, %v1243
    %v1262 = vpack.c.b16 %v1246, %v1245
    %1279 = vmatprep.subr.bf16.mxu0 0
    %1280 = vmatpush1.bf16.msra.mxu0 %v1247
    %1281 = vmatprep.subr.bf16.mxu0 0
    %1282 = vmatpush1.bf16.msra.mxu0 %v1248
    %1283 = vmatprep.subr.bf16.mxu0 0
    %1284 = vmatpush1.bf16.msra.mxu0 %v1249
    %1285 = vmatprep.subr.bf16.mxu0 0
    %1286 = vmatpush1.bf16.msra.mxu0 %v1250
    %1287 = vmatprep.subr.bf16.mxu0 0
    %1288 = vmatpush1.bf16.msra.mxu0 %v1251
    %1289 = vmatprep.subr.bf16.mxu0 0
    %1290 = vmatpush1.bf16.msra.mxu0 %v1252
    %1291 = vmatprep.subr.bf16.mxu0 0
    %1292 = vmatpush1.bf16.msra.mxu0 %v1253
    %1293 = vmatprep.subr.bf16.mxu0 0
    %1294 = vmatpush1.bf16.msra.mxu0 %v1254
    %1295 = vmatprep.subr.bf16.mxu0 0
    %1296 = vmatpush1.bf16.msra.mxu0 %v1255
    %1297 = vmatprep.subr.bf16.mxu0 0
    %1298 = vmatpush1.bf16.msra.mxu0 %v1256
    %1299 = vmatprep.subr.bf16.mxu0 0
    %1300 = vmatpush1.bf16.msra.mxu0 %v1257
    %1301 = vmatprep.subr.bf16.mxu0 0
    %1302 = vmatpush1.bf16.msra.mxu0 %v1258
    %1303 = vmatprep.subr.bf16.mxu0 0
    %1304 = vmatpush1.bf16.msra.mxu0 %v1259
    %1305 = vmatprep.subr.bf16.mxu0 0
    %1306 = vmatpush1.bf16.msra.mxu0 %v1260
    %1307 = vmatprep.subr.bf16.mxu0 0
    %1308 = vmatpush1.bf16.msra.mxu0 %v1261
    %1309 = vmatprep.subr.bf16.mxu0 0
    %1310 = vmatpush1.bf16.msra.mxu0 %v1262
    %1311 = vmatprep.mubr.bf16.mxu0 %v1143
    %1312 = vmatmul.mubr.bf16.gmra.mrb[0].mxu0 %v1142
    %v1313 = vpop.f32.mrb[0].mxu0
    %v1314 = vadd.f32 %v1181, %v1313
    %v1315 = vpop.f32.mrb[0].mxu0
    %v1316 = vpop.f32.mrb[0].mxu0
    %v1317 = vpop.f32.mrb[0].mxu0
    %1318 = vdwg.mxu0
    %vm1319 = vcmask 64512
    %1320 = vst.msk [vmem:[#allocation2] sm:$0xff] %vm1319, %v1314
    %v1321 = vld [vmem:[%s7] sm:$0xff]
    %v1322 = vld [vmem:[%s7 + $0x8] sm:$0xff]
    %v1323 = vld [vmem:[%s7 + $0x10] sm:$0xff]
    %v1324 = vld [vmem:[%s7 + $0x18] sm:$0xff]
    %v1325 = vld [vmem:[%s7 + $0x20] sm:$0xff]
    %v1326 = vld [vmem:[%s7 + $0x28] sm:$0xff]
    %v1327 = vld [vmem:[%s7 + $0x30] sm:$0xff]
    %v1328 = vld [vmem:[%s7 + $0x38] sm:$0xff]
    %v1329 = vld [vmem:[%s7 + $0x40] sm:$0xff]
    %v1330 = vld [vmem:[%s7 + $0x48] sm:$0xff]
    %v1331 = vld [vmem:[%s7 + $0x50] sm:$0xff]
    %v1332 = vld [vmem:[%s7 + $0x58] sm:$0xff]
    %v1333 = vld [vmem:[%s7 + $0x60] sm:$0xff]
    %v1334 = vld [vmem:[%s7 + $0x68] sm:$0xff]
    %v1335 = vld [vmem:[%s7 + $0x70] sm:$0xff]
    %v1336 = vld [vmem:[%s7 + $0x78] sm:$0xff]
    %v1337 = vld [vmem:[%s7 + $0x80] sm:$0xff]
    %v1338 = vld [vmem:[%s7 + $0x88] sm:$0xff]
    %v1339 = vld [vmem:[%s7 + $0x90] sm:$0xff]
    %v1340 = vld [vmem:[%s7 + $0x98] sm:$0xff]
    %v1341 = vld [vmem:[%s7 + $0xa0] sm:$0xff]
    %v1342 = vld [vmem:[%s7 + $0xa8] sm:$0xff]
    %v1343 = vld [vmem:[%s7 + $0xb0] sm:$0xff]
    %v1344 = vld [vmem:[%s7 + $0xb8] sm:$0xff]
    %v1345 = vld [vmem:[%s7 + $0xc0] sm:$0xff]
    %v1346 = vld [vmem:[%s7 + $0xc8] sm:$0xff]
    %v1347 = vld [vmem:[%s7 + $0xd0] sm:$0xff]
    %v1348 = vld [vmem:[%s7 + $0xd8] sm:$0xff]
    %v1349 = vld [vmem:[%s7 + $0xe0] sm:$0xff]
    %v1350 = vld [vmem:[%s7 + $0xe8] sm:$0xff]
    %v1351 = vld [vmem:[%s7 + $0xf0] sm:$0xff]
    %v1352 = vld [vmem:[%s7 + $0xf8] sm:$0xff]
    %v1353 = vld [vmem:[%s7 + $0x100] sm:$0xff]
    %v1354 = vld [vmem:[%s7 + $0x108] sm:$0xff]
    %v1355 = vld [vmem:[%s7 + $0x110] sm:$0xff]
    %v1356 = vld [vmem:[%s7 + $0x118] sm:$0xff]
    %v1357 = vld [vmem:[%s7 + $0x120] sm:$0xff]
    %v1358 = vld [vmem:[%s7 + $0x128] sm:$0xff]
    %v1359 = vld [vmem:[%s7 + $0x130] sm:$0xff]
    %v1360 = vld [vmem:[%s7 + $0x138] sm:$0xff]
    %v1361 = vld [vmem:[%s7 + $0x140] sm:$0xff]
    %v1362 = vld [vmem:[%s7 + $0x148] sm:$0xff]
    %v1363 = vld [vmem:[%s7 + $0x150] sm:$0xff]
    %v1364 = vld [vmem:[%s7 + $0x158] sm:$0xff]
    %v1365 = vld [vmem:[%s7 + $0x160] sm:$0xff]
    %v1366 = vld [vmem:[%s7 + $0x168] sm:$0xff]
    %v1367 = vld [vmem:[%s7 + $0x170] sm:$0xff]
    %v1368 = vld [vmem:[%s7 + $0x178] sm:$0xff]
    %v1369 = vld [vmem:[%s7 + $0x180] sm:$0xff]
    %v1370 = vld [vmem:[%s7 + $0x188] sm:$0xff]
    %v1371 = vld [vmem:[%s7 + $0x190] sm:$0xff]
    %v1372 = vld [vmem:[%s7 + $0x198] sm:$0xff]
    %v1373 = vld [vmem:[%s7 + $0x1a0] sm:$0xff]
    %v1374 = vld [vmem:[%s7 + $0x1a8] sm:$0xff]
    %v1375 = vld [vmem:[%s7 + $0x1b0] sm:$0xff]
    %v1376 = vld [vmem:[%s7 + $0x1b8] sm:$0xff]
    %v1377 = vld [vmem:[%s7 + $0x1c0] sm:$0xff]
    %v1378 = vld [vmem:[%s7 + $0x1c8] sm:$0xff]
    %v1379 = vld [vmem:[%s7 + $0x1d0] sm:$0xff]
    %v1380 = vld [vmem:[%s7 + $0x1d8] sm:$0xff]
    %v1381 = vld [vmem:[%s7 + $0x1e0] sm:$0xff]
    %v1382 = vld [vmem:[%s7 + $0x1e8] sm:$0xff]
    %v1383 = vld [vmem:[%s7 + $0x1f0] sm:$0xff]
    %v1384 = vld [vmem:[%s7 + $0x1f8] sm:$0xff]
    %v1385 = vld [vmem:[%s7 + $0x200] sm:$0xff]
    %v1386 = vld [vmem:[%s7 + $0x208] sm:$0xff]
    %v1387 = vld [vmem:[%s7 + $0x210] sm:$0xff]
    %v1388 = vld [vmem:[%s7 + $0x218] sm:$0xff]
    %v1389 = vld [vmem:[%s7 + $0x220] sm:$0xff]
    %v1390 = vld [vmem:[%s7 + $0x228] sm:$0xff]
    %v1391 = vld [vmem:[%s7 + $0x230] sm:$0xff]
    %v1392 = vld [vmem:[%s7 + $0x238] sm:$0xff]
    %v1393 = vld [vmem:[%s7 + $0x240] sm:$0xff]
    %v1394 = vld [vmem:[%s7 + $0x248] sm:$0xff]
    %v1395 = vld [vmem:[%s7 + $0x250] sm:$0xff]
    %v1396 = vld [vmem:[%s7 + $0x258] sm:$0xff]
    %v1397 = vld [vmem:[%s7 + $0x260] sm:$0xff]
    %v1398 = vld [vmem:[%s7 + $0x268] sm:$0xff]
    %v1399 = vld [vmem:[%s7 + $0x270] sm:$0xff]
    %v1400 = vld [vmem:[%s7 + $0x278] sm:$0xff]
    %v1401 = vld [vmem:[%s7 + $0x280] sm:$0xff]
    %v1402 = vld [vmem:[%s7 + $0x288] sm:$0xff]
    %v1403 = vld [vmem:[%s7 + $0x290] sm:$0xff]
    %v1404 = vld [vmem:[%s7 + $0x298] sm:$0xff]
    %v1405 = vld [vmem:[%s7 + $0x2a0] sm:$0xff]
    %v1406 = vld [vmem:[%s7 + $0x2a8] sm:$0xff]
    %v1407 = vld [vmem:[%s7 + $0x2b0] sm:$0xff]
    %v1408 = vld [vmem:[%s7 + $0x2b8] sm:$0xff]
    %v1409 = vld [vmem:[%s7 + $0x2c0] sm:$0xff]
    %v1410 = vld [vmem:[%s7 + $0x2c8] sm:$0xff]
    %v1411 = vld [vmem:[%s7 + $0x2d0] sm:$0xff]
    %v1412 = vld [vmem:[%s7 + $0x2d8] sm:$0xff]
    %v1413 = vld [vmem:[%s7 + $0x2e0] sm:$0xff]
    %v1414 = vld [vmem:[%s7 + $0x2e8] sm:$0xff]
    %v1415 = vld [vmem:[%s7 + $0x2f0] sm:$0xff]
    %v1416 = vld [vmem:[%s7 + $0x2f8] sm:$0xff]
    %v1417 = vld [vmem:[%s8] sm:$0xff]
    %v1418 = vld [vmem:[%s8 + $0x8] sm:$0xff]
    %v1419 = vld [vmem:[%s8 + $0x10] sm:$0xff]
    %v1420 = vld [vmem:[%s8 + $0x18] sm:$0xff]
    %v1421 = vld [vmem:[%s8 + $0x20] sm:$0xff]
    %v1422 = vld [vmem:[%s8 + $0x28] sm:$0xff]
    %v1423 = vld [vmem:[%s8 + $0x30] sm:$0xff]
    %v1424 = vld [vmem:[%s8 + $0x38] sm:$0xff]
    %v1425 = vld [vmem:[%s8 + $0x40] sm:$0xff]
    %v1426 = vld [vmem:[%s8 + $0x48] sm:$0xff]
    %v1427 = vld [vmem:[%s8 + $0x50] sm:$0xff]
    %v1428 = vld [vmem:[%s8 + $0x58] sm:$0xff]
    %v1441 = vlaneseq
    %v1442 = vshrl.u32 %v1441, 7
    %v1443 = vsub.s32 0, %v1442
    %v1444 = vrot.slane %v1417, %v1443
    %v1445 = vlaneseq
    %v1446 = vshrl.u32 %v1445, 7
    %v1447 = vsub.s32 1, %v1446
    %v1448 = vrot.slane %v1417, %v1447
    %v1449 = vlaneseq
    %v1450 = vshrl.u32 %v1449, 7
    %v1451 = vsub.s32 2, %v1450
    %v1452 = vrot.slane %v1417, %v1451
    %v1453 = vlaneseq
    %v1454 = vshrl.u32 %v1453, 7
    %v1455 = vsub.s32 3, %v1454
    %v1456 = vrot.slane %v1417, %v1455
    %v1457 = vlaneseq
    %v1458 = vshrl.u32 %v1457, 7
    %v1459 = vsub.s32 4, %v1458
    %v1460 = vrot.slane %v1417, %v1459
    %v1461 = vlaneseq
    %v1462 = vshrl.u32 %v1461, 7
    %v1463 = vsub.s32 5, %v1462
    %v1464 = vrot.slane %v1417, %v1463
    %v1465 = vlaneseq
    %v1466 = vshrl.u32 %v1465, 7
    %v1467 = vsub.s32 6, %v1466
    %v1468 = vrot.slane %v1417, %v1467
    %v1469 = vlaneseq
    %v1470 = vshrl.u32 %v1469, 7
    %v1471 = vsub.s32 7, %v1470
    %v1472 = vrot.slane %v1417, %v1471
    %v1473 = vlaneseq
    %v1474 = vshrl.u32 %v1473, 7
    %v1475 = vsub.s32 0, %v1474
    %v1476 = vrot.slane %v1418, %v1475
    %v1477 = vlaneseq
    %v1478 = vshrl.u32 %v1477, 7
    %v1479 = vsub.s32 1, %v1478
    %v1480 = vrot.slane %v1418, %v1479
    %v1481 = vlaneseq
    %v1482 = vshrl.u32 %v1481, 7
    %v1483 = vsub.s32 2, %v1482
    %v1484 = vrot.slane %v1418, %v1483
    %v1485 = vlaneseq
    %v1486 = vshrl.u32 %v1485, 7
    %v1487 = vsub.s32 3, %v1486
    %v1488 = vrot.slane %v1418, %v1487
    %v1489 = vlaneseq
    %v1490 = vshrl.u32 %v1489, 7
    %v1491 = vsub.s32 4, %v1490
    %v1492 = vrot.slane %v1418, %v1491
    %v1493 = vlaneseq
    %v1494 = vshrl.u32 %v1493, 7
    %v1495 = vsub.s32 5, %v1494
    %v1496 = vrot.slane %v1418, %v1495
    %v1497 = vlaneseq
    %v1498 = vshrl.u32 %v1497, 7
    %v1499 = vsub.s32 6, %v1498
    %v1500 = vrot.slane %v1418, %v1499
    %v1501 = vlaneseq
    %v1502 = vshrl.u32 %v1501, 7
    %v1503 = vsub.s32 7, %v1502
    %v1504 = vrot.slane %v1418, %v1503
    %v1505 = vlaneseq
    %v1506 = vshrl.u32 %v1505, 7
    %v1507 = vsub.s32 0, %v1506
    %v1508 = vrot.slane %v1419, %v1507
    %v1509 = vlaneseq
    %v1510 = vshrl.u32 %v1509, 7
    %v1511 = vsub.s32 1, %v1510
    %v1512 = vrot.slane %v1419, %v1511
    %v1513 = vlaneseq
    %v1514 = vshrl.u32 %v1513, 7
    %v1515 = vsub.s32 2, %v1514
    %v1516 = vrot.slane %v1419, %v1515
    %v1517 = vlaneseq
    %v1518 = vshrl.u32 %v1517, 7
    %v1519 = vsub.s32 3, %v1518
    %v1520 = vrot.slane %v1419, %v1519
    %v1521 = vlaneseq
    %v1522 = vshrl.u32 %v1521, 7
    %v1523 = vsub.s32 4, %v1522
    %v1524 = vrot.slane %v1419, %v1523
    %v1525 = vlaneseq
    %v1526 = vshrl.u32 %v1525, 7
    %v1527 = vsub.s32 5, %v1526
    %v1528 = vrot.slane %v1419, %v1527
    %v1529 = vlaneseq
    %v1530 = vshrl.u32 %v1529, 7
    %v1531 = vsub.s32 6, %v1530
    %v1532 = vrot.slane %v1419, %v1531
    %v1533 = vlaneseq
    %v1534 = vshrl.u32 %v1533, 7
    %v1535 = vsub.s32 7, %v1534
    %v1536 = vrot.slane %v1419, %v1535
    %v1537 = vlaneseq
    %v1538 = vshrl.u32 %v1537, 7
    %v1539 = vsub.s32 0, %v1538
    %v1540 = vrot.slane %v1420, %v1539
    %v1541 = vlaneseq
    %v1542 = vshrl.u32 %v1541, 7
    %v1543 = vsub.s32 1, %v1542
    %v1544 = vrot.slane %v1420, %v1543
    %v1545 = vlaneseq
    %v1546 = vshrl.u32 %v1545, 7
    %v1547 = vsub.s32 2, %v1546
    %v1548 = vrot.slane %v1420, %v1547
    %v1549 = vlaneseq
    %v1550 = vshrl.u32 %v1549, 7
    %v1551 = vsub.s32 3, %v1550
    %v1552 = vrot.slane %v1420, %v1551
    %v1553 = vlaneseq
    %v1554 = vshrl.u32 %v1553, 7
    %v1555 = vsub.s32 4, %v1554
    %v1556 = vrot.slane %v1420, %v1555
    %v1557 = vlaneseq
    %v1558 = vshrl.u32 %v1557, 7
    %v1559 = vsub.s32 5, %v1558
    %v1560 = vrot.slane %v1420, %v1559
    %v1561 = vlaneseq
    %v1562 = vshrl.u32 %v1561, 7
    %v1563 = vsub.s32 6, %v1562
    %v1564 = vrot.slane %v1420, %v1563
    %v1565 = vlaneseq
    %v1566 = vshrl.u32 %v1565, 7
    %v1567 = vsub.s32 7, %v1566
    %v1568 = vrot.slane %v1420, %v1567
    %v1569 = vlaneseq
    %v1570 = vshrl.u32 %v1569, 7
    %v1571 = vsub.s32 0, %v1570
    %v1572 = vrot.slane %v1421, %v1571
    %v1573 = vlaneseq
    %v1574 = vshrl.u32 %v1573, 7
    %v1575 = vsub.s32 1, %v1574
    %v1576 = vrot.slane %v1421, %v1575
    %v1577 = vlaneseq
    %v1578 = vshrl.u32 %v1577, 7
    %v1579 = vsub.s32 2, %v1578
    %v1580 = vrot.slane %v1421, %v1579
    %v1581 = vlaneseq
    %v1582 = vshrl.u32 %v1581, 7
    %v1583 = vsub.s32 3, %v1582
    %v1584 = vrot.slane %v1421, %v1583
    %v1585 = vlaneseq
    %v1586 = vshrl.u32 %v1585, 7
    %v1587 = vsub.s32 4, %v1586
    %v1588 = vrot.slane %v1421, %v1587
    %v1589 = vlaneseq
    %v1590 = vshrl.u32 %v1589, 7
    %v1591 = vsub.s32 5, %v1590
    %v1592 = vrot.slane %v1421, %v1591
    %v1593 = vlaneseq
    %v1594 = vshrl.u32 %v1593, 7
    %v1595 = vsub.s32 6, %v1594
    %v1596 = vrot.slane %v1421, %v1595
    %v1597 = vlaneseq
    %v1598 = vshrl.u32 %v1597, 7
    %v1599 = vsub.s32 7, %v1598
    %v1600 = vrot.slane %v1421, %v1599
    %v1601 = vlaneseq
    %v1602 = vshrl.u32 %v1601, 7
    %v1603 = vsub.s32 0, %v1602
    %v1604 = vrot.slane %v1422, %v1603
    %v1605 = vlaneseq
    %v1606 = vshrl.u32 %v1605, 7
    %v1607 = vsub.s32 1, %v1606
    %v1608 = vrot.slane %v1422, %v1607
    %v1609 = vlaneseq
    %v1610 = vshrl.u32 %v1609, 7
    %v1611 = vsub.s32 2, %v1610
    %v1612 = vrot.slane %v1422, %v1611
    %v1613 = vlaneseq
    %v1614 = vshrl.u32 %v1613, 7
    %v1615 = vsub.s32 3, %v1614
    %v1616 = vrot.slane %v1422, %v1615
    %v1617 = vlaneseq
    %v1618 = vshrl.u32 %v1617, 7
    %v1619 = vsub.s32 4, %v1618
    %v1620 = vrot.slane %v1422, %v1619
    %v1621 = vlaneseq
    %v1622 = vshrl.u32 %v1621, 7
    %v1623 = vsub.s32 5, %v1622
    %v1624 = vrot.slane %v1422, %v1623
    %v1625 = vlaneseq
    %v1626 = vshrl.u32 %v1625, 7
    %v1627 = vsub.s32 6, %v1626
    %v1628 = vrot.slane %v1422, %v1627
    %v1629 = vlaneseq
    %v1630 = vshrl.u32 %v1629, 7
    %v1631 = vsub.s32 7, %v1630
    %v1632 = vrot.slane %v1422, %v1631
    %v1633 = vlaneseq
    %v1634 = vshrl.u32 %v1633, 7
    %v1635 = vsub.s32 0, %v1634
    %v1636 = vrot.slane %v1423, %v1635
    %v1637 = vlaneseq
    %v1638 = vshrl.u32 %v1637, 7
    %v1639 = vsub.s32 1, %v1638
    %v1640 = vrot.slane %v1423, %v1639
    %v1641 = vlaneseq
    %v1642 = vshrl.u32 %v1641, 7
    %v1643 = vsub.s32 2, %v1642
    %v1644 = vrot.slane %v1423, %v1643
    %v1645 = vlaneseq
    %v1646 = vshrl.u32 %v1645, 7
    %v1647 = vsub.s32 3, %v1646
    %v1648 = vrot.slane %v1423, %v1647
    %v1649 = vlaneseq
    %v1650 = vshrl.u32 %v1649, 7
    %v1651 = vsub.s32 4, %v1650
    %v1652 = vrot.slane %v1423, %v1651
    %v1653 = vlaneseq
    %v1654 = vshrl.u32 %v1653, 7
    %v1655 = vsub.s32 5, %v1654
    %v1656 = vrot.slane %v1423, %v1655
    %v1657 = vlaneseq
    %v1658 = vshrl.u32 %v1657, 7
    %v1659 = vsub.s32 6, %v1658
    %v1660 = vrot.slane %v1423, %v1659
    %v1661 = vlaneseq
    %v1662 = vshrl.u32 %v1661, 7
    %v1663 = vsub.s32 7, %v1662
    %v1664 = vrot.slane %v1423, %v1663
    %v1665 = vlaneseq
    %v1666 = vshrl.u32 %v1665, 7
    %v1667 = vsub.s32 0, %v1666
    %v1668 = vrot.slane %v1424, %v1667
    %v1669 = vlaneseq
    %v1670 = vshrl.u32 %v1669, 7
    %v1671 = vsub.s32 1, %v1670
    %v1672 = vrot.slane %v1424, %v1671
    %v1673 = vlaneseq
    %v1674 = vshrl.u32 %v1673, 7
    %v1675 = vsub.s32 2, %v1674
    %v1676 = vrot.slane %v1424, %v1675
    %v1677 = vlaneseq
    %v1678 = vshrl.u32 %v1677, 7
    %v1679 = vsub.s32 3, %v1678
    %v1680 = vrot.slane %v1424, %v1679
    %v1681 = vlaneseq
    %v1682 = vshrl.u32 %v1681, 7
    %v1683 = vsub.s32 4, %v1682
    %v1684 = vrot.slane %v1424, %v1683
    %v1685 = vlaneseq
    %v1686 = vshrl.u32 %v1685, 7
    %v1687 = vsub.s32 5, %v1686
    %v1688 = vrot.slane %v1424, %v1687
    %v1689 = vlaneseq
    %v1690 = vshrl.u32 %v1689, 7
    %v1691 = vsub.s32 6, %v1690
    %v1692 = vrot.slane %v1424, %v1691
    %v1693 = vlaneseq
    %v1694 = vshrl.u32 %v1693, 7
    %v1695 = vsub.s32 7, %v1694
    %v1696 = vrot.slane %v1424, %v1695
    %v1697 = vlaneseq
    %v1698 = vshrl.u32 %v1697, 7
    %v1699 = vsub.s32 0, %v1698
    %v1700 = vrot.slane %v1425, %v1699
    %v1701 = vlaneseq
    %v1702 = vshrl.u32 %v1701, 7
    %v1703 = vsub.s32 1, %v1702
    %v1704 = vrot.slane %v1425, %v1703
    %v1705 = vlaneseq
    %v1706 = vshrl.u32 %v1705, 7
    %v1707 = vsub.s32 2, %v1706
    %v1708 = vrot.slane %v1425, %v1707
    %v1709 = vlaneseq
    %v1710 = vshrl.u32 %v1709, 7
    %v1711 = vsub.s32 3, %v1710
    %v1712 = vrot.slane %v1425, %v1711
    %v1713 = vlaneseq
    %v1714 = vshrl.u32 %v1713, 7
    %v1715 = vsub.s32 4, %v1714
    %v1716 = vrot.slane %v1425, %v1715
    %v1717 = vlaneseq
    %v1718 = vshrl.u32 %v1717, 7
    %v1719 = vsub.s32 5, %v1718
    %v1720 = vrot.slane %v1425, %v1719
    %v1721 = vlaneseq
    %v1722 = vshrl.u32 %v1721, 7
    %v1723 = vsub.s32 6, %v1722
    %v1724 = vrot.slane %v1425, %v1723
    %v1725 = vlaneseq
    %v1726 = vshrl.u32 %v1725, 7
    %v1727 = vsub.s32 7, %v1726
    %v1728 = vrot.slane %v1425, %v1727
    %v1729 = vlaneseq
    %v1730 = vshrl.u32 %v1729, 7
    %v1731 = vsub.s32 0, %v1730
    %v1732 = vrot.slane %v1426, %v1731
    %v1733 = vlaneseq
    %v1734 = vshrl.u32 %v1733, 7
    %v1735 = vsub.s32 1, %v1734
    %v1736 = vrot.slane %v1426, %v1735
    %v1737 = vlaneseq
    %v1738 = vshrl.u32 %v1737, 7
    %v1739 = vsub.s32 2, %v1738
    %v1740 = vrot.slane %v1426, %v1739
    %v1741 = vlaneseq
    %v1742 = vshrl.u32 %v1741, 7
    %v1743 = vsub.s32 3, %v1742
    %v1744 = vrot.slane %v1426, %v1743
    %v1745 = vlaneseq
    %v1746 = vshrl.u32 %v1745, 7
    %v1747 = vsub.s32 4, %v1746
    %v1748 = vrot.slane %v1426, %v1747
    %v1749 = vlaneseq
    %v1750 = vshrl.u32 %v1749, 7
    %v1751 = vsub.s32 5, %v1750
    %v1752 = vrot.slane %v1426, %v1751
    %v1753 = vlaneseq
    %v1754 = vshrl.u32 %v1753, 7
    %v1755 = vsub.s32 6, %v1754
    %v1756 = vrot.slane %v1426, %v1755
    %v1757 = vlaneseq
    %v1758 = vshrl.u32 %v1757, 7
    %v1759 = vsub.s32 7, %v1758
    %v1760 = vrot.slane %v1426, %v1759
    %v1761 = vlaneseq
    %v1762 = vshrl.u32 %v1761, 7
    %v1763 = vsub.s32 0, %v1762
    %v1764 = vrot.slane %v1427, %v1763
    %v1765 = vlaneseq
    %v1766 = vshrl.u32 %v1765, 7
    %v1767 = vsub.s32 1, %v1766
    %v1768 = vrot.slane %v1427, %v1767
    %v1769 = vlaneseq
    %v1770 = vshrl.u32 %v1769, 7
    %v1771 = vsub.s32 2, %v1770
    %v1772 = vrot.slane %v1427, %v1771
    %v1773 = vlaneseq
    %v1774 = vshrl.u32 %v1773, 7
    %v1775 = vsub.s32 3, %v1774
    %v1776 = vrot.slane %v1427, %v1775
    %v1777 = vlaneseq
    %v1778 = vshrl.u32 %v1777, 7
    %v1779 = vsub.s32 4, %v1778
    %v1780 = vrot.slane %v1427, %v1779
    %v1781 = vlaneseq
    %v1782 = vshrl.u32 %v1781, 7
    %v1783 = vsub.s32 5, %v1782
    %v1784 = vrot.slane %v1427, %v1783
    %v1785 = vlaneseq
    %v1786 = vshrl.u32 %v1785, 7
    %v1787 = vsub.s32 6, %v1786
    %v1788 = vrot.slane %v1427, %v1787
    %v1789 = vlaneseq
    %v1790 = vshrl.u32 %v1789, 7
    %v1791 = vsub.s32 7, %v1790
    %v1792 = vrot.slane %v1427, %v1791
    %v1793 = vlaneseq
    %v1794 = vshrl.u32 %v1793, 7
    %v1795 = vsub.s32 0, %v1794
    %v1796 = vrot.slane %v1428, %v1795
    %v1797 = vlaneseq
    %v1798 = vshrl.u32 %v1797, 7
    %v1799 = vsub.s32 1, %v1798
    %v1800 = vrot.slane %v1428, %v1799
    %v1801 = vlaneseq
    %v1802 = vshrl.u32 %v1801, 7
    %v1803 = vsub.s32 2, %v1802
    %v1804 = vrot.slane %v1428, %v1803
    %v1805 = vlaneseq
    %v1806 = vshrl.u32 %v1805, 7
    %v1807 = vsub.s32 3, %v1806
    %v1808 = vrot.slane %v1428, %v1807
    %v1809 = vlaneseq
    %v1810 = vshrl.u32 %v1809, 7
    %v1811 = vsub.s32 4, %v1810
    %v1812 = vrot.slane %v1428, %v1811
    %v1813 = vlaneseq
    %v1814 = vshrl.u32 %v1813, 7
    %v1815 = vsub.s32 5, %v1814
    %v1816 = vrot.slane %v1428, %v1815
    %v1817 = vlaneseq
    %v1818 = vshrl.u32 %v1817, 7
    %v1819 = vsub.s32 6, %v1818
    %v1820 = vrot.slane %v1428, %v1819
    %v1821 = vlaneseq
    %v1822 = vshrl.u32 %v1821, 7
    %v1823 = vsub.s32 7, %v1822
    %v1824 = vrot.slane %v1428, %v1823
    %v1922 = vsel %vm1319, %v1314, 0
    %1924 = vmatprep.subr.mxu0 %v1322
    %1925 = vmatpush1.msra.mxu0 %v1321
    %1926 = vmatprep.subr.mxu0 0.0
    %1927 = vmatpush1.msra.mxu0 0.0
    %1928 = vmatprep.subr.mxu0 0.0
    %1929 = vmatpush1.msra.mxu0 0.0
    %1930 = vmatprep.subr.mxu0 0.0
    %1931 = vmatpush1.msra.mxu0 0.0
    %1932 = vmatprep.subr.mxu0 0.0
    %1933 = vmatpush1.msra.mxu0 0.0
    %1934 = vmatprep.subr.mxu0 0.0
    %1935 = vmatpush1.msra.mxu0 0.0
    %1936 = vmatprep.subr.mxu0 0.0
    %1937 = vmatpush1.msra.mxu0 0.0
    %1938 = vmatprep.subr.mxu0 0.0
    %1939 = vmatpush1.msra.mxu0 0.0
    %1940 = vmatprep.subr.mxu0 0.0
    %1941 = vmatpush1.msra.mxu0 0.0
    %1942 = vmatprep.subr.mxu0 0.0
    %1943 = vmatpush1.msra.mxu0 0.0
    %1944 = vmatprep.subr.mxu0 0.0
    %1945 = vmatpush1.msra.mxu0 0.0
    %1946 = vmatprep.subr.mxu0 0.0
    %1947 = vmatpush1.msra.mxu0 0.0
    %1948 = vmatprep.subr.mxu0 0.0
    %1949 = vmatpush1.msra.mxu0 0.0
    %1950 = vmatprep.subr.mxu0 0.0
    %1951 = vmatpush1.msra.mxu0 0.0
    %1952 = vmatprep.subr.mxu0 0.0
    %1953 = vmatpush1.msra.mxu0 0.0
    %1954 = vmatprep.subr.mxu0 0.0
    %1955 = vmatpush1.msra.mxu0 0.0
    %1956 = vmatprep.subr.mxu0 0.0
    %1957 = vmatpush1.msra.mxu0 0.0
    %1958 = vmatprep.subr.mxu0 0.0
    %1959 = vmatpush1.msra.mxu0 0.0
    %1960 = vmatprep.subr.mxu0 0.0
    %1961 = vmatpush1.msra.mxu0 0.0
    %1962 = vmatprep.subr.mxu0 0.0
    %1963 = vmatpush1.msra.mxu0 0.0
    %1964 = vmatprep.subr.mxu0 0.0
    %1965 = vmatpush1.msra.mxu0 0.0
    %1966 = vmatprep.subr.mxu0 0.0
    %1967 = vmatpush1.msra.mxu0 0.0
    %1968 = vmatprep.subr.mxu0 0.0
    %1969 = vmatpush1.msra.mxu0 0.0
    %1970 = vmatprep.subr.mxu0 0.0
    %1971 = vmatpush1.msra.mxu0 0.0
    %1972 = vmatprep.subr.mxu0 0.0
    %1973 = vmatpush1.msra.mxu0 0.0
    %1974 = vmatprep.subr.mxu0 0.0
    %1975 = vmatpush1.msra.mxu0 0.0
    %1976 = vmatprep.subr.mxu0 0.0
    %1977 = vmatpush1.msra.mxu0 0.0
    %1978 = vmatprep.subr.mxu0 0.0
    %1979 = vmatpush1.msra.mxu0 0.0
    %1980 = vmatprep.subr.mxu0 0.0
    %1981 = vmatpush1.msra.mxu0 0.0
    %1982 = vmatprep.subr.mxu0 0.0
    %1983 = vmatpush1.msra.mxu0 0.0
    %1984 = vmatprep.subr.mxu0 0.0
    %1985 = vmatpush1.msra.mxu0 0.0
    %1986 = vmatprep.subr.mxu0 0.0
    %1987 = vmatpush1.msra.mxu0 0.0
    %1988 = vmatprep.mubr.f32.mxu0 0.0
    %1989 = vmatmul.mubr.f32.gmra.mrb[0].mxu0 %v1922
    %v1990 = vpop.f32.mrb[0].mxu0
    %v1991 = vadd.f32 %v1444, %v1990
    %v1992 = vpop.f32.mrb[0].mxu0
    %v1993 = vadd.f32 %v1448, %v1992
    %1994 = vdwg.mxu0
    %1995 = vmatprep.subr.mxu0 %v1324
    %1996 = vmatpush1.msra.mxu0 %v1323
    %1997 = vmatprep.subr.mxu0 0.0
    %1998 = vmatpush1.msra.mxu0 0.0
    %1999 = vmatprep.subr.mxu0 0.0
    %2000 = vmatpush1.msra.mxu0 0.0
    %2001 = vmatprep.subr.mxu0 0.0
    %2002 = vmatpush1.msra.mxu0 0.0
    %2003 = vmatprep.subr.mxu0 0.0
    %2004 = vmatpush1.msra.mxu0 0.0
    %2005 = vmatprep.subr.mxu0 0.0
    %2006 = vmatpush1.msra.mxu0 0.0
    %2007 = vmatprep.subr.mxu0 0.0
    %2008 = vmatpush1.msra.mxu0 0.0
    %2009 = vmatprep.subr.mxu0 0.0
    %2010 = vmatpush1.msra.mxu0 0.0
    %2011 = vmatprep.subr.mxu0 0.0
    %2012 = vmatpush1.msra.mxu0 0.0
    %2013 = vmatprep.subr.mxu0 0.0
    %2014 = vmatpush1.msra.mxu0 0.0
    %2015 = vmatprep.subr.mxu0 0.0
    %2016 = vmatpush1.msra.mxu0 0.0
    %2017 = vmatprep.subr.mxu0 0.0
    %2018 = vmatpush1.msra.mxu0 0.0
    %2019 = vmatprep.subr.mxu0 0.0
    %2020 = vmatpush1.msra.mxu0 0.0
    %2021 = vmatprep.subr.mxu0 0.0
    %2022 = vmatpush1.msra.mxu0 0.0
    %2023 = vmatprep.subr.mxu0 0.0
    %2024 = vmatpush1.msra.mxu0 0.0
    %2025 = vmatprep.subr.mxu0 0.0
    %2026 = vmatpush1.msra.mxu0 0.0
    %2027 = vmatprep.subr.mxu0 0.0
    %2028 = vmatpush1.msra.mxu0 0.0
    %2029 = vmatprep.subr.mxu0 0.0
    %2030 = vmatpush1.msra.mxu0 0.0
    %2031 = vmatprep.subr.mxu0 0.0
    %2032 = vmatpush1.msra.mxu0 0.0
    %2033 = vmatprep.subr.mxu0 0.0
    %2034 = vmatpush1.msra.mxu0 0.0
    %2035 = vmatprep.subr.mxu0 0.0
    %2036 = vmatpush1.msra.mxu0 0.0
    %2037 = vmatprep.subr.mxu0 0.0
    %2038 = vmatpush1.msra.mxu0 0.0
    %2039 = vmatprep.subr.mxu0 0.0
    %2040 = vmatpush1.msra.mxu0 0.0
    %2041 = vmatprep.subr.mxu0 0.0
    %2042 = vmatpush1.msra.mxu0 0.0
    %2043 = vmatprep.subr.mxu0 0.0
    %2044 = vmatpush1.msra.mxu0 0.0
    %2045 = vmatprep.subr.mxu0 0.0
    %2046 = vmatpush1.msra.mxu0 0.0
    %2047 = vmatprep.subr.mxu0 0.0
    %2048 = vmatpush1.msra.mxu0 0.0
    %2049 = vmatprep.subr.mxu0 0.0
    %2050 = vmatpush1.msra.mxu0 0.0
    %2051 = vmatprep.subr.mxu0 0.0
    %2052 = vmatpush1.msra.mxu0 0.0
    %2053 = vmatprep.subr.mxu0 0.0
    %2054 = vmatpush1.msra.mxu0 0.0
    %2055 = vmatprep.subr.mxu0 0.0
    %2056 = vmatpush1.msra.mxu0 0.0
    %2057 = vmatprep.subr.mxu0 0.0
    %2058 = vmatpush1.msra.mxu0 0.0
    %2059 = vmatprep.mubr.f32.mxu0 0.0
    %2060 = vmatmul.mubr.f32.gmra.mrb[0].mxu0 %v1922
    %v2061 = vpop.f32.mrb[0].mxu0
    %v2062 = vadd.f32 %v1452, %v2061
    %v2063 = vpop.f32.mrb[0].mxu0
    %v2064 = vadd.f32 %v1456, %v2063
    %2065 = vdwg.mxu0
    %2066 = vmatprep.subr.mxu0 %v1326
    %2067 = vmatpush1.msra.mxu0 %v1325
    %2068 = vmatprep.subr.mxu0 0.0
    %2069 = vmatpush1.msra.mxu0 0.0
    %2070 = vmatprep.subr.mxu0 0.0
    %2071 = vmatpush1.msra.mxu0 0.0
    %2072 = vmatprep.subr.mxu0 0.0
    %2073 = vmatpush1.msra.mxu0 0.0
    %2074 = vmatprep.subr.mxu0 0.0
    %2075 = vmatpush1.msra.mxu0 0.0
    %2076 = vmatprep.subr.mxu0 0.0
    %2077 = vmatpush1.msra.mxu0 0.0
    %2078 = vmatprep.subr.mxu0 0.0
    %2079 = vmatpush1.msra.mxu0 0.0
    %2080 = vmatprep.subr.mxu0 0.0
    %2081 = vmatpush1.msra.mxu0 0.0
    %2082 = vmatprep.subr.mxu0 0.0
    %2083 = vmatpush1.msra.mxu0 0.0
    %2084 = vmatprep.subr.mxu0 0.0
    %2085 = vmatpush1.msra.mxu0 0.0
    %2086 = vmatprep.subr.mxu0 0.0
    %2087 = vmatpush1.msra.mxu0 0.0
    %2088 = vmatprep.subr.mxu0 0.0
    %2089 = vmatpush1.msra.mxu0 0.0
    %2090 = vmatprep.subr.mxu0 0.0
    %2091 = vmatpush1.msra.mxu0 0.0
    %2092 = vmatprep.subr.mxu0 0.0
    %2093 = vmatpush1.msra.mxu0 0.0
    %2094 = vmatprep.subr.mxu0 0.0
    %2095 = vmatpush1.msra.mxu0 0.0
    %2096 = vmatprep.subr.mxu0 0.0
    %2097 = vmatpush1.msra.mxu0 0.0
    %2098 = vmatprep.subr.mxu0 0.0
    %2099 = vmatpush1.msra.mxu0 0.0
    %2100 = vmatprep.subr.mxu0 0.0
    %2101 = vmatpush1.msra.mxu0 0.0
    %2102 = vmatprep.subr.mxu0 0.0
    %2103 = vmatpush1.msra.mxu0 0.0
    %2104 = vmatprep.subr.mxu0 0.0
    %2105 = vmatpush1.msra.mxu0 0.0
    %2106 = vmatprep.subr.mxu0 0.0
    %2107 = vmatpush1.msra.mxu0 0.0
    %2108 = vmatprep.subr.mxu0 0.0
    %2109 = vmatpush1.msra.mxu0 0.0
    %2110 = vmatprep.subr.mxu0 0.0
    %2111 = vmatpush1.msra.mxu0 0.0
    %2112 = vmatprep.subr.mxu0 0.0
    %2113 = vmatpush1.msra.mxu0 0.0
    %2114 = vmatprep.subr.mxu0 0.0
    %2115 = vmatpush1.msra.mxu0 0.0
    %2116 = vmatprep.subr.mxu0 0.0
    %2117 = vmatpush1.msra.mxu0 0.0
    %2118 = vmatprep.subr.mxu0 0.0
    %2119 = vmatpush1.msra.mxu0 0.0
    %2120 = vmatprep.subr.mxu0 0.0
    %2121 = vmatpush1.msra.mxu0 0.0
    %2122 = vmatprep.subr.mxu0 0.0
    %2123 = vmatpush1.msra.mxu0 0.0
    %2124 = vmatprep.subr.mxu0 0.0
    %2125 = vmatpush1.msra.mxu0 0.0
    %2126 = vmatprep.subr.mxu0 0.0
    %2127 = vmatpush1.msra.mxu0 0.0
    %2128 = vmatprep.subr.mxu0 0.0
    %2129 = vmatpush1.msra.mxu0 0.0
    %2130 = vmatprep.mubr.f32.mxu0 0.0
    %2131 = vmatmul.mubr.f32.gmra.mrb[0].mxu0 %v1922
    %v2132 = vpop.f32.mrb[0].mxu0
    %v2133 = vadd.f32 %v1460, %v2132
    %v2134 = vpop.f32.mrb[0].mxu0
    %v2135 = vadd.f32 %v1464, %v2134
    %2136 = vdwg.mxu0
    %2137 = vmatprep.subr.mxu0 %v1328
    %2138 = vmatpush1.msra.mxu0 %v1327
    %2139 = vmatprep.subr.mxu0 0.0
    %2140 = vmatpush1.msra.mxu0 0.0
    %2141 = vmatprep.subr.mxu0 0.0
    %2142 = vmatpush1.msra.mxu0 0.0
    %2143 = vmatprep.subr.mxu0 0.0
    %2144 = vmatpush1.msra.mxu0 0.0
    %2145 = vmatprep.subr.mxu0 0.0
    %2146 = vmatpush1.msra.mxu0 0.0
    %2147 = vmatprep.subr.mxu0 0.0
    %2148 = vmatpush1.msra.mxu0 0.0
    %2149 = vmatprep.subr.mxu0 0.0
    %2150 = vmatpush1.msra.mxu0 0.0
    %2151 = vmatprep.subr.mxu0 0.0
    %2152 = vmatpush1.msra.mxu0 0.0
    %2153 = vmatprep.subr.mxu0 0.0
    %2154 = vmatpush1.msra.mxu0 0.0
    %2155 = vmatprep.subr.mxu0 0.0
    %2156 = vmatpush1.msra.mxu0 0.0
    %2157 = vmatprep.subr.mxu0 0.0
    %2158 = vmatpush1.msra.mxu0 0.0
    %2159 = vmatprep.subr.mxu0 0.0
    %2160 = vmatpush1.msra.mxu0 0.0
    %2161 = vmatprep.subr.mxu0 0.0
    %2162 = vmatpush1.msra.mxu0 0.0
    %2163 = vmatprep.subr.mxu0 0.0
    %2164 = vmatpush1.msra.mxu0 0.0
    %2165 = vmatprep.subr.mxu0 0.0
    %2166 = vmatpush1.msra.mxu0 0.0
    %2167 = vmatprep.subr.mxu0 0.0
    %2168 = vmatpush1.msra.mxu0 0.0
    %2169 = vmatprep.subr.mxu0 0.0
    %2170 = vmatpush1.msra.mxu0 0.0
    %2171 = vmatprep.subr.mxu0 0.0
    %2172 = vmatpush1.msra.mxu0 0.0
    %2173 = vmatprep.subr.mxu0 0.0
    %2174 = vmatpush1.msra.mxu0 0.0
    %2175 = vmatprep.subr.mxu0 0.0
    %2176 = vmatpush1.msra.mxu0 0.0
    %2177 = vmatprep.subr.mxu0 0.0
    %2178 = vmatpush1.msra.mxu0 0.0
    %2179 = vmatprep.subr.mxu0 0.0
    %2180 = vmatpush1.msra.mxu0 0.0
    %2181 = vmatprep.subr.mxu0 0.0
    %2182 = vmatpush1.msra.mxu0 0.0
    %2183 = vmatprep.subr.mxu0 0.0
    %2184 = vmatpush1.msra.mxu0 0.0
    %2185 = vmatprep.subr.mxu0 0.0
    %2186 = vmatpush1.msra.mxu0 0.0
    %2187 = vmatprep.subr.mxu0 0.0
    %2188 = vmatpush1.msra.mxu0 0.0
    %2189 = vmatprep.subr.mxu0 0.0
    %2190 = vmatpush1.msra.mxu0 0.0
    %2191 = vmatprep.subr.mxu0 0.0
    %2192 = vmatpush1.msra.mxu0 0.0
    %2193 = vmatprep.subr.mxu0 0.0
    %2194 = vmatpush1.msra.mxu0 0.0
    %2195 = vmatprep.subr.mxu0 0.0
    %2196 = vmatpush1.msra.mxu0 0.0
    %2197 = vmatprep.subr.mxu0 0.0
    %2198 = vmatpush1.msra.mxu0 0.0
    %2199 = vmatprep.subr.mxu0 0.0
    %2200 = vmatpush1.msra.mxu0 0.0
    %2201 = vmatprep.mubr.f32.mxu0 0.0
    %2202 = vmatmul.mubr.f32.gmra.mrb[0].mxu0 %v1922
    %v2203 = vpop.f32.mrb[0].mxu0
    %v2204 = vadd.f32 %v1468, %v2203
    %v2205 = vpop.f32.mrb[0].mxu0
    %v2206 = vadd.f32 %v1472, %v2205
    %2207 = vdwg.mxu0
    %2208 = vmatprep.subr.mxu0 %v1330
    %2209 = vmatpush1.msra.mxu0 %v1329
    %2210 = vmatprep.subr.mxu0 0.0
    %2211 = vmatpush1.msra.mxu0 0.0
    %2212 = vmatprep.subr.mxu0 0.0
    %2213 = vmatpush1.msra.mxu0 0.0
    %2214 = vmatprep.subr.mxu0 0.0
    %2215 = vmatpush1.msra.mxu0 0.0
    %2216 = vmatprep.subr.mxu0 0.0
    %2217 = vmatpush1.msra.mxu0 0.0
    %2218 = vmatprep.subr.mxu0 0.0
    %2219 = vmatpush1.msra.mxu0 0.0
    %2220 = vmatprep.subr.mxu0 0.0
    %2221 = vmatpush1.msra.mxu0 0.0
    %2222 = vmatprep.subr.mxu0 0.0
    %2223 = vmatpush1.msra.mxu0 0.0
    %2224 = vmatprep.subr.mxu0 0.0
    %2225 = vmatpush1.msra.mxu0 0.0
    %2226 = vmatprep.subr.mxu0 0.0
    %2227 = vmatpush1.msra.mxu0 0.0
    %2228 = vmatprep.subr.mxu0 0.0
    %2229 = vmatpush1.msra.mxu0 0.0
    %2230 = vmatprep.subr.mxu0 0.0
    %2231 = vmatpush1.msra.mxu0 0.0
    %2232 = vmatprep.subr.mxu0 0.0
    %2233 = vmatpush1.msra.mxu0 0.0
    %2234 = vmatprep.subr.mxu0 0.0
    %2235 = vmatpush1.msra.mxu0 0.0
    %2236 = vmatprep.subr.mxu0 0.0
    %2237 = vmatpush1.msra.mxu0 0.0
    %2238 = vmatprep.subr.mxu0 0.0
    %2239 = vmatpush1.msra.mxu0 0.0
    %2240 = vmatprep.subr.mxu0 0.0
    %2241 = vmatpush1.msra.mxu0 0.0
    %2242 = vmatprep.subr.mxu0 0.0
    %2243 = vmatpush1.msra.mxu0 0.0
    %2244 = vmatprep.subr.mxu0 0.0
    %2245 = vmatpush1.msra.mxu0 0.0
    %2246 = vmatprep.subr.mxu0 0.0
    %2247 = vmatpush1.msra.mxu0 0.0
    %2248 = vmatprep.subr.mxu0 0.0
    %2249 = vmatpush1.msra.mxu0 0.0
    %2250 = vmatprep.subr.mxu0 0.0
    %2251 = vmatpush1.msra.mxu0 0.0
    %2252 = vmatprep.subr.mxu0 0.0
    %2253 = vmatpush1.msra.mxu0 0.0
    %2254 = vmatprep.subr.mxu0 0.0
    %2255 = vmatpush1.msra.mxu0 0.0
    %2256 = vmatprep.subr.mxu0 0.0
    %2257 = vmatpush1.msra.mxu0 0.0
    %2258 = vmatprep.subr.mxu0 0.0
    %2259 = vmatpush1.msra.mxu0 0.0
    %2260 = vmatprep.subr.mxu0 0.0
    %2261 = vmatpush1.msra.mxu0 0.0
    %2262 = vmatprep.subr.mxu0 0.0
    %2263 = vmatpush1.msra.mxu0 0.0
    %2264 = vmatprep.subr.mxu0 0.0
    %2265 = vmatpush1.msra.mxu0 0.0
    %2266 = vmatprep.subr.mxu0 0.0
    %2267 = vmatpush1.msra.mxu0 0.0
    %2268 = vmatprep.subr.mxu0 0.0
    %2269 = vmatpush1.msra.mxu0 0.0
    %2270 = vmatprep.subr.mxu0 0.0
    %2271 = vmatpush1.msra.mxu0 0.0
    %2272 = vmatprep.mubr.f32.mxu0 0.0
    %2273 = vmatmul.mubr.f32.gmra.mrb[0].mxu0 %v1922
    %v2274 = vpop.f32.mrb[0].mxu0
    %v2275 = vadd.f32 %v1476, %v2274
    %v2276 = vpop.f32.mrb[0].mxu0
    %v2277 = vadd.f32 %v1480, %v2276
    %2278 = vdwg.mxu0
    %2279 = vmatprep.subr.mxu0 %v1332
    %2280 = vmatpush1.msra.mxu0 %v1331
    %2281 = vmatprep.subr.mxu0 0.0
    %2282 = vmatpush1.msra.mxu0 0.0
    %2283 = vmatprep.subr.mxu0 0.0
    %2284 = vmatpush1.msra.mxu0 0.0
    %2285 = vmatprep.subr.mxu0 0.0
    %2286 = vmatpush1.msra.mxu0 0.0
    %2287 = vmatprep.subr.mxu0 0.0
    %2288 = vmatpush1.msra.mxu0 0.0
    %2289 = vmatprep.subr.mxu0 0.0
    %2290 = vmatpush1.msra.mxu0 0.0
    %2291 = vmatprep.subr.mxu0 0.0
    %2292 = vmatpush1.msra.mxu0 0.0
    %2293 = vmatprep.subr.mxu0 0.0
    %2294 = vmatpush1.msra.mxu0 0.0
    %2295 = vmatprep.subr.mxu0 0.0
    %2296 = vmatpush1.msra.mxu0 0.0
    %2297 = vmatprep.subr.mxu0 0.0
    %2298 = vmatpush1.msra.mxu0 0.0
    %2299 = vmatprep.subr.mxu0 0.0
    %2300 = vmatpush1.msra.mxu0 0.0
    %2301 = vmatprep.subr.mxu0 0.0
    %2302 = vmatpush1.msra.mxu0 0.0
    %2303 = vmatprep.subr.mxu0 0.0
    %2304 = vmatpush1.msra.mxu0 0.0
    %2305 = vmatprep.subr.mxu0 0.0
    %2306 = vmatpush1.msra.mxu0 0.0
    %2307 = vmatprep.subr.mxu0 0.0
    %2308 = vmatpush1.msra.mxu0 0.0
    %2309 = vmatprep.subr.mxu0 0.0
    %2310 = vmatpush1.msra.mxu0 0.0
    %2311 = vmatprep.subr.mxu0 0.0
    %2312 = vmatpush1.msra.mxu0 0.0
    %2313 = vmatprep.subr.mxu0 0.0
    %2314 = vmatpush1.msra.mxu0 0.0
    %2315 = vmatprep.subr.mxu0 0.0
    %2316 = vmatpush1.msra.mxu0 0.0
    %2317 = vmatprep.subr.mxu0 0.0
    %2318 = vmatpush1.msra.mxu0 0.0
    %2319 = vmatprep.subr.mxu0 0.0
    %2320 = vmatpush1.msra.mxu0 0.0
    %2321 = vmatprep.subr.mxu0 0.0
    %2322 = vmatpush1.msra.mxu0 0.0
    %2323 = vmatprep.subr.mxu0 0.0
    %2324 = vmatpush1.msra.mxu0 0.0
    %2325 = vmatprep.subr.mxu0 0.0
    %2326 = vmatpush1.msra.mxu0 0.0
    %2327 = vmatprep.subr.mxu0 0.0
    %2328 = vmatpush1.msra.mxu0 0.0
    %2329 = vmatprep.subr.mxu0 0.0
    %2330 = vmatpush1.msra.mxu0 0.0
    %2331 = vmatprep.subr.mxu0 0.0
    %2332 = vmatpush1.msra.mxu0 0.0
    %2333 = vmatprep.subr.mxu0 0.0
    %2334 = vmatpush1.msra.mxu0 0.0
    %2335 = vmatprep.subr.mxu0 0.0
    %2336 = vmatpush1.msra.mxu0 0.0
    %2337 = vmatprep.subr.mxu0 0.0
    %2338 = vmatpush1.msra.mxu0 0.0
    %2339 = vmatprep.subr.mxu0 0.0
    %2340 = vmatpush1.msra.mxu0 0.0
    %2341 = vmatprep.subr.mxu0 0.0
    %2342 = vmatpush1.msra.mxu0 0.0
    %2343 = vmatprep.mubr.f32.mxu0 0.0
    %2344 = vmatmul.mubr.f32.gmra.mrb[0].mxu0 %v1922
    %v2345 = vpop.f32.mrb[0].mxu0
    %v2346 = vadd.f32 %v1484, %v2345
    %v2347 = vpop.f32.mrb[0].mxu0
    %v2348 = vadd.f32 %v1488, %v2347
    %2349 = vdwg.mxu0
    %2350 = vmatprep.subr.mxu0 %v1334
    %2351 = vmatpush1.msra.mxu0 %v1333
    %2352 = vmatprep.subr.mxu0 0.0
    %2353 = vmatpush1.msra.mxu0 0.0
    %2354 = vmatprep.subr.mxu0 0.0
    %2355 = vmatpush1.msra.mxu0 0.0
    %2356 = vmatprep.subr.mxu0 0.0
    %2357 = vmatpush1.msra.mxu0 0.0
    %2358 = vmatprep.subr.mxu0 0.0
    %2359 = vmatpush1.msra.mxu0 0.0
    %2360 = vmatprep.subr.mxu0 0.0
    %2361 = vmatpush1.msra.mxu0 0.0
    %2362 = vmatprep.subr.mxu0 0.0
    %2363 = vmatpush1.msra.mxu0 0.0
    %2364 = vmatprep.subr.mxu0 0.0
    %2365 = vmatpush1.msra.mxu0 0.0
    %2366 = vmatprep.subr.mxu0 0.0
    %2367 = vmatpush1.msra.mxu0 0.0
    %2368 = vmatprep.subr.mxu0 0.0
    %2369 = vmatpush1.msra.mxu0 0.0
    %2370 = vmatprep.subr.mxu0 0.0
    %2371 = vmatpush1.msra.mxu0 0.0
    %2372 = vmatprep.subr.mxu0 0.0
    %2373 = vmatpush1.msra.mxu0 0.0
    %2374 = vmatprep.subr.mxu0 0.0
    %2375 = vmatpush1.msra.mxu0 0.0
    %2376 = vmatprep.subr.mxu0 0.0
    %2377 = vmatpush1.msra.mxu0 0.0
    %2378 = vmatprep.subr.mxu0 0.0
    %2379 = vmatpush1.msra.mxu0 0.0
    %2380 = vmatprep.subr.mxu0 0.0
    %2381 = vmatpush1.msra.mxu0 0.0
    %2382 = vmatprep.subr.mxu0 0.0
    %2383 = vmatpush1.msra.mxu0 0.0
    %2384 = vmatprep.subr.mxu0 0.0
    %2385 = vmatpush1.msra.mxu0 0.0
    %2386 = vmatprep.subr.mxu0 0.0
    %2387 = vmatpush1.msra.mxu0 0.0
    %2388 = vmatprep.subr.mxu0 0.0
    %2389 = vmatpush1.msra.mxu0 0.0
    %2390 = vmatprep.subr.mxu0 0.0
    %2391 = vmatpush1.msra.mxu0 0.0
    %2392 = vmatprep.subr.mxu0 0.0
    %2393 = vmatpush1.msra.mxu0 0.0
    %2394 = vmatprep.subr.mxu0 0.0
    %2395 = vmatpush1.msra.mxu0 0.0
    %2396 = vmatprep.subr.mxu0 0.0
    %2397 = vmatpush1.msra.mxu0 0.0
    %2398 = vmatprep.subr.mxu0 0.0
    %2399 = vmatpush1.msra.mxu0 0.0
    %2400 = vmatprep.subr.mxu0 0.0
    %2401 = vmatpush1.msra.mxu0 0.0
    %2402 = vmatprep.subr.mxu0 0.0
    %2403 = vmatpush1.msra.mxu0 0.0
    %2404 = vmatprep.subr.mxu0 0.0
    %2405 = vmatpush1.msra.mxu0 0.0
    %2406 = vmatprep.subr.mxu0 0.0
    %2407 = vmatpush1.msra.mxu0 0.0
    %2408 = vmatprep.subr.mxu0 0.0
    %2409 = vmatpush1.msra.mxu0 0.0
    %2410 = vmatprep.subr.mxu0 0.0
    %2411 = vmatpush1.msra.mxu0 0.0
    %2412 = vmatprep.subr.mxu0 0.0
    %2413 = vmatpush1.msra.mxu0 0.0
    %2414 = vmatprep.mubr.f32.mxu0 0.0
    %2415 = vmatmul.mubr.f32.gmra.mrb[0].mxu0 %v1922
    %v2416 = vpop.f32.mrb[0].mxu0
    %v2417 = vadd.f32 %v1492, %v2416
    %v2418 = vpop.f32.mrb[0].mxu0
    %v2419 = vadd.f32 %v1496, %v2418
    %2420 = vdwg.mxu0
    %2421 = vmatprep.subr.mxu0 %v1336
    %2422 = vmatpush1.msra.mxu0 %v1335
    %2423 = vmatprep.subr.mxu0 0.0
    %2424 = vmatpush1.msra.mxu0 0.0
    %2425 = vmatprep.subr.mxu0 0.0
    %2426 = vmatpush1.msra.mxu0 0.0
    %2427 = vmatprep.subr.mxu0 0.0
    %2428 = vmatpush1.msra.mxu0 0.0
    %2429 = vmatprep.subr.mxu0 0.0
    %2430 = vmatpush1.msra.mxu0 0.0
    %2431 = vmatprep.subr.mxu0 0.0
    %2432 = vmatpush1.msra.mxu0 0.0
    %2433 = vmatprep.subr.mxu0 0.0
    %2434 = vmatpush1.msra.mxu0 0.0
    %2435 = vmatprep.subr.mxu0 0.0
    %2436 = vmatpush1.msra.mxu0 0.0
    %2437 = vmatprep.subr.mxu0 0.0
    %2438 = vmatpush1.msra.mxu0 0.0
    %2439 = vmatprep.subr.mxu0 0.0
    %2440 = vmatpush1.msra.mxu0 0.0
    %2441 = vmatprep.subr.mxu0 0.0
    %2442 = vmatpush1.msra.mxu0 0.0
    %2443 = vmatprep.subr.mxu0 0.0
    %2444 = vmatpush1.msra.mxu0 0.0
    %2445 = vmatprep.subr.mxu0 0.0
    %2446 = vmatpush1.msra.mxu0 0.0
    %2447 = vmatprep.subr.mxu0 0.0
    %2448 = vmatpush1.msra.mxu0 0.0
    %2449 = vmatprep.subr.mxu0 0.0
    %2450 = vmatpush1.msra.mxu0 0.0
    %2451 = vmatprep.subr.mxu0 0.0
    %2452 = vmatpush1.msra.mxu0 0.0
    %2453 = vmatprep.subr.mxu0 0.0
    %2454 = vmatpush1.msra.mxu0 0.0
    %2455 = vmatprep.subr.mxu0 0.0
    %2456 = vmatpush1.msra.mxu0 0.0
    %2457 = vmatprep.subr.mxu0 0.0
    %2458 = vmatpush1.msra.mxu0 0.0
    %2459 = vmatprep.subr.mxu0 0.0
    %2460 = vmatpush1.msra.mxu0 0.0
    %2461 = vmatprep.subr.mxu0 0.0
    %2462 = vmatpush1.msra.mxu0 0.0
    %2463 = vmatprep.subr.mxu0 0.0
    %2464 = vmatpush1.msra.mxu0 0.0
    %2465 = vmatprep.subr.mxu0 0.0
    %2466 = vmatpush1.msra.mxu0 0.0
    %2467 = vmatprep.subr.mxu0 0.0
    %2468 = vmatpush1.msra.mxu0 0.0
    %2469 = vmatprep.subr.mxu0 0.0
    %2470 = vmatpush1.msra.mxu0 0.0
    %2471 = vmatprep.subr.mxu0 0.0
    %2472 = vmatpush1.msra.mxu0 0.0
    %2473 = vmatprep.subr.mxu0 0.0
    %2474 = vmatpush1.msra.mxu0 0.0
    %2475 = vmatprep.subr.mxu0 0.0
    %2476 = vmatpush1.msra.mxu0 0.0
    %2477 = vmatprep.subr.mxu0 0.0
    %2478 = vmatpush1.msra.mxu0 0.0
    %2479 = vmatprep.subr.mxu0 0.0
    %2480 = vmatpush1.msra.mxu0 0.0
    %2481 = vmatprep.subr.mxu0 0.0
    %2482 = vmatpush1.msra.mxu0 0.0
    %2483 = vmatprep.subr.mxu0 0.0
    %2484 = vmatpush1.msra.mxu0 0.0
    %2485 = vmatprep.mubr.f32.mxu0 0.0
    %2486 = vmatmul.mubr.f32.gmra.mrb[0].mxu0 %v1922
    %v2487 = vpop.f32.mrb[0].mxu0
    %v2488 = vadd.f32 %v1500, %v2487
    %v2489 = vpop.f32.mrb[0].mxu0
    %v2490 = vadd.f32 %v1504, %v2489
    %2491 = vdwg.mxu0
    %2492 = vmatprep.subr.mxu0 %v1338
    %2493 = vmatpush1.msra.mxu0 %v1337
    %2494 = vmatprep.subr.mxu0 0.0
    %2495 = vmatpush1.msra.mxu0 0.0
    %2496 = vmatprep.subr.mxu0 0.0
    %2497 = vmatpush1.msra.mxu0 0.0
    %2498 = vmatprep.subr.mxu0 0.0
    %2499 = vmatpush1.msra.mxu0 0.0
    %2500 = vmatprep.subr.mxu0 0.0
    %2501 = vmatpush1.msra.mxu0 0.0
    %2502 = vmatprep.subr.mxu0 0.0
    %2503 = vmatpush1.msra.mxu0 0.0
    %2504 = vmatprep.subr.mxu0 0.0
    %2505 = vmatpush1.msra.mxu0 0.0
    %2506 = vmatprep.subr.mxu0 0.0
    %2507 = vmatpush1.msra.mxu0 0.0
    %2508 = vmatprep.subr.mxu0 0.0
    %2509 = vmatpush1.msra.mxu0 0.0
    %2510 = vmatprep.subr.mxu0 0.0
    %2511 = vmatpush1.msra.mxu0 0.0
    %2512 = vmatprep.subr.mxu0 0.0
    %2513 = vmatpush1.msra.mxu0 0.0
    %2514 = vmatprep.subr.mxu0 0.0
    %2515 = vmatpush1.msra.mxu0 0.0
    %2516 = vmatprep.subr.mxu0 0.0
    %2517 = vmatpush1.msra.mxu0 0.0
    %2518 = vmatprep.subr.mxu0 0.0
    %2519 = vmatpush1.msra.mxu0 0.0
    %2520 = vmatprep.subr.mxu0 0.0
    %2521 = vmatpush1.msra.mxu0 0.0
    %2522 = vmatprep.subr.mxu0 0.0
    %2523 = vmatpush1.msra.mxu0 0.0
    %2524 = vmatprep.subr.mxu0 0.0
    %2525 = vmatpush1.msra.mxu0 0.0
    %2526 = vmatprep.subr.mxu0 0.0
    %2527 = vmatpush1.msra.mxu0 0.0
    %2528 = vmatprep.subr.mxu0 0.0
    %2529 = vmatpush1.msra.mxu0 0.0
    %2530 = vmatprep.subr.mxu0 0.0
    %2531 = vmatpush1.msra.mxu0 0.0
    %2532 = vmatprep.subr.mxu0 0.0
    %2533 = vmatpush1.msra.mxu0 0.0
    %2534 = vmatprep.subr.mxu0 0.0
    %2535 = vmatpush1.msra.mxu0 0.0
    %2536 = vmatprep.subr.mxu0 0.0
    %2537 = vmatpush1.msra.mxu0 0.0
    %2538 = vmatprep.subr.mxu0 0.0
    %2539 = vmatpush1.msra.mxu0 0.0
    %2540 = vmatprep.subr.mxu0 0.0
    %2541 = vmatpush1.msra.mxu0 0.0
    %2542 = vmatprep.subr.mxu0 0.0
    %2543 = vmatpush1.msra.mxu0 0.0
    %2544 = vmatprep.subr.mxu0 0.0
    %2545 = vmatpush1.msra.mxu0 0.0
    %2546 = vmatprep.subr.mxu0 0.0
    %2547 = vmatpush1.msra.mxu0 0.0
    %2548 = vmatprep.subr.mxu0 0.0
    %2549 = vmatpush1.msra.mxu0 0.0
    %2550 = vmatprep.subr.mxu0 0.0
    %2551 = vmatpush1.msra.mxu0 0.0
    %2552 = vmatprep.subr.mxu0 0.0
    %2553 = vmatpush1.msra.mxu0 0.0
    %2554 = vmatprep.subr.mxu0 0.0
    %2555 = vmatpush1.msra.mxu0 0.0
    %2556 = vmatprep.mubr.f32.mxu0 0.0
    %2557 = vmatmul.mubr.f32.gmra.mrb[0].mxu0 %v1922
    %v2558 = vpop.f32.mrb[0].mxu0
    %v2559 = vadd.f32 %v1508, %v2558
    %v2560 = vpop.f32.mrb[0].mxu0
    %v2561 = vadd.f32 %v1512, %v2560
    %2562 = vdwg.mxu0
    %2563 = vmatprep.subr.mxu0 %v1340
    %2564 = vmatpush1.msra.mxu0 %v1339
    %2565 = vmatprep.subr.mxu0 0.0
    %2566 = vmatpush1.msra.mxu0 0.0
    %2567 = vmatprep.subr.mxu0 0.0
    %2568 = vmatpush1.msra.mxu0 0.0
    %2569 = vmatprep.subr.mxu0 0.0
    %2570 = vmatpush1.msra.mxu0 0.0
    %2571 = vmatprep.subr.mxu0 0.0
    %2572 = vmatpush1.msra.mxu0 0.0
    %2573 = vmatprep.subr.mxu0 0.0
    %2574 = vmatpush1.msra.mxu0 0.0
    %2575 = vmatprep.subr.mxu0 0.0
    %2576 = vmatpush1.msra.mxu0 0.0
    %2577 = vmatprep.subr.mxu0 0.0
    %2578 = vmatpush1.msra.mxu0 0.0
    %2579 = vmatprep.subr.mxu0 0.0
    %2580 = vmatpush1.msra.mxu0 0.0
    %2581 = vmatprep.subr.mxu0 0.0
    %2582 = vmatpush1.msra.mxu0 0.0
    %2583 = vmatprep.subr.mxu0 0.0
    %2584 = vmatpush1.msra.mxu0 0.0
    %2585 = vmatprep.subr.mxu0 0.0
    %2586 = vmatpush1.msra.mxu0 0.0
    %2587 = vmatprep.subr.mxu0 0.0
    %2588 = vmatpush1.msra.mxu0 0.0
    %2589 = vmatprep.subr.mxu0 0.0
    %2590 = vmatpush1.msra.mxu0 0.0
    %2591 = vmatprep.subr.mxu0 0.0
    %2592 = vmatpush1.msra.mxu0 0.0
    %2593 = vmatprep.subr.mxu0 0.0
    %2594 = vmatpush1.msra.mxu0 0.0
    %2595 = vmatprep.subr.mxu0 0.0
    %2596 = vmatpush1.msra.mxu0 0.0
    %2597 = vmatprep.subr.mxu0 0.0
    %2598 = vmatpush1.msra.mxu0 0.0
    %2599 = vmatprep.subr.mxu0 0.0
    %2600 = vmatpush1.msra.mxu0 0.0
    %2601 = vmatprep.subr.mxu0 0.0
    %2602 = vmatpush1.msra.mxu0 0.0
    %2603 = vmatprep.subr.mxu0 0.0
    %2604 = vmatpush1.msra.mxu0 0.0
    %2605 = vmatprep.subr.mxu0 0.0
    %2606 = vmatpush1.msra.mxu0 0.0
    %2607 = vmatprep.subr.mxu0 0.0
    %2608 = vmatpush1.msra.mxu0 0.0
    %2609 = vmatprep.subr.mxu0 0.0
    %2610 = vmatpush1.msra.mxu0 0.0
    %2611 = vmatprep.subr.mxu0 0.0
    %2612 = vmatpush1.msra.mxu0 0.0
    %2613 = vmatprep.subr.mxu0 0.0
    %2614 = vmatpush1.msra.mxu0 0.0
    %2615 = vmatprep.subr.mxu0 0.0
    %2616 = vmatpush1.msra.mxu0 0.0
    %2617 = vmatprep.subr.mxu0 0.0
    %2618 = vmatpush1.msra.mxu0 0.0
    %2619 = vmatprep.subr.mxu0 0.0
    %2620 = vmatpush1.msra.mxu0 0.0
    %2621 = vmatprep.subr.mxu0 0.0
    %2622 = vmatpush1.msra.mxu0 0.0
    %2623 = vmatprep.subr.mxu0 0.0
    %2624 = vmatpush1.msra.mxu0 0.0
    %2625 = vmatprep.subr.mxu0 0.0
    %2626 = vmatpush1.msra.mxu0 0.0
    %2627 = vmatprep.mubr.f32.mxu0 0.0
    %2628 = vmatmul.mubr.f32.gmra.mrb[0].mxu0 %v1922
    %v2629 = vpop.f32.mrb[0].mxu0
    %v2630 = vadd.f32 %v1516, %v2629
    %v2631 = vpop.f32.mrb[0].mxu0
    %v2632 = vadd.f32 %v1520, %v2631
    %2633 = vdwg.mxu0
    %2634 = vmatprep.subr.mxu0 %v1342
    %2635 = vmatpush1.msra.mxu0 %v1341
    %2636 = vmatprep.subr.mxu0 0.0
    %2637 = vmatpush1.msra.mxu0 0.0
    %2638 = vmatprep.subr.mxu0 0.0
    %2639 = vmatpush1.msra.mxu0 0.0
    %2640 = vmatprep.subr.mxu0 0.0
    %2641 = vmatpush1.msra.mxu0 0.0
    %2642 = vmatprep.subr.mxu0 0.0
    %2643 = vmatpush1.msra.mxu0 0.0
    %2644 = vmatprep.subr.mxu0 0.0
    %2645 = vmatpush1.msra.mxu0 0.0
    %2646 = vmatprep.subr.mxu0 0.0
    %2647 = vmatpush1.msra.mxu0 0.0
    %2648 = vmatprep.subr.mxu0 0.0
    %2649 = vmatpush1.msra.mxu0 0.0
    %2650 = vmatprep.subr.mxu0 0.0
    %2651 = vmatpush1.msra.mxu0 0.0
    %2652 = vmatprep.subr.mxu0 0.0
    %2653 = vmatpush1.msra.mxu0 0.0
    %2654 = vmatprep.subr.mxu0 0.0
    %2655 = vmatpush1.msra.mxu0 0.0
    %2656 = vmatprep.subr.mxu0 0.0
    %2657 = vmatpush1.msra.mxu0 0.0
    %2658 = vmatprep.subr.mxu0 0.0
    %2659 = vmatpush1.msra.mxu0 0.0
    %2660 = vmatprep.subr.mxu0 0.0
    %2661 = vmatpush1.msra.mxu0 0.0
    %2662 = vmatprep.subr.mxu0 0.0
    %2663 = vmatpush1.msra.mxu0 0.0
    %2664 = vmatprep.subr.mxu0 0.0
    %2665 = vmatpush1.msra.mxu0 0.0
    %2666 = vmatprep.subr.mxu0 0.0
    %2667 = vmatpush1.msra.mxu0 0.0
    %2668 = vmatprep.subr.mxu0 0.0
    %2669 = vmatpush1.msra.mxu0 0.0
    %2670 = vmatprep.subr.mxu0 0.0
    %2671 = vmatpush1.msra.mxu0 0.0
    %2672 = vmatprep.subr.mxu0 0.0
    %2673 = vmatpush1.msra.mxu0 0.0
    %2674 = vmatprep.subr.mxu0 0.0
    %2675 = vmatpush1.msra.mxu0 0.0
    %2676 = vmatprep.subr.mxu0 0.0
    %2677 = vmatpush1.msra.mxu0 0.0
    %2678 = vmatprep.subr.mxu0 0.0
    %2679 = vmatpush1.msra.mxu0 0.0
    %2680 = vmatprep.subr.mxu0 0.0
    %2681 = vmatpush1.msra.mxu0 0.0
    %2682 = vmatprep.subr.mxu0 0.0
    %2683 = vmatpush1.msra.mxu0 0.0
    %2684 = vmatprep.subr.mxu0 0.0
    %2685 = vmatpush1.msra.mxu0 0.0
    %2686 = vmatprep.subr.mxu0 0.0
    %2687 = vmatpush1.msra.mxu0 0.0
    %2688 = vmatprep.subr.mxu0 0.0
    %2689 = vmatpush1.msra.mxu0 0.0
    %2690 = vmatprep.subr.mxu0 0.0
    %2691 = vmatpush1.msra.mxu0 0.0
    %2692 = vmatprep.subr.mxu0 0.0
    %2693 = vmatpush1.msra.mxu0 0.0
    %2694 = vmatprep.subr.mxu0 0.0
    %2695 = vmatpush1.msra.mxu0 0.0
    %2696 = vmatprep.subr.mxu0 0.0
    %2697 = vmatpush1.msra.mxu0 0.0
    %2698 = vmatprep.mubr.f32.mxu0 0.0
    %2699 = vmatmul.mubr.f32.gmra.mrb[0].mxu0 %v1922
    %v2700 = vpop.f32.mrb[0].mxu0
    %v2701 = vadd.f32 %v1524, %v2700
    %v2702 = vpop.f32.mrb[0].mxu0
    %v2703 = vadd.f32 %v1528, %v2702
    %2704 = vdwg.mxu0
    %2705 = vmatprep.subr.mxu0 %v1344
    %2706 = vmatpush1.msra.mxu0 %v1343
    %2707 = vmatprep.subr.mxu0 0.0
    %2708 = vmatpush1.msra.mxu0 0.0
    %2709 = vmatprep.subr.mxu0 0.0
    %2710 = vmatpush1.msra.mxu0 0.0
    %2711 = vmatprep.subr.mxu0 0.0
    %2712 = vmatpush1.msra.mxu0 0.0
    %2713 = vmatprep.subr.mxu0 0.0
    %2714 = vmatpush1.msra.mxu0 0.0
    %2715 = vmatprep.subr.mxu0 0.0
    %2716 = vmatpush1.msra.mxu0 0.0
    %2717 = vmatprep.subr.mxu0 0.0
    %2718 = vmatpush1.msra.mxu0 0.0
    %2719 = vmatprep.subr.mxu0 0.0
    %2720 = vmatpush1.msra.mxu0 0.0
    %2721 = vmatprep.subr.mxu0 0.0
    %2722 = vmatpush1.msra.mxu0 0.0
    %2723 = vmatprep.subr.mxu0 0.0
    %2724 = vmatpush1.msra.mxu0 0.0
    %2725 = vmatprep.subr.mxu0 0.0
    %2726 = vmatpush1.msra.mxu0 0.0
    %2727 = vmatprep.subr.mxu0 0.0
    %2728 = vmatpush1.msra.mxu0 0.0
    %2729 = vmatprep.subr.mxu0 0.0
    %2730 = vmatpush1.msra.mxu0 0.0
    %2731 = vmatprep.subr.mxu0 0.0
    %2732 = vmatpush1.msra.mxu0 0.0
    %2733 = vmatprep.subr.mxu0 0.0
    %2734 = vmatpush1.msra.mxu0 0.0
    %2735 = vmatprep.subr.mxu0 0.0
    %2736 = vmatpush1.msra.mxu0 0.0
    %2737 = vmatprep.subr.mxu0 0.0
    %2738 = vmatpush1.msra.mxu0 0.0
    %2739 = vmatprep.subr.mxu0 0.0
    %2740 = vmatpush1.msra.mxu0 0.0
    %2741 = vmatprep.subr.mxu0 0.0
    %2742 = vmatpush1.msra.mxu0 0.0
    %2743 = vmatprep.subr.mxu0 0.0
    %2744 = vmatpush1.msra.mxu0 0.0
    %2745 = vmatprep.subr.mxu0 0.0
    %2746 = vmatpush1.msra.mxu0 0.0
    %2747 = vmatprep.subr.mxu0 0.0
    %2748 = vmatpush1.msra.mxu0 0.0
    %2749 = vmatprep.subr.mxu0 0.0
    %2750 = vmatpush1.msra.mxu0 0.0
    %2751 = vmatprep.subr.mxu0 0.0
    %2752 = vmatpush1.msra.mxu0 0.0
    %2753 = vmatprep.subr.mxu0 0.0
    %2754 = vmatpush1.msra.mxu0 0.0
    %2755 = vmatprep.subr.mxu0 0.0
    %2756 = vmatpush1.msra.mxu0 0.0
    %2757 = vmatprep.subr.mxu0 0.0
    %2758 = vmatpush1.msra.mxu0 0.0
    %2759 = vmatprep.subr.mxu0 0.0
    %2760 = vmatpush1.msra.mxu0 0.0
    %2761 = vmatprep.subr.mxu0 0.0
    %2762 = vmatpush1.msra.mxu0 0.0
    %2763 = vmatprep.subr.mxu0 0.0
    %2764 = vmatpush1.msra.mxu0 0.0
    %2765 = vmatprep.subr.mxu0 0.0
    %2766 = vmatpush1.msra.mxu0 0.0
    %2767 = vmatprep.subr.mxu0 0.0
    %2768 = vmatpush1.msra.mxu0 0.0
    %2769 = vmatprep.mubr.f32.mxu0 0.0
    %2770 = vmatmul.mubr.f32.gmra.mrb[0].mxu0 %v1922
    %v2771 = vpop.f32.mrb[0].mxu0
    %v2772 = vadd.f32 %v1532, %v2771
    %v2773 = vpop.f32.mrb[0].mxu0
    %v2774 = vadd.f32 %v1536, %v2773
    %2775 = vdwg.mxu0
    %2776 = vmatprep.subr.mxu0 %v1346
    %2777 = vmatpush1.msra.mxu0 %v1345
    %2778 = vmatprep.subr.mxu0 0.0
    %2779 = vmatpush1.msra.mxu0 0.0
    %2780 = vmatprep.subr.mxu0 0.0
    %2781 = vmatpush1.msra.mxu0 0.0
    %2782 = vmatprep.subr.mxu0 0.0
    %2783 = vmatpush1.msra.mxu0 0.0
    %2784 = vmatprep.subr.mxu0 0.0
    %2785 = vmatpush1.msra.mxu0 0.0
    %2786 = vmatprep.subr.mxu0 0.0
    %2787 = vmatpush1.msra.mxu0 0.0
    %2788 = vmatprep.subr.mxu0 0.0
    %2789 = vmatpush1.msra.mxu0 0.0
    %2790 = vmatprep.subr.mxu0 0.0
    %2791 = vmatpush1.msra.mxu0 0.0
    %2792 = vmatprep.subr.mxu0 0.0
    %2793 = vmatpush1.msra.mxu0 0.0
    %2794 = vmatprep.subr.mxu0 0.0
    %2795 = vmatpush1.msra.mxu0 0.0
    %2796 = vmatprep.subr.mxu0 0.0
    %2797 = vmatpush1.msra.mxu0 0.0
    %2798 = vmatprep.subr.mxu0 0.0
    %2799 = vmatpush1.msra.mxu0 0.0
    %2800 = vmatprep.subr.mxu0 0.0
    %2801 = vmatpush1.msra.mxu0 0.0
    %2802 = vmatprep.subr.mxu0 0.0
    %2803 = vmatpush1.msra.mxu0 0.0
    %2804 = vmatprep.subr.mxu0 0.0
    %2805 = vmatpush1.msra.mxu0 0.0
    %2806 = vmatprep.subr.mxu0 0.0
    %2807 = vmatpush1.msra.mxu0 0.0
    %2808 = vmatprep.subr.mxu0 0.0
    %2809 = vmatpush1.msra.mxu0 0.0
    %2810 = vmatprep.subr.mxu0 0.0
    %2811 = vmatpush1.msra.mxu0 0.0
    %2812 = vmatprep.subr.mxu0 0.0
    %2813 = vmatpush1.msra.mxu0 0.0
    %2814 = vmatprep.subr.mxu0 0.0
    %2815 = vmatpush1.msra.mxu0 0.0
    %2816 = vmatprep.subr.mxu0 0.0
    %2817 = vmatpush1.msra.mxu0 0.0
    %2818 = vmatprep.subr.mxu0 0.0
    %2819 = vmatpush1.msra.mxu0 0.0
    %2820 = vmatprep.subr.mxu0 0.0
    %2821 = vmatpush1.msra.mxu0 0.0
    %2822 = vmatprep.subr.mxu0 0.0
    %2823 = vmatpush1.msra.mxu0 0.0
    %2824 = vmatprep.subr.mxu0 0.0
    %2825 = vmatpush1.msra.mxu0 0.0
    %2826 = vmatprep.subr.mxu0 0.0
    %2827 = vmatpush1.msra.mxu0 0.0
    %2828 = vmatprep.subr.mxu0 0.0
    %2829 = vmatpush1.msra.mxu0 0.0
    %2830 = vmatprep.subr.mxu0 0.0
    %2831 = vmatpush1.msra.mxu0 0.0
    %2832 = vmatprep.subr.mxu0 0.0
    %2833 = vmatpush1.msra.mxu0 0.0
    %2834 = vmatprep.subr.mxu0 0.0
    %2835 = vmatpush1.msra.mxu0 0.0
    %2836 = vmatprep.subr.mxu0 0.0
    %2837 = vmatpush1.msra.mxu0 0.0
    %2838 = vmatprep.subr.mxu0 0.0
    %2839 = vmatpush1.msra.mxu0 0.0
    %2840 = vmatprep.mubr.f32.mxu0 0.0
    %2841 = vmatmul.mubr.f32.gmra.mrb[0].mxu0 %v1922
    %v2842 = vpop.f32.mrb[0].mxu0
    %v2843 = vadd.f32 %v1540, %v2842
    %v2844 = vpop.f32.mrb[0].mxu0
    %v2845 = vadd.f32 %v1544, %v2844
    %2846 = vdwg.mxu0
    %2847 = vmatprep.subr.mxu0 %v1348
    %2848 = vmatpush1.msra.mxu0 %v1347
    %2849 = vmatprep.subr.mxu0 0.0
    %2850 = vmatpush1.msra.mxu0 0.0
    %2851 = vmatprep.subr.mxu0 0.0
    %2852 = vmatpush1.msra.mxu0 0.0
    %2853 = vmatprep.subr.mxu0 0.0
    %2854 = vmatpush1.msra.mxu0 0.0
    %2855 = vmatprep.subr.mxu0 0.0
    %2856 = vmatpush1.msra.mxu0 0.0
    %2857 = vmatprep.subr.mxu0 0.0
    %2858 = vmatpush1.msra.mxu0 0.0
    %2859 = vmatprep.subr.mxu0 0.0
    %2860 = vmatpush1.msra.mxu0 0.0
    %2861 = vmatprep.subr.mxu0 0.0
    %2862 = vmatpush1.msra.mxu0 0.0
    %2863 = vmatprep.subr.mxu0 0.0
    %2864 = vmatpush1.msra.mxu0 0.0
    %2865 = vmatprep.subr.mxu0 0.0
    %2866 = vmatpush1.msra.mxu0 0.0
    %2867 = vmatprep.subr.mxu0 0.0
    %2868 = vmatpush1.msra.mxu0 0.0
    %2869 = vmatprep.subr.mxu0 0.0
    %2870 = vmatpush1.msra.mxu0 0.0
    %2871 = vmatprep.subr.mxu0 0.0
    %2872 = vmatpush1.msra.mxu0 0.0
    %2873 = vmatprep.subr.mxu0 0.0
    %2874 = vmatpush1.msra.mxu0 0.0
    %2875 = vmatprep.subr.mxu0 0.0
    %2876 = vmatpush1.msra.mxu0 0.0
    %2877 = vmatprep.subr.mxu0 0.0
    %2878 = vmatpush1.msra.mxu0 0.0
    %2879 = vmatprep.subr.mxu0 0.0
    %2880 = vmatpush1.msra.mxu0 0.0
    %2881 = vmatprep.subr.mxu0 0.0
    %2882 = vmatpush1.msra.mxu0 0.0
    %2883 = vmatprep.subr.mxu0 0.0
    %2884 = vmatpush1.msra.mxu0 0.0
    %2885 = vmatprep.subr.mxu0 0.0
    %2886 = vmatpush1.msra.mxu0 0.0
    %2887 = vmatprep.subr.mxu0 0.0
    %2888 = vmatpush1.msra.mxu0 0.0
    %2889 = vmatprep.subr.mxu0 0.0
    %2890 = vmatpush1.msra.mxu0 0.0
    %2891 = vmatprep.subr.mxu0 0.0
    %2892 = vmatpush1.msra.mxu0 0.0
    %2893 = vmatprep.subr.mxu0 0.0
    %2894 = vmatpush1.msra.mxu0 0.0
    %2895 = vmatprep.subr.mxu0 0.0
    %2896 = vmatpush1.msra.mxu0 0.0
    %2897 = vmatprep.subr.mxu0 0.0
    %2898 = vmatpush1.msra.mxu0 0.0
    %2899 = vmatprep.subr.mxu0 0.0
    %2900 = vmatpush1.msra.mxu0 0.0
    %2901 = vmatprep.subr.mxu0 0.0
    %2902 = vmatpush1.msra.mxu0 0.0
    %2903 = vmatprep.subr.mxu0 0.0
    %2904 = vmatpush1.msra.mxu0 0.0
    %2905 = vmatprep.subr.mxu0 0.0
    %2906 = vmatpush1.msra.mxu0 0.0
    %2907 = vmatprep.subr.mxu0 0.0
    %2908 = vmatpush1.msra.mxu0 0.0
    %2909 = vmatprep.subr.mxu0 0.0
    %2910 = vmatpush1.msra.mxu0 0.0
    %2911 = vmatprep.mubr.f32.mxu0 0.0
    %2912 = vmatmul.mubr.f32.gmra.mrb[0].mxu0 %v1922
    %v2913 = vpop.f32.mrb[0].mxu0
    %v2914 = vadd.f32 %v1548, %v2913
    %v2915 = vpop.f32.mrb[0].mxu0
    %v2916 = vadd.f32 %v1552, %v2915
    %2917 = vdwg.mxu0
    %2918 = vmatprep.subr.mxu0 %v1350
    %2919 = vmatpush1.msra.mxu0 %v1349
    %2920 = vmatprep.subr.mxu0 0.0
    %2921 = vmatpush1.msra.mxu0 0.0
    %2922 = vmatprep.subr.mxu0 0.0
    %2923 = vmatpush1.msra.mxu0 0.0
    %2924 = vmatprep.subr.mxu0 0.0
    %2925 = vmatpush1.msra.mxu0 0.0
    %2926 = vmatprep.subr.mxu0 0.0
    %2927 = vmatpush1.msra.mxu0 0.0
    %2928 = vmatprep.subr.mxu0 0.0
    %2929 = vmatpush1.msra.mxu0 0.0
    %2930 = vmatprep.subr.mxu0 0.0
    %2931 = vmatpush1.msra.mxu0 0.0
    %2932 = vmatprep.subr.mxu0 0.0
    %2933 = vmatpush1.msra.mxu0 0.0
    %2934 = vmatprep.subr.mxu0 0.0
    %2935 = vmatpush1.msra.mxu0 0.0
    %2936 = vmatprep.subr.mxu0 0.0
    %2937 = vmatpush1.msra.mxu0 0.0
    %2938 = vmatprep.subr.mxu0 0.0
    %2939 = vmatpush1.msra.mxu0 0.0
    %2940 = vmatprep.subr.mxu0 0.0
    %2941 = vmatpush1.msra.mxu0 0.0
    %2942 = vmatprep.subr.mxu0 0.0
    %2943 = vmatpush1.msra.mxu0 0.0
    %2944 = vmatprep.subr.mxu0 0.0
    %2945 = vmatpush1.msra.mxu0 0.0
    %2946 = vmatprep.subr.mxu0 0.0
    %2947 = vmatpush1.msra.mxu0 0.0
    %2948 = vmatprep.subr.mxu0 0.0
    %2949 = vmatpush1.msra.mxu0 0.0
    %2950 = vmatprep.subr.mxu0 0.0
    %2951 = vmatpush1.msra.mxu0 0.0
    %2952 = vmatprep.subr.mxu0 0.0
    %2953 = vmatpush1.msra.mxu0 0.0
    %2954 = vmatprep.subr.mxu0 0.0
    %2955 = vmatpush1.msra.mxu0 0.0
    %2956 = vmatprep.subr.mxu0 0.0
    %2957 = vmatpush1.msra.mxu0 0.0
    %2958 = vmatprep.subr.mxu0 0.0
    %2959 = vmatpush1.msra.mxu0 0.0
    %2960 = vmatprep.subr.mxu0 0.0
    %2961 = vmatpush1.msra.mxu0 0.0
    %2962 = vmatprep.subr.mxu0 0.0
    %2963 = vmatpush1.msra.mxu0 0.0
    %2964 = vmatprep.subr.mxu0 0.0
    %2965 = vmatpush1.msra.mxu0 0.0
    %2966 = vmatprep.subr.mxu0 0.0
    %2967 = vmatpush1.msra.mxu0 0.0
    %2968 = vmatprep.subr.mxu0 0.0
    %2969 = vmatpush1.msra.mxu0 0.0
    %2970 = vmatprep.subr.mxu0 0.0
    %2971 = vmatpush1.msra.mxu0 0.0
    %2972 = vmatprep.subr.mxu0 0.0
    %2973 = vmatpush1.msra.mxu0 0.0
    %2974 = vmatprep.subr.mxu0 0.0
    %2975 = vmatpush1.msra.mxu0 0.0
    %2976 = vmatprep.subr.mxu0 0.0
    %2977 = vmatpush1.msra.mxu0 0.0
    %2978 = vmatprep.subr.mxu0 0.0
    %2979 = vmatpush1.msra.mxu0 0.0
    %2980 = vmatprep.subr.mxu0 0.0
    %2981 = vmatpush1.msra.mxu0 0.0
    %2982 = vmatprep.mubr.f32.mxu0 0.0
    %2983 = vmatmul.mubr.f32.gmra.mrb[0].mxu0 %v1922
    %v2984 = vpop.f32.mrb[0].mxu0
    %v2985 = vadd.f32 %v1556, %v2984
    %v2986 = vpop.f32.mrb[0].mxu0
    %v2987 = vadd.f32 %v1560, %v2986
    %2988 = vdwg.mxu0
    %2989 = vmatprep.subr.mxu0 %v1352
    %2990 = vmatpush1.msra.mxu0 %v1351
    %2991 = vmatprep.subr.mxu0 0.0
    %2992 = vmatpush1.msra.mxu0 0.0
    %2993 = vmatprep.subr.mxu0 0.0
    %2994 = vmatpush1.msra.mxu0 0.0
    %2995 = vmatprep.subr.mxu0 0.0
    %2996 = vmatpush1.msra.mxu0 0.0
    %2997 = vmatprep.subr.mxu0 0.0
    %2998 = vmatpush1.msra.mxu0 0.0
    %2999 = vmatprep.subr.mxu0 0.0
    %3000 = vmatpush1.msra.mxu0 0.0
    %3001 = vmatprep.subr.mxu0 0.0
    %3002 = vmatpush1.msra.mxu0 0.0
    %3003 = vmatprep.subr.mxu0 0.0
    %3004 = vmatpush1.msra.mxu0 0.0
    %3005 = vmatprep.subr.mxu0 0.0
    %3006 = vmatpush1.msra.mxu0 0.0
    %3007 = vmatprep.subr.mxu0 0.0
    %3008 = vmatpush1.msra.mxu0 0.0
    %3009 = vmatprep.subr.mxu0 0.0
    %3010 = vmatpush1.msra.mxu0 0.0
    %3011 = vmatprep.subr.mxu0 0.0
    %3012 = vmatpush1.msra.mxu0 0.0
    %3013 = vmatprep.subr.mxu0 0.0
    %3014 = vmatpush1.msra.mxu0 0.0
    %3015 = vmatprep.subr.mxu0 0.0
    %3016 = vmatpush1.msra.mxu0 0.0
    %3017 = vmatprep.subr.mxu0 0.0
    %3018 = vmatpush1.msra.mxu0 0.0
    %3019 = vmatprep.subr.mxu0 0.0
    %3020 = vmatpush1.msra.mxu0 0.0
    %3021 = vmatprep.subr.mxu0 0.0
    %3022 = vmatpush1.msra.mxu0 0.0
    %3023 = vmatprep.subr.mxu0 0.0
    %3024 = vmatpush1.msra.mxu0 0.0
    %3025 = vmatprep.subr.mxu0 0.0
    %3026 = vmatpush1.msra.mxu0 0.0
    %3027 = vmatprep.subr.mxu0 0.0
    %3028 = vmatpush1.msra.mxu0 0.0
    %3029 = vmatprep.subr.mxu0 0.0
    %3030 = vmatpush1.msra.mxu0 0.0
    %3031 = vmatprep.subr.mxu0 0.0
    %3032 = vmatpush1.msra.mxu0 0.0
    %3033 = vmatprep.subr.mxu0 0.0
    %3034 = vmatpush1.msra.mxu0 0.0
    %3035 = vmatprep.subr.mxu0 0.0
    %3036 = vmatpush1.msra.mxu0 0.0
    %3037 = vmatprep.subr.mxu0 0.0
    %3038 = vmatpush1.msra.mxu0 0.0
    %3039 = vmatprep.subr.mxu0 0.0
    %3040 = vmatpush1.msra.mxu0 0.0
    %3041 = vmatprep.subr.mxu0 0.0
    %3042 = vmatpush1.msra.mxu0 0.0
    %3043 = vmatprep.subr.mxu0 0.0
    %3044 = vmatpush1.msra.mxu0 0.0
    %3045 = vmatprep.subr.mxu0 0.0
    %3046 = vmatpush1.msra.mxu0 0.0
    %3047 = vmatprep.subr.mxu0 0.0
    %3048 = vmatpush1.msra.mxu0 0.0
    %3049 = vmatprep.subr.mxu0 0.0
    %3050 = vmatpush1.msra.mxu0 0.0
    %3051 = vmatprep.subr.mxu0 0.0
    %3052 = vmatpush1.msra.mxu0 0.0
    %3053 = vmatprep.mubr.f32.mxu0 0.0
    %3054 = vmatmul.mubr.f32.gmra.mrb[0].mxu0 %v1922
    %v3055 = vpop.f32.mrb[0].mxu0
    %v3056 = vadd.f32 %v1564, %v3055
    %v3057 = vpop.f32.mrb[0].mxu0
    %v3058 = vadd.f32 %v1568, %v3057
    %3059 = vdwg.mxu0
    %3060 = vmatprep.subr.mxu0 %v1354
    %3061 = vmatpush1.msra.mxu0 %v1353
    %3062 = vmatprep.subr.mxu0 0.0
    %3063 = vmatpush1.msra.mxu0 0.0
    %3064 = vmatprep.subr.mxu0 0.0
    %3065 = vmatpush1.msra.mxu0 0.0
    %3066 = vmatprep.subr.mxu0 0.0
    %3067 = vmatpush1.msra.mxu0 0.0
    %3068 = vmatprep.subr.mxu0 0.0
    %3069 = vmatpush1.msra.mxu0 0.0
    %3070 = vmatprep.subr.mxu0 0.0
    %3071 = vmatpush1.msra.mxu0 0.0
    %3072 = vmatprep.subr.mxu0 0.0
    %3073 = vmatpush1.msra.mxu0 0.0
    %3074 = vmatprep.subr.mxu0 0.0
    %3075 = vmatpush1.msra.mxu0 0.0
    %3076 = vmatprep.subr.mxu0 0.0
    %3077 = vmatpush1.msra.mxu0 0.0
    %3078 = vmatprep.subr.mxu0 0.0
    %3079 = vmatpush1.msra.mxu0 0.0
    %3080 = vmatprep.subr.mxu0 0.0
    %3081 = vmatpush1.msra.mxu0 0.0
    %3082 = vmatprep.subr.mxu0 0.0
    %3083 = vmatpush1.msra.mxu0 0.0
    %3084 = vmatprep.subr.mxu0 0.0
    %3085 = vmatpush1.msra.mxu0 0.0
    %3086 = vmatprep.subr.mxu0 0.0
    %3087 = vmatpush1.msra.mxu0 0.0
    %3088 = vmatprep.subr.mxu0 0.0
    %3089 = vmatpush1.msra.mxu0 0.0
    %3090 = vmatprep.subr.mxu0 0.0
    %3091 = vmatpush1.msra.mxu0 0.0
    %3092 = vmatprep.subr.mxu0 0.0
    %3093 = vmatpush1.msra.mxu0 0.0
    %3094 = vmatprep.subr.mxu0 0.0
    %3095 = vmatpush1.msra.mxu0 0.0
    %3096 = vmatprep.subr.mxu0 0.0
    %3097 = vmatpush1.msra.mxu0 0.0
    %3098 = vmatprep.subr.mxu0 0.0
    %3099 = vmatpush1.msra.mxu0 0.0
    %3100 = vmatprep.subr.mxu0 0.0
    %3101 = vmatpush1.msra.mxu0 0.0
    %3102 = vmatprep.subr.mxu0 0.0
    %3103 = vmatpush1.msra.mxu0 0.0
    %3104 = vmatprep.subr.mxu0 0.0
    %3105 = vmatpush1.msra.mxu0 0.0
    %3106 = vmatprep.subr.mxu0 0.0
    %3107 = vmatpush1.msra.mxu0 0.0
    %3108 = vmatprep.subr.mxu0 0.0
    %3109 = vmatpush1.msra.mxu0 0.0
    %3110 = vmatprep.subr.mxu0 0.0
    %3111 = vmatpush1.msra.mxu0 0.0
    %3112 = vmatprep.subr.mxu0 0.0
    %3113 = vmatpush1.msra.mxu0 0.0
    %3114 = vmatprep.subr.mxu0 0.0
    %3115 = vmatpush1.msra.mxu0 0.0
    %3116 = vmatprep.subr.mxu0 0.0
    %3117 = vmatpush1.msra.mxu0 0.0
    %3118 = vmatprep.subr.mxu0 0.0
    %3119 = vmatpush1.msra.mxu0 0.0
    %3120 = vmatprep.subr.mxu0 0.0
    %3121 = vmatpush1.msra.mxu0 0.0
    %3122 = vmatprep.subr.mxu0 0.0
    %3123 = vmatpush1.msra.mxu0 0.0
    %3124 = vmatprep.mubr.f32.mxu0 0.0
    %3125 = vmatmul.mubr.f32.gmra.mrb[0].mxu0 %v1922
    %v3126 = vpop.f32.mrb[0].mxu0
    %v3127 = vadd.f32 %v1572, %v3126
    %v3128 = vpop.f32.mrb[0].mxu0
    %v3129 = vadd.f32 %v1576, %v3128
    %3130 = vdwg.mxu0
    %3131 = vmatprep.subr.mxu0 %v1356
    %3132 = vmatpush1.msra.mxu0 %v1355
    %3133 = vmatprep.subr.mxu0 0.0
    %3134 = vmatpush1.msra.mxu0 0.0
    %3135 = vmatprep.subr.mxu0 0.0
    %3136 = vmatpush1.msra.mxu0 0.0
    %3137 = vmatprep.subr.mxu0 0.0
    %3138 = vmatpush1.msra.mxu0 0.0
    %3139 = vmatprep.subr.mxu0 0.0
    %3140 = vmatpush1.msra.mxu0 0.0
    %3141 = vmatprep.subr.mxu0 0.0
    %3142 = vmatpush1.msra.mxu0 0.0
    %3143 = vmatprep.subr.mxu0 0.0
    %3144 = vmatpush1.msra.mxu0 0.0
    %3145 = vmatprep.subr.mxu0 0.0
    %3146 = vmatpush1.msra.mxu0 0.0
    %3147 = vmatprep.subr.mxu0 0.0
    %3148 = vmatpush1.msra.mxu0 0.0
    %3149 = vmatprep.subr.mxu0 0.0
    %3150 = vmatpush1.msra.mxu0 0.0
    %3151 = vmatprep.subr.mxu0 0.0
    %3152 = vmatpush1.msra.mxu0 0.0
    %3153 = vmatprep.subr.mxu0 0.0
    %3154 = vmatpush1.msra.mxu0 0.0
    %3155 = vmatprep.subr.mxu0 0.0
    %3156 = vmatpush1.msra.mxu0 0.0
    %3157 = vmatprep.subr.mxu0 0.0
    %3158 = vmatpush1.msra.mxu0 0.0
    %3159 = vmatprep.subr.mxu0 0.0
    %3160 = vmatpush1.msra.mxu0 0.0
    %3161 = vmatprep.subr.mxu0 0.0
    %3162 = vmatpush1.msra.mxu0 0.0
    %3163 = vmatprep.subr.mxu0 0.0
    %3164 = vmatpush1.msra.mxu0 0.0
    %3165 = vmatprep.subr.mxu0 0.0
    %3166 = vmatpush1.msra.mxu0 0.0
    %3167 = vmatprep.subr.mxu0 0.0
    %3168 = vmatpush1.msra.mxu0 0.0
    %3169 = vmatprep.subr.mxu0 0.0
    %3170 = vmatpush1.msra.mxu0 0.0
    %3171 = vmatprep.subr.mxu0 0.0
    %3172 = vmatpush1.msra.mxu0 0.0
    %3173 = vmatprep.subr.mxu0 0.0
    %3174 = vmatpush1.msra.mxu0 0.0
    %3175 = vmatprep.subr.mxu0 0.0
    %3176 = vmatpush1.msra.mxu0 0.0
    %3177 = vmatprep.subr.mxu0 0.0
    %3178 = vmatpush1.msra.mxu0 0.0
    %3179 = vmatprep.subr.mxu0 0.0
    %3180 = vmatpush1.msra.mxu0 0.0
    %3181 = vmatprep.subr.mxu0 0.0
    %3182 = vmatpush1.msra.mxu0 0.0
    %3183 = vmatprep.subr.mxu0 0.0
    %3184 = vmatpush1.msra.mxu0 0.0
    %3185 = vmatprep.subr.mxu0 0.0
    %3186 = vmatpush1.msra.mxu0 0.0
    %3187 = vmatprep.subr.mxu0 0.0
    %3188 = vmatpush1.msra.mxu0 0.0
    %3189 = vmatprep.subr.mxu0 0.0
    %3190 = vmatpush1.msra.mxu0 0.0
    %3191 = vmatprep.subr.mxu0 0.0
    %3192 = vmatpush1.msra.mxu0 0.0
    %3193 = vmatprep.subr.mxu0 0.0
    %3194 = vmatpush1.msra.mxu0 0.0
    %3195 = vmatprep.mubr.f32.mxu0 0.0
    %3196 = vmatmul.mubr.f32.gmra.mrb[0].mxu0 %v1922
    %v3197 = vpop.f32.mrb[0].mxu0
    %v3198 = vadd.f32 %v1580, %v3197
    %v3199 = vpop.f32.mrb[0].mxu0
    %v3200 = vadd.f32 %v1584, %v3199
    %3201 = vdwg.mxu0
    %3202 = vmatprep.subr.mxu0 %v1358
    %3203 = vmatpush1.msra.mxu0 %v1357
    %3204 = vmatprep.subr.mxu0 0.0
    %3205 = vmatpush1.msra.mxu0 0.0
    %3206 = vmatprep.subr.mxu0 0.0
    %3207 = vmatpush1.msra.mxu0 0.0
    %3208 = vmatprep.subr.mxu0 0.0
    %3209 = vmatpush1.msra.mxu0 0.0
    %3210 = vmatprep.subr.mxu0 0.0
    %3211 = vmatpush1.msra.mxu0 0.0
    %3212 = vmatprep.subr.mxu0 0.0
    %3213 = vmatpush1.msra.mxu0 0.0
    %3214 = vmatprep.subr.mxu0 0.0
    %3215 = vmatpush1.msra.mxu0 0.0
    %3216 = vmatprep.subr.mxu0 0.0
    %3217 = vmatpush1.msra.mxu0 0.0
    %3218 = vmatprep.subr.mxu0 0.0
    %3219 = vmatpush1.msra.mxu0 0.0
    %3220 = vmatprep.subr.mxu0 0.0
    %3221 = vmatpush1.msra.mxu0 0.0
    %3222 = vmatprep.subr.mxu0 0.0
    %3223 = vmatpush1.msra.mxu0 0.0
    %3224 = vmatprep.subr.mxu0 0.0
    %3225 = vmatpush1.msra.mxu0 0.0
    %3226 = vmatprep.subr.mxu0 0.0
    %3227 = vmatpush1.msra.mxu0 0.0
    %3228 = vmatprep.subr.mxu0 0.0
    %3229 = vmatpush1.msra.mxu0 0.0
    %3230 = vmatprep.subr.mxu0 0.0
    %3231 = vmatpush1.msra.mxu0 0.0
    %3232 = vmatprep.subr.mxu0 0.0
    %3233 = vmatpush1.msra.mxu0 0.0
    %3234 = vmatprep.subr.mxu0 0.0
    %3235 = vmatpush1.msra.mxu0 0.0
    %3236 = vmatprep.subr.mxu0 0.0
    %3237 = vmatpush1.msra.mxu0 0.0
    %3238 = vmatprep.subr.mxu0 0.0
    %3239 = vmatpush1.msra.mxu0 0.0
    %3240 = vmatprep.subr.mxu0 0.0
    %3241 = vmatpush1.msra.mxu0 0.0
    %3242 = vmatprep.subr.mxu0 0.0
    %3243 = vmatpush1.msra.mxu0 0.0
    %3244 = vmatprep.subr.mxu0 0.0
    %3245 = vmatpush1.msra.mxu0 0.0
    %3246 = vmatprep.subr.mxu0 0.0
    %3247 = vmatpush1.msra.mxu0 0.0
    %3248 = vmatprep.subr.mxu0 0.0
    %3249 = vmatpush1.msra.mxu0 0.0
    %3250 = vmatprep.subr.mxu0 0.0
    %3251 = vmatpush1.msra.mxu0 0.0
    %3252 = vmatprep.subr.mxu0 0.0
    %3253 = vmatpush1.msra.mxu0 0.0
    %3254 = vmatprep.subr.mxu0 0.0
    %3255 = vmatpush1.msra.mxu0 0.0
    %3256 = vmatprep.subr.mxu0 0.0
    %3257 = vmatpush1.msra.mxu0 0.0
    %3258 = vmatprep.subr.mxu0 0.0
    %3259 = vmatpush1.msra.mxu0 0.0
    %3260 = vmatprep.subr.mxu0 0.0
    %3261 = vmatpush1.msra.mxu0 0.0
    %3262 = vmatprep.subr.mxu0 0.0
    %3263 = vmatpush1.msra.mxu0 0.0
    %3264 = vmatprep.subr.mxu0 0.0
    %3265 = vmatpush1.msra.mxu0 0.0
    %3266 = vmatprep.mubr.f32.mxu0 0.0
    %3267 = vmatmul.mubr.f32.gmra.mrb[0].mxu0 %v1922
    %v3268 = vpop.f32.mrb[0].mxu0
    %v3269 = vadd.f32 %v1588, %v3268
    %v3270 = vpop.f32.mrb[0].mxu0
    %v3271 = vadd.f32 %v1592, %v3270
    %3272 = vdwg.mxu0
    %3273 = vmatprep.subr.mxu0 %v1360
    %3274 = vmatpush1.msra.mxu0 %v1359
    %3275 = vmatprep.subr.mxu0 0.0
    %3276 = vmatpush1.msra.mxu0 0.0
    %3277 = vmatprep.subr.mxu0 0.0
    %3278 = vmatpush1.msra.mxu0 0.0
    %3279 = vmatprep.subr.mxu0 0.0
    %3280 = vmatpush1.msra.mxu0 0.0
    %3281 = vmatprep.subr.mxu0 0.0
    %3282 = vmatpush1.msra.mxu0 0.0
    %3283 = vmatprep.subr.mxu0 0.0
    %3284 = vmatpush1.msra.mxu0 0.0
    %3285 = vmatprep.subr.mxu0 0.0
    %3286 = vmatpush1.msra.mxu0 0.0
    %3287 = vmatprep.subr.mxu0 0.0
    %3288 = vmatpush1.msra.mxu0 0.0
    %3289 = vmatprep.subr.mxu0 0.0
    %3290 = vmatpush1.msra.mxu0 0.0
    %3291 = vmatprep.subr.mxu0 0.0
    %3292 = vmatpush1.msra.mxu0 0.0
    %3293 = vmatprep.subr.mxu0 0.0
    %3294 = vmatpush1.msra.mxu0 0.0
    %3295 = vmatprep.subr.mxu0 0.0
    %3296 = vmatpush1.msra.mxu0 0.0
    %3297 = vmatprep.subr.mxu0 0.0
    %3298 = vmatpush1.msra.mxu0 0.0
    %3299 = vmatprep.subr.mxu0 0.0
    %3300 = vmatpush1.msra.mxu0 0.0
    %3301 = vmatprep.subr.mxu0 0.0
    %3302 = vmatpush1.msra.mxu0 0.0
    %3303 = vmatprep.subr.mxu0 0.0
    %3304 = vmatpush1.msra.mxu0 0.0
    %3305 = vmatprep.subr.mxu0 0.0
    %3306 = vmatpush1.msra.mxu0 0.0
    %3307 = vmatprep.subr.mxu0 0.0
    %3308 = vmatpush1.msra.mxu0 0.0
    %3309 = vmatprep.subr.mxu0 0.0
    %3310 = vmatpush1.msra.mxu0 0.0
    %3311 = vmatprep.subr.mxu0 0.0
    %3312 = vmatpush1.msra.mxu0 0.0
    %3313 = vmatprep.subr.mxu0 0.0
    %3314 = vmatpush1.msra.mxu0 0.0
    %3315 = vmatprep.subr.mxu0 0.0
    %3316 = vmatpush1.msra.mxu0 0.0
    %3317 = vmatprep.subr.mxu0 0.0
    %3318 = vmatpush1.msra.mxu0 0.0
    %3319 = vmatprep.subr.mxu0 0.0
    %3320 = vmatpush1.msra.mxu0 0.0
    %3321 = vmatprep.subr.mxu0 0.0
    %3322 = vmatpush1.msra.mxu0 0.0
    %3323 = vmatprep.subr.mxu0 0.0
    %3324 = vmatpush1.msra.mxu0 0.0
    %3325 = vmatprep.subr.mxu0 0.0
    %3326 = vmatpush1.msra.mxu0 0.0
    %3327 = vmatprep.subr.mxu0 0.0
    %3328 = vmatpush1.msra.mxu0 0.0
    %3329 = vmatprep.subr.mxu0 0.0
    %3330 = vmatpush1.msra.mxu0 0.0
    %3331 = vmatprep.subr.mxu0 0.0
    %3332 = vmatpush1.msra.mxu0 0.0
    %3333 = vmatprep.subr.mxu0 0.0
    %3334 = vmatpush1.msra.mxu0 0.0
    %3335 = vmatprep.subr.mxu0 0.0
    %3336 = vmatpush1.msra.mxu0 0.0
    %3337 = vmatprep.mubr.f32.mxu0 0.0
    %3338 = vmatmul.mubr.f32.gmra.mrb[0].mxu0 %v1922
    %v3339 = vpop.f32.mrb[0].mxu0
    %v3340 = vadd.f32 %v1596, %v3339
    %v3341 = vpop.f32.mrb[0].mxu0
    %v3342 = vadd.f32 %v1600, %v3341
    %3343 = vdwg.mxu0
    %3344 = vmatprep.subr.mxu0 %v1362
    %3345 = vmatpush1.msra.mxu0 %v1361
    %3346 = vmatprep.subr.mxu0 0.0
    %3347 = vmatpush1.msra.mxu0 0.0
    %3348 = vmatprep.subr.mxu0 0.0
    %3349 = vmatpush1.msra.mxu0 0.0
    %3350 = vmatprep.subr.mxu0 0.0
    %3351 = vmatpush1.msra.mxu0 0.0
    %3352 = vmatprep.subr.mxu0 0.0
    %3353 = vmatpush1.msra.mxu0 0.0
    %3354 = vmatprep.subr.mxu0 0.0
    %3355 = vmatpush1.msra.mxu0 0.0
    %3356 = vmatprep.subr.mxu0 0.0
    %3357 = vmatpush1.msra.mxu0 0.0
    %3358 = vmatprep.subr.mxu0 0.0
    %3359 = vmatpush1.msra.mxu0 0.0
    %3360 = vmatprep.subr.mxu0 0.0
    %3361 = vmatpush1.msra.mxu0 0.0
    %3362 = vmatprep.subr.mxu0 0.0
    %3363 = vmatpush1.msra.mxu0 0.0
    %3364 = vmatprep.subr.mxu0 0.0
    %3365 = vmatpush1.msra.mxu0 0.0
    %3366 = vmatprep.subr.mxu0 0.0
    %3367 = vmatpush1.msra.mxu0 0.0
    %3368 = vmatprep.subr.mxu0 0.0
    %3369 = vmatpush1.msra.mxu0 0.0
    %3370 = vmatprep.subr.mxu0 0.0
    %3371 = vmatpush1.msra.mxu0 0.0
    %3372 = vmatprep.subr.mxu0 0.0
    %3373 = vmatpush1.msra.mxu0 0.0
    %3374 = vmatprep.subr.mxu0 0.0
    %3375 = vmatpush1.msra.mxu0 0.0
    %3376 = vmatprep.subr.mxu0 0.0
    %3377 = vmatpush1.msra.mxu0 0.0
    %3378 = vmatprep.subr.mxu0 0.0
    %3379 = vmatpush1.msra.mxu0 0.0
    %3380 = vmatprep.subr.mxu0 0.0
    %3381 = vmatpush1.msra.mxu0 0.0
    %3382 = vmatprep.subr.mxu0 0.0
    %3383 = vmatpush1.msra.mxu0 0.0
    %3384 = vmatprep.subr.mxu0 0.0
    %3385 = vmatpush1.msra.mxu0 0.0
    %3386 = vmatprep.subr.mxu0 0.0
    %3387 = vmatpush1.msra.mxu0 0.0
    %3388 = vmatprep.subr.mxu0 0.0
    %3389 = vmatpush1.msra.mxu0 0.0
    %3390 = vmatprep.subr.mxu0 0.0
    %3391 = vmatpush1.msra.mxu0 0.0
    %3392 = vmatprep.subr.mxu0 0.0
    %3393 = vmatpush1.msra.mxu0 0.0
    %3394 = vmatprep.subr.mxu0 0.0
    %3395 = vmatpush1.msra.mxu0 0.0
    %3396 = vmatprep.subr.mxu0 0.0
    %3397 = vmatpush1.msra.mxu0 0.0
    %3398 = vmatprep.subr.mxu0 0.0
    %3399 = vmatpush1.msra.mxu0 0.0
    %3400 = vmatprep.subr.mxu0 0.0
    %3401 = vmatpush1.msra.mxu0 0.0
    %3402 = vmatprep.subr.mxu0 0.0
    %3403 = vmatpush1.msra.mxu0 0.0
    %3404 = vmatprep.subr.mxu0 0.0
    %3405 = vmatpush1.msra.mxu0 0.0
    %3406 = vmatprep.subr.mxu0 0.0
    %3407 = vmatpush1.msra.mxu0 0.0
    %3408 = vmatprep.mubr.f32.mxu0 0.0
    %3409 = vmatmul.mubr.f32.gmra.mrb[0].mxu0 %v1922
    %v3410 = vpop.f32.mrb[0].mxu0
    %v3411 = vadd.f32 %v1604, %v3410
    %v3412 = vpop.f32.mrb[0].mxu0
    %v3413 = vadd.f32 %v1608, %v3412
    %3414 = vdwg.mxu0
    %3415 = vmatprep.subr.mxu0 %v1364
    %3416 = vmatpush1.msra.mxu0 %v1363
    %3417 = vmatprep.subr.mxu0 0.0
    %3418 = vmatpush1.msra.mxu0 0.0
    %3419 = vmatprep.subr.mxu0 0.0
    %3420 = vmatpush1.msra.mxu0 0.0
    %3421 = vmatprep.subr.mxu0 0.0
    %3422 = vmatpush1.msra.mxu0 0.0
    %3423 = vmatprep.subr.mxu0 0.0
    %3424 = vmatpush1.msra.mxu0 0.0
    %3425 = vmatprep.subr.mxu0 0.0
    %3426 = vmatpush1.msra.mxu0 0.0
    %3427 = vmatprep.subr.mxu0 0.0
    %3428 = vmatpush1.msra.mxu0 0.0
    %3429 = vmatprep.subr.mxu0 0.0
    %3430 = vmatpush1.msra.mxu0 0.0
    %3431 = vmatprep.subr.mxu0 0.0
    %3432 = vmatpush1.msra.mxu0 0.0
    %3433 = vmatprep.subr.mxu0 0.0
    %3434 = vmatpush1.msra.mxu0 0.0
    %3435 = vmatprep.subr.mxu0 0.0
    %3436 = vmatpush1.msra.mxu0 0.0
    %3437 = vmatprep.subr.mxu0 0.0
    %3438 = vmatpush1.msra.mxu0 0.0
    %3439 = vmatprep.subr.mxu0 0.0
    %3440 = vmatpush1.msra.mxu0 0.0
    %3441 = vmatprep.subr.mxu0 0.0
    %3442 = vmatpush1.msra.mxu0 0.0
    %3443 = vmatprep.subr.mxu0 0.0
    %3444 = vmatpush1.msra.mxu0 0.0
    %3445 = vmatprep.subr.mxu0 0.0
    %3446 = vmatpush1.msra.mxu0 0.0
    %3447 = vmatprep.subr.mxu0 0.0
    %3448 = vmatpush1.msra.mxu0 0.0
    %3449 = vmatprep.subr.mxu0 0.0
    %3450 = vmatpush1.msra.mxu0 0.0
    %3451 = vmatprep.subr.mxu0 0.0
    %3452 = vmatpush1.msra.mxu0 0.0
    %3453 = vmatprep.subr.mxu0 0.0
    %3454 = vmatpush1.msra.mxu0 0.0
    %3455 = vmatprep.subr.mxu0 0.0
    %3456 = vmatpush1.msra.mxu0 0.0
    %3457 = vmatprep.subr.mxu0 0.0
    %3458 = vmatpush1.msra.mxu0 0.0
    %3459 = vmatprep.subr.mxu0 0.0
    %3460 = vmatpush1.msra.mxu0 0.0
    %3461 = vmatprep.subr.mxu0 0.0
    %3462 = vmatpush1.msra.mxu0 0.0
    %3463 = vmatprep.subr.mxu0 0.0
    %3464 = vmatpush1.msra.mxu0 0.0
    %3465 = vmatprep.subr.mxu0 0.0
    %3466 = vmatpush1.msra.mxu0 0.0
    %3467 = vmatprep.subr.mxu0 0.0
    %3468 = vmatpush1.msra.mxu0 0.0
    %3469 = vmatprep.subr.mxu0 0.0
    %3470 = vmatpush1.msra.mxu0 0.0
    %3471 = vmatprep.subr.mxu0 0.0
    %3472 = vmatpush1.msra.mxu0 0.0
    %3473 = vmatprep.subr.mxu0 0.0
    %3474 = vmatpush1.msra.mxu0 0.0
    %3475 = vmatprep.subr.mxu0 0.0
    %3476 = vmatpush1.msra.mxu0 0.0
    %3477 = vmatprep.subr.mxu0 0.0
    %3478 = vmatpush1.msra.mxu0 0.0
    %3479 = vmatprep.mubr.f32.mxu0 0.0
    %3480 = vmatmul.mubr.f32.gmra.mrb[0].mxu0 %v1922
    %v3481 = vpop.f32.mrb[0].mxu0
    %v3482 = vadd.f32 %v1612, %v3481
    %v3483 = vpop.f32.mrb[0].mxu0
    %v3484 = vadd.f32 %v1616, %v3483
    %3485 = vdwg.mxu0
    %3486 = vmatprep.subr.mxu0 %v1366
    %3487 = vmatpush1.msra.mxu0 %v1365
    %3488 = vmatprep.subr.mxu0 0.0
    %3489 = vmatpush1.msra.mxu0 0.0
    %3490 = vmatprep.subr.mxu0 0.0
    %3491 = vmatpush1.msra.mxu0 0.0
    %3492 = vmatprep.subr.mxu0 0.0
    %3493 = vmatpush1.msra.mxu0 0.0
    %3494 = vmatprep.subr.mxu0 0.0
    %3495 = vmatpush1.msra.mxu0 0.0
    %3496 = vmatprep.subr.mxu0 0.0
    %3497 = vmatpush1.msra.mxu0 0.0
    %3498 = vmatprep.subr.mxu0 0.0
    %3499 = vmatpush1.msra.mxu0 0.0
    %3500 = vmatprep.subr.mxu0 0.0
    %3501 = vmatpush1.msra.mxu0 0.0
    %3502 = vmatprep.subr.mxu0 0.0
    %3503 = vmatpush1.msra.mxu0 0.0
    %3504 = vmatprep.subr.mxu0 0.0
    %3505 = vmatpush1.msra.mxu0 0.0
    %3506 = vmatprep.subr.mxu0 0.0
    %3507 = vmatpush1.msra.mxu0 0.0
    %3508 = vmatprep.subr.mxu0 0.0
    %3509 = vmatpush1.msra.mxu0 0.0
    %3510 = vmatprep.subr.mxu0 0.0
    %3511 = vmatpush1.msra.mxu0 0.0
    %3512 = vmatprep.subr.mxu0 0.0
    %3513 = vmatpush1.msra.mxu0 0.0
    %3514 = vmatprep.subr.mxu0 0.0
    %3515 = vmatpush1.msra.mxu0 0.0
    %3516 = vmatprep.subr.mxu0 0.0
    %3517 = vmatpush1.msra.mxu0 0.0
    %3518 = vmatprep.subr.mxu0 0.0
    %3519 = vmatpush1.msra.mxu0 0.0
    %3520 = vmatprep.subr.mxu0 0.0
    %3521 = vmatpush1.msra.mxu0 0.0
    %3522 = vmatprep.subr.mxu0 0.0
    %3523 = vmatpush1.msra.mxu0 0.0
    %3524 = vmatprep.subr.mxu0 0.0
    %3525 = vmatpush1.msra.mxu0 0.0
    %3526 = vmatprep.subr.mxu0 0.0
    %3527 = vmatpush1.msra.mxu0 0.0
    %3528 = vmatprep.subr.mxu0 0.0
    %3529 = vmatpush1.msra.mxu0 0.0
    %3530 = vmatprep.subr.mxu0 0.0
    %3531 = vmatpush1.msra.mxu0 0.0
    %3532 = vmatprep.subr.mxu0 0.0
    %3533 = vmatpush1.msra.mxu0 0.0
    %3534 = vmatprep.subr.mxu0 0.0
    %3535 = vmatpush1.msra.mxu0 0.0
    %3536 = vmatprep.subr.mxu0 0.0
    %3537 = vmatpush1.msra.mxu0 0.0
    %3538 = vmatprep.subr.mxu0 0.0
    %3539 = vmatpush1.msra.mxu0 0.0
    %3540 = vmatprep.subr.mxu0 0.0
    %3541 = vmatpush1.msra.mxu0 0.0
    %3542 = vmatprep.subr.mxu0 0.0
    %3543 = vmatpush1.msra.mxu0 0.0
    %3544 = vmatprep.subr.mxu0 0.0
    %3545 = vmatpush1.msra.mxu0 0.0
    %3546 = vmatprep.subr.mxu0 0.0
    %3547 = vmatpush1.msra.mxu0 0.0
    %3548 = vmatprep.subr.mxu0 0.0
    %3549 = vmatpush1.msra.mxu0 0.0
    %3550 = vmatprep.mubr.f32.mxu0 0.0
    %3551 = vmatmul.mubr.f32.gmra.mrb[0].mxu0 %v1922
    %v3552 = vpop.f32.mrb[0].mxu0
    %v3553 = vadd.f32 %v1620, %v3552
    %v3554 = vpop.f32.mrb[0].mxu0
    %v3555 = vadd.f32 %v1624, %v3554
    %3556 = vdwg.mxu0
    %3557 = vmatprep.subr.mxu0 %v1368
    %3558 = vmatpush1.msra.mxu0 %v1367
    %3559 = vmatprep.subr.mxu0 0.0
    %3560 = vmatpush1.msra.mxu0 0.0
    %3561 = vmatprep.subr.mxu0 0.0
    %3562 = vmatpush1.msra.mxu0 0.0
    %3563 = vmatprep.subr.mxu0 0.0
    %3564 = vmatpush1.msra.mxu0 0.0
    %3565 = vmatprep.subr.mxu0 0.0
    %3566 = vmatpush1.msra.mxu0 0.0
    %3567 = vmatprep.subr.mxu0 0.0
    %3568 = vmatpush1.msra.mxu0 0.0
    %3569 = vmatprep.subr.mxu0 0.0
    %3570 = vmatpush1.msra.mxu0 0.0
    %3571 = vmatprep.subr.mxu0 0.0
    %3572 = vmatpush1.msra.mxu0 0.0
    %3573 = vmatprep.subr.mxu0 0.0
    %3574 = vmatpush1.msra.mxu0 0.0
    %3575 = vmatprep.subr.mxu0 0.0
    %3576 = vmatpush1.msra.mxu0 0.0
    %3577 = vmatprep.subr.mxu0 0.0
    %3578 = vmatpush1.msra.mxu0 0.0
    %3579 = vmatprep.subr.mxu0 0.0
    %3580 = vmatpush1.msra.mxu0 0.0
    %3581 = vmatprep.subr.mxu0 0.0
    %3582 = vmatpush1.msra.mxu0 0.0
    %3583 = vmatprep.subr.mxu0 0.0
    %3584 = vmatpush1.msra.mxu0 0.0
    %3585 = vmatprep.subr.mxu0 0.0
    %3586 = vmatpush1.msra.mxu0 0.0
    %3587 = vmatprep.subr.mxu0 0.0
    %3588 = vmatpush1.msra.mxu0 0.0
    %3589 = vmatprep.subr.mxu0 0.0
    %3590 = vmatpush1.msra.mxu0 0.0
    %3591 = vmatprep.subr.mxu0 0.0
    %3592 = vmatpush1.msra.mxu0 0.0
    %3593 = vmatprep.subr.mxu0 0.0
    %3594 = vmatpush1.msra.mxu0 0.0
    %3595 = vmatprep.subr.mxu0 0.0
    %3596 = vmatpush1.msra.mxu0 0.0
    %3597 = vmatprep.subr.mxu0 0.0
    %3598 = vmatpush1.msra.mxu0 0.0
    %3599 = vmatprep.subr.mxu0 0.0
    %3600 = vmatpush1.msra.mxu0 0.0
    %3601 = vmatprep.subr.mxu0 0.0
    %3602 = vmatpush1.msra.mxu0 0.0
    %3603 = vmatprep.subr.mxu0 0.0
    %3604 = vmatpush1.msra.mxu0 0.0
    %3605 = vmatprep.subr.mxu0 0.0
    %3606 = vmatpush1.msra.mxu0 0.0
    %3607 = vmatprep.subr.mxu0 0.0
    %3608 = vmatpush1.msra.mxu0 0.0
    %3609 = vmatprep.subr.mxu0 0.0
    %3610 = vmatpush1.msra.mxu0 0.0
    %3611 = vmatprep.subr.mxu0 0.0
    %3612 = vmatpush1.msra.mxu0 0.0
    %3613 = vmatprep.subr.mxu0 0.0
    %3614 = vmatpush1.msra.mxu0 0.0
    %3615 = vmatprep.subr.mxu0 0.0
    %3616 = vmatpush1.msra.mxu0 0.0
    %3617 = vmatprep.subr.mxu0 0.0
    %3618 = vmatpush1.msra.mxu0 0.0
    %3619 = vmatprep.subr.mxu0 0.0
    %3620 = vmatpush1.msra.mxu0 0.0
    %3621 = vmatprep.mubr.f32.mxu0 0.0
    %3622 = vmatmul.mubr.f32.gmra.mrb[0].mxu0 %v1922
    %v3623 = vpop.f32.mrb[0].mxu0
    %v3624 = vadd.f32 %v1628, %v3623
    %v3625 = vpop.f32.mrb[0].mxu0
    %v3626 = vadd.f32 %v1632, %v3625
    %3627 = vdwg.mxu0
    %3628 = vmatprep.subr.mxu0 %v1370
    %3629 = vmatpush1.msra.mxu0 %v1369
    %3630 = vmatprep.subr.mxu0 0.0
    %3631 = vmatpush1.msra.mxu0 0.0
    %3632 = vmatprep.subr.mxu0 0.0
    %3633 = vmatpush1.msra.mxu0 0.0
    %3634 = vmatprep.subr.mxu0 0.0
    %3635 = vmatpush1.msra.mxu0 0.0
    %3636 = vmatprep.subr.mxu0 0.0
    %3637 = vmatpush1.msra.mxu0 0.0
    %3638 = vmatprep.subr.mxu0 0.0
    %3639 = vmatpush1.msra.mxu0 0.0
    %3640 = vmatprep.subr.mxu0 0.0
    %3641 = vmatpush1.msra.mxu0 0.0
    %3642 = vmatprep.subr.mxu0 0.0
    %3643 = vmatpush1.msra.mxu0 0.0
    %3644 = vmatprep.subr.mxu0 0.0
    %3645 = vmatpush1.msra.mxu0 0.0
    %3646 = vmatprep.subr.mxu0 0.0
    %3647 = vmatpush1.msra.mxu0 0.0
    %3648 = vmatprep.subr.mxu0 0.0
    %3649 = vmatpush1.msra.mxu0 0.0
    %3650 = vmatprep.subr.mxu0 0.0
    %3651 = vmatpush1.msra.mxu0 0.0
    %3652 = vmatprep.subr.mxu0 0.0
    %3653 = vmatpush1.msra.mxu0 0.0
    %3654 = vmatprep.subr.mxu0 0.0
    %3655 = vmatpush1.msra.mxu0 0.0
    %3656 = vmatprep.subr.mxu0 0.0
    %3657 = vmatpush1.msra.mxu0 0.0
    %3658 = vmatprep.subr.mxu0 0.0
    %3659 = vmatpush1.msra.mxu0 0.0
    %3660 = vmatprep.subr.mxu0 0.0
    %3661 = vmatpush1.msra.mxu0 0.0
    %3662 = vmatprep.subr.mxu0 0.0
    %3663 = vmatpush1.msra.mxu0 0.0
    %3664 = vmatprep.subr.mxu0 0.0
    %3665 = vmatpush1.msra.mxu0 0.0
    %3666 = vmatprep.subr.mxu0 0.0
    %3667 = vmatpush1.msra.mxu0 0.0
    %3668 = vmatprep.subr.mxu0 0.0
    %3669 = vmatpush1.msra.mxu0 0.0
    %3670 = vmatprep.subr.mxu0 0.0
    %3671 = vmatpush1.msra.mxu0 0.0
    %3672 = vmatprep.subr.mxu0 0.0
    %3673 = vmatpush1.msra.mxu0 0.0
    %3674 = vmatprep.subr.mxu0 0.0
    %3675 = vmatpush1.msra.mxu0 0.0
    %3676 = vmatprep.subr.mxu0 0.0
    %3677 = vmatpush1.msra.mxu0 0.0
    %3678 = vmatprep.subr.mxu0 0.0
    %3679 = vmatpush1.msra.mxu0 0.0
    %3680 = vmatprep.subr.mxu0 0.0
    %3681 = vmatpush1.msra.mxu0 0.0
    %3682 = vmatprep.subr.mxu0 0.0
    %3683 = vmatpush1.msra.mxu0 0.0
    %3684 = vmatprep.subr.mxu0 0.0
    %3685 = vmatpush1.msra.mxu0 0.0
    %3686 = vmatprep.subr.mxu0 0.0
    %3687 = vmatpush1.msra.mxu0 0.0
    %3688 = vmatprep.subr.mxu0 0.0
    %3689 = vmatpush1.msra.mxu0 0.0
    %3690 = vmatprep.subr.mxu0 0.0
    %3691 = vmatpush1.msra.mxu0 0.0
    %3692 = vmatprep.mubr.f32.mxu0 0.0
    %3693 = vmatmul.mubr.f32.gmra.mrb[0].mxu0 %v1922
    %v3694 = vpop.f32.mrb[0].mxu0
    %v3695 = vadd.f32 %v1636, %v3694
    %v3696 = vpop.f32.mrb[0].mxu0
    %v3697 = vadd.f32 %v1640, %v3696
    %3698 = vdwg.mxu0
    %3699 = vmatprep.subr.mxu0 %v1372
    %3700 = vmatpush1.msra.mxu0 %v1371
    %3701 = vmatprep.subr.mxu0 0.0
    %3702 = vmatpush1.msra.mxu0 0.0
    %3703 = vmatprep.subr.mxu0 0.0
    %3704 = vmatpush1.msra.mxu0 0.0
    %3705 = vmatprep.subr.mxu0 0.0
    %3706 = vmatpush1.msra.mxu0 0.0
    %3707 = vmatprep.subr.mxu0 0.0
    %3708 = vmatpush1.msra.mxu0 0.0
    %3709 = vmatprep.subr.mxu0 0.0
    %3710 = vmatpush1.msra.mxu0 0.0
    %3711 = vmatprep.subr.mxu0 0.0
    %3712 = vmatpush1.msra.mxu0 0.0
    %3713 = vmatprep.subr.mxu0 0.0
    %3714 = vmatpush1.msra.mxu0 0.0
    %3715 = vmatprep.subr.mxu0 0.0
    %3716 = vmatpush1.msra.mxu0 0.0
    %3717 = vmatprep.subr.mxu0 0.0
    %3718 = vmatpush1.msra.mxu0 0.0
    %3719 = vmatprep.subr.mxu0 0.0
    %3720 = vmatpush1.msra.mxu0 0.0
    %3721 = vmatprep.subr.mxu0 0.0
    %3722 = vmatpush1.msra.mxu0 0.0
    %3723 = vmatprep.subr.mxu0 0.0
    %3724 = vmatpush1.msra.mxu0 0.0
    %3725 = vmatprep.subr.mxu0 0.0
    %3726 = vmatpush1.msra.mxu0 0.0
    %3727 = vmatprep.subr.mxu0 0.0
    %3728 = vmatpush1.msra.mxu0 0.0
    %3729 = vmatprep.subr.mxu0 0.0
    %3730 = vmatpush1.msra.mxu0 0.0
    %3731 = vmatprep.subr.mxu0 0.0
    %3732 = vmatpush1.msra.mxu0 0.0
    %3733 = vmatprep.subr.mxu0 0.0
    %3734 = vmatpush1.msra.mxu0 0.0
    %3735 = vmatprep.subr.mxu0 0.0
    %3736 = vmatpush1.msra.mxu0 0.0
    %3737 = vmatprep.subr.mxu0 0.0
    %3738 = vmatpush1.msra.mxu0 0.0
    %3739 = vmatprep.subr.mxu0 0.0
    %3740 = vmatpush1.msra.mxu0 0.0
    %3741 = vmatprep.subr.mxu0 0.0
    %3742 = vmatpush1.msra.mxu0 0.0
    %3743 = vmatprep.subr.mxu0 0.0
    %3744 = vmatpush1.msra.mxu0 0.0
    %3745 = vmatprep.subr.mxu0 0.0
    %3746 = vmatpush1.msra.mxu0 0.0
    %3747 = vmatprep.subr.mxu0 0.0
    %3748 = vmatpush1.msra.mxu0 0.0
    %3749 = vmatprep.subr.mxu0 0.0
    %3750 = vmatpush1.msra.mxu0 0.0
    %3751 = vmatprep.subr.mxu0 0.0
    %3752 = vmatpush1.msra.mxu0 0.0
    %3753 = vmatprep.subr.mxu0 0.0
    %3754 = vmatpush1.msra.mxu0 0.0
    %3755 = vmatprep.subr.mxu0 0.0
    %3756 = vmatpush1.msra.mxu0 0.0
    %3757 = vmatprep.subr.mxu0 0.0
    %3758 = vmatpush1.msra.mxu0 0.0
    %3759 = vmatprep.subr.mxu0 0.0
    %3760 = vmatpush1.msra.mxu0 0.0
    %3761 = vmatprep.subr.mxu0 0.0
    %3762 = vmatpush1.msra.mxu0 0.0
    %3763 = vmatprep.mubr.f32.mxu0 0.0
    %3764 = vmatmul.mubr.f32.gmra.mrb[0].mxu0 %v1922
    %v3765 = vpop.f32.mrb[0].mxu0
    %v3766 = vadd.f32 %v1644, %v3765
    %v3767 = vpop.f32.mrb[0].mxu0
    %v3768 = vadd.f32 %v1648, %v3767
    %3769 = vdwg.mxu0
    %3770 = vmatprep.subr.mxu0 %v1374
    %3771 = vmatpush1.msra.mxu0 %v1373
    %3772 = vmatprep.subr.mxu0 0.0
    %3773 = vmatpush1.msra.mxu0 0.0
    %3774 = vmatprep.subr.mxu0 0.0
    %3775 = vmatpush1.msra.mxu0 0.0
    %3776 = vmatprep.subr.mxu0 0.0
    %3777 = vmatpush1.msra.mxu0 0.0
    %3778 = vmatprep.subr.mxu0 0.0
    %3779 = vmatpush1.msra.mxu0 0.0
    %3780 = vmatprep.subr.mxu0 0.0
    %3781 = vmatpush1.msra.mxu0 0.0
    %3782 = vmatprep.subr.mxu0 0.0
    %3783 = vmatpush1.msra.mxu0 0.0
    %3784 = vmatprep.subr.mxu0 0.0
    %3785 = vmatpush1.msra.mxu0 0.0
    %3786 = vmatprep.subr.mxu0 0.0
    %3787 = vmatpush1.msra.mxu0 0.0
    %3788 = vmatprep.subr.mxu0 0.0
    %3789 = vmatpush1.msra.mxu0 0.0
    %3790 = vmatprep.subr.mxu0 0.0
    %3791 = vmatpush1.msra.mxu0 0.0
    %3792 = vmatprep.subr.mxu0 0.0
    %3793 = vmatpush1.msra.mxu0 0.0
    %3794 = vmatprep.subr.mxu0 0.0
    %3795 = vmatpush1.msra.mxu0 0.0
    %3796 = vmatprep.subr.mxu0 0.0
    %3797 = vmatpush1.msra.mxu0 0.0
    %3798 = vmatprep.subr.mxu0 0.0
    %3799 = vmatpush1.msra.mxu0 0.0
    %3800 = vmatprep.subr.mxu0 0.0
    %3801 = vmatpush1.msra.mxu0 0.0
    %3802 = vmatprep.subr.mxu0 0.0
    %3803 = vmatpush1.msra.mxu0 0.0
    %3804 = vmatprep.subr.mxu0 0.0
    %3805 = vmatpush1.msra.mxu0 0.0
    %3806 = vmatprep.subr.mxu0 0.0
    %3807 = vmatpush1.msra.mxu0 0.0
    %3808 = vmatprep.subr.mxu0 0.0
    %3809 = vmatpush1.msra.mxu0 0.0
    %3810 = vmatprep.subr.mxu0 0.0
    %3811 = vmatpush1.msra.mxu0 0.0
    %3812 = vmatprep.subr.mxu0 0.0
    %3813 = vmatpush1.msra.mxu0 0.0
    %3814 = vmatprep.subr.mxu0 0.0
    %3815 = vmatpush1.msra.mxu0 0.0
    %3816 = vmatprep.subr.mxu0 0.0
    %3817 = vmatpush1.msra.mxu0 0.0
    %3818 = vmatprep.subr.mxu0 0.0
    %3819 = vmatpush1.msra.mxu0 0.0
    %3820 = vmatprep.subr.mxu0 0.0
    %3821 = vmatpush1.msra.mxu0 0.0
    %3822 = vmatprep.subr.mxu0 0.0
    %3823 = vmatpush1.msra.mxu0 0.0
    %3824 = vmatprep.subr.mxu0 0.0
    %3825 = vmatpush1.msra.mxu0 0.0
    %3826 = vmatprep.subr.mxu0 0.0
    %3827 = vmatpush1.msra.mxu0 0.0
    %3828 = vmatprep.subr.mxu0 0.0
    %3829 = vmatpush1.msra.mxu0 0.0
    %3830 = vmatprep.subr.mxu0 0.0
    %3831 = vmatpush1.msra.mxu0 0.0
    %3832 = vmatprep.subr.mxu0 0.0
    %3833 = vmatpush1.msra.mxu0 0.0
    %3834 = vmatprep.mubr.f32.mxu0 0.0
    %3835 = vmatmul.mubr.f32.gmra.mrb[0].mxu0 %v1922
    %v3836 = vpop.f32.mrb[0].mxu0
    %v3837 = vadd.f32 %v1652, %v3836
    %v3838 = vpop.f32.mrb[0].mxu0
    %v3839 = vadd.f32 %v1656, %v3838
    %3840 = vdwg.mxu0
    %3841 = vmatprep.subr.mxu0 %v1376
    %3842 = vmatpush1.msra.mxu0 %v1375
    %3843 = vmatprep.subr.mxu0 0.0
    %3844 = vmatpush1.msra.mxu0 0.0
    %3845 = vmatprep.subr.mxu0 0.0
    %3846 = vmatpush1.msra.mxu0 0.0
    %3847 = vmatprep.subr.mxu0 0.0
    %3848 = vmatpush1.msra.mxu0 0.0
    %3849 = vmatprep.subr.mxu0 0.0
    %3850 = vmatpush1.msra.mxu0 0.0
    %3851 = vmatprep.subr.mxu0 0.0
    %3852 = vmatpush1.msra.mxu0 0.0
    %3853 = vmatprep.subr.mxu0 0.0
    %3854 = vmatpush1.msra.mxu0 0.0
    %3855 = vmatprep.subr.mxu0 0.0
    %3856 = vmatpush1.msra.mxu0 0.0
    %3857 = vmatprep.subr.mxu0 0.0
    %3858 = vmatpush1.msra.mxu0 0.0
    %3859 = vmatprep.subr.mxu0 0.0
    %3860 = vmatpush1.msra.mxu0 0.0
    %3861 = vmatprep.subr.mxu0 0.0
    %3862 = vmatpush1.msra.mxu0 0.0
    %3863 = vmatprep.subr.mxu0 0.0
    %3864 = vmatpush1.msra.mxu0 0.0
    %3865 = vmatprep.subr.mxu0 0.0
    %3866 = vmatpush1.msra.mxu0 0.0
    %3867 = vmatprep.subr.mxu0 0.0
    %3868 = vmatpush1.msra.mxu0 0.0
    %3869 = vmatprep.subr.mxu0 0.0
    %3870 = vmatpush1.msra.mxu0 0.0
    %3871 = vmatprep.subr.mxu0 0.0
    %3872 = vmatpush1.msra.mxu0 0.0
    %3873 = vmatprep.subr.mxu0 0.0
    %3874 = vmatpush1.msra.mxu0 0.0
    %3875 = vmatprep.subr.mxu0 0.0
    %3876 = vmatpush1.msra.mxu0 0.0
    %3877 = vmatprep.subr.mxu0 0.0
    %3878 = vmatpush1.msra.mxu0 0.0
    %3879 = vmatprep.subr.mxu0 0.0
    %3880 = vmatpush1.msra.mxu0 0.0
    %3881 = vmatprep.subr.mxu0 0.0
    %3882 = vmatpush1.msra.mxu0 0.0
    %3883 = vmatprep.subr.mxu0 0.0
    %3884 = vmatpush1.msra.mxu0 0.0
    %3885 = vmatprep.subr.mxu0 0.0
    %3886 = vmatpush1.msra.mxu0 0.0
    %3887 = vmatprep.subr.mxu0 0.0
    %3888 = vmatpush1.msra.mxu0 0.0
    %3889 = vmatprep.subr.mxu0 0.0
    %3890 = vmatpush1.msra.mxu0 0.0
    %3891 = vmatprep.subr.mxu0 0.0
    %3892 = vmatpush1.msra.mxu0 0.0
    %3893 = vmatprep.subr.mxu0 0.0
    %3894 = vmatpush1.msra.mxu0 0.0
    %3895 = vmatprep.subr.mxu0 0.0
    %3896 = vmatpush1.msra.mxu0 0.0
    %3897 = vmatprep.subr.mxu0 0.0
    %3898 = vmatpush1.msra.mxu0 0.0
    %3899 = vmatprep.subr.mxu0 0.0
    %3900 = vmatpush1.msra.mxu0 0.0
    %3901 = vmatprep.subr.mxu0 0.0
    %3902 = vmatpush1.msra.mxu0 0.0
    %3903 = vmatprep.subr.mxu0 0.0
    %3904 = vmatpush1.msra.mxu0 0.0
    %3905 = vmatprep.mubr.f32.mxu0 0.0
    %3906 = vmatmul.mubr.f32.gmra.mrb[0].mxu0 %v1922
    %v3907 = vpop.f32.mrb[0].mxu0
    %v3908 = vadd.f32 %v1660, %v3907
    %v3909 = vpop.f32.mrb[0].mxu0
    %v3910 = vadd.f32 %v1664, %v3909
    %3911 = vdwg.mxu0
    %3912 = vmatprep.subr.mxu0 %v1378
    %3913 = vmatpush1.msra.mxu0 %v1377
    %3914 = vmatprep.subr.mxu0 0.0
    %3915 = vmatpush1.msra.mxu0 0.0
    %3916 = vmatprep.subr.mxu0 0.0
    %3917 = vmatpush1.msra.mxu0 0.0
    %3918 = vmatprep.subr.mxu0 0.0
    %3919 = vmatpush1.msra.mxu0 0.0
    %3920 = vmatprep.subr.mxu0 0.0
    %3921 = vmatpush1.msra.mxu0 0.0
    %3922 = vmatprep.subr.mxu0 0.0
    %3923 = vmatpush1.msra.mxu0 0.0
    %3924 = vmatprep.subr.mxu0 0.0
    %3925 = vmatpush1.msra.mxu0 0.0
    %3926 = vmatprep.subr.mxu0 0.0
    %3927 = vmatpush1.msra.mxu0 0.0
    %3928 = vmatprep.subr.mxu0 0.0
    %3929 = vmatpush1.msra.mxu0 0.0
    %3930 = vmatprep.subr.mxu0 0.0
    %3931 = vmatpush1.msra.mxu0 0.0
    %3932 = vmatprep.subr.mxu0 0.0
    %3933 = vmatpush1.msra.mxu0 0.0
    %3934 = vmatprep.subr.mxu0 0.0
    %3935 = vmatpush1.msra.mxu0 0.0
    %3936 = vmatprep.subr.mxu0 0.0
    %3937 = vmatpush1.msra.mxu0 0.0
    %3938 = vmatprep.subr.mxu0 0.0
    %3939 = vmatpush1.msra.mxu0 0.0
    %3940 = vmatprep.subr.mxu0 0.0
    %3941 = vmatpush1.msra.mxu0 0.0
    %3942 = vmatprep.subr.mxu0 0.0
    %3943 = vmatpush1.msra.mxu0 0.0
    %3944 = vmatprep.subr.mxu0 0.0
    %3945 = vmatpush1.msra.mxu0 0.0
    %3946 = vmatprep.subr.mxu0 0.0
    %3947 = vmatpush1.msra.mxu0 0.0
    %3948 = vmatprep.subr.mxu0 0.0
    %3949 = vmatpush1.msra.mxu0 0.0
    %3950 = vmatprep.subr.mxu0 0.0
    %3951 = vmatpush1.msra.mxu0 0.0
    %3952 = vmatprep.subr.mxu0 0.0
    %3953 = vmatpush1.msra.mxu0 0.0
    %3954 = vmatprep.subr.mxu0 0.0
    %3955 = vmatpush1.msra.mxu0 0.0
    %3956 = vmatprep.subr.mxu0 0.0
    %3957 = vmatpush1.msra.mxu0 0.0
    %3958 = vmatprep.subr.mxu0 0.0
    %3959 = vmatpush1.msra.mxu0 0.0
    %3960 = vmatprep.subr.mxu0 0.0
    %3961 = vmatpush1.msra.mxu0 0.0
    %3962 = vmatprep.subr.mxu0 0.0
    %3963 = vmatpush1.msra.mxu0 0.0
    %3964 = vmatprep.subr.mxu0 0.0
    %3965 = vmatpush1.msra.mxu0 0.0
    %3966 = vmatprep.subr.mxu0 0.0
    %3967 = vmatpush1.msra.mxu0 0.0
    %3968 = vmatprep.subr.mxu0 0.0
    %3969 = vmatpush1.msra.mxu0 0.0
    %3970 = vmatprep.subr.mxu0 0.0
    %3971 = vmatpush1.msra.mxu0 0.0
    %3972 = vmatprep.subr.mxu0 0.0
    %3973 = vmatpush1.msra.mxu0 0.0
    %3974 = vmatprep.subr.mxu0 0.0
    %3975 = vmatpush1.msra.mxu0 0.0
    %3976 = vmatprep.mubr.f32.mxu0 0.0
    %3977 = vmatmul.mubr.f32.gmra.mrb[0].mxu0 %v1922
    %v3978 = vpop.f32.mrb[0].mxu0
    %v3979 = vadd.f32 %v1668, %v3978
    %v3980 = vpop.f32.mrb[0].mxu0
    %v3981 = vadd.f32 %v1672, %v3980
    %3982 = vdwg.mxu0
    %3983 = vmatprep.subr.mxu0 %v1380
    %3984 = vmatpush1.msra.mxu0 %v1379
    %3985 = vmatprep.subr.mxu0 0.0
    %3986 = vmatpush1.msra.mxu0 0.0
    %3987 = vmatprep.subr.mxu0 0.0
    %3988 = vmatpush1.msra.mxu0 0.0
    %3989 = vmatprep.subr.mxu0 0.0
    %3990 = vmatpush1.msra.mxu0 0.0
    %3991 = vmatprep.subr.mxu0 0.0
    %3992 = vmatpush1.msra.mxu0 0.0
    %3993 = vmatprep.subr.mxu0 0.0
    %3994 = vmatpush1.msra.mxu0 0.0
    %3995 = vmatprep.subr.mxu0 0.0
    %3996 = vmatpush1.msra.mxu0 0.0
    %3997 = vmatprep.subr.mxu0 0.0
    %3998 = vmatpush1.msra.mxu0 0.0
    %3999 = vmatprep.subr.mxu0 0.0
    %4000 = vmatpush1.msra.mxu0 0.0
    %4001 = vmatprep.subr.mxu0 0.0
    %4002 = vmatpush1.msra.mxu0 0.0
    %4003 = vmatprep.subr.mxu0 0.0
    %4004 = vmatpush1.msra.mxu0 0.0
    %4005 = vmatprep.subr.mxu0 0.0
    %4006 = vmatpush1.msra.mxu0 0.0
    %4007 = vmatprep.subr.mxu0 0.0
    %4008 = vmatpush1.msra.mxu0 0.0
    %4009 = vmatprep.subr.mxu0 0.0
    %4010 = vmatpush1.msra.mxu0 0.0
    %4011 = vmatprep.subr.mxu0 0.0
    %4012 = vmatpush1.msra.mxu0 0.0
    %4013 = vmatprep.subr.mxu0 0.0
    %4014 = vmatpush1.msra.mxu0 0.0
    %4015 = vmatprep.subr.mxu0 0.0
    %4016 = vmatpush1.msra.mxu0 0.0
    %4017 = vmatprep.subr.mxu0 0.0
    %4018 = vmatpush1.msra.mxu0 0.0
    %4019 = vmatprep.subr.mxu0 0.0
    %4020 = vmatpush1.msra.mxu0 0.0
    %4021 = vmatprep.subr.mxu0 0.0
    %4022 = vmatpush1.msra.mxu0 0.0
    %4023 = vmatprep.subr.mxu0 0.0
    %4024 = vmatpush1.msra.mxu0 0.0
    %4025 = vmatprep.subr.mxu0 0.0
    %4026 = vmatpush1.msra.mxu0 0.0
    %4027 = vmatprep.subr.mxu0 0.0
    %4028 = vmatpush1.msra.mxu0 0.0
    %4029 = vmatprep.subr.mxu0 0.0
    %4030 = vmatpush1.msra.mxu0 0.0
    %4031 = vmatprep.subr.mxu0 0.0
    %4032 = vmatpush1.msra.mxu0 0.0
    %4033 = vmatprep.subr.mxu0 0.0
    %4034 = vmatpush1.msra.mxu0 0.0
    %4035 = vmatprep.subr.mxu0 0.0
    %4036 = vmatpush1.msra.mxu0 0.0
    %4037 = vmatprep.subr.mxu0 0.0
    %4038 = vmatpush1.msra.mxu0 0.0
    %4039 = vmatprep.subr.mxu0 0.0
    %4040 = vmatpush1.msra.mxu0 0.0
    %4041 = vmatprep.subr.mxu0 0.0
    %4042 = vmatpush1.msra.mxu0 0.0
    %4043 = vmatprep.subr.mxu0 0.0
    %4044 = vmatpush1.msra.mxu0 0.0
    %4045 = vmatprep.subr.mxu0 0.0
    %4046 = vmatpush1.msra.mxu0 0.0
    %4047 = vmatprep.mubr.f32.mxu0 0.0
    %4048 = vmatmul.mubr.f32.gmra.mrb[0].mxu0 %v1922
    %v4049 = vpop.f32.mrb[0].mxu0
    %v4050 = vadd.f32 %v1676, %v4049
    %v4051 = vpop.f32.mrb[0].mxu0
    %v4052 = vadd.f32 %v1680, %v4051
    %4053 = vdwg.mxu0
    %4054 = vmatprep.subr.mxu0 %v1382
    %4055 = vmatpush1.msra.mxu0 %v1381
    %4056 = vmatprep.subr.mxu0 0.0
    %4057 = vmatpush1.msra.mxu0 0.0
    %4058 = vmatprep.subr.mxu0 0.0
    %4059 = vmatpush1.msra.mxu0 0.0
    %4060 = vmatprep.subr.mxu0 0.0
    %4061 = vmatpush1.msra.mxu0 0.0
    %4062 = vmatprep.subr.mxu0 0.0
    %4063 = vmatpush1.msra.mxu0 0.0
    %4064 = vmatprep.subr.mxu0 0.0
    %4065 = vmatpush1.msra.mxu0 0.0
    %4066 = vmatprep.subr.mxu0 0.0
    %4067 = vmatpush1.msra.mxu0 0.0
    %4068 = vmatprep.subr.mxu0 0.0
    %4069 = vmatpush1.msra.mxu0 0.0
    %4070 = vmatprep.subr.mxu0 0.0
    %4071 = vmatpush1.msra.mxu0 0.0
    %4072 = vmatprep.subr.mxu0 0.0
    %4073 = vmatpush1.msra.mxu0 0.0
    %4074 = vmatprep.subr.mxu0 0.0
    %4075 = vmatpush1.msra.mxu0 0.0
    %4076 = vmatprep.subr.mxu0 0.0
    %4077 = vmatpush1.msra.mxu0 0.0
    %4078 = vmatprep.subr.mxu0 0.0
    %4079 = vmatpush1.msra.mxu0 0.0
    %4080 = vmatprep.subr.mxu0 0.0
    %4081 = vmatpush1.msra.mxu0 0.0
    %4082 = vmatprep.subr.mxu0 0.0
    %4083 = vmatpush1.msra.mxu0 0.0
    %4084 = vmatprep.subr.mxu0 0.0
    %4085 = vmatpush1.msra.mxu0 0.0
    %4086 = vmatprep.subr.mxu0 0.0
    %4087 = vmatpush1.msra.mxu0 0.0
    %4088 = vmatprep.subr.mxu0 0.0
    %4089 = vmatpush1.msra.mxu0 0.0
    %4090 = vmatprep.subr.mxu0 0.0
    %4091 = vmatpush1.msra.mxu0 0.0
    %4092 = vmatprep.subr.mxu0 0.0
    %4093 = vmatpush1.msra.mxu0 0.0
    %4094 = vmatprep.subr.mxu0 0.0
    %4095 = vmatpush1.msra.mxu0 0.0
    %4096 = vmatprep.subr.mxu0 0.0
    %4097 = vmatpush1.msra.mxu0 0.0
    %4098 = vmatprep.subr.mxu0 0.0
    %4099 = vmatpush1.msra.mxu0 0.0
    %4100 = vmatprep.subr.mxu0 0.0
    %4101 = vmatpush1.msra.mxu0 0.0
    %4102 = vmatprep.subr.mxu0 0.0
    %4103 = vmatpush1.msra.mxu0 0.0
    %4104 = vmatprep.subr.mxu0 0.0
    %4105 = vmatpush1.msra.mxu0 0.0
    %4106 = vmatprep.subr.mxu0 0.0
    %4107 = vmatpush1.msra.mxu0 0.0
    %4108 = vmatprep.subr.mxu0 0.0
    %4109 = vmatpush1.msra.mxu0 0.0
    %4110 = vmatprep.subr.mxu0 0.0
    %4111 = vmatpush1.msra.mxu0 0.0
    %4112 = vmatprep.subr.mxu0 0.0
    %4113 = vmatpush1.msra.mxu0 0.0
    %4114 = vmatprep.subr.mxu0 0.0
    %4115 = vmatpush1.msra.mxu0 0.0
    %4116 = vmatprep.subr.mxu0 0.0
    %4117 = vmatpush1.msra.mxu0 0.0
    %4118 = vmatprep.mubr.f32.mxu0 0.0
    %4119 = vmatmul.mubr.f32.gmra.mrb[0].mxu0 %v1922
    %v4120 = vpop.f32.mrb[0].mxu0
    %v4121 = vadd.f32 %v1684, %v4120
    %v4122 = vpop.f32.mrb[0].mxu0
    %v4123 = vadd.f32 %v1688, %v4122
    %4124 = vdwg.mxu0
    %4125 = vmatprep.subr.mxu0 %v1384
    %4126 = vmatpush1.msra.mxu0 %v1383
    %4127 = vmatprep.subr.mxu0 0.0
    %4128 = vmatpush1.msra.mxu0 0.0
    %4129 = vmatprep.subr.mxu0 0.0
    %4130 = vmatpush1.msra.mxu0 0.0
    %4131 = vmatprep.subr.mxu0 0.0
    %4132 = vmatpush1.msra.mxu0 0.0
    %4133 = vmatprep.subr.mxu0 0.0
    %4134 = vmatpush1.msra.mxu0 0.0
    %4135 = vmatprep.subr.mxu0 0.0
    %4136 = vmatpush1.msra.mxu0 0.0
    %4137 = vmatprep.subr.mxu0 0.0
    %4138 = vmatpush1.msra.mxu0 0.0
    %4139 = vmatprep.subr.mxu0 0.0
    %4140 = vmatpush1.msra.mxu0 0.0
    %4141 = vmatprep.subr.mxu0 0.0
    %4142 = vmatpush1.msra.mxu0 0.0
    %4143 = vmatprep.subr.mxu0 0.0
    %4144 = vmatpush1.msra.mxu0 0.0
    %4145 = vmatprep.subr.mxu0 0.0
    %4146 = vmatpush1.msra.mxu0 0.0
    %4147 = vmatprep.subr.mxu0 0.0
    %4148 = vmatpush1.msra.mxu0 0.0
    %4149 = vmatprep.subr.mxu0 0.0
    %4150 = vmatpush1.msra.mxu0 0.0
    %4151 = vmatprep.subr.mxu0 0.0
    %4152 = vmatpush1.msra.mxu0 0.0
    %4153 = vmatprep.subr.mxu0 0.0
    %4154 = vmatpush1.msra.mxu0 0.0
    %4155 = vmatprep.subr.mxu0 0.0
    %4156 = vmatpush1.msra.mxu0 0.0
    %4157 = vmatprep.subr.mxu0 0.0
    %4158 = vmatpush1.msra.mxu0 0.0
    %4159 = vmatprep.subr.mxu0 0.0
    %4160 = vmatpush1.msra.mxu0 0.0
    %4161 = vmatprep.subr.mxu0 0.0
    %4162 = vmatpush1.msra.mxu0 0.0
    %4163 = vmatprep.subr.mxu0 0.0
    %4164 = vmatpush1.msra.mxu0 0.0
    %4165 = vmatprep.subr.mxu0 0.0
    %4166 = vmatpush1.msra.mxu0 0.0
    %4167 = vmatprep.subr.mxu0 0.0
    %4168 = vmatpush1.msra.mxu0 0.0
    %4169 = vmatprep.subr.mxu0 0.0
    %4170 = vmatpush1.msra.mxu0 0.0
    %4171 = vmatprep.subr.mxu0 0.0
    %4172 = vmatpush1.msra.mxu0 0.0
    %4173 = vmatprep.subr.mxu0 0.0
    %4174 = vmatpush1.msra.mxu0 0.0
    %4175 = vmatprep.subr.mxu0 0.0
    %4176 = vmatpush1.msra.mxu0 0.0
    %4177 = vmatprep.subr.mxu0 0.0
    %4178 = vmatpush1.msra.mxu0 0.0
    %4179 = vmatprep.subr.mxu0 0.0
    %4180 = vmatpush1.msra.mxu0 0.0
    %4181 = vmatprep.subr.mxu0 0.0
    %4182 = vmatpush1.msra.mxu0 0.0
    %4183 = vmatprep.subr.mxu0 0.0
    %4184 = vmatpush1.msra.mxu0 0.0
    %4185 = vmatprep.subr.mxu0 0.0
    %4186 = vmatpush1.msra.mxu0 0.0
    %4187 = vmatprep.subr.mxu0 0.0
    %4188 = vmatpush1.msra.mxu0 0.0
    %4189 = vmatprep.mubr.f32.mxu0 0.0
    %4190 = vmatmul.mubr.f32.gmra.mrb[0].mxu0 %v1922
    %v4191 = vpop.f32.mrb[0].mxu0
    %v4192 = vadd.f32 %v1692, %v4191
    %v4193 = vpop.f32.mrb[0].mxu0
    %v4194 = vadd.f32 %v1696, %v4193
    %4195 = vdwg.mxu0
    %4196 = vmatprep.subr.mxu0 %v1386
    %4197 = vmatpush1.msra.mxu0 %v1385
    %4198 = vmatprep.subr.mxu0 0.0
    %4199 = vmatpush1.msra.mxu0 0.0
    %4200 = vmatprep.subr.mxu0 0.0
    %4201 = vmatpush1.msra.mxu0 0.0
    %4202 = vmatprep.subr.mxu0 0.0
    %4203 = vmatpush1.msra.mxu0 0.0
    %4204 = vmatprep.subr.mxu0 0.0
    %4205 = vmatpush1.msra.mxu0 0.0
    %4206 = vmatprep.subr.mxu0 0.0
    %4207 = vmatpush1.msra.mxu0 0.0
    %4208 = vmatprep.subr.mxu0 0.0
    %4209 = vmatpush1.msra.mxu0 0.0
    %4210 = vmatprep.subr.mxu0 0.0
    %4211 = vmatpush1.msra.mxu0 0.0
    %4212 = vmatprep.subr.mxu0 0.0
    %4213 = vmatpush1.msra.mxu0 0.0
    %4214 = vmatprep.subr.mxu0 0.0
    %4215 = vmatpush1.msra.mxu0 0.0
    %4216 = vmatprep.subr.mxu0 0.0
    %4217 = vmatpush1.msra.mxu0 0.0
    %4218 = vmatprep.subr.mxu0 0.0
    %4219 = vmatpush1.msra.mxu0 0.0
    %4220 = vmatprep.subr.mxu0 0.0
    %4221 = vmatpush1.msra.mxu0 0.0
    %4222 = vmatprep.subr.mxu0 0.0
    %4223 = vmatpush1.msra.mxu0 0.0
    %4224 = vmatprep.subr.mxu0 0.0
    %4225 = vmatpush1.msra.mxu0 0.0
    %4226 = vmatprep.subr.mxu0 0.0
    %4227 = vmatpush1.msra.mxu0 0.0
    %4228 = vmatprep.subr.mxu0 0.0
    %4229 = vmatpush1.msra.mxu0 0.0
    %4230 = vmatprep.subr.mxu0 0.0
    %4231 = vmatpush1.msra.mxu0 0.0
    %4232 = vmatprep.subr.mxu0 0.0
    %4233 = vmatpush1.msra.mxu0 0.0
    %4234 = vmatprep.subr.mxu0 0.0
    %4235 = vmatpush1.msra.mxu0 0.0
    %4236 = vmatprep.subr.mxu0 0.0
    %4237 = vmatpush1.msra.mxu0 0.0
    %4238 = vmatprep.subr.mxu0 0.0
    %4239 = vmatpush1.msra.mxu0 0.0
    %4240 = vmatprep.subr.mxu0 0.0
    %4241 = vmatpush1.msra.mxu0 0.0
    %4242 = vmatprep.subr.mxu0 0.0
    %4243 = vmatpush1.msra.mxu0 0.0
    %4244 = vmatprep.subr.mxu0 0.0
    %4245 = vmatpush1.msra.mxu0 0.0
    %4246 = vmatprep.subr.mxu0 0.0
    %4247 = vmatpush1.msra.mxu0 0.0
    %4248 = vmatprep.subr.mxu0 0.0
    %4249 = vmatpush1.msra.mxu0 0.0
    %4250 = vmatprep.subr.mxu0 0.0
    %4251 = vmatpush1.msra.mxu0 0.0
    %4252 = vmatprep.subr.mxu0 0.0
    %4253 = vmatpush1.msra.mxu0 0.0
    %4254 = vmatprep.subr.mxu0 0.0
    %4255 = vmatpush1.msra.mxu0 0.0
    %4256 = vmatprep.subr.mxu0 0.0
    %4257 = vmatpush1.msra.mxu0 0.0
    %4258 = vmatprep.subr.mxu0 0.0
    %4259 = vmatpush1.msra.mxu0 0.0
    %4260 = vmatprep.mubr.f32.mxu0 0.0
    %4261 = vmatmul.mubr.f32.gmra.mrb[0].mxu0 %v1922
    %v4262 = vpop.f32.mrb[0].mxu0
    %v4263 = vadd.f32 %v1700, %v4262
    %v4264 = vpop.f32.mrb[0].mxu0
    %v4265 = vadd.f32 %v1704, %v4264
    %4266 = vdwg.mxu0
    %4267 = vmatprep.subr.mxu0 %v1388
    %4268 = vmatpush1.msra.mxu0 %v1387
    %4269 = vmatprep.subr.mxu0 0.0
    %4270 = vmatpush1.msra.mxu0 0.0
    %4271 = vmatprep.subr.mxu0 0.0
    %4272 = vmatpush1.msra.mxu0 0.0
    %4273 = vmatprep.subr.mxu0 0.0
    %4274 = vmatpush1.msra.mxu0 0.0
    %4275 = vmatprep.subr.mxu0 0.0
    %4276 = vmatpush1.msra.mxu0 0.0
    %4277 = vmatprep.subr.mxu0 0.0
    %4278 = vmatpush1.msra.mxu0 0.0
    %4279 = vmatprep.subr.mxu0 0.0
    %4280 = vmatpush1.msra.mxu0 0.0
    %4281 = vmatprep.subr.mxu0 0.0
    %4282 = vmatpush1.msra.mxu0 0.0
    %4283 = vmatprep.subr.mxu0 0.0
    %4284 = vmatpush1.msra.mxu0 0.0
    %4285 = vmatprep.subr.mxu0 0.0
    %4286 = vmatpush1.msra.mxu0 0.0
    %4287 = vmatprep.subr.mxu0 0.0
    %4288 = vmatpush1.msra.mxu0 0.0
    %4289 = vmatprep.subr.mxu0 0.0
    %4290 = vmatpush1.msra.mxu0 0.0
    %4291 = vmatprep.subr.mxu0 0.0
    %4292 = vmatpush1.msra.mxu0 0.0
    %4293 = vmatprep.subr.mxu0 0.0
    %4294 = vmatpush1.msra.mxu0 0.0
    %4295 = vmatprep.subr.mxu0 0.0
    %4296 = vmatpush1.msra.mxu0 0.0
    %4297 = vmatprep.subr.mxu0 0.0
    %4298 = vmatpush1.msra.mxu0 0.0
    %4299 = vmatprep.subr.mxu0 0.0
    %4300 = vmatpush1.msra.mxu0 0.0
    %4301 = vmatprep.subr.mxu0 0.0
    %4302 = vmatpush1.msra.mxu0 0.0
    %4303 = vmatprep.subr.mxu0 0.0
    %4304 = vmatpush1.msra.mxu0 0.0
    %4305 = vmatprep.subr.mxu0 0.0
    %4306 = vmatpush1.msra.mxu0 0.0
    %4307 = vmatprep.subr.mxu0 0.0
    %4308 = vmatpush1.msra.mxu0 0.0
    %4309 = vmatprep.subr.mxu0 0.0
    %4310 = vmatpush1.msra.mxu0 0.0
    %4311 = vmatprep.subr.mxu0 0.0
    %4312 = vmatpush1.msra.mxu0 0.0
    %4313 = vmatprep.subr.mxu0 0.0
    %4314 = vmatpush1.msra.mxu0 0.0
    %4315 = vmatprep.subr.mxu0 0.0
    %4316 = vmatpush1.msra.mxu0 0.0
    %4317 = vmatprep.subr.mxu0 0.0
    %4318 = vmatpush1.msra.mxu0 0.0
    %4319 = vmatprep.subr.mxu0 0.0
    %4320 = vmatpush1.msra.mxu0 0.0
    %4321 = vmatprep.subr.mxu0 0.0
    %4322 = vmatpush1.msra.mxu0 0.0
    %4323 = vmatprep.subr.mxu0 0.0
    %4324 = vmatpush1.msra.mxu0 0.0
    %4325 = vmatprep.subr.mxu0 0.0
    %4326 = vmatpush1.msra.mxu0 0.0
    %4327 = vmatprep.subr.mxu0 0.0
    %4328 = vmatpush1.msra.mxu0 0.0
    %4329 = vmatprep.subr.mxu0 0.0
    %4330 = vmatpush1.msra.mxu0 0.0
    %4331 = vmatprep.mubr.f32.mxu0 0.0
    %4332 = vmatmul.mubr.f32.gmra.mrb[0].mxu0 %v1922
    %v4333 = vpop.f32.mrb[0].mxu0
    %v4334 = vadd.f32 %v1708, %v4333
    %v4335 = vpop.f32.mrb[0].mxu0
    %v4336 = vadd.f32 %v1712, %v4335
    %4337 = vdwg.mxu0
    %4338 = vmatprep.subr.mxu0 %v1390
    %4339 = vmatpush1.msra.mxu0 %v1389
    %4340 = vmatprep.subr.mxu0 0.0
    %4341 = vmatpush1.msra.mxu0 0.0
    %4342 = vmatprep.subr.mxu0 0.0
    %4343 = vmatpush1.msra.mxu0 0.0
    %4344 = vmatprep.subr.mxu0 0.0
    %4345 = vmatpush1.msra.mxu0 0.0
    %4346 = vmatprep.subr.mxu0 0.0
    %4347 = vmatpush1.msra.mxu0 0.0
    %4348 = vmatprep.subr.mxu0 0.0
    %4349 = vmatpush1.msra.mxu0 0.0
    %4350 = vmatprep.subr.mxu0 0.0
    %4351 = vmatpush1.msra.mxu0 0.0
    %4352 = vmatprep.subr.mxu0 0.0
    %4353 = vmatpush1.msra.mxu0 0.0
    %4354 = vmatprep.subr.mxu0 0.0
    %4355 = vmatpush1.msra.mxu0 0.0
    %4356 = vmatprep.subr.mxu0 0.0
    %4357 = vmatpush1.msra.mxu0 0.0
    %4358 = vmatprep.subr.mxu0 0.0
    %4359 = vmatpush1.msra.mxu0 0.0
    %4360 = vmatprep.subr.mxu0 0.0
    %4361 = vmatpush1.msra.mxu0 0.0
    %4362 = vmatprep.subr.mxu0 0.0
    %4363 = vmatpush1.msra.mxu0 0.0
    %4364 = vmatprep.subr.mxu0 0.0
    %4365 = vmatpush1.msra.mxu0 0.0
    %4366 = vmatprep.subr.mxu0 0.0
    %4367 = vmatpush1.msra.mxu0 0.0
    %4368 = vmatprep.subr.mxu0 0.0
    %4369 = vmatpush1.msra.mxu0 0.0
    %4370 = vmatprep.subr.mxu0 0.0
    %4371 = vmatpush1.msra.mxu0 0.0
    %4372 = vmatprep.subr.mxu0 0.0
    %4373 = vmatpush1.msra.mxu0 0.0
    %4374 = vmatprep.subr.mxu0 0.0
    %4375 = vmatpush1.msra.mxu0 0.0
    %4376 = vmatprep.subr.mxu0 0.0
    %4377 = vmatpush1.msra.mxu0 0.0
    %4378 = vmatprep.subr.mxu0 0.0
    %4379 = vmatpush1.msra.mxu0 0.0
    %4380 = vmatprep.subr.mxu0 0.0
    %4381 = vmatpush1.msra.mxu0 0.0
    %4382 = vmatprep.subr.mxu0 0.0
    %4383 = vmatpush1.msra.mxu0 0.0
    %4384 = vmatprep.subr.mxu0 0.0
    %4385 = vmatpush1.msra.mxu0 0.0
    %4386 = vmatprep.subr.mxu0 0.0
    %4387 = vmatpush1.msra.mxu0 0.0
    %4388 = vmatprep.subr.mxu0 0.0
    %4389 = vmatpush1.msra.mxu0 0.0
    %4390 = vmatprep.subr.mxu0 0.0
    %4391 = vmatpush1.msra.mxu0 0.0
    %4392 = vmatprep.subr.mxu0 0.0
    %4393 = vmatpush1.msra.mxu0 0.0
    %4394 = vmatprep.subr.mxu0 0.0
    %4395 = vmatpush1.msra.mxu0 0.0
    %4396 = vmatprep.subr.mxu0 0.0
    %4397 = vmatpush1.msra.mxu0 0.0
    %4398 = vmatprep.subr.mxu0 0.0
    %4399 = vmatpush1.msra.mxu0 0.0
    %4400 = vmatprep.subr.mxu0 0.0
    %4401 = vmatpush1.msra.mxu0 0.0
    %4402 = vmatprep.mubr.f32.mxu0 0.0
    %4403 = vmatmul.mubr.f32.gmra.mrb[0].mxu0 %v1922
    %v4404 = vpop.f32.mrb[0].mxu0
    %v4405 = vadd.f32 %v1716, %v4404
    %v4406 = vpop.f32.mrb[0].mxu0
    %v4407 = vadd.f32 %v1720, %v4406
    %4408 = vdwg.mxu0
    %4409 = vmatprep.subr.mxu0 %v1392
    %4410 = vmatpush1.msra.mxu0 %v1391
    %4411 = vmatprep.subr.mxu0 0.0
    %4412 = vmatpush1.msra.mxu0 0.0
    %4413 = vmatprep.subr.mxu0 0.0
    %4414 = vmatpush1.msra.mxu0 0.0
    %4415 = vmatprep.subr.mxu0 0.0
    %4416 = vmatpush1.msra.mxu0 0.0
    %4417 = vmatprep.subr.mxu0 0.0
    %4418 = vmatpush1.msra.mxu0 0.0
    %4419 = vmatprep.subr.mxu0 0.0
    %4420 = vmatpush1.msra.mxu0 0.0
    %4421 = vmatprep.subr.mxu0 0.0
    %4422 = vmatpush1.msra.mxu0 0.0
    %4423 = vmatprep.subr.mxu0 0.0
    %4424 = vmatpush1.msra.mxu0 0.0
    %4425 = vmatprep.subr.mxu0 0.0
    %4426 = vmatpush1.msra.mxu0 0.0
    %4427 = vmatprep.subr.mxu0 0.0
    %4428 = vmatpush1.msra.mxu0 0.0
    %4429 = vmatprep.subr.mxu0 0.0
    %4430 = vmatpush1.msra.mxu0 0.0
    %4431 = vmatprep.subr.mxu0 0.0
    %4432 = vmatpush1.msra.mxu0 0.0
    %4433 = vmatprep.subr.mxu0 0.0
    %4434 = vmatpush1.msra.mxu0 0.0
    %4435 = vmatprep.subr.mxu0 0.0
    %4436 = vmatpush1.msra.mxu0 0.0
    %4437 = vmatprep.subr.mxu0 0.0
    %4438 = vmatpush1.msra.mxu0 0.0
    %4439 = vmatprep.subr.mxu0 0.0
    %4440 = vmatpush1.msra.mxu0 0.0
    %4441 = vmatprep.subr.mxu0 0.0
    %4442 = vmatpush1.msra.mxu0 0.0
    %4443 = vmatprep.subr.mxu0 0.0
    %4444 = vmatpush1.msra.mxu0 0.0
    %4445 = vmatprep.subr.mxu0 0.0
    %4446 = vmatpush1.msra.mxu0 0.0
    %4447 = vmatprep.subr.mxu0 0.0
    %4448 = vmatpush1.msra.mxu0 0.0
    %4449 = vmatprep.subr.mxu0 0.0
    %4450 = vmatpush1.msra.mxu0 0.0
    %4451 = vmatprep.subr.mxu0 0.0
    %4452 = vmatpush1.msra.mxu0 0.0
    %4453 = vmatprep.subr.mxu0 0.0
    %4454 = vmatpush1.msra.mxu0 0.0
    %4455 = vmatprep.subr.mxu0 0.0
    %4456 = vmatpush1.msra.mxu0 0.0
    %4457 = vmatprep.subr.mxu0 0.0
    %4458 = vmatpush1.msra.mxu0 0.0
    %4459 = vmatprep.subr.mxu0 0.0
    %4460 = vmatpush1.msra.mxu0 0.0
    %4461 = vmatprep.subr.mxu0 0.0
    %4462 = vmatpush1.msra.mxu0 0.0
    %4463 = vmatprep.subr.mxu0 0.0
    %4464 = vmatpush1.msra.mxu0 0.0
    %4465 = vmatprep.subr.mxu0 0.0
    %4466 = vmatpush1.msra.mxu0 0.0
    %4467 = vmatprep.subr.mxu0 0.0
    %4468 = vmatpush1.msra.mxu0 0.0
    %4469 = vmatprep.subr.mxu0 0.0
    %4470 = vmatpush1.msra.mxu0 0.0
    %4471 = vmatprep.subr.mxu0 0.0
    %4472 = vmatpush1.msra.mxu0 0.0
    %4473 = vmatprep.mubr.f32.mxu0 0.0
    %4474 = vmatmul.mubr.f32.gmra.mrb[0].mxu0 %v1922
    %v4475 = vpop.f32.mrb[0].mxu0
    %v4476 = vadd.f32 %v1724, %v4475
    %v4477 = vpop.f32.mrb[0].mxu0
    %v4478 = vadd.f32 %v1728, %v4477
    %4479 = vdwg.mxu0
    %4480 = vmatprep.subr.mxu0 %v1394
    %4481 = vmatpush1.msra.mxu0 %v1393
    %4482 = vmatprep.subr.mxu0 0.0
    %4483 = vmatpush1.msra.mxu0 0.0
    %4484 = vmatprep.subr.mxu0 0.0
    %4485 = vmatpush1.msra.mxu0 0.0
    %4486 = vmatprep.subr.mxu0 0.0
    %4487 = vmatpush1.msra.mxu0 0.0
    %4488 = vmatprep.subr.mxu0 0.0
    %4489 = vmatpush1.msra.mxu0 0.0
    %4490 = vmatprep.subr.mxu0 0.0
    %4491 = vmatpush1.msra.mxu0 0.0
    %4492 = vmatprep.subr.mxu0 0.0
    %4493 = vmatpush1.msra.mxu0 0.0
    %4494 = vmatprep.subr.mxu0 0.0
    %4495 = vmatpush1.msra.mxu0 0.0
    %4496 = vmatprep.subr.mxu0 0.0
    %4497 = vmatpush1.msra.mxu0 0.0
    %4498 = vmatprep.subr.mxu0 0.0
    %4499 = vmatpush1.msra.mxu0 0.0
    %4500 = vmatprep.subr.mxu0 0.0
    %4501 = vmatpush1.msra.mxu0 0.0
    %4502 = vmatprep.subr.mxu0 0.0
    %4503 = vmatpush1.msra.mxu0 0.0
    %4504 = vmatprep.subr.mxu0 0.0
    %4505 = vmatpush1.msra.mxu0 0.0
    %4506 = vmatprep.subr.mxu0 0.0
    %4507 = vmatpush1.msra.mxu0 0.0
    %4508 = vmatprep.subr.mxu0 0.0
    %4509 = vmatpush1.msra.mxu0 0.0
    %4510 = vmatprep.subr.mxu0 0.0
    %4511 = vmatpush1.msra.mxu0 0.0
    %4512 = vmatprep.subr.mxu0 0.0
    %4513 = vmatpush1.msra.mxu0 0.0
    %4514 = vmatprep.subr.mxu0 0.0
    %4515 = vmatpush1.msra.mxu0 0.0
    %4516 = vmatprep.subr.mxu0 0.0
    %4517 = vmatpush1.msra.mxu0 0.0
    %4518 = vmatprep.subr.mxu0 0.0
    %4519 = vmatpush1.msra.mxu0 0.0
    %4520 = vmatprep.subr.mxu0 0.0
    %4521 = vmatpush1.msra.mxu0 0.0
    %4522 = vmatprep.subr.mxu0 0.0
    %4523 = vmatpush1.msra.mxu0 0.0
    %4524 = vmatprep.subr.mxu0 0.0
    %4525 = vmatpush1.msra.mxu0 0.0
    %4526 = vmatprep.subr.mxu0 0.0
    %4527 = vmatpush1.msra.mxu0 0.0
    %4528 = vmatprep.subr.mxu0 0.0
    %4529 = vmatpush1.msra.mxu0 0.0
    %4530 = vmatprep.subr.mxu0 0.0
    %4531 = vmatpush1.msra.mxu0 0.0
    %4532 = vmatprep.subr.mxu0 0.0
    %4533 = vmatpush1.msra.mxu0 0.0
    %4534 = vmatprep.subr.mxu0 0.0
    %4535 = vmatpush1.msra.mxu0 0.0
    %4536 = vmatprep.subr.mxu0 0.0
    %4537 = vmatpush1.msra.mxu0 0.0
    %4538 = vmatprep.subr.mxu0 0.0
    %4539 = vmatpush1.msra.mxu0 0.0
    %4540 = vmatprep.subr.mxu0 0.0
    %4541 = vmatpush1.msra.mxu0 0.0
    %4542 = vmatprep.subr.mxu0 0.0
    %4543 = vmatpush1.msra.mxu0 0.0
    %4544 = vmatprep.mubr.f32.mxu0 0.0
    %4545 = vmatmul.mubr.f32.gmra.mrb[0].mxu0 %v1922
    %v4546 = vpop.f32.mrb[0].mxu0
    %v4547 = vadd.f32 %v1732, %v4546
    %v4548 = vpop.f32.mrb[0].mxu0
    %v4549 = vadd.f32 %v1736, %v4548
    %4550 = vdwg.mxu0
    %4551 = vmatprep.subr.mxu0 %v1396
    %4552 = vmatpush1.msra.mxu0 %v1395
    %4553 = vmatprep.subr.mxu0 0.0
    %4554 = vmatpush1.msra.mxu0 0.0
    %4555 = vmatprep.subr.mxu0 0.0
    %4556 = vmatpush1.msra.mxu0 0.0
    %4557 = vmatprep.subr.mxu0 0.0
    %4558 = vmatpush1.msra.mxu0 0.0
    %4559 = vmatprep.subr.mxu0 0.0
    %4560 = vmatpush1.msra.mxu0 0.0
    %4561 = vmatprep.subr.mxu0 0.0
    %4562 = vmatpush1.msra.mxu0 0.0
    %4563 = vmatprep.subr.mxu0 0.0
    %4564 = vmatpush1.msra.mxu0 0.0
    %4565 = vmatprep.subr.mxu0 0.0
    %4566 = vmatpush1.msra.mxu0 0.0
    %4567 = vmatprep.subr.mxu0 0.0
    %4568 = vmatpush1.msra.mxu0 0.0
    %4569 = vmatprep.subr.mxu0 0.0
    %4570 = vmatpush1.msra.mxu0 0.0
    %4571 = vmatprep.subr.mxu0 0.0
    %4572 = vmatpush1.msra.mxu0 0.0
    %4573 = vmatprep.subr.mxu0 0.0
    %4574 = vmatpush1.msra.mxu0 0.0
    %4575 = vmatprep.subr.mxu0 0.0
    %4576 = vmatpush1.msra.mxu0 0.0
    %4577 = vmatprep.subr.mxu0 0.0
    %4578 = vmatpush1.msra.mxu0 0.0
    %4579 = vmatprep.subr.mxu0 0.0
    %4580 = vmatpush1.msra.mxu0 0.0
    %4581 = vmatprep.subr.mxu0 0.0
    %4582 = vmatpush1.msra.mxu0 0.0
    %4583 = vmatprep.subr.mxu0 0.0
    %4584 = vmatpush1.msra.mxu0 0.0
    %4585 = vmatprep.subr.mxu0 0.0
    %4586 = vmatpush1.msra.mxu0 0.0
    %4587 = vmatprep.subr.mxu0 0.0
    %4588 = vmatpush1.msra.mxu0 0.0
    %4589 = vmatprep.subr.mxu0 0.0
    %4590 = vmatpush1.msra.mxu0 0.0
    %4591 = vmatprep.subr.mxu0 0.0
    %4592 = vmatpush1.msra.mxu0 0.0
    %4593 = vmatprep.subr.mxu0 0.0
    %4594 = vmatpush1.msra.mxu0 0.0
    %4595 = vmatprep.subr.mxu0 0.0
    %4596 = vmatpush1.msra.mxu0 0.0
    %4597 = vmatprep.subr.mxu0 0.0
    %4598 = vmatpush1.msra.mxu0 0.0
    %4599 = vmatprep.subr.mxu0 0.0
    %4600 = vmatpush1.msra.mxu0 0.0
    %4601 = vmatprep.subr.mxu0 0.0
    %4602 = vmatpush1.msra.mxu0 0.0
    %4603 = vmatprep.subr.mxu0 0.0
    %4604 = vmatpush1.msra.mxu0 0.0
    %4605 = vmatprep.subr.mxu0 0.0
    %4606 = vmatpush1.msra.mxu0 0.0
    %4607 = vmatprep.subr.mxu0 0.0
    %4608 = vmatpush1.msra.mxu0 0.0
    %4609 = vmatprep.subr.mxu0 0.0
    %4610 = vmatpush1.msra.mxu0 0.0
    %4611 = vmatprep.subr.mxu0 0.0
    %4612 = vmatpush1.msra.mxu0 0.0
    %4613 = vmatprep.subr.mxu0 0.0
    %4614 = vmatpush1.msra.mxu0 0.0
    %4615 = vmatprep.mubr.f32.mxu0 0.0
    %4616 = vmatmul.mubr.f32.gmra.mrb[0].mxu0 %v1922
    %v4617 = vpop.f32.mrb[0].mxu0
    %v4618 = vadd.f32 %v1740, %v4617
    %v4619 = vpop.f32.mrb[0].mxu0
    %v4620 = vadd.f32 %v1744, %v4619
    %4621 = vdwg.mxu0
    %4622 = vmatprep.subr.mxu0 %v1398
    %4623 = vmatpush1.msra.mxu0 %v1397
    %4624 = vmatprep.subr.mxu0 0.0
    %4625 = vmatpush1.msra.mxu0 0.0
    %4626 = vmatprep.subr.mxu0 0.0
    %4627 = vmatpush1.msra.mxu0 0.0
    %4628 = vmatprep.subr.mxu0 0.0
    %4629 = vmatpush1.msra.mxu0 0.0
    %4630 = vmatprep.subr.mxu0 0.0
    %4631 = vmatpush1.msra.mxu0 0.0
    %4632 = vmatprep.subr.mxu0 0.0
    %4633 = vmatpush1.msra.mxu0 0.0
    %4634 = vmatprep.subr.mxu0 0.0
    %4635 = vmatpush1.msra.mxu0 0.0
    %4636 = vmatprep.subr.mxu0 0.0
    %4637 = vmatpush1.msra.mxu0 0.0
    %4638 = vmatprep.subr.mxu0 0.0
    %4639 = vmatpush1.msra.mxu0 0.0
    %4640 = vmatprep.subr.mxu0 0.0
    %4641 = vmatpush1.msra.mxu0 0.0
    %4642 = vmatprep.subr.mxu0 0.0
    %4643 = vmatpush1.msra.mxu0 0.0
    %4644 = vmatprep.subr.mxu0 0.0
    %4645 = vmatpush1.msra.mxu0 0.0
    %4646 = vmatprep.subr.mxu0 0.0
    %4647 = vmatpush1.msra.mxu0 0.0
    %4648 = vmatprep.subr.mxu0 0.0
    %4649 = vmatpush1.msra.mxu0 0.0
    %4650 = vmatprep.subr.mxu0 0.0
    %4651 = vmatpush1.msra.mxu0 0.0
    %4652 = vmatprep.subr.mxu0 0.0
    %4653 = vmatpush1.msra.mxu0 0.0
    %4654 = vmatprep.subr.mxu0 0.0
    %4655 = vmatpush1.msra.mxu0 0.0
    %4656 = vmatprep.subr.mxu0 0.0
    %4657 = vmatpush1.msra.mxu0 0.0
    %4658 = vmatprep.subr.mxu0 0.0
    %4659 = vmatpush1.msra.mxu0 0.0
    %4660 = vmatprep.subr.mxu0 0.0
    %4661 = vmatpush1.msra.mxu0 0.0
    %4662 = vmatprep.subr.mxu0 0.0
    %4663 = vmatpush1.msra.mxu0 0.0
    %4664 = vmatprep.subr.mxu0 0.0
    %4665 = vmatpush1.msra.mxu0 0.0
    %4666 = vmatprep.subr.mxu0 0.0
    %4667 = vmatpush1.msra.mxu0 0.0
    %4668 = vmatprep.subr.mxu0 0.0
    %4669 = vmatpush1.msra.mxu0 0.0
    %4670 = vmatprep.subr.mxu0 0.0
    %4671 = vmatpush1.msra.mxu0 0.0
    %4672 = vmatprep.subr.mxu0 0.0
    %4673 = vmatpush1.msra.mxu0 0.0
    %4674 = vmatprep.subr.mxu0 0.0
    %4675 = vmatpush1.msra.mxu0 0.0
    %4676 = vmatprep.subr.mxu0 0.0
    %4677 = vmatpush1.msra.mxu0 0.0
    %4678 = vmatprep.subr.mxu0 0.0
    %4679 = vmatpush1.msra.mxu0 0.0
    %4680 = vmatprep.subr.mxu0 0.0
    %4681 = vmatpush1.msra.mxu0 0.0
    %4682 = vmatprep.subr.mxu0 0.0
    %4683 = vmatpush1.msra.mxu0 0.0
    %4684 = vmatprep.subr.mxu0 0.0
    %4685 = vmatpush1.msra.mxu0 0.0
    %4686 = vmatprep.mubr.f32.mxu0 0.0
    %4687 = vmatmul.mubr.f32.gmra.mrb[0].mxu0 %v1922
    %v4688 = vpop.f32.mrb[0].mxu0
    %v4689 = vadd.f32 %v1748, %v4688
    %v4690 = vpop.f32.mrb[0].mxu0
    %v4691 = vadd.f32 %v1752, %v4690
    %4692 = vdwg.mxu0
    %4693 = vmatprep.subr.mxu0 %v1400
    %4694 = vmatpush1.msra.mxu0 %v1399
    %4695 = vmatprep.subr.mxu0 0.0
    %4696 = vmatpush1.msra.mxu0 0.0
    %4697 = vmatprep.subr.mxu0 0.0
    %4698 = vmatpush1.msra.mxu0 0.0
    %4699 = vmatprep.subr.mxu0 0.0
    %4700 = vmatpush1.msra.mxu0 0.0
    %4701 = vmatprep.subr.mxu0 0.0
    %4702 = vmatpush1.msra.mxu0 0.0
    %4703 = vmatprep.subr.mxu0 0.0
    %4704 = vmatpush1.msra.mxu0 0.0
    %4705 = vmatprep.subr.mxu0 0.0
    %4706 = vmatpush1.msra.mxu0 0.0
    %4707 = vmatprep.subr.mxu0 0.0
    %4708 = vmatpush1.msra.mxu0 0.0
    %4709 = vmatprep.subr.mxu0 0.0
    %4710 = vmatpush1.msra.mxu0 0.0
    %4711 = vmatprep.subr.mxu0 0.0
    %4712 = vmatpush1.msra.mxu0 0.0
    %4713 = vmatprep.subr.mxu0 0.0
    %4714 = vmatpush1.msra.mxu0 0.0
    %4715 = vmatprep.subr.mxu0 0.0
    %4716 = vmatpush1.msra.mxu0 0.0
    %4717 = vmatprep.subr.mxu0 0.0
    %4718 = vmatpush1.msra.mxu0 0.0
    %4719 = vmatprep.subr.mxu0 0.0
    %4720 = vmatpush1.msra.mxu0 0.0
    %4721 = vmatprep.subr.mxu0 0.0
    %4722 = vmatpush1.msra.mxu0 0.0
    %4723 = vmatprep.subr.mxu0 0.0
    %4724 = vmatpush1.msra.mxu0 0.0
    %4725 = vmatprep.subr.mxu0 0.0
    %4726 = vmatpush1.msra.mxu0 0.0
    %4727 = vmatprep.subr.mxu0 0.0
    %4728 = vmatpush1.msra.mxu0 0.0
    %4729 = vmatprep.subr.mxu0 0.0
    %4730 = vmatpush1.msra.mxu0 0.0
    %4731 = vmatprep.subr.mxu0 0.0
    %4732 = vmatpush1.msra.mxu0 0.0
    %4733 = vmatprep.subr.mxu0 0.0
    %4734 = vmatpush1.msra.mxu0 0.0
    %4735 = vmatprep.subr.mxu0 0.0
    %4736 = vmatpush1.msra.mxu0 0.0
    %4737 = vmatprep.subr.mxu0 0.0
    %4738 = vmatpush1.msra.mxu0 0.0
    %4739 = vmatprep.subr.mxu0 0.0
    %4740 = vmatpush1.msra.mxu0 0.0
    %4741 = vmatprep.subr.mxu0 0.0
    %4742 = vmatpush1.msra.mxu0 0.0
    %4743 = vmatprep.subr.mxu0 0.0
    %4744 = vmatpush1.msra.mxu0 0.0
    %4745 = vmatprep.subr.mxu0 0.0
    %4746 = vmatpush1.msra.mxu0 0.0
    %4747 = vmatprep.subr.mxu0 0.0
    %4748 = vmatpush1.msra.mxu0 0.0
    %4749 = vmatprep.subr.mxu0 0.0
    %4750 = vmatpush1.msra.mxu0 0.0
    %4751 = vmatprep.subr.mxu0 0.0
    %4752 = vmatpush1.msra.mxu0 0.0
    %4753 = vmatprep.subr.mxu0 0.0
    %4754 = vmatpush1.msra.mxu0 0.0
    %4755 = vmatprep.subr.mxu0 0.0
    %4756 = vmatpush1.msra.mxu0 0.0
    %4757 = vmatprep.mubr.f32.mxu0 0.0
    %4758 = vmatmul.mubr.f32.gmra.mrb[0].mxu0 %v1922
    %v4759 = vpop.f32.mrb[0].mxu0
    %v4760 = vadd.f32 %v1756, %v4759
    %v4761 = vpop.f32.mrb[0].mxu0
    %v4762 = vadd.f32 %v1760, %v4761
    %4763 = vdwg.mxu0
    %4764 = vmatprep.subr.mxu0 %v1402
    %4765 = vmatpush1.msra.mxu0 %v1401
    %4766 = vmatprep.subr.mxu0 0.0
    %4767 = vmatpush1.msra.mxu0 0.0
    %4768 = vmatprep.subr.mxu0 0.0
    %4769 = vmatpush1.msra.mxu0 0.0
    %4770 = vmatprep.subr.mxu0 0.0
    %4771 = vmatpush1.msra.mxu0 0.0
    %4772 = vmatprep.subr.mxu0 0.0
    %4773 = vmatpush1.msra.mxu0 0.0
    %4774 = vmatprep.subr.mxu0 0.0
    %4775 = vmatpush1.msra.mxu0 0.0
    %4776 = vmatprep.subr.mxu0 0.0
    %4777 = vmatpush1.msra.mxu0 0.0
    %4778 = vmatprep.subr.mxu0 0.0
    %4779 = vmatpush1.msra.mxu0 0.0
    %4780 = vmatprep.subr.mxu0 0.0
    %4781 = vmatpush1.msra.mxu0 0.0
    %4782 = vmatprep.subr.mxu0 0.0
    %4783 = vmatpush1.msra.mxu0 0.0
    %4784 = vmatprep.subr.mxu0 0.0
    %4785 = vmatpush1.msra.mxu0 0.0
    %4786 = vmatprep.subr.mxu0 0.0
    %4787 = vmatpush1.msra.mxu0 0.0
    %4788 = vmatprep.subr.mxu0 0.0
    %4789 = vmatpush1.msra.mxu0 0.0
    %4790 = vmatprep.subr.mxu0 0.0
    %4791 = vmatpush1.msra.mxu0 0.0
    %4792 = vmatprep.subr.mxu0 0.0
    %4793 = vmatpush1.msra.mxu0 0.0
    %4794 = vmatprep.subr.mxu0 0.0
    %4795 = vmatpush1.msra.mxu0 0.0
    %4796 = vmatprep.subr.mxu0 0.0
    %4797 = vmatpush1.msra.mxu0 0.0
    %4798 = vmatprep.subr.mxu0 0.0
    %4799 = vmatpush1.msra.mxu0 0.0
    %4800 = vmatprep.subr.mxu0 0.0
    %4801 = vmatpush1.msra.mxu0 0.0
    %4802 = vmatprep.subr.mxu0 0.0
    %4803 = vmatpush1.msra.mxu0 0.0
    %4804 = vmatprep.subr.mxu0 0.0
    %4805 = vmatpush1.msra.mxu0 0.0
    %4806 = vmatprep.subr.mxu0 0.0
    %4807 = vmatpush1.msra.mxu0 0.0
    %4808 = vmatprep.subr.mxu0 0.0
    %4809 = vmatpush1.msra.mxu0 0.0
    %4810 = vmatprep.subr.mxu0 0.0
    %4811 = vmatpush1.msra.mxu0 0.0
    %4812 = vmatprep.subr.mxu0 0.0
    %4813 = vmatpush1.msra.mxu0 0.0
    %4814 = vmatprep.subr.mxu0 0.0
    %4815 = vmatpush1.msra.mxu0 0.0
    %4816 = vmatprep.subr.mxu0 0.0
    %4817 = vmatpush1.msra.mxu0 0.0
    %4818 = vmatprep.subr.mxu0 0.0
    %4819 = vmatpush1.msra.mxu0 0.0
    %4820 = vmatprep.subr.mxu0 0.0
    %4821 = vmatpush1.msra.mxu0 0.0
    %4822 = vmatprep.subr.mxu0 0.0
    %4823 = vmatpush1.msra.mxu0 0.0
    %4824 = vmatprep.subr.mxu0 0.0
    %4825 = vmatpush1.msra.mxu0 0.0
    %4826 = vmatprep.subr.mxu0 0.0
    %4827 = vmatpush1.msra.mxu0 0.0
    %4828 = vmatprep.mubr.f32.mxu0 0.0
    %4829 = vmatmul.mubr.f32.gmra.mrb[0].mxu0 %v1922
    %v4830 = vpop.f32.mrb[0].mxu0
    %v4831 = vadd.f32 %v1764, %v4830
    %v4832 = vpop.f32.mrb[0].mxu0
    %v4833 = vadd.f32 %v1768, %v4832
    %4834 = vdwg.mxu0
    %4835 = vmatprep.subr.mxu0 %v1404
    %4836 = vmatpush1.msra.mxu0 %v1403
    %4837 = vmatprep.subr.mxu0 0.0
    %4838 = vmatpush1.msra.mxu0 0.0
    %4839 = vmatprep.subr.mxu0 0.0
    %4840 = vmatpush1.msra.mxu0 0.0
    %4841 = vmatprep.subr.mxu0 0.0
    %4842 = vmatpush1.msra.mxu0 0.0
    %4843 = vmatprep.subr.mxu0 0.0
    %4844 = vmatpush1.msra.mxu0 0.0
    %4845 = vmatprep.subr.mxu0 0.0
    %4846 = vmatpush1.msra.mxu0 0.0
    %4847 = vmatprep.subr.mxu0 0.0
    %4848 = vmatpush1.msra.mxu0 0.0
    %4849 = vmatprep.subr.mxu0 0.0
    %4850 = vmatpush1.msra.mxu0 0.0
    %4851 = vmatprep.subr.mxu0 0.0
    %4852 = vmatpush1.msra.mxu0 0.0
    %4853 = vmatprep.subr.mxu0 0.0
    %4854 = vmatpush1.msra.mxu0 0.0
    %4855 = vmatprep.subr.mxu0 0.0
    %4856 = vmatpush1.msra.mxu0 0.0
    %4857 = vmatprep.subr.mxu0 0.0
    %4858 = vmatpush1.msra.mxu0 0.0
    %4859 = vmatprep.subr.mxu0 0.0
    %4860 = vmatpush1.msra.mxu0 0.0
    %4861 = vmatprep.subr.mxu0 0.0
    %4862 = vmatpush1.msra.mxu0 0.0
    %4863 = vmatprep.subr.mxu0 0.0
    %4864 = vmatpush1.msra.mxu0 0.0
    %4865 = vmatprep.subr.mxu0 0.0
    %4866 = vmatpush1.msra.mxu0 0.0
    %4867 = vmatprep.subr.mxu0 0.0
    %4868 = vmatpush1.msra.mxu0 0.0
    %4869 = vmatprep.subr.mxu0 0.0
    %4870 = vmatpush1.msra.mxu0 0.0
    %4871 = vmatprep.subr.mxu0 0.0
    %4872 = vmatpush1.msra.mxu0 0.0
    %4873 = vmatprep.subr.mxu0 0.0
    %4874 = vmatpush1.msra.mxu0 0.0
    %4875 = vmatprep.subr.mxu0 0.0
    %4876 = vmatpush1.msra.mxu0 0.0
    %4877 = vmatprep.subr.mxu0 0.0
    %4878 = vmatpush1.msra.mxu0 0.0
    %4879 = vmatprep.subr.mxu0 0.0
    %4880 = vmatpush1.msra.mxu0 0.0
    %4881 = vmatprep.subr.mxu0 0.0
    %4882 = vmatpush1.msra.mxu0 0.0
    %4883 = vmatprep.subr.mxu0 0.0
    %4884 = vmatpush1.msra.mxu0 0.0
    %4885 = vmatprep.subr.mxu0 0.0
    %4886 = vmatpush1.msra.mxu0 0.0
    %4887 = vmatprep.subr.mxu0 0.0
    %4888 = vmatpush1.msra.mxu0 0.0
    %4889 = vmatprep.subr.mxu0 0.0
    %4890 = vmatpush1.msra.mxu0 0.0
    %4891 = vmatprep.subr.mxu0 0.0
    %4892 = vmatpush1.msra.mxu0 0.0
    %4893 = vmatprep.subr.mxu0 0.0
    %4894 = vmatpush1.msra.mxu0 0.0
    %4895 = vmatprep.subr.mxu0 0.0
    %4896 = vmatpush1.msra.mxu0 0.0
    %4897 = vmatprep.subr.mxu0 0.0
    %4898 = vmatpush1.msra.mxu0 0.0
    %4899 = vmatprep.mubr.f32.mxu0 0.0
    %4900 = vmatmul.mubr.f32.gmra.mrb[0].mxu0 %v1922
    %v4901 = vpop.f32.mrb[0].mxu0
    %v4902 = vadd.f32 %v1772, %v4901
    %v4903 = vpop.f32.mrb[0].mxu0
    %v4904 = vadd.f32 %v1776, %v4903
    %4905 = vdwg.mxu0
    %4906 = vmatprep.subr.mxu0 %v1406
    %4907 = vmatpush1.msra.mxu0 %v1405
    %4908 = vmatprep.subr.mxu0 0.0
    %4909 = vmatpush1.msra.mxu0 0.0
    %4910 = vmatprep.subr.mxu0 0.0
    %4911 = vmatpush1.msra.mxu0 0.0
    %4912 = vmatprep.subr.mxu0 0.0
    %4913 = vmatpush1.msra.mxu0 0.0
    %4914 = vmatprep.subr.mxu0 0.0
    %4915 = vmatpush1.msra.mxu0 0.0
    %4916 = vmatprep.subr.mxu0 0.0
    %4917 = vmatpush1.msra.mxu0 0.0
    %4918 = vmatprep.subr.mxu0 0.0
    %4919 = vmatpush1.msra.mxu0 0.0
    %4920 = vmatprep.subr.mxu0 0.0
    %4921 = vmatpush1.msra.mxu0 0.0
    %4922 = vmatprep.subr.mxu0 0.0
    %4923 = vmatpush1.msra.mxu0 0.0
    %4924 = vmatprep.subr.mxu0 0.0
    %4925 = vmatpush1.msra.mxu0 0.0
    %4926 = vmatprep.subr.mxu0 0.0
    %4927 = vmatpush1.msra.mxu0 0.0
    %4928 = vmatprep.subr.mxu0 0.0
    %4929 = vmatpush1.msra.mxu0 0.0
    %4930 = vmatprep.subr.mxu0 0.0
    %4931 = vmatpush1.msra.mxu0 0.0
    %4932 = vmatprep.subr.mxu0 0.0
    %4933 = vmatpush1.msra.mxu0 0.0
    %4934 = vmatprep.subr.mxu0 0.0
    %4935 = vmatpush1.msra.mxu0 0.0
    %4936 = vmatprep.subr.mxu0 0.0
    %4937 = vmatpush1.msra.mxu0 0.0
    %4938 = vmatprep.subr.mxu0 0.0
    %4939 = vmatpush1.msra.mxu0 0.0
    %4940 = vmatprep.subr.mxu0 0.0
    %4941 = vmatpush1.msra.mxu0 0.0
    %4942 = vmatprep.subr.mxu0 0.0
    %4943 = vmatpush1.msra.mxu0 0.0
    %4944 = vmatprep.subr.mxu0 0.0
    %4945 = vmatpush1.msra.mxu0 0.0
    %4946 = vmatprep.subr.mxu0 0.0
    %4947 = vmatpush1.msra.mxu0 0.0
    %4948 = vmatprep.subr.mxu0 0.0
    %4949 = vmatpush1.msra.mxu0 0.0
    %4950 = vmatprep.subr.mxu0 0.0
    %4951 = vmatpush1.msra.mxu0 0.0
    %4952 = vmatprep.subr.mxu0 0.0
    %4953 = vmatpush1.msra.mxu0 0.0
    %4954 = vmatprep.subr.mxu0 0.0
    %4955 = vmatpush1.msra.mxu0 0.0
    %4956 = vmatprep.subr.mxu0 0.0
    %4957 = vmatpush1.msra.mxu0 0.0
    %4958 = vmatprep.subr.mxu0 0.0
    %4959 = vmatpush1.msra.mxu0 0.0
    %4960 = vmatprep.subr.mxu0 0.0
    %4961 = vmatpush1.msra.mxu0 0.0
    %4962 = vmatprep.subr.mxu0 0.0
    %4963 = vmatpush1.msra.mxu0 0.0
    %4964 = vmatprep.subr.mxu0 0.0
    %4965 = vmatpush1.msra.mxu0 0.0
    %4966 = vmatprep.subr.mxu0 0.0
    %4967 = vmatpush1.msra.mxu0 0.0
    %4968 = vmatprep.subr.mxu0 0.0
    %4969 = vmatpush1.msra.mxu0 0.0
    %4970 = vmatprep.mubr.f32.mxu0 0.0
    %4971 = vmatmul.mubr.f32.gmra.mrb[0].mxu0 %v1922
    %v4972 = vpop.f32.mrb[0].mxu0
    %v4973 = vadd.f32 %v1780, %v4972
    %v4974 = vpop.f32.mrb[0].mxu0
    %v4975 = vadd.f32 %v1784, %v4974
    %4976 = vdwg.mxu0
    %4977 = vmatprep.subr.mxu0 %v1408
    %4978 = vmatpush1.msra.mxu0 %v1407
    %4979 = vmatprep.subr.mxu0 0.0
    %4980 = vmatpush1.msra.mxu0 0.0
    %4981 = vmatprep.subr.mxu0 0.0
    %4982 = vmatpush1.msra.mxu0 0.0
    %4983 = vmatprep.subr.mxu0 0.0
    %4984 = vmatpush1.msra.mxu0 0.0
    %4985 = vmatprep.subr.mxu0 0.0
    %4986 = vmatpush1.msra.mxu0 0.0
    %4987 = vmatprep.subr.mxu0 0.0
    %4988 = vmatpush1.msra.mxu0 0.0
    %4989 = vmatprep.subr.mxu0 0.0
    %4990 = vmatpush1.msra.mxu0 0.0
    %4991 = vmatprep.subr.mxu0 0.0
    %4992 = vmatpush1.msra.mxu0 0.0
    %4993 = vmatprep.subr.mxu0 0.0
    %4994 = vmatpush1.msra.mxu0 0.0
    %4995 = vmatprep.subr.mxu0 0.0
    %4996 = vmatpush1.msra.mxu0 0.0
    %4997 = vmatprep.subr.mxu0 0.0
    %4998 = vmatpush1.msra.mxu0 0.0
    %4999 = vmatprep.subr.mxu0 0.0
    %5000 = vmatpush1.msra.mxu0 0.0
    %5001 = vmatprep.subr.mxu0 0.0
    %5002 = vmatpush1.msra.mxu0 0.0
    %5003 = vmatprep.subr.mxu0 0.0
    %5004 = vmatpush1.msra.mxu0 0.0
    %5005 = vmatprep.subr.mxu0 0.0
    %5006 = vmatpush1.msra.mxu0 0.0
    %5007 = vmatprep.subr.mxu0 0.0
    %5008 = vmatpush1.msra.mxu0 0.0
    %5009 = vmatprep.subr.mxu0 0.0
    %5010 = vmatpush1.msra.mxu0 0.0
    %5011 = vmatprep.subr.mxu0 0.0
    %5012 = vmatpush1.msra.mxu0 0.0
    %5013 = vmatprep.subr.mxu0 0.0
    %5014 = vmatpush1.msra.mxu0 0.0
    %5015 = vmatprep.subr.mxu0 0.0
    %5016 = vmatpush1.msra.mxu0 0.0
    %5017 = vmatprep.subr.mxu0 0.0
    %5018 = vmatpush1.msra.mxu0 0.0
    %5019 = vmatprep.subr.mxu0 0.0
    %5020 = vmatpush1.msra.mxu0 0.0
    %5021 = vmatprep.subr.mxu0 0.0
    %5022 = vmatpush1.msra.mxu0 0.0
    %5023 = vmatprep.subr.mxu0 0.0
    %5024 = vmatpush1.msra.mxu0 0.0
    %5025 = vmatprep.subr.mxu0 0.0
    %5026 = vmatpush1.msra.mxu0 0.0
    %5027 = vmatprep.subr.mxu0 0.0
    %5028 = vmatpush1.msra.mxu0 0.0
    %5029 = vmatprep.subr.mxu0 0.0
    %5030 = vmatpush1.msra.mxu0 0.0
    %5031 = vmatprep.subr.mxu0 0.0
    %5032 = vmatpush1.msra.mxu0 0.0
    %5033 = vmatprep.subr.mxu0 0.0
    %5034 = vmatpush1.msra.mxu0 0.0
    %5035 = vmatprep.subr.mxu0 0.0
    %5036 = vmatpush1.msra.mxu0 0.0
    %5037 = vmatprep.subr.mxu0 0.0
    %5038 = vmatpush1.msra.mxu0 0.0
    %5039 = vmatprep.subr.mxu0 0.0
    %5040 = vmatpush1.msra.mxu0 0.0
    %5041 = vmatprep.mubr.f32.mxu0 0.0
    %5042 = vmatmul.mubr.f32.gmra.mrb[0].mxu0 %v1922
    %v5043 = vpop.f32.mrb[0].mxu0
    %v5044 = vadd.f32 %v1788, %v5043
    %v5045 = vpop.f32.mrb[0].mxu0
    %v5046 = vadd.f32 %v1792, %v5045
    %5047 = vdwg.mxu0
    %5048 = vmatprep.subr.mxu0 %v1410
    %5049 = vmatpush1.msra.mxu0 %v1409
    %5050 = vmatprep.subr.mxu0 0.0
    %5051 = vmatpush1.msra.mxu0 0.0
    %5052 = vmatprep.subr.mxu0 0.0
    %5053 = vmatpush1.msra.mxu0 0.0
    %5054 = vmatprep.subr.mxu0 0.0
    %5055 = vmatpush1.msra.mxu0 0.0
    %5056 = vmatprep.subr.mxu0 0.0
    %5057 = vmatpush1.msra.mxu0 0.0
    %5058 = vmatprep.subr.mxu0 0.0
    %5059 = vmatpush1.msra.mxu0 0.0
    %5060 = vmatprep.subr.mxu0 0.0
    %5061 = vmatpush1.msra.mxu0 0.0
    %5062 = vmatprep.subr.mxu0 0.0
    %5063 = vmatpush1.msra.mxu0 0.0
    %5064 = vmatprep.subr.mxu0 0.0
    %5065 = vmatpush1.msra.mxu0 0.0
    %5066 = vmatprep.subr.mxu0 0.0
    %5067 = vmatpush1.msra.mxu0 0.0
    %5068 = vmatprep.subr.mxu0 0.0
    %5069 = vmatpush1.msra.mxu0 0.0
    %5070 = vmatprep.subr.mxu0 0.0
    %5071 = vmatpush1.msra.mxu0 0.0
    %5072 = vmatprep.subr.mxu0 0.0
    %5073 = vmatpush1.msra.mxu0 0.0
    %5074 = vmatprep.subr.mxu0 0.0
    %5075 = vmatpush1.msra.mxu0 0.0
    %5076 = vmatprep.subr.mxu0 0.0
    %5077 = vmatpush1.msra.mxu0 0.0
    %5078 = vmatprep.subr.mxu0 0.0
    %5079 = vmatpush1.msra.mxu0 0.0
    %5080 = vmatprep.subr.mxu0 0.0
    %5081 = vmatpush1.msra.mxu0 0.0
    %5082 = vmatprep.subr.mxu0 0.0
    %5083 = vmatpush1.msra.mxu0 0.0
    %5084 = vmatprep.subr.mxu0 0.0
    %5085 = vmatpush1.msra.mxu0 0.0
    %5086 = vmatprep.subr.mxu0 0.0
    %5087 = vmatpush1.msra.mxu0 0.0
    %5088 = vmatprep.subr.mxu0 0.0
    %5089 = vmatpush1.msra.mxu0 0.0
    %5090 = vmatprep.subr.mxu0 0.0
    %5091 = vmatpush1.msra.mxu0 0.0
    %5092 = vmatprep.subr.mxu0 0.0
    %5093 = vmatpush1.msra.mxu0 0.0
    %5094 = vmatprep.subr.mxu0 0.0
    %5095 = vmatpush1.msra.mxu0 0.0
    %5096 = vmatprep.subr.mxu0 0.0
    %5097 = vmatpush1.msra.mxu0 0.0
    %5098 = vmatprep.subr.mxu0 0.0
    %5099 = vmatpush1.msra.mxu0 0.0
    %5100 = vmatprep.subr.mxu0 0.0
    %5101 = vmatpush1.msra.mxu0 0.0
    %5102 = vmatprep.subr.mxu0 0.0
    %5103 = vmatpush1.msra.mxu0 0.0
    %5104 = vmatprep.subr.mxu0 0.0
    %5105 = vmatpush1.msra.mxu0 0.0
    %5106 = vmatprep.subr.mxu0 0.0
    %5107 = vmatpush1.msra.mxu0 0.0
    %5108 = vmatprep.subr.mxu0 0.0
    %5109 = vmatpush1.msra.mxu0 0.0
    %5110 = vmatprep.subr.mxu0 0.0
    %5111 = vmatpush1.msra.mxu0 0.0
    %5112 = vmatprep.mubr.f32.mxu0 0.0
    %5113 = vmatmul.mubr.f32.gmra.mrb[0].mxu0 %v1922
    %v5114 = vpop.f32.mrb[0].mxu0
    %v5115 = vadd.f32 %v1796, %v5114
    %v5116 = vpop.f32.mrb[0].mxu0
    %v5117 = vadd.f32 %v1800, %v5116
    %5118 = vdwg.mxu0
    %5119 = vmatprep.subr.mxu0 %v1412
    %5120 = vmatpush1.msra.mxu0 %v1411
    %5121 = vmatprep.subr.mxu0 0.0
    %5122 = vmatpush1.msra.mxu0 0.0
    %5123 = vmatprep.subr.mxu0 0.0
    %5124 = vmatpush1.msra.mxu0 0.0
    %5125 = vmatprep.subr.mxu0 0.0
    %5126 = vmatpush1.msra.mxu0 0.0
    %5127 = vmatprep.subr.mxu0 0.0
    %5128 = vmatpush1.msra.mxu0 0.0
    %5129 = vmatprep.subr.mxu0 0.0
    %5130 = vmatpush1.msra.mxu0 0.0
    %5131 = vmatprep.subr.mxu0 0.0
    %5132 = vmatpush1.msra.mxu0 0.0
    %5133 = vmatprep.subr.mxu0 0.0
    %5134 = vmatpush1.msra.mxu0 0.0
    %5135 = vmatprep.subr.mxu0 0.0
    %5136 = vmatpush1.msra.mxu0 0.0
    %5137 = vmatprep.subr.mxu0 0.0
    %5138 = vmatpush1.msra.mxu0 0.0
    %5139 = vmatprep.subr.mxu0 0.0
    %5140 = vmatpush1.msra.mxu0 0.0
    %5141 = vmatprep.subr.mxu0 0.0
    %5142 = vmatpush1.msra.mxu0 0.0
    %5143 = vmatprep.subr.mxu0 0.0
    %5144 = vmatpush1.msra.mxu0 0.0
    %5145 = vmatprep.subr.mxu0 0.0
    %5146 = vmatpush1.msra.mxu0 0.0
    %5147 = vmatprep.subr.mxu0 0.0
    %5148 = vmatpush1.msra.mxu0 0.0
    %5149 = vmatprep.subr.mxu0 0.0
    %5150 = vmatpush1.msra.mxu0 0.0
    %5151 = vmatprep.subr.mxu0 0.0
    %5152 = vmatpush1.msra.mxu0 0.0
    %5153 = vmatprep.subr.mxu0 0.0
    %5154 = vmatpush1.msra.mxu0 0.0
    %5155 = vmatprep.subr.mxu0 0.0
    %5156 = vmatpush1.msra.mxu0 0.0
    %5157 = vmatprep.subr.mxu0 0.0
    %5158 = vmatpush1.msra.mxu0 0.0
    %5159 = vmatprep.subr.mxu0 0.0
    %5160 = vmatpush1.msra.mxu0 0.0
    %5161 = vmatprep.subr.mxu0 0.0
    %5162 = vmatpush1.msra.mxu0 0.0
    %5163 = vmatprep.subr.mxu0 0.0
    %5164 = vmatpush1.msra.mxu0 0.0
    %5165 = vmatprep.subr.mxu0 0.0
    %5166 = vmatpush1.msra.mxu0 0.0
    %5167 = vmatprep.subr.mxu0 0.0
    %5168 = vmatpush1.msra.mxu0 0.0
    %5169 = vmatprep.subr.mxu0 0.0
    %5170 = vmatpush1.msra.mxu0 0.0
    %5171 = vmatprep.subr.mxu0 0.0
    %5172 = vmatpush1.msra.mxu0 0.0
    %5173 = vmatprep.subr.mxu0 0.0
    %5174 = vmatpush1.msra.mxu0 0.0
    %5175 = vmatprep.subr.mxu0 0.0
    %5176 = vmatpush1.msra.mxu0 0.0
    %5177 = vmatprep.subr.mxu0 0.0
    %5178 = vmatpush1.msra.mxu0 0.0
    %5179 = vmatprep.subr.mxu0 0.0
    %5180 = vmatpush1.msra.mxu0 0.0
    %5181 = vmatprep.subr.mxu0 0.0
    %5182 = vmatpush1.msra.mxu0 0.0
    %5183 = vmatprep.mubr.f32.mxu0 0.0
    %5184 = vmatmul.mubr.f32.gmra.mrb[0].mxu0 %v1922
    %v5185 = vpop.f32.mrb[0].mxu0
    %v5186 = vadd.f32 %v1804, %v5185
    %v5187 = vpop.f32.mrb[0].mxu0
    %v5188 = vadd.f32 %v1808, %v5187
    %5189 = vdwg.mxu0
    %5190 = vmatprep.subr.mxu0 %v1414
    %5191 = vmatpush1.msra.mxu0 %v1413
    %5192 = vmatprep.subr.mxu0 0.0
    %5193 = vmatpush1.msra.mxu0 0.0
    %5194 = vmatprep.subr.mxu0 0.0
    %5195 = vmatpush1.msra.mxu0 0.0
    %5196 = vmatprep.subr.mxu0 0.0
    %5197 = vmatpush1.msra.mxu0 0.0
    %5198 = vmatprep.subr.mxu0 0.0
    %5199 = vmatpush1.msra.mxu0 0.0
    %5200 = vmatprep.subr.mxu0 0.0
    %5201 = vmatpush1.msra.mxu0 0.0
    %5202 = vmatprep.subr.mxu0 0.0
    %5203 = vmatpush1.msra.mxu0 0.0
    %5204 = vmatprep.subr.mxu0 0.0
    %5205 = vmatpush1.msra.mxu0 0.0
    %5206 = vmatprep.subr.mxu0 0.0
    %5207 = vmatpush1.msra.mxu0 0.0
    %5208 = vmatprep.subr.mxu0 0.0
    %5209 = vmatpush1.msra.mxu0 0.0
    %5210 = vmatprep.subr.mxu0 0.0
    %5211 = vmatpush1.msra.mxu0 0.0
    %5212 = vmatprep.subr.mxu0 0.0
    %5213 = vmatpush1.msra.mxu0 0.0
    %5214 = vmatprep.subr.mxu0 0.0
    %5215 = vmatpush1.msra.mxu0 0.0
    %5216 = vmatprep.subr.mxu0 0.0
    %5217 = vmatpush1.msra.mxu0 0.0
    %5218 = vmatprep.subr.mxu0 0.0
    %5219 = vmatpush1.msra.mxu0 0.0
    %5220 = vmatprep.subr.mxu0 0.0
    %5221 = vmatpush1.msra.mxu0 0.0
    %5222 = vmatprep.subr.mxu0 0.0
    %5223 = vmatpush1.msra.mxu0 0.0
    %5224 = vmatprep.subr.mxu0 0.0
    %5225 = vmatpush1.msra.mxu0 0.0
    %5226 = vmatprep.subr.mxu0 0.0
    %5227 = vmatpush1.msra.mxu0 0.0
    %5228 = vmatprep.subr.mxu0 0.0
    %5229 = vmatpush1.msra.mxu0 0.0
    %5230 = vmatprep.subr.mxu0 0.0
    %5231 = vmatpush1.msra.mxu0 0.0
    %5232 = vmatprep.subr.mxu0 0.0
    %5233 = vmatpush1.msra.mxu0 0.0
    %5234 = vmatprep.subr.mxu0 0.0
    %5235 = vmatpush1.msra.mxu0 0.0
    %5236 = vmatprep.subr.mxu0 0.0
    %5237 = vmatpush1.msra.mxu0 0.0
    %5238 = vmatprep.subr.mxu0 0.0
    %5239 = vmatpush1.msra.mxu0 0.0
    %5240 = vmatprep.subr.mxu0 0.0
    %5241 = vmatpush1.msra.mxu0 0.0
    %5242 = vmatprep.subr.mxu0 0.0
    %5243 = vmatpush1.msra.mxu0 0.0
    %5244 = vmatprep.subr.mxu0 0.0
    %5245 = vmatpush1.msra.mxu0 0.0
    %5246 = vmatprep.subr.mxu0 0.0
    %5247 = vmatpush1.msra.mxu0 0.0
    %5248 = vmatprep.subr.mxu0 0.0
    %5249 = vmatpush1.msra.mxu0 0.0
    %5250 = vmatprep.subr.mxu0 0.0
    %5251 = vmatpush1.msra.mxu0 0.0
    %5252 = vmatprep.subr.mxu0 0.0
    %5253 = vmatpush1.msra.mxu0 0.0
    %5254 = vmatprep.mubr.f32.mxu0 0.0
    %5255 = vmatmul.mubr.f32.gmra.mrb[0].mxu0 %v1922
    %v5256 = vpop.f32.mrb[0].mxu0
    %v5257 = vadd.f32 %v1812, %v5256
    %v5258 = vpop.f32.mrb[0].mxu0
    %v5259 = vadd.f32 %v1816, %v5258
    %5260 = vdwg.mxu0
    %5261 = vmatprep.subr.mxu0 %v1416
    %5262 = vmatpush1.msra.mxu0 %v1415
    %5263 = vmatprep.subr.mxu0 0.0
    %5264 = vmatpush1.msra.mxu0 0.0
    %5265 = vmatprep.subr.mxu0 0.0
    %5266 = vmatpush1.msra.mxu0 0.0
    %5267 = vmatprep.subr.mxu0 0.0
    %5268 = vmatpush1.msra.mxu0 0.0
    %5269 = vmatprep.subr.mxu0 0.0
    %5270 = vmatpush1.msra.mxu0 0.0
    %5271 = vmatprep.subr.mxu0 0.0
    %5272 = vmatpush1.msra.mxu0 0.0
    %5273 = vmatprep.subr.mxu0 0.0
    %5274 = vmatpush1.msra.mxu0 0.0
    %5275 = vmatprep.subr.mxu0 0.0
    %5276 = vmatpush1.msra.mxu0 0.0
    %5277 = vmatprep.subr.mxu0 0.0
    %5278 = vmatpush1.msra.mxu0 0.0
    %5279 = vmatprep.subr.mxu0 0.0
    %5280 = vmatpush1.msra.mxu0 0.0
    %5281 = vmatprep.subr.mxu0 0.0
    %5282 = vmatpush1.msra.mxu0 0.0
    %5283 = vmatprep.subr.mxu0 0.0
    %5284 = vmatpush1.msra.mxu0 0.0
    %5285 = vmatprep.subr.mxu0 0.0
    %5286 = vmatpush1.msra.mxu0 0.0
    %5287 = vmatprep.subr.mxu0 0.0
    %5288 = vmatpush1.msra.mxu0 0.0
    %5289 = vmatprep.subr.mxu0 0.0
    %5290 = vmatpush1.msra.mxu0 0.0
    %5291 = vmatprep.subr.mxu0 0.0
    %5292 = vmatpush1.msra.mxu0 0.0
    %5293 = vmatprep.subr.mxu0 0.0
    %5294 = vmatpush1.msra.mxu0 0.0
    %5295 = vmatprep.subr.mxu0 0.0
    %5296 = vmatpush1.msra.mxu0 0.0
    %5297 = vmatprep.subr.mxu0 0.0
    %5298 = vmatpush1.msra.mxu0 0.0
    %5299 = vmatprep.subr.mxu0 0.0
    %5300 = vmatpush1.msra.mxu0 0.0
    %5301 = vmatprep.subr.mxu0 0.0
    %5302 = vmatpush1.msra.mxu0 0.0
    %5303 = vmatprep.subr.mxu0 0.0
    %5304 = vmatpush1.msra.mxu0 0.0
    %5305 = vmatprep.subr.mxu0 0.0
    %5306 = vmatpush1.msra.mxu0 0.0
    %5307 = vmatprep.subr.mxu0 0.0
    %5308 = vmatpush1.msra.mxu0 0.0
    %5309 = vmatprep.subr.mxu0 0.0
    %5310 = vmatpush1.msra.mxu0 0.0
    %5311 = vmatprep.subr.mxu0 0.0
    %5312 = vmatpush1.msra.mxu0 0.0
    %5313 = vmatprep.subr.mxu0 0.0
    %5314 = vmatpush1.msra.mxu0 0.0
    %5315 = vmatprep.subr.mxu0 0.0
    %5316 = vmatpush1.msra.mxu0 0.0
    %5317 = vmatprep.subr.mxu0 0.0
    %5318 = vmatpush1.msra.mxu0 0.0
    %5319 = vmatprep.subr.mxu0 0.0
    %5320 = vmatpush1.msra.mxu0 0.0
    %5321 = vmatprep.subr.mxu0 0.0
    %5322 = vmatpush1.msra.mxu0 0.0
    %5323 = vmatprep.subr.mxu0 0.0
    %5324 = vmatpush1.msra.mxu0 0.0
    %5325 = vmatprep.mubr.f32.mxu0 0.0
    %5326 = vmatmul.mubr.f32.gmra.mrb[0].mxu0 %v1922
    %v5327 = vpop.f32.mrb[0].mxu0
    %v5328 = vadd.f32 %v1820, %v5327
    %v5329 = vpop.f32.mrb[0].mxu0
    %v5330 = vadd.f32 %v1824, %v5329
    %5331 = vdwg.mxu0
    %5332 = vst [vmem:[%s10] sm:$0xff] %v1991
    %5333 = vst [vmem:[%s10 + $0x8] sm:$0xff] %v1993
    %5334 = vst [vmem:[%s10 + $0x10] sm:$0xff] %v2062
    %5335 = vst [vmem:[%s10 + $0x18] sm:$0xff] %v2064
    %5336 = vst [vmem:[%s10 + $0x20] sm:$0xff] %v2133
    %5337 = vst [vmem:[%s10 + $0x28] sm:$0xff] %v2135
    %5338 = vst [vmem:[%s10 + $0x30] sm:$0xff] %v2204
    %5339 = vst [vmem:[%s10 + $0x38] sm:$0xff] %v2206
    %5340 = vst [vmem:[%s10 + $0x40] sm:$0xff] %v2275
    %5341 = vst [vmem:[%s10 + $0x48] sm:$0xff] %v2277
    %5342 = vst [vmem:[%s10 + $0x50] sm:$0xff] %v2346
    %5343 = vst [vmem:[%s10 + $0x58] sm:$0xff] %v2348
    %5344 = vst [vmem:[%s10 + $0x60] sm:$0xff] %v2417
    %5345 = vst [vmem:[%s10 + $0x68] sm:$0xff] %v2419
    %5346 = vst [vmem:[%s10 + $0x70] sm:$0xff] %v2488
    %5347 = vst [vmem:[%s10 + $0x78] sm:$0xff] %v2490
    %5348 = vst [vmem:[%s10 + $0x80] sm:$0xff] %v2559
    %5349 = vst [vmem:[%s10 + $0x88] sm:$0xff] %v2561
    %5350 = vst [vmem:[%s10 + $0x90] sm:$0xff] %v2630
    %5351 = vst [vmem:[%s10 + $0x98] sm:$0xff] %v2632
    %5352 = vst [vmem:[%s10 + $0xa0] sm:$0xff] %v2701
    %5353 = vst [vmem:[%s10 + $0xa8] sm:$0xff] %v2703
    %5354 = vst [vmem:[%s10 + $0xb0] sm:$0xff] %v2772
    %5355 = vst [vmem:[%s10 + $0xb8] sm:$0xff] %v2774
    %5356 = vst [vmem:[%s10 + $0xc0] sm:$0xff] %v2843
    %5357 = vst [vmem:[%s10 + $0xc8] sm:$0xff] %v2845
    %5358 = vst [vmem:[%s10 + $0xd0] sm:$0xff] %v2914
    %5359 = vst [vmem:[%s10 + $0xd8] sm:$0xff] %v2916
    %5360 = vst [vmem:[%s10 + $0xe0] sm:$0xff] %v2985
    %5361 = vst [vmem:[%s10 + $0xe8] sm:$0xff] %v2987
    %5362 = vst [vmem:[%s10 + $0xf0] sm:$0xff] %v3056
    %5363 = vst [vmem:[%s10 + $0xf8] sm:$0xff] %v3058
    %5364 = vst [vmem:[%s10 + $0x100] sm:$0xff] %v3127
    %5365 = vst [vmem:[%s10 + $0x108] sm:$0xff] %v3129
    %5366 = vst [vmem:[%s10 + $0x110] sm:$0xff] %v3198
    %5367 = vst [vmem:[%s10 + $0x118] sm:$0xff] %v3200
    %5368 = vst [vmem:[%s10 + $0x120] sm:$0xff] %v3269
    %5369 = vst [vmem:[%s10 + $0x128] sm:$0xff] %v3271
    %5370 = vst [vmem:[%s10 + $0x130] sm:$0xff] %v3340
    %5371 = vst [vmem:[%s10 + $0x138] sm:$0xff] %v3342
    %5372 = vst [vmem:[%s10 + $0x140] sm:$0xff] %v3411
    %5373 = vst [vmem:[%s10 + $0x148] sm:$0xff] %v3413
    %5374 = vst [vmem:[%s10 + $0x150] sm:$0xff] %v3482
    %5375 = vst [vmem:[%s10 + $0x158] sm:$0xff] %v3484
    %5376 = vst [vmem:[%s10 + $0x160] sm:$0xff] %v3553
    %5377 = vst [vmem:[%s10 + $0x168] sm:$0xff] %v3555
    %5378 = vst [vmem:[%s10 + $0x170] sm:$0xff] %v3624
    %5379 = vst [vmem:[%s10 + $0x178] sm:$0xff] %v3626
    %5380 = vst [vmem:[%s10 + $0x180] sm:$0xff] %v3695
    %5381 = vst [vmem:[%s10 + $0x188] sm:$0xff] %v3697
    %5382 = vst [vmem:[%s10 + $0x190] sm:$0xff] %v3766
    %5383 = vst [vmem:[%s10 + $0x198] sm:$0xff] %v3768
    %5384 = vst [vmem:[%s10 + $0x1a0] sm:$0xff] %v3837
    %5385 = vst [vmem:[%s10 + $0x1a8] sm:$0xff] %v3839
    %5386 = vst [vmem:[%s10 + $0x1b0] sm:$0xff] %v3908
    %5387 = vst [vmem:[%s10 + $0x1b8] sm:$0xff] %v3910
    %5388 = vst [vmem:[%s10 + $0x1c0] sm:$0xff] %v3979
    %5389 = vst [vmem:[%s10 + $0x1c8] sm:$0xff] %v3981
    %5390 = vst [vmem:[%s10 + $0x1d0] sm:$0xff] %v4050
    %5391 = vst [vmem:[%s10 + $0x1d8] sm:$0xff] %v4052
    %5392 = vst [vmem:[%s10 + $0x1e0] sm:$0xff] %v4121
    %5393 = vst [vmem:[%s10 + $0x1e8] sm:$0xff] %v4123
    %5394 = vst [vmem:[%s10 + $0x1f0] sm:$0xff] %v4192
    %5395 = vst [vmem:[%s10 + $0x1f8] sm:$0xff] %v4194
    %5396 = vst [vmem:[%s10 + $0x200] sm:$0xff] %v4263
    %5397 = vst [vmem:[%s10 + $0x208] sm:$0xff] %v4265
    %5398 = vst [vmem:[%s10 + $0x210] sm:$0xff] %v4334
    %5399 = vst [vmem:[%s10 + $0x218] sm:$0xff] %v4336
    %5400 = vst [vmem:[%s10 + $0x220] sm:$0xff] %v4405
    %5401 = vst [vmem:[%s10 + $0x228] sm:$0xff] %v4407
    %5402 = vst [vmem:[%s10 + $0x230] sm:$0xff] %v4476
    %5403 = vst [vmem:[%s10 + $0x238] sm:$0xff] %v4478
    %5404 = vst [vmem:[%s10 + $0x240] sm:$0xff] %v4547
    %5405 = vst [vmem:[%s10 + $0x248] sm:$0xff] %v4549
    %5406 = vst [vmem:[%s10 + $0x250] sm:$0xff] %v4618
    %5407 = vst [vmem:[%s10 + $0x258] sm:$0xff] %v4620
    %5408 = vst [vmem:[%s10 + $0x260] sm:$0xff] %v4689
    %5409 = vst [vmem:[%s10 + $0x268] sm:$0xff] %v4691
    %5410 = vst [vmem:[%s10 + $0x270] sm:$0xff] %v4760
    %5411 = vst [vmem:[%s10 + $0x278] sm:$0xff] %v4762
    %5412 = vst [vmem:[%s10 + $0x280] sm:$0xff] %v4831
    %5413 = vst [vmem:[%s10 + $0x288] sm:$0xff] %v4833
    %5414 = vst [vmem:[%s10 + $0x290] sm:$0xff] %v4902
    %5415 = vst [vmem:[%s10 + $0x298] sm:$0xff] %v4904
    %5416 = vst [vmem:[%s10 + $0x2a0] sm:$0xff] %v4973
    %5417 = vst [vmem:[%s10 + $0x2a8] sm:$0xff] %v4975
    %5418 = vst [vmem:[%s10 + $0x2b0] sm:$0xff] %v5044
    %5419 = vst [vmem:[%s10 + $0x2b8] sm:$0xff] %v5046
    %5420 = vst [vmem:[%s10 + $0x2c0] sm:$0xff] %v5115
    %5421 = vst [vmem:[%s10 + $0x2c8] sm:$0xff] %v5117
    %5422 = vst [vmem:[%s10 + $0x2d0] sm:$0xff] %v5186
    %5423 = vst [vmem:[%s10 + $0x2d8] sm:$0xff] %v5188
    %5424 = vst [vmem:[%s10 + $0x2e0] sm:$0xff] %v5257
    %5425 = vst [vmem:[%s10 + $0x2e8] sm:$0xff] %v5259
    %5426 = vst [vmem:[%s10 + $0x2f0] sm:$0xff] %v5328
    %5427 = vst [vmem:[%s10 + $0x2f8] sm:$0xff] %v5330
    // Predicated region
    $region38: #{forward.13} parent=1 // pred_check
      _
    $region39: #{forward.13} parent=1 // pred_check_branch
      %5429 = sbr.rel (0) target = $region41
    $region40: #{forward.13} parent=1 // pred_region
      %s5431 = ssub.s32 128, 128
      %5432 = vsyncadd [#allocation3], %s5431
      %s5434 = sshll.u32 [#allocation2], 4
      %s5435 = int_to_ptr.vmem [resolvable:$true] %s5434
      %5437 = dma.vmem_to_hbm [thread:$0]  %s5435, 128, %s9, [#allocation3]
    $region41: #{forward.13} parent=1 // pred_fallthru
      _
    // Predicated region
    $region42: #{forward.13} parent=1 // pred_check
      _
    $region43: #{forward.13} parent=1 // pred_check_branch
      %5439 = sbr.rel (0) target = $region45
    $region44: #{forward.13} parent=1 // pred_region
      _
    $region45: #{forward.13} parent=1 // pred_fallthru
      _
    // Predicated region
    $region46: #{forward.13} parent=1 // pred_check
      _
    $region47: #{forward.13} parent=1 // pred_check_branch
      %5441 = sbr.rel (0) target = $region49
    $region48: #{forward.13} parent=1 // pred_region
      %5442 = dma.done [#allocation3], 128
    $region49: #{forward.13} parent=1 // pred_fallthru
      _
    // Predicated region
    $region50: #{forward.13} parent=1 // pred_check
      _
    $region51: #{forward.13} parent=1 // pred_check_branch
      %5444 = sbr.rel (0) target = $region53
    $region52: #{forward.13} parent=1 // pred_region
      _
    $region53: #{forward.13} parent=1 // pred_fallthru
      _
    %5445 = vsyncpa [#allocation3], 1

</llo_original>
